<compile_context>
chip_gen: v7x
topology: tpu7x:2x2x1
jax: 0.10.0
libtpu: 0.0.40
codegen_flags: <defaults>
</compile_context>

<pallas_src>
import math
import functools

import numpy as np
import jax
import jax.numpy as jnp
from jax import lax
from jax.experimental import pallas as pl
from jax.experimental.pallas import tpu as pltpu


def _round_up(x, m):
    return ((x + m - 1) // m) * m


def interact_quad_kernel(blk_ref, start_ref, featp_ref, dcoord_ref, pfl_ref,
                         iota_ref, mu_ref, w2_ref, env_ref, *,
                         sigma, hard_cutoff, n_dist, no, w_tot):
    """One grid step = one block of TP sorted/padded pairs scattered into one
    TA-row atom block of the packed (TA, w_tot) environment output."""
    f32 = jnp.float32
    j = pl.program_id(0)

    # Zero the output block on the first pair-step of each atom block.
    @pl.when(start_ref[j] == 1)
    def _init():
        env_ref[...] = jnp.zeros_like(env_ref)

    dc = dcoord_ref[...]                       # (TP, 4): [d, x, y, z]
    d = dc[:, 0:1]
    coord = dc[:, 1:4]
    mu = mu_ref[...]                           # (1, nd)

    # sensitivity: Gaussian in 1/d with cos^2 hard cutoff (padded pairs have
    # d = 2*hard_cutoff -> sensitivity exactly 0).
    inv_d = 1.0 / d
    cut = jnp.where(d < hard_cutoff,
                    jnp.cos((0.5 * math.pi / hard_cutoff) * d) ** 2,
                    jnp.zeros_like(d))
    diff = inv_d - mu
    sense = jnp.exp(-0.5 * (diff * diff) / (sigma * sigma)) * cut   # (TP, nd)

    # geometry factors: unit vector + traceless quadrupole upper triangle.
    rhat = coord * inv_d
    rx = rhat[:, 0:1]
    ry = rhat[:, 1:2]
    rz = rhat[:, 2:3]
    tr = (rx * rx + ry * ry + rz * rz) / 3.0

    # per-pair weighted features T[p,o] = sum_{s,f} sense*feat*W[s,o,f]:
    # one bf16 MXU matmul (f32 accumulation) + nd cheap VPU FMAs; sensitivity
    # slots are packed at stride `no` (no per-channel 128 padding).
    fw = jnp.dot(featp_ref[...], w2_ref[...],
                 preferred_element_type=f32)                        # (TP, nd*no)
    t = sense[:, 0:1] * fw[:, 0:no]
    for s in range(1, n_dist):
        t = t + sense[:, s:s + 1] * fw[:, s * no:(s + 1) * no]

    # 9 geometry channels packed side-by-side at stride `no`; only the total
    # width is padded up to the lane-dense w_tot.  (Concat in f32 — the most
    # robust relayout path — then a single cast; the scatter still runs bf16.)
    geom = (rx, ry, rz, rx * rx - tr, rx * ry, rx * rz, ry * ry - tr, ry * rz)
    pieces = [t] + [g * t for g in geom]
    pad_w = w_tot - 9 * no
    if pad_w > 0:
        pieces.append(jnp.zeros((t.shape[0], pad_w), f32))
    scaled_all = jnp.concatenate(pieces, axis=-1).astype(jnp.bfloat16)  # (TP, w_tot)

    # scatter-add onto the local atom block: one bf16 one-hot matmul (exact for
    # 0/1 one-hot values), f32 accumulation directly into the resident output.
    pf = pfl_ref[...]                           # (1, TP) local atom idx, -1 = pad
    onehot = (iota_ref[...] == pf).astype(jnp.bfloat16)                # (TA, TP)
    env_ref[...] += jnp.dot(onehot, scaled_all, preferred_element_type=f32)


def init_params(key, nf_in, nf_out, n_dist, mind_soft, maxd_soft, hard_cutoff):
    k = jax.random.split(key, 5)
    fan_in = nf_out * nf_in
    fan_out = n_dist * nf_in
    std = math.sqrt(2.0 / (fan_in + fan_out))
    int_weights = std * jax.random.normal(k[0], (n_dist, nf_out, nf_in), jnp.float32)
    std_self = math.sqrt(2.0 / (nf_in + nf_out))
    self_w = std_self * jax.random.normal(k[1], (nf_out, nf_in), jnp.float32)
    bound = 1.0 / math.sqrt(nf_in)
    self_b = jax.random.uniform(k[2], (nf_out,), jnp.float32, -bound, bound)
    vecscales = jax.random.normal(k[3], (nf_out,), jnp.float32)
    quadscales = jax.random.normal(k[4], (nf_out,), jnp.float32)
    mu = jnp.linspace(1.0 / maxd_soft, 1.0 / mind_soft, n_dist).astype(jnp.float32)
    sigma = float((1.0 / mind_soft - 1.0 / maxd_soft) / n_dist)
    return dict(int_weights=int_weights, self_w=self_w, self_b=self_b,
                vecscales=vecscales, quadscales=quadscales, mu=mu,
                sigma=sigma, hard_cutoff=float(hard_cutoff))


def interact_layer_quad_forward(in_features, pair_first, pair_second,
                                dist_pairs, coord_pairs, params, *,
                                pair_block=256, atom_block=256):
    """InteractLayerQuad forward.  The heavy sensitivity-weighted envsum +
    interaction-weight contraction + scatter runs in a single Pallas kernel
    over sorted, atom-blocked pair blocks; the cheap O(A*NO) magnitude /
    self-interaction finalize runs in plain XLA."""
    f32 = jnp.float32
    in_features = in_features.astype(f32)
    A, F = in_features.shape
    P = int(pair_first.shape[0])
    nd, NO, _ = params["int_weights"].shape
    hard = float(params["hard_cutoff"])
    sigma = float(params["sigma"])

    TP = int(pair_block)                 # use 128 on v5e (128x128 MXU), 256 on v6e/v7x
    TA = min(int(atom_block), _round_up(A, 8))
    n_blocks = -(-A // TA)
    W_tot = _round_up(9 * NO, 128)       # lane-dense TOTAL width (channels at stride NO)
    S_max = n_blocks + P // TP           # static upper bound on number of pair steps
    NPAD = S_max * TP

    # ---- parameter layout glue (bf16 weights for the MXU fast path) ----
    # W2[f, s*NO + o] = int_weights[s, o, f]
    w2 = jnp.transpose(params["int_weights"], (2, 0, 1)).reshape(F, nd * NO)
    w2 = w2.astype(jnp.bfloat16)
    mu = params["mu"].reshape(1, nd).astype(f32)
    iota_col = jnp.arange(TA, dtype=jnp.int32).reshape(TA, 1)

    # ---- sort pairs by central atom, bucket into TA-row atom blocks, and pad
    #      each bucket's pair list to a multiple of TP (>= 1 step per block so
    #      every output block gets initialized) ----
    pf = pair_first.astype(jnp.int32)
    ps = pair_second.astype(jnp.int32)
    order = jnp.argsort(pf)
    pf_s = pf[order]
    ps_s = ps[order]
    d_s = dist_pairs.astype(f32)[order]
    c_s = coord_pairs.astype(f32)[order]
    blk = pf_s // TA                                               # (P,)
    cnt = jnp.zeros((n_blocks,), jnp.int32).at[blk].add(1)
    steps_b = jnp.maximum((cnt + TP - 1) // TP, 1)
    soff = jnp.concatenate([jnp.zeros((1,), jnp.int32),
                            jnp.cumsum(steps_b)[:-1].astype(jnp.int32)])
    poff = jnp.concatenate([jnp.zeros((1,), jnp.int32),
                            jnp.cumsum(cnt)[:-1].astype(jnp.int32)])
    rank = jnp.arange(P, dtype=jnp.int32) - poff[blk]
    dest = soff[blk] * TP + rank                                   # unique slot per pair

    # Neighbor-feature gather done here: Pallas TPU has no general dynamic VMEM
    # row gather; the scatter-add stays in-kernel.
    featp = jnp.zeros((NPAD, F), jnp.bfloat16).at[dest].set(
        in_features.astype(jnp.bfloat16)[ps_s])
    dcoord = jnp.zeros((NPAD, 4), f32).at[:, 0].set(2.0 * hard)    # pad d -> cutoff 0
    dcoord = dcoord.at[dest].set(jnp.concatenate([d_s[:, None], c_s], axis=1))
    pfl = jnp.full((NPAD,), -1, jnp.int32).at[dest].set(pf_s - blk * TA)
    pfl = pfl.reshape(1, NPAD)

    step_ids = jnp.arange(S_max, dtype=jnp.int32)
    out_blk = (jnp.searchsorted(soff, step_ids, side="right") - 1).astype(jnp.int32)
    is_start = jnp.zeros((S_max,), jnp.int32).at[soff].set(1)

    kernel = functools.partial(interact_quad_kernel, sigma=sigma,
                               hard_cutoff=hard, n_dist=nd, no=NO, w_tot=W_tot)

    env = pl.pallas_call(
        kernel,
        out_shape=jax.ShapeDtypeStruct((n_blocks * TA, W_tot), f32),
        grid_spec=pltpu.PrefetchScalarGridSpec(
            num_scalar_prefetch=2,
            grid=(S_max,),
            in_specs=[
                pl.BlockSpec((TP, F), lambda j, ob, st: (j, 0)),       # neighbor feats (bf16)
                pl.BlockSpec((TP, 4), lambda j, ob, st: (j, 0)),       # [d, x, y, z]
                pl.BlockSpec((1, TP), lambda j, ob, st: (0, j)),       # local pair_first
                pl.BlockSpec((TA, 1), lambda j, ob, st: (0, 0)),       # atom iota column
                pl.BlockSpec((1, nd), lambda j, ob, st: (0, 0)),       # mu
                pl.BlockSpec((F, nd * NO), lambda j, ob, st: (0, 0)),  # W2 (bf16)
            ],
            out_specs=pl.BlockSpec((TA, W_tot), lambda j, ob, st: (ob[j], 0)),
        ),
        compiler_params=pltpu.CompilerParams(
            dimension_semantics=("arbitrary",),
            vmem_limit_bytes=64 * 1024 * 1024),
    )(out_blk, is_start, featp, dcoord, pfl, iota_col, mu, w2)

    # ---- cheap finalize (magnitudes, scales, self interaction) in XLA ----
    env = env[:A]

    def ch(k):
        return env[:, k * NO:(k + 1) * NO]

    o0 = ch(0)
    v1, v2, v3 = ch(1), ch(2), ch(3)
    q0, q1, q2, q3, q4 = ch(4), ch(5), ch(6), ch(7), ch(8)
    vec = jnp.sqrt(v1 * v1 + v2 * v2 + v3 * v3 + 1e-30) * params["vecscales"][None, :]
    quadfirst = q0 * q0 + q1 * q1 + q2 * q2 + q3 * q3 + q4 * q4
    quad = jnp.sqrt(2.0 * (quadfirst + q0 * q3) + 1e-30) * params["quadscales"][None, :]
    selfpart = jnp.dot(in_features, params["self_w"].T,
                       precision=lax.Precision.HIGHEST) + params["self_b"][None, :]
    return o0 + vec + quad + selfpart


def reference_forward(in_features, pair_first, pair_second, dist_pairs,
                      coord_pairs, params):
    """Pure-JAX replica of InteractLayerQuad.forward for verification."""
    A, F = in_features.shape
    nd, NO, _ = params["int_weights"].shape
    hi = lax.Precision.HIGHEST
    mu = params["mu"]
    sigma = params["sigma"]
    hard = params["hard_cutoff"]

    d = dist_pairs
    cut = jnp.where(d < hard, jnp.cos((0.5 * math.pi / hard) * d) ** 2, 0.0)
    sense_vals = jnp.exp(-0.5 * ((1.0 / d)[:, None] - mu[None, :]) ** 2
                         / sigma ** 2) * cut[:, None]

    def envsum(sense, feat, pf, ps):
        contrib = sense[:, :, None] * feat[ps][:, None, :]
        return jnp.zeros((A, sense.shape[1], F), jnp.float32).at[pf].add(contrib)

    w_rs = jnp.transpose(params["int_weights"], (0, 2, 1)).reshape(nd * F, NO)
    env = envsum(sense_vals, in_features, pair_first, pair_second).reshape(A, nd * F)
    features_out = jnp.dot(env, w_rs, precision=hi)

    rhats = coord_pairs / d[:, None]
    sense_vec = (sense_vals[:, None, :] * rhats[:, :, None]).reshape(-1, nd * 3)
    env_vec = envsum(sense_vec, in_features, pair_first, pair_second).reshape(A * 3, nd * F)
    fo_vec = jnp.dot(env_vec, w_rs, precision=hi).reshape(A, 3, NO)
    fo_vec = jnp.sqrt(jnp.sum(fo_vec ** 2, axis=1) + 1e-30) * params["vecscales"][None, :]

    rhatsquad = rhats[:, :, None] * rhats[:, None, :]
    rhatsquad = (rhatsquad + jnp.transpose(rhatsquad, (0, 2, 1))) / 2.0
    tr = jnp.trace(rhatsquad, axis1=1, axis2=2) / 3.0
    rhatsquad = rhatsquad - tr[:, None, None] * jnp.eye(3, dtype=jnp.float32)[None]
    rhatsqflat = rhatsquad.reshape(-1, 9)[:, np.array([0, 1, 2, 4, 5])]
    sense_quad = (sense_vals[:, None, :] * rhatsqflat[:, :, None]).reshape(-1, nd * 5)
    env_quad = envsum(sense_quad, in_features, pair_first, pair_second).reshape(A * 5, nd * F)
    fo_quad = jnp.dot(env_quad, w_rs, precision=hi).reshape(A, 5, NO)
    quadfirst = jnp.sum(fo_quad ** 2, axis=1)
    quadsecond = fo_quad[:, 0, :] * fo_quad[:, 3, :]
    fo_quad = jnp.sqrt(2.0 * (quadfirst + quadsecond) + 1e-30) * params["quadscales"][None, :]

    selfpart = jnp.dot(in_features, params["self_w"].T, precision=hi) + params["self_b"][None, :]
    return features_out + fo_vec + fo_quad + selfpart


if __name__ == "__main__":
    key = jax.random.PRNGKey(0)

    def run_case(case_key, n_atoms, nf_in, nf_out, n_dist, n_pairs,
                 pair_block, atom_block):
        mind_soft, maxd_soft, hard_cutoff = 0.7, 3.5, 4.0
        kp, kf, kdir, kd, k1, k2 = jax.random.split(case_key, 6)
        params = init_params(kp, nf_in, nf_out, n_dist, mind_soft, maxd_soft, hard_cutoff)

        in_features = jax.random.normal(kf, (n_atoms, nf_in), jnp.float32)
        dirs = jax.random.normal(kdir, (n_pairs, 3), jnp.float32)
        dirs = dirs / jnp.linalg.norm(dirs, axis=1, keepdims=True)
        dist_pairs = jax.random.uniform(kd, (n_pairs,), jnp.float32, minval=0.8, maxval=3.5)
        coord_pairs = dirs * dist_pairs[:, None]
        pair_first = jax.random.randint(k1, (n_pairs,), 0, n_atoms, jnp.int32)
        pair_second = jax.random.randint(k2, (n_pairs,), 0, n_atoms, jnp.int32)

        out = interact_layer_quad_forward(in_features, pair_first, pair_second,
                                          dist_pairs, coord_pairs, params,
                                          pair_block=pair_block, atom_block=atom_block)
        out = jax.block_until_ready(out)
        ref = jax.block_until_ready(
            reference_forward(in_features, pair_first, pair_second,
                              dist_pairs, coord_pairs, params))

        assert out.shape == (n_atoms, nf_out)
        assert bool(jnp.all(jnp.isfinite(out)))
        # bf16 per-pair contributions (f32 accumulation) -> slightly looser tol.
        np.testing.assert_allclose(np.asarray(out), np.asarray(ref),
                                   rtol=5e-2, atol=5e-2)

    ka, kb = jax.random.split(key)
    # Case 1: single atom block / single pair step.
    run_case(ka, n_atoms=16, nf_in=16, nf_out=16, n_dist=8, n_pairs=64,
             pair_block=256, atom_block=256)
    # Case 2: multiple atom blocks, multi-step reduction per block, dummy tail steps.
    run_case(kb, n_atoms=40, nf_in=32, nf_out=32, n_dist=10, n_pairs=500,
             pair_block=128, atom_block=16)

    print("KERNEL_OK")
</pallas_src>

<mosaic_0001>
module attributes {stable_mosaic.version = 11 : i64} {
  func.func @interact_quad_kernel(%arg0: i32, %arg1: memref<1xi32, #tpu.memory_space<smem>>, %arg2: memref<1xi32, #tpu.memory_space<smem>>, %arg3: memref<256x16xbf16, #tpu.memory_space<vmem>>, %arg4: memref<256x4xf32, #tpu.memory_space<vmem>>, %arg5: memref<1x256xi32, #tpu.memory_space<vmem>>, %arg6: memref<16x1xi32, #tpu.memory_space<vmem>>, %arg7: memref<1x8xf32, #tpu.memory_space<vmem>>, %arg8: memref<16x128xbf16, #tpu.memory_space<vmem>>, %arg9: memref<16x256xf32, #tpu.memory_space<vmem>>) attributes {dimension_semantics = [#tpu.dimension_semantics<arbitrary>], iteration_bounds = array<i64: 1>, scalar_prefetch = 2 : i64, scratch_operands = 0 : i64, tpu.core_type = #tpu.core_type<tc>, window_params = [{transform_indices = @transform_0, window_bounds = array<i64: 256, 16>}, {transform_indices = @transform_1, window_bounds = array<i64: 256, 4>}, {transform_indices = @transform_2, window_bounds = array<i64: 1, 256>}, {pipeline_mode = #tpu.pipeline_mode<synchronous>, transform_indices = @transform_3, window_bounds = array<i64: 16, 1>}, {pipeline_mode = #tpu.pipeline_mode<synchronous>, transform_indices = @transform_4, window_bounds = array<i64: 1, 8>}, {pipeline_mode = #tpu.pipeline_mode<synchronous>, transform_indices = @transform_5, window_bounds = array<i64: 16, 128>}, {transform_indices = @transform_6, window_bounds = array<i64: 16, 256>}]} {
    %0 = arith.index_cast %arg0 : i32 to index
    %1 = memref.load %arg2[%0] : memref<1xi32, #tpu.memory_space<smem>>
    %c1_i32 = arith.constant 1 : i32
    %2 = arith.cmpi eq, %1, %c1_i32 : i32
    %3 = arith.extui %2 : i1 to i32
    %c0_i32 = arith.constant 0 : i32
    %4 = arith.cmpi ne, %3, %c0_i32 : i32
    scf.if %4 {
      %cst_24 = arith.constant 0.000000e+00 : f32
      %122 = vector.broadcast %cst_24 : f32 to vector<16x256xf32>
      %c0_25 = arith.constant 0 : index
      %c0_26 = arith.constant 0 : index
      %123 = vector.load %arg9[%c0_25, %c0_26] : memref<16x256xf32, #tpu.memory_space<vmem>>, vector<16x256xf32>
      tpu.vector_store %arg9[%c0_25, %c0_26], %122 {strides = array<i32>} : memref<16x256xf32, #tpu.memory_space<vmem>>, vector<16x256xf32>,
    } else {
    }
    %c0 = arith.constant 0 : index
    %c0_0 = arith.constant 0 : index
    %5 = vector.load %arg4[%c0, %c0_0] : memref<256x4xf32, #tpu.memory_space<vmem>>, vector<256x4xf32>
    %6 = vector.extract_strided_slice %5 {offsets = [0, 0], sizes = [256, 1], strides = [1, 1]} : vector<256x4xf32> to vector<256x1xf32>
    %7 = vector.extract_strided_slice %5 {offsets = [0, 1], sizes = [256, 3], strides = [1, 1]} : vector<256x4xf32> to vector<256x3xf32>
    %c0_1 = arith.constant 0 : index
    %c0_2 = arith.constant 0 : index
    %8 = vector.load %arg7[%c0_1, %c0_2] : memref<1x8xf32, #tpu.memory_space<vmem>>, vector<1x8xf32>
    %cst = arith.constant 1.000000e+00 : f32
    %9 = vector.broadcast %cst : f32 to vector<256x1xf32>
    %10 = arith.divf %9, %6 : vector<256x1xf32>
    %cst_3 = arith.constant 4.000000e+00 : f32
    %11 = vector.broadcast %cst_3 : f32 to vector<256x1xf32>
    %12 = arith.cmpf olt, %6, %11 : vector<256x1xf32>
    %cst_4 = arith.constant 0.392699093 : f32
    %13 = vector.broadcast %cst_4 : f32 to vector<256x1xf32>
    %14 = arith.mulf %13, %6 : vector<256x1xf32>
    %15 = math.cos %14 : vector<256x1xf32>
    %16 = arith.mulf %15, %15 : vector<256x1xf32>
    %cst_5 = arith.constant 0.000000e+00 : f32
    %17 = vector.broadcast %cst_5 : f32 to vector<256x1xf32>
    %18 = arith.select %12, %16, %17 : vector<256x1xi1>, vector<256x1xf32>
    %19 = vector.broadcast %10 : vector<256x1xf32> to vector<256x8xf32>
    %20 = vector.broadcast %8 : vector<1x8xf32> to vector<256x8xf32>
    %21 = arith.subf %19, %20 : vector<256x8xf32>
    %22 = arith.mulf %21, %21 : vector<256x8xf32>
    %cst_6 = arith.constant -5.000000e-01 : f32
    %23 = vector.broadcast %cst_6 : f32 to vector<256x8xf32>
    %24 = arith.mulf %23, %22 : vector<256x8xf32>
    %cst_7 = arith.constant 0.0204081628 : f32
    %25 = vector.broadcast %cst_7 : f32 to vector<256x8xf32>
    %26 = arith.divf %24, %25 : vector<256x8xf32>
    %27 = math.exp %26 : vector<256x8xf32>
    %28 = vector.broadcast %18 : vector<256x1xf32> to vector<256x8xf32>
    %29 = arith.mulf %27, %28 : vector<256x8xf32>
    %30 = vector.broadcast %10 : vector<256x1xf32> to vector<256x3xf32>
    %31 = arith.mulf %7, %30 : vector<256x3xf32>
    %32 = vector.extract_strided_slice %31 {offsets = [0, 0], sizes = [256, 1], strides = [1, 1]} : vector<256x3xf32> to vector<256x1xf32>
    %33 = vector.extract_strided_slice %31 {offsets = [0, 1], sizes = [256, 1], strides = [1, 1]} : vector<256x3xf32> to vector<256x1xf32>
    %34 = vector.extract_strided_slice %31 {offsets = [0, 2], sizes = [256, 1], strides = [1, 1]} : vector<256x3xf32> to vector<256x1xf32>
    %35 = arith.mulf %32, %32 : vector<256x1xf32>
    %36 = arith.mulf %33, %33 : vector<256x1xf32>
    %37 = arith.addf %35, %36 : vector<256x1xf32>
    %38 = arith.mulf %34, %34 : vector<256x1xf32>
    %39 = arith.addf %37, %38 : vector<256x1xf32>
    %cst_8 = arith.constant 3.000000e+00 : f32
    %40 = vector.broadcast %cst_8 : f32 to vector<256x1xf32>
    %41 = arith.divf %39, %40 : vector<256x1xf32>
    %c0_9 = arith.constant 0 : index
    %c0_10 = arith.constant 0 : index
    %42 = vector.load %arg3[%c0_9, %c0_10] : memref<256x16xbf16, #tpu.memory_space<vmem>>, vector<256x16xbf16>
    %c0_11 = arith.constant 0 : index
    %c0_12 = arith.constant 0 : index
    %43 = vector.load %arg8[%c0_11, %c0_12] : memref<16x128xbf16, #tpu.memory_space<vmem>>, vector<16x128xbf16>
    %cst_13 = arith.constant dense<0.000000e+00> : vector<256x128xf32>
    %44 = tpu.matmul %42, %43, %cst_13 {dimension_numbers = #tpu.dot_dimension_numbers<[1], [0], [0], [1], [0, 0, 1, 1], [], []>} : vector<256x16xbf16>, vector<16x128xbf16>, vector<256x128xf32> -> vector<256x128xf32>
    %45 = vector.extract_strided_slice %29 {offsets = [0, 0], sizes = [256, 1], strides = [1, 1]} : vector<256x8xf32> to vector<256x1xf32>
    %46 = vector.extract_strided_slice %44 {offsets = [0, 0], sizes = [256, 16], strides = [1, 1]} : vector<256x128xf32> to vector<256x16xf32>
    %47 = vector.broadcast %45 : vector<256x1xf32> to vector<256x16xf32>
    %48 = arith.mulf %47, %46 : vector<256x16xf32>
    %49 = vector.extract_strided_slice %29 {offsets = [0, 1], sizes = [256, 1], strides = [1, 1]} : vector<256x8xf32> to vector<256x1xf32>
    %50 = vector.extract_strided_slice %44 {offsets = [0, 16], sizes = [256, 16], strides = [1, 1]} : vector<256x128xf32> to vector<256x16xf32>
    %51 = vector.broadcast %49 : vector<256x1xf32> to vector<256x16xf32>
    %52 = arith.mulf %51, %50 : vector<256x16xf32>
    %53 = arith.addf %48, %52 : vector<256x16xf32>
    %54 = vector.extract_strided_slice %29 {offsets = [0, 2], sizes = [256, 1], strides = [1, 1]} : vector<256x8xf32> to vector<256x1xf32>
    %55 = vector.extract_strided_slice %44 {offsets = [0, 32], sizes = [256, 16], strides = [1, 1]} : vector<256x128xf32> to vector<256x16xf32>
    %56 = vector.broadcast %54 : vector<256x1xf32> to vector<256x16xf32>
    %57 = arith.mulf %56, %55 : vector<256x16xf32>
    %58 = arith.addf %53, %57 : vector<256x16xf32>
    %59 = vector.extract_strided_slice %29 {offsets = [0, 3], sizes = [256, 1], strides = [1, 1]} : vector<256x8xf32> to vector<256x1xf32>
    %60 = vector.extract_strided_slice %44 {offsets = [0, 48], sizes = [256, 16], strides = [1, 1]} : vector<256x128xf32> to vector<256x16xf32>
    %61 = vector.broadcast %59 : vector<256x1xf32> to vector<256x16xf32>
    %62 = arith.mulf %61, %60 : vector<256x16xf32>
    %63 = arith.addf %58, %62 : vector<256x16xf32>
    %64 = vector.extract_strided_slice %29 {offsets = [0, 4], sizes = [256, 1], strides = [1, 1]} : vector<256x8xf32> to vector<256x1xf32>
    %65 = vector.extract_strided_slice %44 {offsets = [0, 64], sizes = [256, 16], strides = [1, 1]} : vector<256x128xf32> to vector<256x16xf32>
    %66 = vector.broadcast %64 : vector<256x1xf32> to vector<256x16xf32>
    %67 = arith.mulf %66, %65 : vector<256x16xf32>
    %68 = arith.addf %63, %67 : vector<256x16xf32>
    %69 = vector.extract_strided_slice %29 {offsets = [0, 5], sizes = [256, 1], strides = [1, 1]} : vector<256x8xf32> to vector<256x1xf32>
    %70 = vector.extract_strided_slice %44 {offsets = [0, 80], sizes = [256, 16], strides = [1, 1]} : vector<256x128xf32> to vector<256x16xf32>
    %71 = vector.broadcast %69 : vector<256x1xf32> to vector<256x16xf32>
    %72 = arith.mulf %71, %70 : vector<256x16xf32>
    %73 = arith.addf %68, %72 : vector<256x16xf32>
    %74 = vector.extract_strided_slice %29 {offsets = [0, 6], sizes = [256, 1], strides = [1, 1]} : vector<256x8xf32> to vector<256x1xf32>
    %75 = vector.extract_strided_slice %44 {offsets = [0, 96], sizes = [256, 16], strides = [1, 1]} : vector<256x128xf32> to vector<256x16xf32>
    %76 = vector.broadcast %74 : vector<256x1xf32> to vector<256x16xf32>
    %77 = arith.mulf %76, %75 : vector<256x16xf32>
    %78 = arith.addf %73, %77 : vector<256x16xf32>
    %79 = vector.extract_strided_slice %29 {offsets = [0, 7], sizes = [256, 1], strides = [1, 1]} : vector<256x8xf32> to vector<256x1xf32>
    %80 = vector.extract_strided_slice %44 {offsets = [0, 112], sizes = [256, 16], strides = [1, 1]} : vector<256x128xf32> to vector<256x16xf32>
    %81 = vector.broadcast %79 : vector<256x1xf32> to vector<256x16xf32>
    %82 = arith.mulf %81, %80 : vector<256x16xf32>
    %83 = arith.addf %78, %82 : vector<256x16xf32>
    %84 = arith.mulf %32, %32 : vector<256x1xf32>
    %85 = arith.subf %84, %41 : vector<256x1xf32>
    %86 = arith.mulf %32, %33 : vector<256x1xf32>
    %87 = arith.mulf %32, %34 : vector<256x1xf32>
    %88 = arith.mulf %33, %33 : vector<256x1xf32>
    %89 = arith.subf %88, %41 : vector<256x1xf32>
    %90 = arith.mulf %33, %34 : vector<256x1xf32>
    %91 = vector.broadcast %32 : vector<256x1xf32> to vector<256x16xf32>
    %92 = arith.mulf %91, %83 : vector<256x16xf32>
    %93 = vector.broadcast %33 : vector<256x1xf32> to vector<256x16xf32>
    %94 = arith.mulf %93, %83 : vector<256x16xf32>
    %95 = vector.broadcast %34 : vector<256x1xf32> to vector<256x16xf32>
    %96 = arith.mulf %95, %83 : vector<256x16xf32>
    %97 = vector.broadcast %85 : vector<256x1xf32> to vector<256x16xf32>
    %98 = arith.mulf %97, %83 : vector<256x16xf32>
    %99 = vector.broadcast %86 : vector<256x1xf32> to vector<256x16xf32>
    %100 = arith.mulf %99, %83 : vector<256x16xf32>
    %101 = vector.broadcast %87 : vector<256x1xf32> to vector<256x16xf32>
    %102 = arith.mulf %101, %83 : vector<256x16xf32>
    %103 = vector.broadcast %89 : vector<256x1xf32> to vector<256x16xf32>
    %104 = arith.mulf %103, %83 : vector<256x16xf32>
    %105 = vector.broadcast %90 : vector<256x1xf32> to vector<256x16xf32>
    %106 = arith.mulf %105, %83 : vector<256x16xf32>
    %cst_14 = arith.constant 0.000000e+00 : f32
    %107 = vector.broadcast %cst_14 : f32 to vector<256x112xf32>
    %108 = tpu.concatenate %83, %92, %94, %96, %98, %100, %102, %104, %106, %107 in 1 : vector<256x16xf32>, vector<256x16xf32>, vector<256x16xf32>, vector<256x16xf32>, vector<256x16xf32>, vector<256x16xf32>, vector<256x16xf32>, vector<256x16xf32>, vector<256x16xf32>, vector<256x112xf32> -> vector<256x256xf32>
    %109 = arith.truncf %108 : vector<256x256xf32> to vector<256x256xbf16>
    %c0_15 = arith.constant 0 : index
    %c0_16 = arith.constant 0 : index
    %110 = vector.load %arg5[%c0_15, %c0_16] : memref<1x256xi32, #tpu.memory_space<vmem>>, vector<1x256xi32>
    %c0_17 = arith.constant 0 : index
    %c0_18 = arith.constant 0 : index
    %111 = vector.load %arg6[%c0_17, %c0_18] : memref<16x1xi32, #tpu.memory_space<vmem>>, vector<16x1xi32>
    %112 = vector.broadcast %111 : vector<16x1xi32> to vector<16x256xi32>
    %113 = vector.broadcast %110 : vector<1x256xi32> to vector<16x256xi32>
    %114 = arith.cmpi eq, %112, %113 : vector<16x256xi32>
    %115 = arith.extui %114 : vector<16x256xi1> to vector<16x256xi32>
    %116 = arith.sitofp %115 : vector<16x256xi32> to vector<16x256xf32>
    %117 = arith.truncf %116 : vector<16x256xf32> to vector<16x256xbf16>
    %c0_19 = arith.constant 0 : index
    %c0_20 = arith.constant 0 : index
    %118 = vector.load %arg9[%c0_19, %c0_20] : memref<16x256xf32, #tpu.memory_space<vmem>>, vector<16x256xf32>
    %cst_21 = arith.constant dense<0.000000e+00> : vector<16x256xf32>
    %119 = tpu.matmul %117, %109, %cst_21 {dimension_numbers = #tpu.dot_dimension_numbers<[1], [0], [0], [1], [0, 0, 1, 1], [], []>} : vector<16x256xbf16>, vector<256x256xbf16>, vector<16x256xf32> -> vector<16x256xf32>
    %120 = arith.addf %118, %119 : vector<16x256xf32>
    %c0_22 = arith.constant 0 : index
    %c0_23 = arith.constant 0 : index
    %121 = vector.load %arg9[%c0_22, %c0_23] : memref<16x256xf32, #tpu.memory_space<vmem>>, vector<16x256xf32>
    tpu.vector_store %arg9[%c0_22, %c0_23], %120 {strides = array<i32>} : memref<16x256xf32, #tpu.memory_space<vmem>>, vector<16x256xf32>,
    return
  }
  func.func @transform_0(%arg0: i32, %arg1: memref<1xi32, #tpu.memory_space<smem>>, %arg2: memref<1xi32, #tpu.memory_space<smem>>) -> (i32, i32) {
    %c0_i32 = arith.constant 0 : i32
    %c0_i32_0 = arith.constant 0 : i32
    return %arg0, %c0_i32 : i32, i32
  }
  func.func @transform_1(%arg0: i32, %arg1: memref<1xi32, #tpu.memory_space<smem>>, %arg2: memref<1xi32, #tpu.memory_space<smem>>) -> (i32, i32) {
    %c0_i32 = arith.constant 0 : i32
    %c0_i32_0 = arith.constant 0 : i32
    return %arg0, %c0_i32 : i32, i32
  }
  func.func @transform_2(%arg0: i32, %arg1: memref<1xi32, #tpu.memory_space<smem>>, %arg2: memref<1xi32, #tpu.memory_space<smem>>) -> (i32, i32) {
    %c0_i32 = arith.constant 0 : i32
    %c0_i32_0 = arith.constant 0 : i32
    return %c0_i32, %arg0 : i32, i32
  }
  func.func @transform_3(%arg0: i32, %arg1: memref<1xi32, #tpu.memory_space<smem>>, %arg2: memref<1xi32, #tpu.memory_space<smem>>) -> (i32, i32) {
    %c0_i32 = arith.constant 0 : i32
    %c0_i32_0 = arith.constant 0 : i32
    %c0_i32_1 = arith.constant 0 : i32
    return %c0_i32, %c0_i32_0 : i32, i32
  }
  func.func @transform_4(%arg0: i32, %arg1: memref<1xi32, #tpu.memory_space<smem>>, %arg2: memref<1xi32, #tpu.memory_space<smem>>) -> (i32, i32) {
    %c0_i32 = arith.constant 0 : i32
    %c0_i32_0 = arith.constant 0 : i32
    %c0_i32_1 = arith.constant 0 : i32
    return %c0_i32, %c0_i32_0 : i32, i32
  }
  func.func @transform_5(%arg0: i32, %arg1: memref<1xi32, #tpu.memory_space<smem>>, %arg2: memref<1xi32, #tpu.memory_space<smem>>) -> (i32, i32) {
    %c0_i32 = arith.constant 0 : i32
    %c0_i32_0 = arith.constant 0 : i32
    %c0_i32_1 = arith.constant 0 : i32
    return %c0_i32, %c0_i32_0 : i32, i32
  }
  func.func @transform_6(%arg0: i32, %arg1: memref<1xi32, #tpu.memory_space<smem>>, %arg2: memref<1xi32, #tpu.memory_space<smem>>) -> (i32, i32) {
    %0 = arith.index_cast %arg0 : i32 to index
    %1 = memref.load %arg1[%0] : memref<1xi32, #tpu.memory_space<smem>>
    %c0_i32 = arith.constant 0 : i32
    %c0_i32_0 = arith.constant 0 : i32
    return %1, %c0_i32 : i32, i32
  }
}

</mosaic_0001>

<llo_original>
// kernel: tpu_custom_call.1
$region0: #{tpu_custom_call.1}
  #allocation0 [shape = 'u32[]', space=smem, size = 0x4, offset = 0x4, fixed_abs, tag = 'smem constant byte address 0x4 - core index']
  #allocation1 [shape = 'u32[144,128]{1,0:T(1,128)}', space=vmem, size = 0x12000, scoped, tag = 'internal scratch']
  #allocation2 [shape = 's32[1]{0}', space=sflag, size = 0x4, scoped, tag = 'scoped memory for tpu_custom_call.1']
  #allocation3 [shape = 's32[1]{0:T(128)S(6)}', space=smem, size = 0x200, scoped, tag = 'prefetched SMEM operand 0']
  #allocation4 [shape = 's32[1]{0:T(128)S(6)}', space=smem, size = 0x200, scoped, tag = 'prefetched SMEM operand 1']
  %s0 = inlined_call_operand.<no memory space> [shape: s32[1], index: 0, kind: input, shape index: {}]
  %s1 = inlined_call_operand.<no memory space> [shape: s32[1], index: 1, kind: input, shape index: {}]
  %s2 = inlined_call_operand.hbm [shape: bf16[256,16], index: 2, kind: input, shape index: {}]
  %s3 = inlined_call_operand.hbm [shape: f32[256,4], index: 3, kind: input, shape index: {}]
  %s4 = inlined_call_operand.hbm [shape: s32[1,256], index: 4, kind: input, shape index: {}]
  %s5 = inlined_call_operand.hbm [shape: s32[16,1], index: 5, kind: input, shape index: {}]
  %s6 = inlined_call_operand.hbm [shape: f32[1,8], index: 6, kind: input, shape index: {}]
  %s7 = inlined_call_operand.hbm [shape: bf16[16,128], index: 7, kind: input, shape index: {}]
  %s8 = inlined_call_operand.hbm [shape: f32[16,256], index: 8, kind: output, shape index: {}]
  %s9 = sld [smem:[#allocation0]]
  $region62: #{tpu_custom_call.1} parent=0
    _
  %s11 = ssub.s32 1, %s9
  %s12 = scalar_select 0, %s11, %s9
  %13 = sst [smem:[#allocation3]] %s0
  %14 = sst [smem:[#allocation4]] %s1
  $region1: #{tpu_custom_call.1} parent=0
    #allocation5 [shape = 'u8[65536]{0}', space=vmem, size = 0x10000, scoped, tag = 'input window, operand 2, single buffered']
    #allocation6 [shape = 's32[1]{0}', space=sflag, size = 0x4, scoped, tag = 'scoped memory for tpu_custom_call.1']
    #allocation7 [shape = 's32[1]{0}', space=sflag, size = 0x4, scoped, tag = 'scoped memory for tpu_custom_call.1']
    #allocation8 [shape = 'u8[131072]{0}', space=vmem, size = 0x20000, scoped, tag = 'input window, operand 3, single buffered']
    #allocation9 [shape = 's32[1]{0}', space=sflag, size = 0x4, scoped, tag = 'scoped memory for tpu_custom_call.1']
    #allocation10 [shape = 'u8[1024]{0}', space=vmem, size = 0x400, scoped, tag = 'input window, operand 4, single buffered']
    #allocation11 [shape = 'u8[8192]{0}', space=vmem, size = 0x2000, scoped, tag = 'input window, operand 5, single buffered']
    #allocation12 [shape = 's32[1]{0}', space=sflag, size = 0x4, scoped, tag = 'scoped memory for tpu_custom_call.1']
    #allocation13 [shape = 'u8[512]{0}', space=vmem, size = 0x400, scoped, tag = 'input window, operand 6, single buffered']
    #allocation14 [shape = 'u8[4096]{0}', space=vmem, size = 0x1000, scoped, tag = 'input window, operand 7, single buffered']
    #allocation15 [shape = 's32[1]{0}', space=sflag, size = 0x4, scoped, tag = 'scoped memory for tpu_custom_call.1']
    #allocation16 [shape = 'u8[16384]{0}', space=vmem, size = 0x4000, scoped, tag = 'output window, operand 0, single buffered']
    %15 = vsyncpa [#allocation6], 0
    %16 = vsyncpa [#allocation9], 0
    %17 = vsyncpa [#allocation12], 0
    %18 = vsyncpa [#allocation15], 0
    %19 = vsyncpa [#allocation7], 0
    // Predicated region
    $region2: #{tpu_custom_call.1} parent=1 // pred_check
      _
    $region3: #{tpu_custom_call.1} parent=1 // pred_check_branch
      %21 = sbr.rel (0) target = $region5
    $region4: #{tpu_custom_call.1} parent=1 // pred_region
      %s23 = ssub.s32 2048, 2048
      %24 = vsyncadd [#allocation6], %s23
      %s25 = sshll.u32 [#allocation5], 4
      %s26 = int_to_ptr.vmem [resolvable:$true] %s25
      %31 = dma.hbm_to_vmem [thread:$0]  %s2, 2048, %s26, [#allocation6], 64, 64, 4
    $region5: #{tpu_custom_call.1} parent=1 // pred_fallthru
      _
    // Predicated region
    $region6: #{tpu_custom_call.1} parent=1 // pred_check
      _
    $region7: #{tpu_custom_call.1} parent=1 // pred_check_branch
      %33 = sbr.rel (0) target = $region9
    $region8: #{tpu_custom_call.1} parent=1 // pred_region
      %s35 = ssub.s32 4096, 4096
      %36 = vsyncadd [#allocation9], %s35
      %s37 = sshll.u32 [#allocation8], 4
      %s38 = int_to_ptr.vmem [resolvable:$true] %s37
      %43 = dma.hbm_to_vmem [thread:$0]  %s3, 4096, %s38, [#allocation9], 128, 128, 8
    $region9: #{tpu_custom_call.1} parent=1 // pred_fallthru
      _
    // Predicated region
    $region10: #{tpu_custom_call.1} parent=1 // pred_check
      _
    $region11: #{tpu_custom_call.1} parent=1 // pred_check_branch
      %45 = sbr.rel (0) target = $region13
    $region12: #{tpu_custom_call.1} parent=1 // pred_region
      %s47 = ssub.s32 32, 32
      %48 = vsyncadd [#allocation9], %s47
      %s50 = sshll.u32 [#allocation10], 4
      %s51 = int_to_ptr.vmem [resolvable:$true] %s50
      %53 = dma.hbm_to_vmem [thread:$0]  %s4, 32, %s51, [#allocation9]
    $region13: #{tpu_custom_call.1} parent=1 // pred_fallthru
      _
    // Predicated region
    $region14: #{tpu_custom_call.1} parent=1 // pred_check
      _
    $region15: #{tpu_custom_call.1} parent=1 // pred_check_branch
      %55 = sbr.rel (0) target = $region17
    $region16: #{tpu_custom_call.1} parent=1 // pred_region
      %s57 = ssub.s32 256, 256
      %58 = vsyncadd [#allocation12], %s57
      %s59 = sshll.u32 [#allocation11], 4
      %s60 = int_to_ptr.vmem [resolvable:$true] %s59
      %65 = dma.hbm_to_vmem [thread:$0]  %s5, 256, %s60, [#allocation12], 128, 128, 8
    $region17: #{tpu_custom_call.1} parent=1 // pred_fallthru
      _
    // Predicated region
    $region18: #{tpu_custom_call.1} parent=1 // pred_check
      _
    $region19: #{tpu_custom_call.1} parent=1 // pred_check_branch
      %67 = sbr.rel (0) target = $region21
    $region20: #{tpu_custom_call.1} parent=1 // pred_region
      %s69 = ssub.s32 16, 16
      %70 = vsyncadd [#allocation12], %s69
      %s72 = sshll.u32 [#allocation13], 4
      %s73 = int_to_ptr.vmem [resolvable:$true] %s72
      %75 = dma.hbm_to_vmem [thread:$0]  %s6, 16, %s73, [#allocation12]
    $region21: #{tpu_custom_call.1} parent=1 // pred_fallthru
      _
    // Predicated region
    $region22: #{tpu_custom_call.1} parent=1 // pred_check
      _
    $region23: #{tpu_custom_call.1} parent=1 // pred_check_branch
      %77 = sbr.rel (0) target = $region25
    $region24: #{tpu_custom_call.1} parent=1 // pred_region
      %s79 = ssub.s32 128, 128
      %80 = vsyncadd [#allocation15], %s79
      %s81 = sshll.u32 [#allocation14], 4
      %s82 = int_to_ptr.vmem [resolvable:$true] %s81
      %87 = dma.hbm_to_vmem [thread:$0]  %s7, 128, %s82, [#allocation15], 64, 64, 4
    $region25: #{tpu_custom_call.1} parent=1 // pred_fallthru
      _
    // Predicated region
    $region26: #{tpu_custom_call.1} parent=1 // pred_check
      _
    $region27: #{tpu_custom_call.1} parent=1 // pred_check_branch
      %89 = sbr.rel (0) target = $region29
    $region28: #{tpu_custom_call.1} parent=1 // pred_region
      %90 = dma.done [#allocation6], 2048
    $region29: #{tpu_custom_call.1} parent=1 // pred_fallthru
      _
    // Predicated region
    $region30: #{tpu_custom_call.1} parent=1 // pred_check
      _
    $region31: #{tpu_custom_call.1} parent=1 // pred_check_branch
      %92 = sbr.rel (0) target = $region33
    $region32: #{tpu_custom_call.1} parent=1 // pred_region
      %93 = dma.done [#allocation9], 4096
    $region33: #{tpu_custom_call.1} parent=1 // pred_fallthru
      _
    // Predicated region
    $region34: #{tpu_custom_call.1} parent=1 // pred_check
      _
    $region35: #{tpu_custom_call.1} parent=1 // pred_check_branch
      %95 = sbr.rel (0) target = $region37
    $region36: #{tpu_custom_call.1} parent=1 // pred_region
      %96 = dma.done [#allocation9], 32
    $region37: #{tpu_custom_call.1} parent=1 // pred_fallthru
      _
    // Predicated region
    $region38: #{tpu_custom_call.1} parent=1 // pred_check
      _
    $region39: #{tpu_custom_call.1} parent=1 // pred_check_branch
      %98 = sbr.rel (0) target = $region41
    $region40: #{tpu_custom_call.1} parent=1 // pred_region
      %99 = dma.done [#allocation12], 256
    $region41: #{tpu_custom_call.1} parent=1 // pred_fallthru
      _
    // Predicated region
    $region42: #{tpu_custom_call.1} parent=1 // pred_check
      _
    $region43: #{tpu_custom_call.1} parent=1 // pred_check_branch
      %101 = sbr.rel (0) target = $region45
    $region44: #{tpu_custom_call.1} parent=1 // pred_region
      %102 = dma.done [#allocation12], 16
    $region45: #{tpu_custom_call.1} parent=1 // pred_fallthru
      _
    // Predicated region
    $region46: #{tpu_custom_call.1} parent=1 // pred_check
      _
    $region47: #{tpu_custom_call.1} parent=1 // pred_check_branch
      %104 = sbr.rel (0) target = $region49
    $region48: #{tpu_custom_call.1} parent=1 // pred_region
      %105 = dma.done [#allocation15], 128
    $region49: #{tpu_custom_call.1} parent=1 // pred_fallthru
      _
    %s106 = sld [smem:[#allocation3]]
    %s107 = smul.u32 2, %s106
    %s109 = sld [smem:[#allocation4]]
    %p110 = scmp.eq.s32.totalorder %s109, 1
    // Predicated region
    $region50: #{tpu_custom_call.1} parent=1 // pred_check
      %p111 = pneg %p110
    $region51: #{tpu_custom_call.1} parent=1 // pred_check_branch
      %113 = sbr.rel (%p111) target = $region53
    $region52: #{tpu_custom_call.1} parent=1 // pred_region
      %114 = vst [vmem:[#allocation16] sm:$0xff] 0.0
      %115 = vst [vmem:[#allocation16 + $0x8] sm:$0xff] 0.0
      %116 = vst [vmem:[#allocation16 + $0x10] sm:$0xff] 0.0
      %117 = vst [vmem:[#allocation16 + $0x18] sm:$0xff] 0.0
    $region53: #{tpu_custom_call.1} parent=1 // pred_fallthru
      _
    %v118 = vld [vmem:[#allocation8] sm:$0xff]
    %v119 = vld [vmem:[#allocation8 + $0x8] sm:$0xff]
    %v120 = vld [vmem:[#allocation8 + $0x10] sm:$0xff]
    %v121 = vld [vmem:[#allocation8 + $0x18] sm:$0xff]
    %v122 = vld [vmem:[#allocation8 + $0x20] sm:$0xff]
    %v123 = vld [vmem:[#allocation8 + $0x28] sm:$0xff]
    %v124 = vld [vmem:[#allocation8 + $0x30] sm:$0xff]
    %v125 = vld [vmem:[#allocation8 + $0x38] sm:$0xff]
    %v126 = vld [vmem:[#allocation8 + $0x40] sm:$0xff]
    %v127 = vld [vmem:[#allocation8 + $0x48] sm:$0xff]
    %v128 = vld [vmem:[#allocation8 + $0x50] sm:$0xff]
    %v129 = vld [vmem:[#allocation8 + $0x58] sm:$0xff]
    %v130 = vld [vmem:[#allocation8 + $0x60] sm:$0xff]
    %v131 = vld [vmem:[#allocation8 + $0x68] sm:$0xff]
    %v132 = vld [vmem:[#allocation8 + $0x70] sm:$0xff]
    %v133 = vld [vmem:[#allocation8 + $0x78] sm:$0xff]
    %v134 = vld [vmem:[#allocation8 + $0x80] sm:$0xff]
    %v135 = vld [vmem:[#allocation8 + $0x88] sm:$0xff]
    %v136 = vld [vmem:[#allocation8 + $0x90] sm:$0xff]
    %v137 = vld [vmem:[#allocation8 + $0x98] sm:$0xff]
    %v138 = vld [vmem:[#allocation8 + $0xa0] sm:$0xff]
    %v139 = vld [vmem:[#allocation8 + $0xa8] sm:$0xff]
    %v140 = vld [vmem:[#allocation8 + $0xb0] sm:$0xff]
    %v141 = vld [vmem:[#allocation8 + $0xb8] sm:$0xff]
    %v142 = vld [vmem:[#allocation8 + $0xc0] sm:$0xff]
    %v143 = vld [vmem:[#allocation8 + $0xc8] sm:$0xff]
    %v144 = vld [vmem:[#allocation8 + $0xd0] sm:$0xff]
    %v145 = vld [vmem:[#allocation8 + $0xd8] sm:$0xff]
    %v146 = vld [vmem:[#allocation8 + $0xe0] sm:$0xff]
    %v147 = vld [vmem:[#allocation8 + $0xe8] sm:$0xff]
    %v148 = vld [vmem:[#allocation8 + $0xf0] sm:$0xff]
    %v149 = vld [vmem:[#allocation8 + $0xf8] sm:$0xff]
    %v150 = vld [vmem:[#allocation13] sm:$0x1]
    %v151 = vrcp.pop %v118
    %v152 = vmul.f32 1.0, %v151
    %v153 = vrcp.pop %v119
    %v154 = vmul.f32 1.0, %v153
    %v155 = vrcp.pop %v120
    %v156 = vmul.f32 1.0, %v155
    %v157 = vrcp.pop %v121
    %v158 = vmul.f32 1.0, %v157
    %v159 = vrcp.pop %v122
    %v160 = vmul.f32 1.0, %v159
    %v161 = vrcp.pop %v123
    %v162 = vmul.f32 1.0, %v161
    %v163 = vrcp.pop %v124
    %v164 = vmul.f32 1.0, %v163
    %v165 = vrcp.pop %v125
    %v166 = vmul.f32 1.0, %v165
    %v167 = vrcp.pop %v126
    %v168 = vmul.f32 1.0, %v167
    %v169 = vrcp.pop %v127
    %v170 = vmul.f32 1.0, %v169
    %v171 = vrcp.pop %v128
    %v172 = vmul.f32 1.0, %v171
    %v173 = vrcp.pop %v129
    %v174 = vmul.f32 1.0, %v173
    %v175 = vrcp.pop %v130
    %v176 = vmul.f32 1.0, %v175
    %v177 = vrcp.pop %v131
    %v178 = vmul.f32 1.0, %v177
    %v179 = vrcp.pop %v132
    %v180 = vmul.f32 1.0, %v179
    %v181 = vrcp.pop %v133
    %v182 = vmul.f32 1.0, %v181
    %v183 = vrcp.pop %v134
    %v184 = vmul.f32 1.0, %v183
    %v185 = vrcp.pop %v135
    %v186 = vmul.f32 1.0, %v185
    %v187 = vrcp.pop %v136
    %v188 = vmul.f32 1.0, %v187
    %v189 = vrcp.pop %v137
    %v190 = vmul.f32 1.0, %v189
    %v191 = vrcp.pop %v138
    %v192 = vmul.f32 1.0, %v191
    %v193 = vrcp.pop %v139
    %v194 = vmul.f32 1.0, %v193
    %v195 = vrcp.pop %v140
    %v196 = vmul.f32 1.0, %v195
    %v197 = vrcp.pop %v141
    %v198 = vmul.f32 1.0, %v197
    %v199 = vrcp.pop %v142
    %v200 = vmul.f32 1.0, %v199
    %v201 = vrcp.pop %v143
    %v202 = vmul.f32 1.0, %v201
    %v203 = vrcp.pop %v144
    %v204 = vmul.f32 1.0, %v203
    %v205 = vrcp.pop %v145
    %v206 = vmul.f32 1.0, %v205
    %v207 = vrcp.pop %v146
    %v208 = vmul.f32 1.0, %v207
    %v209 = vrcp.pop %v147
    %v210 = vmul.f32 1.0, %v209
    %v211 = vrcp.pop %v148
    %v212 = vmul.f32 1.0, %v211
    %v213 = vrcp.pop %v149
    %v214 = vmul.f32 1.0, %v213
    %vm215 = vcmp.lt.f32.partialorder %v118, 4.0
    %vm216 = vcmp.lt.f32.partialorder %v119, 4.0
    %vm217 = vcmp.lt.f32.partialorder %v120, 4.0
    %vm218 = vcmp.lt.f32.partialorder %v121, 4.0
    %vm219 = vcmp.lt.f32.partialorder %v122, 4.0
    %vm220 = vcmp.lt.f32.partialorder %v123, 4.0
    %vm221 = vcmp.lt.f32.partialorder %v124, 4.0
    %vm222 = vcmp.lt.f32.partialorder %v125, 4.0
    %vm223 = vcmp.lt.f32.partialorder %v126, 4.0
    %vm224 = vcmp.lt.f32.partialorder %v127, 4.0
    %vm225 = vcmp.lt.f32.partialorder %v128, 4.0
    %vm226 = vcmp.lt.f32.partialorder %v129, 4.0
    %vm227 = vcmp.lt.f32.partialorder %v130, 4.0
    %vm228 = vcmp.lt.f32.partialorder %v131, 4.0
    %vm229 = vcmp.lt.f32.partialorder %v132, 4.0
    %vm230 = vcmp.lt.f32.partialorder %v133, 4.0
    %vm231 = vcmp.lt.f32.partialorder %v134, 4.0
    %vm232 = vcmp.lt.f32.partialorder %v135, 4.0
    %vm233 = vcmp.lt.f32.partialorder %v136, 4.0
    %vm234 = vcmp.lt.f32.partialorder %v137, 4.0
    %vm235 = vcmp.lt.f32.partialorder %v138, 4.0
    %vm236 = vcmp.lt.f32.partialorder %v139, 4.0
    %vm237 = vcmp.lt.f32.partialorder %v140, 4.0
    %vm238 = vcmp.lt.f32.partialorder %v141, 4.0
    %vm239 = vcmp.lt.f32.partialorder %v142, 4.0
    %vm240 = vcmp.lt.f32.partialorder %v143, 4.0
    %vm241 = vcmp.lt.f32.partialorder %v144, 4.0
    %vm242 = vcmp.lt.f32.partialorder %v145, 4.0
    %vm243 = vcmp.lt.f32.partialorder %v146, 4.0
    %vm244 = vcmp.lt.f32.partialorder %v147, 4.0
    %vm245 = vcmp.lt.f32.partialorder %v148, 4.0
    %vm246 = vcmp.lt.f32.partialorder %v149, 4.0
    %v247 = vmul.f32 %v118, 0.3926991
    %v248 = vmul.f32 %v119, 0.3926991
    %v249 = vmul.f32 %v120, 0.3926991
    %v250 = vmul.f32 %v121, 0.3926991
    %v251 = vmul.f32 %v122, 0.3926991
    %v252 = vmul.f32 %v123, 0.3926991
    %v253 = vmul.f32 %v124, 0.3926991
    %v254 = vmul.f32 %v125, 0.3926991
    %v255 = vmul.f32 %v126, 0.3926991
    %v256 = vmul.f32 %v127, 0.3926991
    %v257 = vmul.f32 %v128, 0.3926991
    %v258 = vmul.f32 %v129, 0.3926991
    %v259 = vmul.f32 %v130, 0.3926991
    %v260 = vmul.f32 %v131, 0.3926991
    %v261 = vmul.f32 %v132, 0.3926991
    %v262 = vmul.f32 %v133, 0.3926991
    %v263 = vmul.f32 %v134, 0.3926991
    %v264 = vmul.f32 %v135, 0.3926991
    %v265 = vmul.f32 %v136, 0.3926991
    %v266 = vmul.f32 %v137, 0.3926991
    %v267 = vmul.f32 %v138, 0.3926991
    %v268 = vmul.f32 %v139, 0.3926991
    %v269 = vmul.f32 %v140, 0.3926991
    %v270 = vmul.f32 %v141, 0.3926991
    %v271 = vmul.f32 %v142, 0.3926991
    %v272 = vmul.f32 %v143, 0.3926991
    %v273 = vmul.f32 %v144, 0.3926991
    %v274 = vmul.f32 %v145, 0.3926991
    %v275 = vmul.f32 %v146, 0.3926991
    %v276 = vmul.f32 %v147, 0.3926991
    %v277 = vmul.f32 %v148, 0.3926991
    %v278 = vmul.f32 %v149, 0.3926991
    %v279 = vand.u32 2147483647, %v247
    %vm280 = vcmp.le.f32.partialorder %v279, 0.7853982
    %vm281 = vcmp.lt.s32.totalorder %v247, 0
    %v282 = vand.u32 %v247, 2139095040
    %v283 = vshrl.u32 %v282, 23
    %v284 = vsub.s32 %v283, 127
    %v285 = vand.u32 2147483647, %v247
    %v286 = vand.u32 %v285, 8388607
    %v287 = vor.u32 %v286, 8388608
    %v288 = vsub.s32 0, %v287
    %v289 = vadd.s32 %v284, 1
    %vm290 = vcmp.gt.s32.totalorder %v289, 0
    %v291 = vsel %vm290, %v289, 0
    %v292 = vshrl.u32 %v291, 5
    %v293 = vand.u32 %v291, 31
    %v294 = vsub.s32 32, %v293
    %v295 = vshrl.u32 683565275, %v294
    %v296 = vshll.u32 683565275, %v293
    %v297 = vshrl.u32 2475754826, %v294
    %v298 = vor.u32 %v296, %v297
    %v299 = vshll.u32 2475754826, %v293
    %v300 = vshrl.u32 2131351028, %v294
    %v301 = vor.u32 %v299, %v300
    %v302 = vshll.u32 2131351028, %v293
    %v303 = vshrl.u32 2102212464, %v294
    %v304 = vor.u32 %v302, %v303
    %v305 = vshll.u32 2102212464, %v293
    %v306 = vshrl.u32 920167782, %v294
    %v307 = vor.u32 %v305, %v306
    %v308 = vshll.u32 920167782, %v293
    %v309 = vshrl.u32 1326507024, %v294
    %v310 = vor.u32 %v308, %v309
    %vm311 = vcmp.lt.s32.totalorder %v292, 1
    %vm312 = vcmp.lt.s32.totalorder %v292, 2
    %vm313 = vcmp.lt.s32.totalorder %v292, 3
    %vm314 = vcmp.lt.s32.totalorder %v292, 4
    %v315 = vsel %vm311, %v295, %v298
    %v316 = vsel %vm314, %v304, 2102212464
    %v317 = vsel %vm313, %v301, %v316
    %v318 = vsel %vm312, %v315, %v317
    %v319 = vsel %vm311, %v298, %v301
    %v320 = vsel %vm314, %v307, 920167782
    %v321 = vsel %vm313, %v304, %v320
    %v322 = vsel %vm312, %v319, %v321
    %v323 = vsel %vm311, %v301, %v304
    %v324 = vsel %vm314, %v310, 1326507024
    %v325 = vsel %vm313, %v307, %v324
    %v326 = vsel %vm312, %v323, %v325
    %v327 = vshll.u32 %v287, 8
    %v328 = vmul.u32.u64.compose %v327, %v326
    %v329 = vextract.low.u32 %v328
    %v330 = vextract.high.u32 %v328
    %v331 = vmul.u32.u64.compose %v327, %v322
    %v332 = vextract.low.u32 %v331
    %v333 = vextract.high.u32 %v331
    %v334 = vmul.u32 %v327, %v318
    %v335 = vadd.s32 %v330, %v332
    %vm336 = vc.u32 %v330, %v332
    %v337 = vadd.s32 %v333, 1
    %v338 = vsel %vm336, %v337, %v333
    %v339 = vadd.s32 %v334, %v338
    %v340 = vadd.s32 %v339, 536870912
    %v341 = vshrl.u32 %v340, 30
    %v342 = vshll.u32 %v341, 30
    %v343 = vsub.s32 %v339, %v342
    %vm344 = vcmp.lt.s32.totalorder %v343, 0
    %v345 = vsub.s32 0, %v343
    %v346 = vsel %vm344, %v345, %v343
    %v347 = vclz %v346
    %v348 = vsub.s32 %v347, 2
    %vm349 = vcmp.gt.s32.totalorder 0, %v348
    %v350 = vsel %vm349, 0, %v348
    %v351 = vsub.s32 32, %v350
    %v352 = vshll.u32 %v343, %v350
    %v353 = vshrl.u32 %v335, %v351
    %v354 = vor.u32 %v352, %v353
    %v355 = vsub.s32 4294967266, %v350
    %v356 = vadd.s32 %v355, 127
    %v357 = vshll.u32 %v356, 23
    %v358 = vor.u32 4788187, %v357
    %v359 = vand.u32 2147483647, %v358
    %v361 = vcvt.s32.f32 %v354
    %v362 = vmul.f32 %v361, %v359
    %v363 = vxor.u32 %v362, 2147483648
    %v364 = vsel %vm281, %v363, %v362
    %v365 = vsub.s32 4, %v341
    %v366 = vsel %vm281, %v365, %v341
    %v367 = vsel %vm280, %v247, %v364
    %v368 = vsel %vm280, 0, %v366
    %v369 = vcosq.f32.pop %v367
    %v370 = vsinq.f32.pop %v367
    %vm371 = vweird.f32 %v247
    %v372 = vand.u32 %v368, 3
    %vm373 = vcmp.lt.s32.totalorder %v372, 2
    %vm374 = vcmp.eq.s32.totalorder %v372, 0
    %v375 = vxor.u32 %v370, 2147483648
    %v376 = vsel %vm374, %v369, %v375
    %vm377 = vcmp.eq.s32.totalorder %v372, 2
    %v378 = vxor.u32 %v369, 2147483648
    %v379 = vsel %vm377, %v378, %v370
    %v380 = vsel %vm373, %v376, %v379
    %v381 = vsel %vm371, nan, %v380
    %v382 = vand.u32 2147483647, %v248
    %vm383 = vcmp.le.f32.partialorder %v382, 0.7853982
    %vm384 = vcmp.lt.s32.totalorder %v248, 0
    %v385 = vand.u32 %v248, 2139095040
    %v386 = vshrl.u32 %v385, 23
    %v387 = vsub.s32 %v386, 127
    %v388 = vand.u32 2147483647, %v248
    %v389 = vand.u32 %v388, 8388607
    %v390 = vor.u32 %v389, 8388608
    %v391 = vsub.s32 0, %v390
    %v392 = vadd.s32 %v387, 1
    %vm393 = vcmp.gt.s32.totalorder %v392, 0
    %v394 = vsel %vm393, %v392, 0
    %v395 = vshrl.u32 %v394, 5
    %v396 = vand.u32 %v394, 31
    %v397 = vsub.s32 32, %v396
    %v398 = vshrl.u32 683565275, %v397
    %v399 = vshll.u32 683565275, %v396
    %v400 = vshrl.u32 2475754826, %v397
    %v401 = vor.u32 %v399, %v400
    %v402 = vshll.u32 2475754826, %v396
    %v403 = vshrl.u32 2131351028, %v397
    %v404 = vor.u32 %v402, %v403
    %v405 = vshll.u32 2131351028, %v396
    %v406 = vshrl.u32 2102212464, %v397
    %v407 = vor.u32 %v405, %v406
    %v408 = vshll.u32 2102212464, %v396
    %v409 = vshrl.u32 920167782, %v397
    %v410 = vor.u32 %v408, %v409
    %v411 = vshll.u32 920167782, %v396
    %v412 = vshrl.u32 1326507024, %v397
    %v413 = vor.u32 %v411, %v412
    %vm414 = vcmp.lt.s32.totalorder %v395, 1
    %vm415 = vcmp.lt.s32.totalorder %v395, 2
    %vm416 = vcmp.lt.s32.totalorder %v395, 3
    %vm417 = vcmp.lt.s32.totalorder %v395, 4
    %v418 = vsel %vm414, %v398, %v401
    %v419 = vsel %vm417, %v407, 2102212464
    %v420 = vsel %vm416, %v404, %v419
    %v421 = vsel %vm415, %v418, %v420
    %v422 = vsel %vm414, %v401, %v404
    %v423 = vsel %vm417, %v410, 920167782
    %v424 = vsel %vm416, %v407, %v423
    %v425 = vsel %vm415, %v422, %v424
    %v426 = vsel %vm414, %v404, %v407
    %v427 = vsel %vm417, %v413, 1326507024
    %v428 = vsel %vm416, %v410, %v427
    %v429 = vsel %vm415, %v426, %v428
    %v430 = vshll.u32 %v390, 8
    %v431 = vmul.u32.u64.compose %v430, %v429
    %v432 = vextract.low.u32 %v431
    %v433 = vextract.high.u32 %v431
    %v434 = vmul.u32.u64.compose %v430, %v425
    %v435 = vextract.low.u32 %v434
    %v436 = vextract.high.u32 %v434
    %v437 = vmul.u32 %v430, %v421
    %v438 = vadd.s32 %v433, %v435
    %vm439 = vc.u32 %v433, %v435
    %v440 = vadd.s32 %v436, 1
    %v441 = vsel %vm439, %v440, %v436
    %v442 = vadd.s32 %v437, %v441
    %v443 = vadd.s32 %v442, 536870912
    %v444 = vshrl.u32 %v443, 30
    %v445 = vshll.u32 %v444, 30
    %v446 = vsub.s32 %v442, %v445
    %vm447 = vcmp.lt.s32.totalorder %v446, 0
    %v448 = vsub.s32 0, %v446
    %v449 = vsel %vm447, %v448, %v446
    %v450 = vclz %v449
    %v451 = vsub.s32 %v450, 2
    %vm452 = vcmp.gt.s32.totalorder 0, %v451
    %v453 = vsel %vm452, 0, %v451
    %v454 = vsub.s32 32, %v453
    %v455 = vshll.u32 %v446, %v453
    %v456 = vshrl.u32 %v438, %v454
    %v457 = vor.u32 %v455, %v456
    %v458 = vsub.s32 4294967266, %v453
    %v459 = vadd.s32 %v458, 127
    %v460 = vshll.u32 %v459, 23
    %v461 = vor.u32 4788187, %v460
    %v462 = vand.u32 2147483647, %v461
    %v464 = vcvt.s32.f32 %v457
    %v465 = vmul.f32 %v464, %v462
    %v466 = vxor.u32 %v465, 2147483648
    %v467 = vsel %vm384, %v466, %v465
    %v468 = vsub.s32 4, %v444
    %v469 = vsel %vm384, %v468, %v444
    %v470 = vsel %vm383, %v248, %v467
    %v471 = vsel %vm383, 0, %v469
    %v472 = vcosq.f32.pop %v470
    %v473 = vsinq.f32.pop %v470
    %vm474 = vweird.f32 %v248
    %v475 = vand.u32 %v471, 3
    %vm476 = vcmp.lt.s32.totalorder %v475, 2
    %vm477 = vcmp.eq.s32.totalorder %v475, 0
    %v478 = vxor.u32 %v473, 2147483648
    %v479 = vsel %vm477, %v472, %v478
    %vm480 = vcmp.eq.s32.totalorder %v475, 2
    %v481 = vxor.u32 %v472, 2147483648
    %v482 = vsel %vm480, %v481, %v473
    %v483 = vsel %vm476, %v479, %v482
    %v484 = vsel %vm474, nan, %v483
    %v485 = vand.u32 2147483647, %v249
    %vm486 = vcmp.le.f32.partialorder %v485, 0.7853982
    %vm487 = vcmp.lt.s32.totalorder %v249, 0
    %v488 = vand.u32 %v249, 2139095040
    %v489 = vshrl.u32 %v488, 23
    %v490 = vsub.s32 %v489, 127
    %v491 = vand.u32 2147483647, %v249
    %v492 = vand.u32 %v491, 8388607
    %v493 = vor.u32 %v492, 8388608
    %v494 = vsub.s32 0, %v493
    %v495 = vadd.s32 %v490, 1
    %vm496 = vcmp.gt.s32.totalorder %v495, 0
    %v497 = vsel %vm496, %v495, 0
    %v498 = vshrl.u32 %v497, 5
    %v499 = vand.u32 %v497, 31
    %v500 = vsub.s32 32, %v499
    %v501 = vshrl.u32 683565275, %v500
    %v502 = vshll.u32 683565275, %v499
    %v503 = vshrl.u32 2475754826, %v500
    %v504 = vor.u32 %v502, %v503
    %v505 = vshll.u32 2475754826, %v499
    %v506 = vshrl.u32 2131351028, %v500
    %v507 = vor.u32 %v505, %v506
    %v508 = vshll.u32 2131351028, %v499
    %v509 = vshrl.u32 2102212464, %v500
    %v510 = vor.u32 %v508, %v509
    %v511 = vshll.u32 2102212464, %v499
    %v512 = vshrl.u32 920167782, %v500
    %v513 = vor.u32 %v511, %v512
    %v514 = vshll.u32 920167782, %v499
    %v515 = vshrl.u32 1326507024, %v500
    %v516 = vor.u32 %v514, %v515
    %vm517 = vcmp.lt.s32.totalorder %v498, 1
    %vm518 = vcmp.lt.s32.totalorder %v498, 2
    %vm519 = vcmp.lt.s32.totalorder %v498, 3
    %vm520 = vcmp.lt.s32.totalorder %v498, 4
    %v521 = vsel %vm517, %v501, %v504
    %v522 = vsel %vm520, %v510, 2102212464
    %v523 = vsel %vm519, %v507, %v522
    %v524 = vsel %vm518, %v521, %v523
    %v525 = vsel %vm517, %v504, %v507
    %v526 = vsel %vm520, %v513, 920167782
    %v527 = vsel %vm519, %v510, %v526
    %v528 = vsel %vm518, %v525, %v527
    %v529 = vsel %vm517, %v507, %v510
    %v530 = vsel %vm520, %v516, 1326507024
    %v531 = vsel %vm519, %v513, %v530
    %v532 = vsel %vm518, %v529, %v531
    %v533 = vshll.u32 %v493, 8
    %v534 = vmul.u32.u64.compose %v533, %v532
    %v535 = vextract.low.u32 %v534
    %v536 = vextract.high.u32 %v534
    %v537 = vmul.u32.u64.compose %v533, %v528
    %v538 = vextract.low.u32 %v537
    %v539 = vextract.high.u32 %v537
    %v540 = vmul.u32 %v533, %v524
    %v541 = vadd.s32 %v536, %v538
    %vm542 = vc.u32 %v536, %v538
    %v543 = vadd.s32 %v539, 1
    %v544 = vsel %vm542, %v543, %v539
    %v545 = vadd.s32 %v540, %v544
    %v546 = vadd.s32 %v545, 536870912
    %v547 = vshrl.u32 %v546, 30
    %v548 = vshll.u32 %v547, 30
    %v549 = vsub.s32 %v545, %v548
    %vm550 = vcmp.lt.s32.totalorder %v549, 0
    %v551 = vsub.s32 0, %v549
    %v552 = vsel %vm550, %v551, %v549
    %v553 = vclz %v552
    %v554 = vsub.s32 %v553, 2
    %vm555 = vcmp.gt.s32.totalorder 0, %v554
    %v556 = vsel %vm555, 0, %v554
    %v557 = vsub.s32 32, %v556
    %v558 = vshll.u32 %v549, %v556
    %v559 = vshrl.u32 %v541, %v557
    %v560 = vor.u32 %v558, %v559
    %v561 = vsub.s32 4294967266, %v556
    %v562 = vadd.s32 %v561, 127
    %v563 = vshll.u32 %v562, 23
    %v564 = vor.u32 4788187, %v563
    %v565 = vand.u32 2147483647, %v564
    %v567 = vcvt.s32.f32 %v560
    %v568 = vmul.f32 %v567, %v565
    %v569 = vxor.u32 %v568, 2147483648
    %v570 = vsel %vm487, %v569, %v568
    %v571 = vsub.s32 4, %v547
    %v572 = vsel %vm487, %v571, %v547
    %v573 = vsel %vm486, %v249, %v570
    %v574 = vsel %vm486, 0, %v572
    %v575 = vcosq.f32.pop %v573
    %v576 = vsinq.f32.pop %v573
    %vm577 = vweird.f32 %v249
    %v578 = vand.u32 %v574, 3
    %vm579 = vcmp.lt.s32.totalorder %v578, 2
    %vm580 = vcmp.eq.s32.totalorder %v578, 0
    %v581 = vxor.u32 %v576, 2147483648
    %v582 = vsel %vm580, %v575, %v581
    %vm583 = vcmp.eq.s32.totalorder %v578, 2
    %v584 = vxor.u32 %v575, 2147483648
    %v585 = vsel %vm583, %v584, %v576
    %v586 = vsel %vm579, %v582, %v585
    %v587 = vsel %vm577, nan, %v586
    %v588 = vand.u32 2147483647, %v250
    %vm589 = vcmp.le.f32.partialorder %v588, 0.7853982
    %vm590 = vcmp.lt.s32.totalorder %v250, 0
    %v591 = vand.u32 %v250, 2139095040
    %v592 = vshrl.u32 %v591, 23
    %v593 = vsub.s32 %v592, 127
    %v594 = vand.u32 2147483647, %v250
    %v595 = vand.u32 %v594, 8388607
    %v596 = vor.u32 %v595, 8388608
    %v597 = vsub.s32 0, %v596
    %v598 = vadd.s32 %v593, 1
    %vm599 = vcmp.gt.s32.totalorder %v598, 0
    %v600 = vsel %vm599, %v598, 0
    %v601 = vshrl.u32 %v600, 5
    %v602 = vand.u32 %v600, 31
    %v603 = vsub.s32 32, %v602
    %v604 = vshrl.u32 683565275, %v603
    %v605 = vshll.u32 683565275, %v602
    %v606 = vshrl.u32 2475754826, %v603
    %v607 = vor.u32 %v605, %v606
    %v608 = vshll.u32 2475754826, %v602
    %v609 = vshrl.u32 2131351028, %v603
    %v610 = vor.u32 %v608, %v609
    %v611 = vshll.u32 2131351028, %v602
    %v612 = vshrl.u32 2102212464, %v603
    %v613 = vor.u32 %v611, %v612
    %v614 = vshll.u32 2102212464, %v602
    %v615 = vshrl.u32 920167782, %v603
    %v616 = vor.u32 %v614, %v615
    %v617 = vshll.u32 920167782, %v602
    %v618 = vshrl.u32 1326507024, %v603
    %v619 = vor.u32 %v617, %v618
    %vm620 = vcmp.lt.s32.totalorder %v601, 1
    %vm621 = vcmp.lt.s32.totalorder %v601, 2
    %vm622 = vcmp.lt.s32.totalorder %v601, 3
    %vm623 = vcmp.lt.s32.totalorder %v601, 4
    %v624 = vsel %vm620, %v604, %v607
    %v625 = vsel %vm623, %v613, 2102212464
    %v626 = vsel %vm622, %v610, %v625
    %v627 = vsel %vm621, %v624, %v626
    %v628 = vsel %vm620, %v607, %v610
    %v629 = vsel %vm623, %v616, 920167782
    %v630 = vsel %vm622, %v613, %v629
    %v631 = vsel %vm621, %v628, %v630
    %v632 = vsel %vm620, %v610, %v613
    %v633 = vsel %vm623, %v619, 1326507024
    %v634 = vsel %vm622, %v616, %v633
    %v635 = vsel %vm621, %v632, %v634
    %v636 = vshll.u32 %v596, 8
    %v637 = vmul.u32.u64.compose %v636, %v635
    %v638 = vextract.low.u32 %v637
    %v639 = vextract.high.u32 %v637
    %v640 = vmul.u32.u64.compose %v636, %v631
    %v641 = vextract.low.u32 %v640
    %v642 = vextract.high.u32 %v640
    %v643 = vmul.u32 %v636, %v627
    %v644 = vadd.s32 %v639, %v641
    %vm645 = vc.u32 %v639, %v641
    %v646 = vadd.s32 %v642, 1
    %v647 = vsel %vm645, %v646, %v642
    %v648 = vadd.s32 %v643, %v647
    %v649 = vadd.s32 %v648, 536870912
    %v650 = vshrl.u32 %v649, 30
    %v651 = vshll.u32 %v650, 30
    %v652 = vsub.s32 %v648, %v651
    %vm653 = vcmp.lt.s32.totalorder %v652, 0
    %v654 = vsub.s32 0, %v652
    %v655 = vsel %vm653, %v654, %v652
    %v656 = vclz %v655
    %v657 = vsub.s32 %v656, 2
    %vm658 = vcmp.gt.s32.totalorder 0, %v657
    %v659 = vsel %vm658, 0, %v657
    %v660 = vsub.s32 32, %v659
    %v661 = vshll.u32 %v652, %v659
    %v662 = vshrl.u32 %v644, %v660
    %v663 = vor.u32 %v661, %v662
    %v664 = vsub.s32 4294967266, %v659
    %v665 = vadd.s32 %v664, 127
    %v666 = vshll.u32 %v665, 23
    %v667 = vor.u32 4788187, %v666
    %v668 = vand.u32 2147483647, %v667
    %v670 = vcvt.s32.f32 %v663
    %v671 = vmul.f32 %v670, %v668
    %v672 = vxor.u32 %v671, 2147483648
    %v673 = vsel %vm590, %v672, %v671
    %v674 = vsub.s32 4, %v650
    %v675 = vsel %vm590, %v674, %v650
    %v676 = vsel %vm589, %v250, %v673
    %v677 = vsel %vm589, 0, %v675
    %v678 = vcosq.f32.pop %v676
    %v679 = vsinq.f32.pop %v676
    %vm680 = vweird.f32 %v250
    %v681 = vand.u32 %v677, 3
    %vm682 = vcmp.lt.s32.totalorder %v681, 2
    %vm683 = vcmp.eq.s32.totalorder %v681, 0
    %v684 = vxor.u32 %v679, 2147483648
    %v685 = vsel %vm683, %v678, %v684
    %vm686 = vcmp.eq.s32.totalorder %v681, 2
    %v687 = vxor.u32 %v678, 2147483648
    %v688 = vsel %vm686, %v687, %v679
    %v689 = vsel %vm682, %v685, %v688
    %v690 = vsel %vm680, nan, %v689
    %v691 = vand.u32 2147483647, %v251
    %vm692 = vcmp.le.f32.partialorder %v691, 0.7853982
    %vm693 = vcmp.lt.s32.totalorder %v251, 0
    %v694 = vand.u32 %v251, 2139095040
    %v695 = vshrl.u32 %v694, 23
    %v696 = vsub.s32 %v695, 127
    %v697 = vand.u32 2147483647, %v251
    %v698 = vand.u32 %v697, 8388607
    %v699 = vor.u32 %v698, 8388608
    %v700 = vsub.s32 0, %v699
    %v701 = vadd.s32 %v696, 1
    %vm702 = vcmp.gt.s32.totalorder %v701, 0
    %v703 = vsel %vm702, %v701, 0
    %v704 = vshrl.u32 %v703, 5
    %v705 = vand.u32 %v703, 31
    %v706 = vsub.s32 32, %v705
    %v707 = vshrl.u32 683565275, %v706
    %v708 = vshll.u32 683565275, %v705
    %v709 = vshrl.u32 2475754826, %v706
    %v710 = vor.u32 %v708, %v709
    %v711 = vshll.u32 2475754826, %v705
    %v712 = vshrl.u32 2131351028, %v706
    %v713 = vor.u32 %v711, %v712
    %v714 = vshll.u32 2131351028, %v705
    %v715 = vshrl.u32 2102212464, %v706
    %v716 = vor.u32 %v714, %v715
    %v717 = vshll.u32 2102212464, %v705
    %v718 = vshrl.u32 920167782, %v706
    %v719 = vor.u32 %v717, %v718
    %v720 = vshll.u32 920167782, %v705
    %v721 = vshrl.u32 1326507024, %v706
    %v722 = vor.u32 %v720, %v721
    %vm723 = vcmp.lt.s32.totalorder %v704, 1
    %vm724 = vcmp.lt.s32.totalorder %v704, 2
    %vm725 = vcmp.lt.s32.totalorder %v704, 3
    %vm726 = vcmp.lt.s32.totalorder %v704, 4
    %v727 = vsel %vm723, %v707, %v710
    %v728 = vsel %vm726, %v716, 2102212464
    %v729 = vsel %vm725, %v713, %v728
    %v730 = vsel %vm724, %v727, %v729
    %v731 = vsel %vm723, %v710, %v713
    %v732 = vsel %vm726, %v719, 920167782
    %v733 = vsel %vm725, %v716, %v732
    %v734 = vsel %vm724, %v731, %v733
    %v735 = vsel %vm723, %v713, %v716
    %v736 = vsel %vm726, %v722, 1326507024
    %v737 = vsel %vm725, %v719, %v736
    %v738 = vsel %vm724, %v735, %v737
    %v739 = vshll.u32 %v699, 8
    %v740 = vmul.u32.u64.compose %v739, %v738
    %v741 = vextract.low.u32 %v740
    %v742 = vextract.high.u32 %v740
    %v743 = vmul.u32.u64.compose %v739, %v734
    %v744 = vextract.low.u32 %v743
    %v745 = vextract.high.u32 %v743
    %v746 = vmul.u32 %v739, %v730
    %v747 = vadd.s32 %v742, %v744
    %vm748 = vc.u32 %v742, %v744
    %v749 = vadd.s32 %v745, 1
    %v750 = vsel %vm748, %v749, %v745
    %v751 = vadd.s32 %v746, %v750
    %v752 = vadd.s32 %v751, 536870912
    %v753 = vshrl.u32 %v752, 30
    %v754 = vshll.u32 %v753, 30
    %v755 = vsub.s32 %v751, %v754
    %vm756 = vcmp.lt.s32.totalorder %v755, 0
    %v757 = vsub.s32 0, %v755
    %v758 = vsel %vm756, %v757, %v755
    %v759 = vclz %v758
    %v760 = vsub.s32 %v759, 2
    %vm761 = vcmp.gt.s32.totalorder 0, %v760
    %v762 = vsel %vm761, 0, %v760
    %v763 = vsub.s32 32, %v762
    %v764 = vshll.u32 %v755, %v762
    %v765 = vshrl.u32 %v747, %v763
    %v766 = vor.u32 %v764, %v765
    %v767 = vsub.s32 4294967266, %v762
    %v768 = vadd.s32 %v767, 127
    %v769 = vshll.u32 %v768, 23
    %v770 = vor.u32 4788187, %v769
    %v771 = vand.u32 2147483647, %v770
    %v773 = vcvt.s32.f32 %v766
    %v774 = vmul.f32 %v773, %v771
    %v775 = vxor.u32 %v774, 2147483648
    %v776 = vsel %vm693, %v775, %v774
    %v777 = vsub.s32 4, %v753
    %v778 = vsel %vm693, %v777, %v753
    %v779 = vsel %vm692, %v251, %v776
    %v780 = vsel %vm692, 0, %v778
    %v781 = vcosq.f32.pop %v779
    %v782 = vsinq.f32.pop %v779
    %vm783 = vweird.f32 %v251
    %v784 = vand.u32 %v780, 3
    %vm785 = vcmp.lt.s32.totalorder %v784, 2
    %vm786 = vcmp.eq.s32.totalorder %v784, 0
    %v787 = vxor.u32 %v782, 2147483648
    %v788 = vsel %vm786, %v781, %v787
    %vm789 = vcmp.eq.s32.totalorder %v784, 2
    %v790 = vxor.u32 %v781, 2147483648
    %v791 = vsel %vm789, %v790, %v782
    %v792 = vsel %vm785, %v788, %v791
    %v793 = vsel %vm783, nan, %v792
    %v794 = vand.u32 2147483647, %v252
    %vm795 = vcmp.le.f32.partialorder %v794, 0.7853982
    %vm796 = vcmp.lt.s32.totalorder %v252, 0
    %v797 = vand.u32 %v252, 2139095040
    %v798 = vshrl.u32 %v797, 23
    %v799 = vsub.s32 %v798, 127
    %v800 = vand.u32 2147483647, %v252
    %v801 = vand.u32 %v800, 8388607
    %v802 = vor.u32 %v801, 8388608
    %v803 = vsub.s32 0, %v802
    %v804 = vadd.s32 %v799, 1
    %vm805 = vcmp.gt.s32.totalorder %v804, 0
    %v806 = vsel %vm805, %v804, 0
    %v807 = vshrl.u32 %v806, 5
    %v808 = vand.u32 %v806, 31
    %v809 = vsub.s32 32, %v808
    %v810 = vshrl.u32 683565275, %v809
    %v811 = vshll.u32 683565275, %v808
    %v812 = vshrl.u32 2475754826, %v809
    %v813 = vor.u32 %v811, %v812
    %v814 = vshll.u32 2475754826, %v808
    %v815 = vshrl.u32 2131351028, %v809
    %v816 = vor.u32 %v814, %v815
    %v817 = vshll.u32 2131351028, %v808
    %v818 = vshrl.u32 2102212464, %v809
    %v819 = vor.u32 %v817, %v818
    %v820 = vshll.u32 2102212464, %v808
    %v821 = vshrl.u32 920167782, %v809
    %v822 = vor.u32 %v820, %v821
    %v823 = vshll.u32 920167782, %v808
    %v824 = vshrl.u32 1326507024, %v809
    %v825 = vor.u32 %v823, %v824
    %vm826 = vcmp.lt.s32.totalorder %v807, 1
    %vm827 = vcmp.lt.s32.totalorder %v807, 2
    %vm828 = vcmp.lt.s32.totalorder %v807, 3
    %vm829 = vcmp.lt.s32.totalorder %v807, 4
    %v830 = vsel %vm826, %v810, %v813
    %v831 = vsel %vm829, %v819, 2102212464
    %v832 = vsel %vm828, %v816, %v831
    %v833 = vsel %vm827, %v830, %v832
    %v834 = vsel %vm826, %v813, %v816
    %v835 = vsel %vm829, %v822, 920167782
    %v836 = vsel %vm828, %v819, %v835
    %v837 = vsel %vm827, %v834, %v836
    %v838 = vsel %vm826, %v816, %v819
    %v839 = vsel %vm829, %v825, 1326507024
    %v840 = vsel %vm828, %v822, %v839
    %v841 = vsel %vm827, %v838, %v840
    %v842 = vshll.u32 %v802, 8
    %v843 = vmul.u32.u64.compose %v842, %v841
    %v844 = vextract.low.u32 %v843
    %v845 = vextract.high.u32 %v843
    %v846 = vmul.u32.u64.compose %v842, %v837
    %v847 = vextract.low.u32 %v846
    %v848 = vextract.high.u32 %v846
    %v849 = vmul.u32 %v842, %v833
    %v850 = vadd.s32 %v845, %v847
    %vm851 = vc.u32 %v845, %v847
    %v852 = vadd.s32 %v848, 1
    %v853 = vsel %vm851, %v852, %v848
    %v854 = vadd.s32 %v849, %v853
    %v855 = vadd.s32 %v854, 536870912
    %v856 = vshrl.u32 %v855, 30
    %v857 = vshll.u32 %v856, 30
    %v858 = vsub.s32 %v854, %v857
    %vm859 = vcmp.lt.s32.totalorder %v858, 0
    %v860 = vsub.s32 0, %v858
    %v861 = vsel %vm859, %v860, %v858
    %v862 = vclz %v861
    %v863 = vsub.s32 %v862, 2
    %vm864 = vcmp.gt.s32.totalorder 0, %v863
    %v865 = vsel %vm864, 0, %v863
    %v866 = vsub.s32 32, %v865
    %v867 = vshll.u32 %v858, %v865
    %v868 = vshrl.u32 %v850, %v866
    %v869 = vor.u32 %v867, %v868
    %v870 = vsub.s32 4294967266, %v865
    %v871 = vadd.s32 %v870, 127
    %v872 = vshll.u32 %v871, 23
    %v873 = vor.u32 4788187, %v872
    %v874 = vand.u32 2147483647, %v873
    %v876 = vcvt.s32.f32 %v869
    %v877 = vmul.f32 %v876, %v874
    %v878 = vxor.u32 %v877, 2147483648
    %v879 = vsel %vm796, %v878, %v877
    %v880 = vsub.s32 4, %v856
    %v881 = vsel %vm796, %v880, %v856
    %v882 = vsel %vm795, %v252, %v879
    %v883 = vsel %vm795, 0, %v881
    %v884 = vcosq.f32.pop %v882
    %v885 = vsinq.f32.pop %v882
    %vm886 = vweird.f32 %v252
    %v887 = vand.u32 %v883, 3
    %vm888 = vcmp.lt.s32.totalorder %v887, 2
    %vm889 = vcmp.eq.s32.totalorder %v887, 0
    %v890 = vxor.u32 %v885, 2147483648
    %v891 = vsel %vm889, %v884, %v890
    %vm892 = vcmp.eq.s32.totalorder %v887, 2
    %v893 = vxor.u32 %v884, 2147483648
    %v894 = vsel %vm892, %v893, %v885
    %v895 = vsel %vm888, %v891, %v894
    %v896 = vsel %vm886, nan, %v895
    %v897 = vand.u32 2147483647, %v253
    %vm898 = vcmp.le.f32.partialorder %v897, 0.7853982
    %vm899 = vcmp.lt.s32.totalorder %v253, 0
    %v900 = vand.u32 %v253, 2139095040
    %v901 = vshrl.u32 %v900, 23
    %v902 = vsub.s32 %v901, 127
    %v903 = vand.u32 2147483647, %v253
    %v904 = vand.u32 %v903, 8388607
    %v905 = vor.u32 %v904, 8388608
    %v906 = vsub.s32 0, %v905
    %v907 = vadd.s32 %v902, 1
    %vm908 = vcmp.gt.s32.totalorder %v907, 0
    %v909 = vsel %vm908, %v907, 0
    %v910 = vshrl.u32 %v909, 5
    %v911 = vand.u32 %v909, 31
    %v912 = vsub.s32 32, %v911
    %v913 = vshrl.u32 683565275, %v912
    %v914 = vshll.u32 683565275, %v911
    %v915 = vshrl.u32 2475754826, %v912
    %v916 = vor.u32 %v914, %v915
    %v917 = vshll.u32 2475754826, %v911
    %v918 = vshrl.u32 2131351028, %v912
    %v919 = vor.u32 %v917, %v918
    %v920 = vshll.u32 2131351028, %v911
    %v921 = vshrl.u32 2102212464, %v912
    %v922 = vor.u32 %v920, %v921
    %v923 = vshll.u32 2102212464, %v911
    %v924 = vshrl.u32 920167782, %v912
    %v925 = vor.u32 %v923, %v924
    %v926 = vshll.u32 920167782, %v911
    %v927 = vshrl.u32 1326507024, %v912
    %v928 = vor.u32 %v926, %v927
    %vm929 = vcmp.lt.s32.totalorder %v910, 1
    %vm930 = vcmp.lt.s32.totalorder %v910, 2
    %vm931 = vcmp.lt.s32.totalorder %v910, 3
    %vm932 = vcmp.lt.s32.totalorder %v910, 4
    %v933 = vsel %vm929, %v913, %v916
    %v934 = vsel %vm932, %v922, 2102212464
    %v935 = vsel %vm931, %v919, %v934
    %v936 = vsel %vm930, %v933, %v935
    %v937 = vsel %vm929, %v916, %v919
    %v938 = vsel %vm932, %v925, 920167782
    %v939 = vsel %vm931, %v922, %v938
    %v940 = vsel %vm930, %v937, %v939
    %v941 = vsel %vm929, %v919, %v922
    %v942 = vsel %vm932, %v928, 1326507024
    %v943 = vsel %vm931, %v925, %v942
    %v944 = vsel %vm930, %v941, %v943
    %v945 = vshll.u32 %v905, 8
    %v946 = vmul.u32.u64.compose %v945, %v944
    %v947 = vextract.low.u32 %v946
    %v948 = vextract.high.u32 %v946
    %v949 = vmul.u32.u64.compose %v945, %v940
    %v950 = vextract.low.u32 %v949
    %v951 = vextract.high.u32 %v949
    %v952 = vmul.u32 %v945, %v936
    %v953 = vadd.s32 %v948, %v950
    %vm954 = vc.u32 %v948, %v950
    %v955 = vadd.s32 %v951, 1
    %v956 = vsel %vm954, %v955, %v951
    %v957 = vadd.s32 %v952, %v956
    %v958 = vadd.s32 %v957, 536870912
    %v959 = vshrl.u32 %v958, 30
    %v960 = vshll.u32 %v959, 30
    %v961 = vsub.s32 %v957, %v960
    %vm962 = vcmp.lt.s32.totalorder %v961, 0
    %v963 = vsub.s32 0, %v961
    %v964 = vsel %vm962, %v963, %v961
    %v965 = vclz %v964
    %v966 = vsub.s32 %v965, 2
    %vm967 = vcmp.gt.s32.totalorder 0, %v966
    %v968 = vsel %vm967, 0, %v966
    %v969 = vsub.s32 32, %v968
    %v970 = vshll.u32 %v961, %v968
    %v971 = vshrl.u32 %v953, %v969
    %v972 = vor.u32 %v970, %v971
    %v973 = vsub.s32 4294967266, %v968
    %v974 = vadd.s32 %v973, 127
    %v975 = vshll.u32 %v974, 23
    %v976 = vor.u32 4788187, %v975
    %v977 = vand.u32 2147483647, %v976
    %v979 = vcvt.s32.f32 %v972
    %v980 = vmul.f32 %v979, %v977
    %v981 = vxor.u32 %v980, 2147483648
    %v982 = vsel %vm899, %v981, %v980
    %v983 = vsub.s32 4, %v959
    %v984 = vsel %vm899, %v983, %v959
    %v985 = vsel %vm898, %v253, %v982
    %v986 = vsel %vm898, 0, %v984
    %v987 = vcosq.f32.pop %v985
    %v988 = vsinq.f32.pop %v985
    %vm989 = vweird.f32 %v253
    %v990 = vand.u32 %v986, 3
    %vm991 = vcmp.lt.s32.totalorder %v990, 2
    %vm992 = vcmp.eq.s32.totalorder %v990, 0
    %v993 = vxor.u32 %v988, 2147483648
    %v994 = vsel %vm992, %v987, %v993
    %vm995 = vcmp.eq.s32.totalorder %v990, 2
    %v996 = vxor.u32 %v987, 2147483648
    %v997 = vsel %vm995, %v996, %v988
    %v998 = vsel %vm991, %v994, %v997
    %v999 = vsel %vm989, nan, %v998
    %v1000 = vand.u32 2147483647, %v254
    %vm1001 = vcmp.le.f32.partialorder %v1000, 0.7853982
    %vm1002 = vcmp.lt.s32.totalorder %v254, 0
    %v1003 = vand.u32 %v254, 2139095040
    %v1004 = vshrl.u32 %v1003, 23
    %v1005 = vsub.s32 %v1004, 127
    %v1006 = vand.u32 2147483647, %v254
    %v1007 = vand.u32 %v1006, 8388607
    %v1008 = vor.u32 %v1007, 8388608
    %v1009 = vsub.s32 0, %v1008
    %v1010 = vadd.s32 %v1005, 1
    %vm1011 = vcmp.gt.s32.totalorder %v1010, 0
    %v1012 = vsel %vm1011, %v1010, 0
    %v1013 = vshrl.u32 %v1012, 5
    %v1014 = vand.u32 %v1012, 31
    %v1015 = vsub.s32 32, %v1014
    %v1016 = vshrl.u32 683565275, %v1015
    %v1017 = vshll.u32 683565275, %v1014
    %v1018 = vshrl.u32 2475754826, %v1015
    %v1019 = vor.u32 %v1017, %v1018
    %v1020 = vshll.u32 2475754826, %v1014
    %v1021 = vshrl.u32 2131351028, %v1015
    %v1022 = vor.u32 %v1020, %v1021
    %v1023 = vshll.u32 2131351028, %v1014
    %v1024 = vshrl.u32 2102212464, %v1015
    %v1025 = vor.u32 %v1023, %v1024
    %v1026 = vshll.u32 2102212464, %v1014
    %v1027 = vshrl.u32 920167782, %v1015
    %v1028 = vor.u32 %v1026, %v1027
    %v1029 = vshll.u32 920167782, %v1014
    %v1030 = vshrl.u32 1326507024, %v1015
    %v1031 = vor.u32 %v1029, %v1030
    %vm1032 = vcmp.lt.s32.totalorder %v1013, 1
    %vm1033 = vcmp.lt.s32.totalorder %v1013, 2
    %vm1034 = vcmp.lt.s32.totalorder %v1013, 3
    %vm1035 = vcmp.lt.s32.totalorder %v1013, 4
    %v1036 = vsel %vm1032, %v1016, %v1019
    %v1037 = vsel %vm1035, %v1025, 2102212464
    %v1038 = vsel %vm1034, %v1022, %v1037
    %v1039 = vsel %vm1033, %v1036, %v1038
    %v1040 = vsel %vm1032, %v1019, %v1022
    %v1041 = vsel %vm1035, %v1028, 920167782
    %v1042 = vsel %vm1034, %v1025, %v1041
    %v1043 = vsel %vm1033, %v1040, %v1042
    %v1044 = vsel %vm1032, %v1022, %v1025
    %v1045 = vsel %vm1035, %v1031, 1326507024
    %v1046 = vsel %vm1034, %v1028, %v1045
    %v1047 = vsel %vm1033, %v1044, %v1046
    %v1048 = vshll.u32 %v1008, 8
    %v1049 = vmul.u32.u64.compose %v1048, %v1047
    %v1050 = vextract.low.u32 %v1049
    %v1051 = vextract.high.u32 %v1049
    %v1052 = vmul.u32.u64.compose %v1048, %v1043
    %v1053 = vextract.low.u32 %v1052
    %v1054 = vextract.high.u32 %v1052
    %v1055 = vmul.u32 %v1048, %v1039
    %v1056 = vadd.s32 %v1051, %v1053
    %vm1057 = vc.u32 %v1051, %v1053
    %v1058 = vadd.s32 %v1054, 1
    %v1059 = vsel %vm1057, %v1058, %v1054
    %v1060 = vadd.s32 %v1055, %v1059
    %v1061 = vadd.s32 %v1060, 536870912
    %v1062 = vshrl.u32 %v1061, 30
    %v1063 = vshll.u32 %v1062, 30
    %v1064 = vsub.s32 %v1060, %v1063
    %vm1065 = vcmp.lt.s32.totalorder %v1064, 0
    %v1066 = vsub.s32 0, %v1064
    %v1067 = vsel %vm1065, %v1066, %v1064
    %v1068 = vclz %v1067
    %v1069 = vsub.s32 %v1068, 2
    %vm1070 = vcmp.gt.s32.totalorder 0, %v1069
    %v1071 = vsel %vm1070, 0, %v1069
    %v1072 = vsub.s32 32, %v1071
    %v1073 = vshll.u32 %v1064, %v1071
    %v1074 = vshrl.u32 %v1056, %v1072
    %v1075 = vor.u32 %v1073, %v1074
    %v1076 = vsub.s32 4294967266, %v1071
    %v1077 = vadd.s32 %v1076, 127
    %v1078 = vshll.u32 %v1077, 23
    %v1079 = vor.u32 4788187, %v1078
    %v1080 = vand.u32 2147483647, %v1079
    %v1082 = vcvt.s32.f32 %v1075
    %v1083 = vmul.f32 %v1082, %v1080
    %v1084 = vxor.u32 %v1083, 2147483648
    %v1085 = vsel %vm1002, %v1084, %v1083
    %v1086 = vsub.s32 4, %v1062
    %v1087 = vsel %vm1002, %v1086, %v1062
    %v1088 = vsel %vm1001, %v254, %v1085
    %v1089 = vsel %vm1001, 0, %v1087
    %v1090 = vcosq.f32.pop %v1088
    %v1091 = vsinq.f32.pop %v1088
    %vm1092 = vweird.f32 %v254
    %v1093 = vand.u32 %v1089, 3
    %vm1094 = vcmp.lt.s32.totalorder %v1093, 2
    %vm1095 = vcmp.eq.s32.totalorder %v1093, 0
    %v1096 = vxor.u32 %v1091, 2147483648
    %v1097 = vsel %vm1095, %v1090, %v1096
    %vm1098 = vcmp.eq.s32.totalorder %v1093, 2
    %v1099 = vxor.u32 %v1090, 2147483648
    %v1100 = vsel %vm1098, %v1099, %v1091
    %v1101 = vsel %vm1094, %v1097, %v1100
    %v1102 = vsel %vm1092, nan, %v1101
    %v1103 = vand.u32 2147483647, %v255
    %vm1104 = vcmp.le.f32.partialorder %v1103, 0.7853982
    %vm1105 = vcmp.lt.s32.totalorder %v255, 0
    %v1106 = vand.u32 %v255, 2139095040
    %v1107 = vshrl.u32 %v1106, 23
    %v1108 = vsub.s32 %v1107, 127
    %v1109 = vand.u32 2147483647, %v255
    %v1110 = vand.u32 %v1109, 8388607
    %v1111 = vor.u32 %v1110, 8388608
    %v1112 = vsub.s32 0, %v1111
    %v1113 = vadd.s32 %v1108, 1
    %vm1114 = vcmp.gt.s32.totalorder %v1113, 0
    %v1115 = vsel %vm1114, %v1113, 0
    %v1116 = vshrl.u32 %v1115, 5
    %v1117 = vand.u32 %v1115, 31
    %v1118 = vsub.s32 32, %v1117
    %v1119 = vshrl.u32 683565275, %v1118
    %v1120 = vshll.u32 683565275, %v1117
    %v1121 = vshrl.u32 2475754826, %v1118
    %v1122 = vor.u32 %v1120, %v1121
    %v1123 = vshll.u32 2475754826, %v1117
    %v1124 = vshrl.u32 2131351028, %v1118
    %v1125 = vor.u32 %v1123, %v1124
    %v1126 = vshll.u32 2131351028, %v1117
    %v1127 = vshrl.u32 2102212464, %v1118
    %v1128 = vor.u32 %v1126, %v1127
    %v1129 = vshll.u32 2102212464, %v1117
    %v1130 = vshrl.u32 920167782, %v1118
    %v1131 = vor.u32 %v1129, %v1130
    %v1132 = vshll.u32 920167782, %v1117
    %v1133 = vshrl.u32 1326507024, %v1118
    %v1134 = vor.u32 %v1132, %v1133
    %vm1135 = vcmp.lt.s32.totalorder %v1116, 1
    %vm1136 = vcmp.lt.s32.totalorder %v1116, 2
    %vm1137 = vcmp.lt.s32.totalorder %v1116, 3
    %vm1138 = vcmp.lt.s32.totalorder %v1116, 4
    %v1139 = vsel %vm1135, %v1119, %v1122
    %v1140 = vsel %vm1138, %v1128, 2102212464
    %v1141 = vsel %vm1137, %v1125, %v1140
    %v1142 = vsel %vm1136, %v1139, %v1141
    %v1143 = vsel %vm1135, %v1122, %v1125
    %v1144 = vsel %vm1138, %v1131, 920167782
    %v1145 = vsel %vm1137, %v1128, %v1144
    %v1146 = vsel %vm1136, %v1143, %v1145
    %v1147 = vsel %vm1135, %v1125, %v1128
    %v1148 = vsel %vm1138, %v1134, 1326507024
    %v1149 = vsel %vm1137, %v1131, %v1148
    %v1150 = vsel %vm1136, %v1147, %v1149
    %v1151 = vshll.u32 %v1111, 8
    %v1152 = vmul.u32.u64.compose %v1151, %v1150
    %v1153 = vextract.low.u32 %v1152
    %v1154 = vextract.high.u32 %v1152
    %v1155 = vmul.u32.u64.compose %v1151, %v1146
    %v1156 = vextract.low.u32 %v1155
    %v1157 = vextract.high.u32 %v1155
    %v1158 = vmul.u32 %v1151, %v1142
    %v1159 = vadd.s32 %v1154, %v1156
    %vm1160 = vc.u32 %v1154, %v1156
    %v1161 = vadd.s32 %v1157, 1
    %v1162 = vsel %vm1160, %v1161, %v1157
    %v1163 = vadd.s32 %v1158, %v1162
    %v1164 = vadd.s32 %v1163, 536870912
    %v1165 = vshrl.u32 %v1164, 30
    %v1166 = vshll.u32 %v1165, 30
    %v1167 = vsub.s32 %v1163, %v1166
    %vm1168 = vcmp.lt.s32.totalorder %v1167, 0
    %v1169 = vsub.s32 0, %v1167
    %v1170 = vsel %vm1168, %v1169, %v1167
    %v1171 = vclz %v1170
    %v1172 = vsub.s32 %v1171, 2
    %vm1173 = vcmp.gt.s32.totalorder 0, %v1172
    %v1174 = vsel %vm1173, 0, %v1172
    %v1175 = vsub.s32 32, %v1174
    %v1176 = vshll.u32 %v1167, %v1174
    %v1177 = vshrl.u32 %v1159, %v1175
    %v1178 = vor.u32 %v1176, %v1177
    %v1179 = vsub.s32 4294967266, %v1174
    %v1180 = vadd.s32 %v1179, 127
    %v1181 = vshll.u32 %v1180, 23
    %v1182 = vor.u32 4788187, %v1181
    %v1183 = vand.u32 2147483647, %v1182
    %v1185 = vcvt.s32.f32 %v1178
    %v1186 = vmul.f32 %v1185, %v1183
    %v1187 = vxor.u32 %v1186, 2147483648
    %v1188 = vsel %vm1105, %v1187, %v1186
    %v1189 = vsub.s32 4, %v1165
    %v1190 = vsel %vm1105, %v1189, %v1165
    %v1191 = vsel %vm1104, %v255, %v1188
    %v1192 = vsel %vm1104, 0, %v1190
    %v1193 = vcosq.f32.pop %v1191
    %v1194 = vsinq.f32.pop %v1191
    %vm1195 = vweird.f32 %v255
    %v1196 = vand.u32 %v1192, 3
    %vm1197 = vcmp.lt.s32.totalorder %v1196, 2
    %vm1198 = vcmp.eq.s32.totalorder %v1196, 0
    %v1199 = vxor.u32 %v1194, 2147483648
    %v1200 = vsel %vm1198, %v1193, %v1199
    %vm1201 = vcmp.eq.s32.totalorder %v1196, 2
    %v1202 = vxor.u32 %v1193, 2147483648
    %v1203 = vsel %vm1201, %v1202, %v1194
    %v1204 = vsel %vm1197, %v1200, %v1203
    %v1205 = vsel %vm1195, nan, %v1204
    %v1206 = vand.u32 2147483647, %v256
    %vm1207 = vcmp.le.f32.partialorder %v1206, 0.7853982
    %vm1208 = vcmp.lt.s32.totalorder %v256, 0
    %v1209 = vand.u32 %v256, 2139095040
    %v1210 = vshrl.u32 %v1209, 23
    %v1211 = vsub.s32 %v1210, 127
    %v1212 = vand.u32 2147483647, %v256
    %v1213 = vand.u32 %v1212, 8388607
    %v1214 = vor.u32 %v1213, 8388608
    %v1215 = vsub.s32 0, %v1214
    %v1216 = vadd.s32 %v1211, 1
    %vm1217 = vcmp.gt.s32.totalorder %v1216, 0
    %v1218 = vsel %vm1217, %v1216, 0
    %v1219 = vshrl.u32 %v1218, 5
    %v1220 = vand.u32 %v1218, 31
    %v1221 = vsub.s32 32, %v1220
    %v1222 = vshrl.u32 683565275, %v1221
    %v1223 = vshll.u32 683565275, %v1220
    %v1224 = vshrl.u32 2475754826, %v1221
    %v1225 = vor.u32 %v1223, %v1224
    %v1226 = vshll.u32 2475754826, %v1220
    %v1227 = vshrl.u32 2131351028, %v1221
    %v1228 = vor.u32 %v1226, %v1227
    %v1229 = vshll.u32 2131351028, %v1220
    %v1230 = vshrl.u32 2102212464, %v1221
    %v1231 = vor.u32 %v1229, %v1230
    %v1232 = vshll.u32 2102212464, %v1220
    %v1233 = vshrl.u32 920167782, %v1221
    %v1234 = vor.u32 %v1232, %v1233
    %v1235 = vshll.u32 920167782, %v1220
    %v1236 = vshrl.u32 1326507024, %v1221
    %v1237 = vor.u32 %v1235, %v1236
    %vm1238 = vcmp.lt.s32.totalorder %v1219, 1
    %vm1239 = vcmp.lt.s32.totalorder %v1219, 2
    %vm1240 = vcmp.lt.s32.totalorder %v1219, 3
    %vm1241 = vcmp.lt.s32.totalorder %v1219, 4
    %v1242 = vsel %vm1238, %v1222, %v1225
    %v1243 = vsel %vm1241, %v1231, 2102212464
    %v1244 = vsel %vm1240, %v1228, %v1243
    %v1245 = vsel %vm1239, %v1242, %v1244
    %v1246 = vsel %vm1238, %v1225, %v1228
    %v1247 = vsel %vm1241, %v1234, 920167782
    %v1248 = vsel %vm1240, %v1231, %v1247
    %v1249 = vsel %vm1239, %v1246, %v1248
    %v1250 = vsel %vm1238, %v1228, %v1231
    %v1251 = vsel %vm1241, %v1237, 1326507024
    %v1252 = vsel %vm1240, %v1234, %v1251
    %v1253 = vsel %vm1239, %v1250, %v1252
    %v1254 = vshll.u32 %v1214, 8
    %v1255 = vmul.u32.u64.compose %v1254, %v1253
    %v1256 = vextract.low.u32 %v1255
    %v1257 = vextract.high.u32 %v1255
    %v1258 = vmul.u32.u64.compose %v1254, %v1249
    %v1259 = vextract.low.u32 %v1258
    %v1260 = vextract.high.u32 %v1258
    %v1261 = vmul.u32 %v1254, %v1245
    %v1262 = vadd.s32 %v1257, %v1259
    %vm1263 = vc.u32 %v1257, %v1259
    %v1264 = vadd.s32 %v1260, 1
    %v1265 = vsel %vm1263, %v1264, %v1260
    %v1266 = vadd.s32 %v1261, %v1265
    %v1267 = vadd.s32 %v1266, 536870912
    %v1268 = vshrl.u32 %v1267, 30
    %v1269 = vshll.u32 %v1268, 30
    %v1270 = vsub.s32 %v1266, %v1269
    %vm1271 = vcmp.lt.s32.totalorder %v1270, 0
    %v1272 = vsub.s32 0, %v1270
    %v1273 = vsel %vm1271, %v1272, %v1270
    %v1274 = vclz %v1273
    %v1275 = vsub.s32 %v1274, 2
    %vm1276 = vcmp.gt.s32.totalorder 0, %v1275
    %v1277 = vsel %vm1276, 0, %v1275
    %v1278 = vsub.s32 32, %v1277
    %v1279 = vshll.u32 %v1270, %v1277
    %v1280 = vshrl.u32 %v1262, %v1278
    %v1281 = vor.u32 %v1279, %v1280
    %v1282 = vsub.s32 4294967266, %v1277
    %v1283 = vadd.s32 %v1282, 127
    %v1284 = vshll.u32 %v1283, 23
    %v1285 = vor.u32 4788187, %v1284
    %v1286 = vand.u32 2147483647, %v1285
    %v1288 = vcvt.s32.f32 %v1281
    %v1289 = vmul.f32 %v1288, %v1286
    %v1290 = vxor.u32 %v1289, 2147483648
    %v1291 = vsel %vm1208, %v1290, %v1289
    %v1292 = vsub.s32 4, %v1268
    %v1293 = vsel %vm1208, %v1292, %v1268
    %v1294 = vsel %vm1207, %v256, %v1291
    %v1295 = vsel %vm1207, 0, %v1293
    %v1296 = vcosq.f32.pop %v1294
    %v1297 = vsinq.f32.pop %v1294
    %vm1298 = vweird.f32 %v256
    %v1299 = vand.u32 %v1295, 3
    %vm1300 = vcmp.lt.s32.totalorder %v1299, 2
    %vm1301 = vcmp.eq.s32.totalorder %v1299, 0
    %v1302 = vxor.u32 %v1297, 2147483648
    %v1303 = vsel %vm1301, %v1296, %v1302
    %vm1304 = vcmp.eq.s32.totalorder %v1299, 2
    %v1305 = vxor.u32 %v1296, 2147483648
    %v1306 = vsel %vm1304, %v1305, %v1297
    %v1307 = vsel %vm1300, %v1303, %v1306
    %v1308 = vsel %vm1298, nan, %v1307
    %v1309 = vand.u32 2147483647, %v257
    %vm1310 = vcmp.le.f32.partialorder %v1309, 0.7853982
    %vm1311 = vcmp.lt.s32.totalorder %v257, 0
    %v1312 = vand.u32 %v257, 2139095040
    %v1313 = vshrl.u32 %v1312, 23
    %v1314 = vsub.s32 %v1313, 127
    %v1315 = vand.u32 2147483647, %v257
    %v1316 = vand.u32 %v1315, 8388607
    %v1317 = vor.u32 %v1316, 8388608
    %v1318 = vsub.s32 0, %v1317
    %v1319 = vadd.s32 %v1314, 1
    %vm1320 = vcmp.gt.s32.totalorder %v1319, 0
    %v1321 = vsel %vm1320, %v1319, 0
    %v1322 = vshrl.u32 %v1321, 5
    %v1323 = vand.u32 %v1321, 31
    %v1324 = vsub.s32 32, %v1323
    %v1325 = vshrl.u32 683565275, %v1324
    %v1326 = vshll.u32 683565275, %v1323
    %v1327 = vshrl.u32 2475754826, %v1324
    %v1328 = vor.u32 %v1326, %v1327
    %v1329 = vshll.u32 2475754826, %v1323
    %v1330 = vshrl.u32 2131351028, %v1324
    %v1331 = vor.u32 %v1329, %v1330
    %v1332 = vshll.u32 2131351028, %v1323
    %v1333 = vshrl.u32 2102212464, %v1324
    %v1334 = vor.u32 %v1332, %v1333
    %v1335 = vshll.u32 2102212464, %v1323
    %v1336 = vshrl.u32 920167782, %v1324
    %v1337 = vor.u32 %v1335, %v1336
    %v1338 = vshll.u32 920167782, %v1323
    %v1339 = vshrl.u32 1326507024, %v1324
    %v1340 = vor.u32 %v1338, %v1339
    %vm1341 = vcmp.lt.s32.totalorder %v1322, 1
    %vm1342 = vcmp.lt.s32.totalorder %v1322, 2
    %vm1343 = vcmp.lt.s32.totalorder %v1322, 3
    %vm1344 = vcmp.lt.s32.totalorder %v1322, 4
    %v1345 = vsel %vm1341, %v1325, %v1328
    %v1346 = vsel %vm1344, %v1334, 2102212464
    %v1347 = vsel %vm1343, %v1331, %v1346
    %v1348 = vsel %vm1342, %v1345, %v1347
    %v1349 = vsel %vm1341, %v1328, %v1331
    %v1350 = vsel %vm1344, %v1337, 920167782
    %v1351 = vsel %vm1343, %v1334, %v1350
    %v1352 = vsel %vm1342, %v1349, %v1351
    %v1353 = vsel %vm1341, %v1331, %v1334
    %v1354 = vsel %vm1344, %v1340, 1326507024
    %v1355 = vsel %vm1343, %v1337, %v1354
    %v1356 = vsel %vm1342, %v1353, %v1355
    %v1357 = vshll.u32 %v1317, 8
    %v1358 = vmul.u32.u64.compose %v1357, %v1356
    %v1359 = vextract.low.u32 %v1358
    %v1360 = vextract.high.u32 %v1358
    %v1361 = vmul.u32.u64.compose %v1357, %v1352
    %v1362 = vextract.low.u32 %v1361
    %v1363 = vextract.high.u32 %v1361
    %v1364 = vmul.u32 %v1357, %v1348
    %v1365 = vadd.s32 %v1360, %v1362
    %vm1366 = vc.u32 %v1360, %v1362
    %v1367 = vadd.s32 %v1363, 1
    %v1368 = vsel %vm1366, %v1367, %v1363
    %v1369 = vadd.s32 %v1364, %v1368
    %v1370 = vadd.s32 %v1369, 536870912
    %v1371 = vshrl.u32 %v1370, 30
    %v1372 = vshll.u32 %v1371, 30
    %v1373 = vsub.s32 %v1369, %v1372
    %vm1374 = vcmp.lt.s32.totalorder %v1373, 0
    %v1375 = vsub.s32 0, %v1373
    %v1376 = vsel %vm1374, %v1375, %v1373
    %v1377 = vclz %v1376
    %v1378 = vsub.s32 %v1377, 2
    %vm1379 = vcmp.gt.s32.totalorder 0, %v1378
    %v1380 = vsel %vm1379, 0, %v1378
    %v1381 = vsub.s32 32, %v1380
    %v1382 = vshll.u32 %v1373, %v1380
    %v1383 = vshrl.u32 %v1365, %v1381
    %v1384 = vor.u32 %v1382, %v1383
    %v1385 = vsub.s32 4294967266, %v1380
    %v1386 = vadd.s32 %v1385, 127
    %v1387 = vshll.u32 %v1386, 23
    %v1388 = vor.u32 4788187, %v1387
    %v1389 = vand.u32 2147483647, %v1388
    %v1391 = vcvt.s32.f32 %v1384
    %v1392 = vmul.f32 %v1391, %v1389
    %v1393 = vxor.u32 %v1392, 2147483648
    %v1394 = vsel %vm1311, %v1393, %v1392
    %v1395 = vsub.s32 4, %v1371
    %v1396 = vsel %vm1311, %v1395, %v1371
    %v1397 = vsel %vm1310, %v257, %v1394
    %v1398 = vsel %vm1310, 0, %v1396
    %v1399 = vcosq.f32.pop %v1397
    %v1400 = vsinq.f32.pop %v1397
    %vm1401 = vweird.f32 %v257
    %v1402 = vand.u32 %v1398, 3
    %vm1403 = vcmp.lt.s32.totalorder %v1402, 2
    %vm1404 = vcmp.eq.s32.totalorder %v1402, 0
    %v1405 = vxor.u32 %v1400, 2147483648
    %v1406 = vsel %vm1404, %v1399, %v1405
    %vm1407 = vcmp.eq.s32.totalorder %v1402, 2
    %v1408 = vxor.u32 %v1399, 2147483648
    %v1409 = vsel %vm1407, %v1408, %v1400
    %v1410 = vsel %vm1403, %v1406, %v1409
    %v1411 = vsel %vm1401, nan, %v1410
    %v1412 = vand.u32 2147483647, %v258
    %vm1413 = vcmp.le.f32.partialorder %v1412, 0.7853982
    %vm1414 = vcmp.lt.s32.totalorder %v258, 0
    %v1415 = vand.u32 %v258, 2139095040
    %v1416 = vshrl.u32 %v1415, 23
    %v1417 = vsub.s32 %v1416, 127
    %v1418 = vand.u32 2147483647, %v258
    %v1419 = vand.u32 %v1418, 8388607
    %v1420 = vor.u32 %v1419, 8388608
    %v1421 = vsub.s32 0, %v1420
    %v1422 = vadd.s32 %v1417, 1
    %vm1423 = vcmp.gt.s32.totalorder %v1422, 0
    %v1424 = vsel %vm1423, %v1422, 0
    %v1425 = vshrl.u32 %v1424, 5
    %v1426 = vand.u32 %v1424, 31
    %v1427 = vsub.s32 32, %v1426
    %v1428 = vshrl.u32 683565275, %v1427
    %v1429 = vshll.u32 683565275, %v1426
    %v1430 = vshrl.u32 2475754826, %v1427
    %v1431 = vor.u32 %v1429, %v1430
    %v1432 = vshll.u32 2475754826, %v1426
    %v1433 = vshrl.u32 2131351028, %v1427
    %v1434 = vor.u32 %v1432, %v1433
    %v1435 = vshll.u32 2131351028, %v1426
    %v1436 = vshrl.u32 2102212464, %v1427
    %v1437 = vor.u32 %v1435, %v1436
    %v1438 = vshll.u32 2102212464, %v1426
    %v1439 = vshrl.u32 920167782, %v1427
    %v1440 = vor.u32 %v1438, %v1439
    %v1441 = vshll.u32 920167782, %v1426
    %v1442 = vshrl.u32 1326507024, %v1427
    %v1443 = vor.u32 %v1441, %v1442
    %vm1444 = vcmp.lt.s32.totalorder %v1425, 1
    %vm1445 = vcmp.lt.s32.totalorder %v1425, 2
    %vm1446 = vcmp.lt.s32.totalorder %v1425, 3
    %vm1447 = vcmp.lt.s32.totalorder %v1425, 4
    %v1448 = vsel %vm1444, %v1428, %v1431
    %v1449 = vsel %vm1447, %v1437, 2102212464
    %v1450 = vsel %vm1446, %v1434, %v1449
    %v1451 = vsel %vm1445, %v1448, %v1450
    %v1452 = vsel %vm1444, %v1431, %v1434
    %v1453 = vsel %vm1447, %v1440, 920167782
    %v1454 = vsel %vm1446, %v1437, %v1453
    %v1455 = vsel %vm1445, %v1452, %v1454
    %v1456 = vsel %vm1444, %v1434, %v1437
    %v1457 = vsel %vm1447, %v1443, 1326507024
    %v1458 = vsel %vm1446, %v1440, %v1457
    %v1459 = vsel %vm1445, %v1456, %v1458
    %v1460 = vshll.u32 %v1420, 8
    %v1461 = vmul.u32.u64.compose %v1460, %v1459
    %v1462 = vextract.low.u32 %v1461
    %v1463 = vextract.high.u32 %v1461
    %v1464 = vmul.u32.u64.compose %v1460, %v1455
    %v1465 = vextract.low.u32 %v1464
    %v1466 = vextract.high.u32 %v1464
    %v1467 = vmul.u32 %v1460, %v1451
    %v1468 = vadd.s32 %v1463, %v1465
    %vm1469 = vc.u32 %v1463, %v1465
    %v1470 = vadd.s32 %v1466, 1
    %v1471 = vsel %vm1469, %v1470, %v1466
    %v1472 = vadd.s32 %v1467, %v1471
    %v1473 = vadd.s32 %v1472, 536870912
    %v1474 = vshrl.u32 %v1473, 30
    %v1475 = vshll.u32 %v1474, 30
    %v1476 = vsub.s32 %v1472, %v1475
    %vm1477 = vcmp.lt.s32.totalorder %v1476, 0
    %v1478 = vsub.s32 0, %v1476
    %v1479 = vsel %vm1477, %v1478, %v1476
    %v1480 = vclz %v1479
    %v1481 = vsub.s32 %v1480, 2
    %vm1482 = vcmp.gt.s32.totalorder 0, %v1481
    %v1483 = vsel %vm1482, 0, %v1481
    %v1484 = vsub.s32 32, %v1483
    %v1485 = vshll.u32 %v1476, %v1483
    %v1486 = vshrl.u32 %v1468, %v1484
    %v1487 = vor.u32 %v1485, %v1486
    %v1488 = vsub.s32 4294967266, %v1483
    %v1489 = vadd.s32 %v1488, 127
    %v1490 = vshll.u32 %v1489, 23
    %v1491 = vor.u32 4788187, %v1490
    %v1492 = vand.u32 2147483647, %v1491
    %v1494 = vcvt.s32.f32 %v1487
    %v1495 = vmul.f32 %v1494, %v1492
    %v1496 = vxor.u32 %v1495, 2147483648
    %v1497 = vsel %vm1414, %v1496, %v1495
    %v1498 = vsub.s32 4, %v1474
    %v1499 = vsel %vm1414, %v1498, %v1474
    %v1500 = vsel %vm1413, %v258, %v1497
    %v1501 = vsel %vm1413, 0, %v1499
    %v1502 = vcosq.f32.pop %v1500
    %v1503 = vsinq.f32.pop %v1500
    %vm1504 = vweird.f32 %v258
    %v1505 = vand.u32 %v1501, 3
    %vm1506 = vcmp.lt.s32.totalorder %v1505, 2
    %vm1507 = vcmp.eq.s32.totalorder %v1505, 0
    %v1508 = vxor.u32 %v1503, 2147483648
    %v1509 = vsel %vm1507, %v1502, %v1508
    %vm1510 = vcmp.eq.s32.totalorder %v1505, 2
    %v1511 = vxor.u32 %v1502, 2147483648
    %v1512 = vsel %vm1510, %v1511, %v1503
    %v1513 = vsel %vm1506, %v1509, %v1512
    %v1514 = vsel %vm1504, nan, %v1513
    %v1515 = vand.u32 2147483647, %v259
    %vm1516 = vcmp.le.f32.partialorder %v1515, 0.7853982
    %vm1517 = vcmp.lt.s32.totalorder %v259, 0
    %v1518 = vand.u32 %v259, 2139095040
    %v1519 = vshrl.u32 %v1518, 23
    %v1520 = vsub.s32 %v1519, 127
    %v1521 = vand.u32 2147483647, %v259
    %v1522 = vand.u32 %v1521, 8388607
    %v1523 = vor.u32 %v1522, 8388608
    %v1524 = vsub.s32 0, %v1523
    %v1525 = vadd.s32 %v1520, 1
    %vm1526 = vcmp.gt.s32.totalorder %v1525, 0
    %v1527 = vsel %vm1526, %v1525, 0
    %v1528 = vshrl.u32 %v1527, 5
    %v1529 = vand.u32 %v1527, 31
    %v1530 = vsub.s32 32, %v1529
    %v1531 = vshrl.u32 683565275, %v1530
    %v1532 = vshll.u32 683565275, %v1529
    %v1533 = vshrl.u32 2475754826, %v1530
    %v1534 = vor.u32 %v1532, %v1533
    %v1535 = vshll.u32 2475754826, %v1529
    %v1536 = vshrl.u32 2131351028, %v1530
    %v1537 = vor.u32 %v1535, %v1536
    %v1538 = vshll.u32 2131351028, %v1529
    %v1539 = vshrl.u32 2102212464, %v1530
    %v1540 = vor.u32 %v1538, %v1539
    %v1541 = vshll.u32 2102212464, %v1529
    %v1542 = vshrl.u32 920167782, %v1530
    %v1543 = vor.u32 %v1541, %v1542
    %v1544 = vshll.u32 920167782, %v1529
    %v1545 = vshrl.u32 1326507024, %v1530
    %v1546 = vor.u32 %v1544, %v1545
    %vm1547 = vcmp.lt.s32.totalorder %v1528, 1
    %vm1548 = vcmp.lt.s32.totalorder %v1528, 2
    %vm1549 = vcmp.lt.s32.totalorder %v1528, 3
    %vm1550 = vcmp.lt.s32.totalorder %v1528, 4
    %v1551 = vsel %vm1547, %v1531, %v1534
    %v1552 = vsel %vm1550, %v1540, 2102212464
    %v1553 = vsel %vm1549, %v1537, %v1552
    %v1554 = vsel %vm1548, %v1551, %v1553
    %v1555 = vsel %vm1547, %v1534, %v1537
    %v1556 = vsel %vm1550, %v1543, 920167782
    %v1557 = vsel %vm1549, %v1540, %v1556
    %v1558 = vsel %vm1548, %v1555, %v1557
    %v1559 = vsel %vm1547, %v1537, %v1540
    %v1560 = vsel %vm1550, %v1546, 1326507024
    %v1561 = vsel %vm1549, %v1543, %v1560
    %v1562 = vsel %vm1548, %v1559, %v1561
    %v1563 = vshll.u32 %v1523, 8
    %v1564 = vmul.u32.u64.compose %v1563, %v1562
    %v1565 = vextract.low.u32 %v1564
    %v1566 = vextract.high.u32 %v1564
    %v1567 = vmul.u32.u64.compose %v1563, %v1558
    %v1568 = vextract.low.u32 %v1567
    %v1569 = vextract.high.u32 %v1567
    %v1570 = vmul.u32 %v1563, %v1554
    %v1571 = vadd.s32 %v1566, %v1568
    %vm1572 = vc.u32 %v1566, %v1568
    %v1573 = vadd.s32 %v1569, 1
    %v1574 = vsel %vm1572, %v1573, %v1569
    %v1575 = vadd.s32 %v1570, %v1574
    %v1576 = vadd.s32 %v1575, 536870912
    %v1577 = vshrl.u32 %v1576, 30
    %v1578 = vshll.u32 %v1577, 30
    %v1579 = vsub.s32 %v1575, %v1578
    %vm1580 = vcmp.lt.s32.totalorder %v1579, 0
    %v1581 = vsub.s32 0, %v1579
    %v1582 = vsel %vm1580, %v1581, %v1579
    %v1583 = vclz %v1582
    %v1584 = vsub.s32 %v1583, 2
    %vm1585 = vcmp.gt.s32.totalorder 0, %v1584
    %v1586 = vsel %vm1585, 0, %v1584
    %v1587 = vsub.s32 32, %v1586
    %v1588 = vshll.u32 %v1579, %v1586
    %v1589 = vshrl.u32 %v1571, %v1587
    %v1590 = vor.u32 %v1588, %v1589
    %v1591 = vsub.s32 4294967266, %v1586
    %v1592 = vadd.s32 %v1591, 127
    %v1593 = vshll.u32 %v1592, 23
    %v1594 = vor.u32 4788187, %v1593
    %v1595 = vand.u32 2147483647, %v1594
    %v1597 = vcvt.s32.f32 %v1590
    %v1598 = vmul.f32 %v1597, %v1595
    %v1599 = vxor.u32 %v1598, 2147483648
    %v1600 = vsel %vm1517, %v1599, %v1598
    %v1601 = vsub.s32 4, %v1577
    %v1602 = vsel %vm1517, %v1601, %v1577
    %v1603 = vsel %vm1516, %v259, %v1600
    %v1604 = vsel %vm1516, 0, %v1602
    %v1605 = vcosq.f32.pop %v1603
    %v1606 = vsinq.f32.pop %v1603
    %vm1607 = vweird.f32 %v259
    %v1608 = vand.u32 %v1604, 3
    %vm1609 = vcmp.lt.s32.totalorder %v1608, 2
    %vm1610 = vcmp.eq.s32.totalorder %v1608, 0
    %v1611 = vxor.u32 %v1606, 2147483648
    %v1612 = vsel %vm1610, %v1605, %v1611
    %vm1613 = vcmp.eq.s32.totalorder %v1608, 2
    %v1614 = vxor.u32 %v1605, 2147483648
    %v1615 = vsel %vm1613, %v1614, %v1606
    %v1616 = vsel %vm1609, %v1612, %v1615
    %v1617 = vsel %vm1607, nan, %v1616
    %v1618 = vand.u32 2147483647, %v260
    %vm1619 = vcmp.le.f32.partialorder %v1618, 0.7853982
    %vm1620 = vcmp.lt.s32.totalorder %v260, 0
    %v1621 = vand.u32 %v260, 2139095040
    %v1622 = vshrl.u32 %v1621, 23
    %v1623 = vsub.s32 %v1622, 127
    %v1624 = vand.u32 2147483647, %v260
    %v1625 = vand.u32 %v1624, 8388607
    %v1626 = vor.u32 %v1625, 8388608
    %v1627 = vsub.s32 0, %v1626
    %v1628 = vadd.s32 %v1623, 1
    %vm1629 = vcmp.gt.s32.totalorder %v1628, 0
    %v1630 = vsel %vm1629, %v1628, 0
    %v1631 = vshrl.u32 %v1630, 5
    %v1632 = vand.u32 %v1630, 31
    %v1633 = vsub.s32 32, %v1632
    %v1634 = vshrl.u32 683565275, %v1633
    %v1635 = vshll.u32 683565275, %v1632
    %v1636 = vshrl.u32 2475754826, %v1633
    %v1637 = vor.u32 %v1635, %v1636
    %v1638 = vshll.u32 2475754826, %v1632
    %v1639 = vshrl.u32 2131351028, %v1633
    %v1640 = vor.u32 %v1638, %v1639
    %v1641 = vshll.u32 2131351028, %v1632
    %v1642 = vshrl.u32 2102212464, %v1633
    %v1643 = vor.u32 %v1641, %v1642
    %v1644 = vshll.u32 2102212464, %v1632
    %v1645 = vshrl.u32 920167782, %v1633
    %v1646 = vor.u32 %v1644, %v1645
    %v1647 = vshll.u32 920167782, %v1632
    %v1648 = vshrl.u32 1326507024, %v1633
    %v1649 = vor.u32 %v1647, %v1648
    %vm1650 = vcmp.lt.s32.totalorder %v1631, 1
    %vm1651 = vcmp.lt.s32.totalorder %v1631, 2
    %vm1652 = vcmp.lt.s32.totalorder %v1631, 3
    %vm1653 = vcmp.lt.s32.totalorder %v1631, 4
    %v1654 = vsel %vm1650, %v1634, %v1637
    %v1655 = vsel %vm1653, %v1643, 2102212464
    %v1656 = vsel %vm1652, %v1640, %v1655
    %v1657 = vsel %vm1651, %v1654, %v1656
    %v1658 = vsel %vm1650, %v1637, %v1640
    %v1659 = vsel %vm1653, %v1646, 920167782
    %v1660 = vsel %vm1652, %v1643, %v1659
    %v1661 = vsel %vm1651, %v1658, %v1660
    %v1662 = vsel %vm1650, %v1640, %v1643
    %v1663 = vsel %vm1653, %v1649, 1326507024
    %v1664 = vsel %vm1652, %v1646, %v1663
    %v1665 = vsel %vm1651, %v1662, %v1664
    %v1666 = vshll.u32 %v1626, 8
    %v1667 = vmul.u32.u64.compose %v1666, %v1665
    %v1668 = vextract.low.u32 %v1667
    %v1669 = vextract.high.u32 %v1667
    %v1670 = vmul.u32.u64.compose %v1666, %v1661
    %v1671 = vextract.low.u32 %v1670
    %v1672 = vextract.high.u32 %v1670
    %v1673 = vmul.u32 %v1666, %v1657
    %v1674 = vadd.s32 %v1669, %v1671
    %vm1675 = vc.u32 %v1669, %v1671
    %v1676 = vadd.s32 %v1672, 1
    %v1677 = vsel %vm1675, %v1676, %v1672
    %v1678 = vadd.s32 %v1673, %v1677
    %v1679 = vadd.s32 %v1678, 536870912
    %v1680 = vshrl.u32 %v1679, 30
    %v1681 = vshll.u32 %v1680, 30
    %v1682 = vsub.s32 %v1678, %v1681
    %vm1683 = vcmp.lt.s32.totalorder %v1682, 0
    %v1684 = vsub.s32 0, %v1682
    %v1685 = vsel %vm1683, %v1684, %v1682
    %v1686 = vclz %v1685
    %v1687 = vsub.s32 %v1686, 2
    %vm1688 = vcmp.gt.s32.totalorder 0, %v1687
    %v1689 = vsel %vm1688, 0, %v1687
    %v1690 = vsub.s32 32, %v1689
    %v1691 = vshll.u32 %v1682, %v1689
    %v1692 = vshrl.u32 %v1674, %v1690
    %v1693 = vor.u32 %v1691, %v1692
    %v1694 = vsub.s32 4294967266, %v1689
    %v1695 = vadd.s32 %v1694, 127
    %v1696 = vshll.u32 %v1695, 23
    %v1697 = vor.u32 4788187, %v1696
    %v1698 = vand.u32 2147483647, %v1697
    %v1700 = vcvt.s32.f32 %v1693
    %v1701 = vmul.f32 %v1700, %v1698
    %v1702 = vxor.u32 %v1701, 2147483648
    %v1703 = vsel %vm1620, %v1702, %v1701
    %v1704 = vsub.s32 4, %v1680
    %v1705 = vsel %vm1620, %v1704, %v1680
    %v1706 = vsel %vm1619, %v260, %v1703
    %v1707 = vsel %vm1619, 0, %v1705
    %v1708 = vcosq.f32.pop %v1706
    %v1709 = vsinq.f32.pop %v1706
    %vm1710 = vweird.f32 %v260
    %v1711 = vand.u32 %v1707, 3
    %vm1712 = vcmp.lt.s32.totalorder %v1711, 2
    %vm1713 = vcmp.eq.s32.totalorder %v1711, 0
    %v1714 = vxor.u32 %v1709, 2147483648
    %v1715 = vsel %vm1713, %v1708, %v1714
    %vm1716 = vcmp.eq.s32.totalorder %v1711, 2
    %v1717 = vxor.u32 %v1708, 2147483648
    %v1718 = vsel %vm1716, %v1717, %v1709
    %v1719 = vsel %vm1712, %v1715, %v1718
    %v1720 = vsel %vm1710, nan, %v1719
    %v1721 = vand.u32 2147483647, %v261
    %vm1722 = vcmp.le.f32.partialorder %v1721, 0.7853982
    %vm1723 = vcmp.lt.s32.totalorder %v261, 0
    %v1724 = vand.u32 %v261, 2139095040
    %v1725 = vshrl.u32 %v1724, 23
    %v1726 = vsub.s32 %v1725, 127
    %v1727 = vand.u32 2147483647, %v261
    %v1728 = vand.u32 %v1727, 8388607
    %v1729 = vor.u32 %v1728, 8388608
    %v1730 = vsub.s32 0, %v1729
    %v1731 = vadd.s32 %v1726, 1
    %vm1732 = vcmp.gt.s32.totalorder %v1731, 0
    %v1733 = vsel %vm1732, %v1731, 0
    %v1734 = vshrl.u32 %v1733, 5
    %v1735 = vand.u32 %v1733, 31
    %v1736 = vsub.s32 32, %v1735
    %v1737 = vshrl.u32 683565275, %v1736
    %v1738 = vshll.u32 683565275, %v1735
    %v1739 = vshrl.u32 2475754826, %v1736
    %v1740 = vor.u32 %v1738, %v1739
    %v1741 = vshll.u32 2475754826, %v1735
    %v1742 = vshrl.u32 2131351028, %v1736
    %v1743 = vor.u32 %v1741, %v1742
    %v1744 = vshll.u32 2131351028, %v1735
    %v1745 = vshrl.u32 2102212464, %v1736
    %v1746 = vor.u32 %v1744, %v1745
    %v1747 = vshll.u32 2102212464, %v1735
    %v1748 = vshrl.u32 920167782, %v1736
    %v1749 = vor.u32 %v1747, %v1748
    %v1750 = vshll.u32 920167782, %v1735
    %v1751 = vshrl.u32 1326507024, %v1736
    %v1752 = vor.u32 %v1750, %v1751
    %vm1753 = vcmp.lt.s32.totalorder %v1734, 1
    %vm1754 = vcmp.lt.s32.totalorder %v1734, 2
    %vm1755 = vcmp.lt.s32.totalorder %v1734, 3
    %vm1756 = vcmp.lt.s32.totalorder %v1734, 4
    %v1757 = vsel %vm1753, %v1737, %v1740
    %v1758 = vsel %vm1756, %v1746, 2102212464
    %v1759 = vsel %vm1755, %v1743, %v1758
    %v1760 = vsel %vm1754, %v1757, %v1759
    %v1761 = vsel %vm1753, %v1740, %v1743
    %v1762 = vsel %vm1756, %v1749, 920167782
    %v1763 = vsel %vm1755, %v1746, %v1762
    %v1764 = vsel %vm1754, %v1761, %v1763
    %v1765 = vsel %vm1753, %v1743, %v1746
    %v1766 = vsel %vm1756, %v1752, 1326507024
    %v1767 = vsel %vm1755, %v1749, %v1766
    %v1768 = vsel %vm1754, %v1765, %v1767
    %v1769 = vshll.u32 %v1729, 8
    %v1770 = vmul.u32.u64.compose %v1769, %v1768
    %v1771 = vextract.low.u32 %v1770
    %v1772 = vextract.high.u32 %v1770
    %v1773 = vmul.u32.u64.compose %v1769, %v1764
    %v1774 = vextract.low.u32 %v1773
    %v1775 = vextract.high.u32 %v1773
    %v1776 = vmul.u32 %v1769, %v1760
    %v1777 = vadd.s32 %v1772, %v1774
    %vm1778 = vc.u32 %v1772, %v1774
    %v1779 = vadd.s32 %v1775, 1
    %v1780 = vsel %vm1778, %v1779, %v1775
    %v1781 = vadd.s32 %v1776, %v1780
    %v1782 = vadd.s32 %v1781, 536870912
    %v1783 = vshrl.u32 %v1782, 30
    %v1784 = vshll.u32 %v1783, 30
    %v1785 = vsub.s32 %v1781, %v1784
    %vm1786 = vcmp.lt.s32.totalorder %v1785, 0
    %v1787 = vsub.s32 0, %v1785
    %v1788 = vsel %vm1786, %v1787, %v1785
    %v1789 = vclz %v1788
    %v1790 = vsub.s32 %v1789, 2
    %vm1791 = vcmp.gt.s32.totalorder 0, %v1790
    %v1792 = vsel %vm1791, 0, %v1790
    %v1793 = vsub.s32 32, %v1792
    %v1794 = vshll.u32 %v1785, %v1792
    %v1795 = vshrl.u32 %v1777, %v1793
    %v1796 = vor.u32 %v1794, %v1795
    %v1797 = vsub.s32 4294967266, %v1792
    %v1798 = vadd.s32 %v1797, 127
    %v1799 = vshll.u32 %v1798, 23
    %v1800 = vor.u32 4788187, %v1799
    %v1801 = vand.u32 2147483647, %v1800
    %v1803 = vcvt.s32.f32 %v1796
    %v1804 = vmul.f32 %v1803, %v1801
    %v1805 = vxor.u32 %v1804, 2147483648
    %v1806 = vsel %vm1723, %v1805, %v1804
    %v1807 = vsub.s32 4, %v1783
    %v1808 = vsel %vm1723, %v1807, %v1783
    %v1809 = vsel %vm1722, %v261, %v1806
    %v1810 = vsel %vm1722, 0, %v1808
    %v1811 = vcosq.f32.pop %v1809
    %v1812 = vsinq.f32.pop %v1809
    %vm1813 = vweird.f32 %v261
    %v1814 = vand.u32 %v1810, 3
    %vm1815 = vcmp.lt.s32.totalorder %v1814, 2
    %vm1816 = vcmp.eq.s32.totalorder %v1814, 0
    %v1817 = vxor.u32 %v1812, 2147483648
    %v1818 = vsel %vm1816, %v1811, %v1817
    %vm1819 = vcmp.eq.s32.totalorder %v1814, 2
    %v1820 = vxor.u32 %v1811, 2147483648
    %v1821 = vsel %vm1819, %v1820, %v1812
    %v1822 = vsel %vm1815, %v1818, %v1821
    %v1823 = vsel %vm1813, nan, %v1822
    %v1824 = vand.u32 2147483647, %v262
    %vm1825 = vcmp.le.f32.partialorder %v1824, 0.7853982
    %vm1826 = vcmp.lt.s32.totalorder %v262, 0
    %v1827 = vand.u32 %v262, 2139095040
    %v1828 = vshrl.u32 %v1827, 23
    %v1829 = vsub.s32 %v1828, 127
    %v1830 = vand.u32 2147483647, %v262
    %v1831 = vand.u32 %v1830, 8388607
    %v1832 = vor.u32 %v1831, 8388608
    %v1833 = vsub.s32 0, %v1832
    %v1834 = vadd.s32 %v1829, 1
    %vm1835 = vcmp.gt.s32.totalorder %v1834, 0
    %v1836 = vsel %vm1835, %v1834, 0
    %v1837 = vshrl.u32 %v1836, 5
    %v1838 = vand.u32 %v1836, 31
    %v1839 = vsub.s32 32, %v1838
    %v1840 = vshrl.u32 683565275, %v1839
    %v1841 = vshll.u32 683565275, %v1838
    %v1842 = vshrl.u32 2475754826, %v1839
    %v1843 = vor.u32 %v1841, %v1842
    %v1844 = vshll.u32 2475754826, %v1838
    %v1845 = vshrl.u32 2131351028, %v1839
    %v1846 = vor.u32 %v1844, %v1845
    %v1847 = vshll.u32 2131351028, %v1838
    %v1848 = vshrl.u32 2102212464, %v1839
    %v1849 = vor.u32 %v1847, %v1848
    %v1850 = vshll.u32 2102212464, %v1838
    %v1851 = vshrl.u32 920167782, %v1839
    %v1852 = vor.u32 %v1850, %v1851
    %v1853 = vshll.u32 920167782, %v1838
    %v1854 = vshrl.u32 1326507024, %v1839
    %v1855 = vor.u32 %v1853, %v1854
    %vm1856 = vcmp.lt.s32.totalorder %v1837, 1
    %vm1857 = vcmp.lt.s32.totalorder %v1837, 2
    %vm1858 = vcmp.lt.s32.totalorder %v1837, 3
    %vm1859 = vcmp.lt.s32.totalorder %v1837, 4
    %v1860 = vsel %vm1856, %v1840, %v1843
    %v1861 = vsel %vm1859, %v1849, 2102212464
    %v1862 = vsel %vm1858, %v1846, %v1861
    %v1863 = vsel %vm1857, %v1860, %v1862
    %v1864 = vsel %vm1856, %v1843, %v1846
    %v1865 = vsel %vm1859, %v1852, 920167782
    %v1866 = vsel %vm1858, %v1849, %v1865
    %v1867 = vsel %vm1857, %v1864, %v1866
    %v1868 = vsel %vm1856, %v1846, %v1849
    %v1869 = vsel %vm1859, %v1855, 1326507024
    %v1870 = vsel %vm1858, %v1852, %v1869
    %v1871 = vsel %vm1857, %v1868, %v1870
    %v1872 = vshll.u32 %v1832, 8
    %v1873 = vmul.u32.u64.compose %v1872, %v1871
    %v1874 = vextract.low.u32 %v1873
    %v1875 = vextract.high.u32 %v1873
    %v1876 = vmul.u32.u64.compose %v1872, %v1867
    %v1877 = vextract.low.u32 %v1876
    %v1878 = vextract.high.u32 %v1876
    %v1879 = vmul.u32 %v1872, %v1863
    %v1880 = vadd.s32 %v1875, %v1877
    %vm1881 = vc.u32 %v1875, %v1877
    %v1882 = vadd.s32 %v1878, 1
    %v1883 = vsel %vm1881, %v1882, %v1878
    %v1884 = vadd.s32 %v1879, %v1883
    %v1885 = vadd.s32 %v1884, 536870912
    %v1886 = vshrl.u32 %v1885, 30
    %v1887 = vshll.u32 %v1886, 30
    %v1888 = vsub.s32 %v1884, %v1887
    %vm1889 = vcmp.lt.s32.totalorder %v1888, 0
    %v1890 = vsub.s32 0, %v1888
    %v1891 = vsel %vm1889, %v1890, %v1888
    %v1892 = vclz %v1891
    %v1893 = vsub.s32 %v1892, 2
    %vm1894 = vcmp.gt.s32.totalorder 0, %v1893
    %v1895 = vsel %vm1894, 0, %v1893
    %v1896 = vsub.s32 32, %v1895
    %v1897 = vshll.u32 %v1888, %v1895
    %v1898 = vshrl.u32 %v1880, %v1896
    %v1899 = vor.u32 %v1897, %v1898
    %v1900 = vsub.s32 4294967266, %v1895
    %v1901 = vadd.s32 %v1900, 127
    %v1902 = vshll.u32 %v1901, 23
    %v1903 = vor.u32 4788187, %v1902
    %v1904 = vand.u32 2147483647, %v1903
    %v1906 = vcvt.s32.f32 %v1899
    %v1907 = vmul.f32 %v1906, %v1904
    %v1908 = vxor.u32 %v1907, 2147483648
    %v1909 = vsel %vm1826, %v1908, %v1907
    %v1910 = vsub.s32 4, %v1886
    %v1911 = vsel %vm1826, %v1910, %v1886
    %v1912 = vsel %vm1825, %v262, %v1909
    %v1913 = vsel %vm1825, 0, %v1911
    %v1914 = vcosq.f32.pop %v1912
    %v1915 = vsinq.f32.pop %v1912
    %vm1916 = vweird.f32 %v262
    %v1917 = vand.u32 %v1913, 3
    %vm1918 = vcmp.lt.s32.totalorder %v1917, 2
    %vm1919 = vcmp.eq.s32.totalorder %v1917, 0
    %v1920 = vxor.u32 %v1915, 2147483648
    %v1921 = vsel %vm1919, %v1914, %v1920
    %vm1922 = vcmp.eq.s32.totalorder %v1917, 2
    %v1923 = vxor.u32 %v1914, 2147483648
    %v1924 = vsel %vm1922, %v1923, %v1915
    %v1925 = vsel %vm1918, %v1921, %v1924
    %v1926 = vsel %vm1916, nan, %v1925
    %v1927 = vand.u32 2147483647, %v263
    %vm1928 = vcmp.le.f32.partialorder %v1927, 0.7853982
    %vm1929 = vcmp.lt.s32.totalorder %v263, 0
    %v1930 = vand.u32 %v263, 2139095040
    %v1931 = vshrl.u32 %v1930, 23
    %v1932 = vsub.s32 %v1931, 127
    %v1933 = vand.u32 2147483647, %v263
    %v1934 = vand.u32 %v1933, 8388607
    %v1935 = vor.u32 %v1934, 8388608
    %v1936 = vsub.s32 0, %v1935
    %v1937 = vadd.s32 %v1932, 1
    %vm1938 = vcmp.gt.s32.totalorder %v1937, 0
    %v1939 = vsel %vm1938, %v1937, 0
    %v1940 = vshrl.u32 %v1939, 5
    %v1941 = vand.u32 %v1939, 31
    %v1942 = vsub.s32 32, %v1941
    %v1943 = vshrl.u32 683565275, %v1942
    %v1944 = vshll.u32 683565275, %v1941
    %v1945 = vshrl.u32 2475754826, %v1942
    %v1946 = vor.u32 %v1944, %v1945
    %v1947 = vshll.u32 2475754826, %v1941
    %v1948 = vshrl.u32 2131351028, %v1942
    %v1949 = vor.u32 %v1947, %v1948
    %v1950 = vshll.u32 2131351028, %v1941
    %v1951 = vshrl.u32 2102212464, %v1942
    %v1952 = vor.u32 %v1950, %v1951
    %v1953 = vshll.u32 2102212464, %v1941
    %v1954 = vshrl.u32 920167782, %v1942
    %v1955 = vor.u32 %v1953, %v1954
    %v1956 = vshll.u32 920167782, %v1941
    %v1957 = vshrl.u32 1326507024, %v1942
    %v1958 = vor.u32 %v1956, %v1957
    %vm1959 = vcmp.lt.s32.totalorder %v1940, 1
    %vm1960 = vcmp.lt.s32.totalorder %v1940, 2
    %vm1961 = vcmp.lt.s32.totalorder %v1940, 3
    %vm1962 = vcmp.lt.s32.totalorder %v1940, 4
    %v1963 = vsel %vm1959, %v1943, %v1946
    %v1964 = vsel %vm1962, %v1952, 2102212464
    %v1965 = vsel %vm1961, %v1949, %v1964
    %v1966 = vsel %vm1960, %v1963, %v1965
    %v1967 = vsel %vm1959, %v1946, %v1949
    %v1968 = vsel %vm1962, %v1955, 920167782
    %v1969 = vsel %vm1961, %v1952, %v1968
    %v1970 = vsel %vm1960, %v1967, %v1969
    %v1971 = vsel %vm1959, %v1949, %v1952
    %v1972 = vsel %vm1962, %v1958, 1326507024
    %v1973 = vsel %vm1961, %v1955, %v1972
    %v1974 = vsel %vm1960, %v1971, %v1973
    %v1975 = vshll.u32 %v1935, 8
    %v1976 = vmul.u32.u64.compose %v1975, %v1974
    %v1977 = vextract.low.u32 %v1976
    %v1978 = vextract.high.u32 %v1976
    %v1979 = vmul.u32.u64.compose %v1975, %v1970
    %v1980 = vextract.low.u32 %v1979
    %v1981 = vextract.high.u32 %v1979
    %v1982 = vmul.u32 %v1975, %v1966
    %v1983 = vadd.s32 %v1978, %v1980
    %vm1984 = vc.u32 %v1978, %v1980
    %v1985 = vadd.s32 %v1981, 1
    %v1986 = vsel %vm1984, %v1985, %v1981
    %v1987 = vadd.s32 %v1982, %v1986
    %v1988 = vadd.s32 %v1987, 536870912
    %v1989 = vshrl.u32 %v1988, 30
    %v1990 = vshll.u32 %v1989, 30
    %v1991 = vsub.s32 %v1987, %v1990
    %vm1992 = vcmp.lt.s32.totalorder %v1991, 0
    %v1993 = vsub.s32 0, %v1991
    %v1994 = vsel %vm1992, %v1993, %v1991
    %v1995 = vclz %v1994
    %v1996 = vsub.s32 %v1995, 2
    %vm1997 = vcmp.gt.s32.totalorder 0, %v1996
    %v1998 = vsel %vm1997, 0, %v1996
    %v1999 = vsub.s32 32, %v1998
    %v2000 = vshll.u32 %v1991, %v1998
    %v2001 = vshrl.u32 %v1983, %v1999
    %v2002 = vor.u32 %v2000, %v2001
    %v2003 = vsub.s32 4294967266, %v1998
    %v2004 = vadd.s32 %v2003, 127
    %v2005 = vshll.u32 %v2004, 23
    %v2006 = vor.u32 4788187, %v2005
    %v2007 = vand.u32 2147483647, %v2006
    %v2009 = vcvt.s32.f32 %v2002
    %v2010 = vmul.f32 %v2009, %v2007
    %v2011 = vxor.u32 %v2010, 2147483648
    %v2012 = vsel %vm1929, %v2011, %v2010
    %v2013 = vsub.s32 4, %v1989
    %v2014 = vsel %vm1929, %v2013, %v1989
    %v2015 = vsel %vm1928, %v263, %v2012
    %v2016 = vsel %vm1928, 0, %v2014
    %v2017 = vcosq.f32.pop %v2015
    %v2018 = vsinq.f32.pop %v2015
    %vm2019 = vweird.f32 %v263
    %v2020 = vand.u32 %v2016, 3
    %vm2021 = vcmp.lt.s32.totalorder %v2020, 2
    %vm2022 = vcmp.eq.s32.totalorder %v2020, 0
    %v2023 = vxor.u32 %v2018, 2147483648
    %v2024 = vsel %vm2022, %v2017, %v2023
    %vm2025 = vcmp.eq.s32.totalorder %v2020, 2
    %v2026 = vxor.u32 %v2017, 2147483648
    %v2027 = vsel %vm2025, %v2026, %v2018
    %v2028 = vsel %vm2021, %v2024, %v2027
    %v2029 = vsel %vm2019, nan, %v2028
    %v2030 = vand.u32 2147483647, %v264
    %vm2031 = vcmp.le.f32.partialorder %v2030, 0.7853982
    %vm2032 = vcmp.lt.s32.totalorder %v264, 0
    %v2033 = vand.u32 %v264, 2139095040
    %v2034 = vshrl.u32 %v2033, 23
    %v2035 = vsub.s32 %v2034, 127
    %v2036 = vand.u32 2147483647, %v264
    %v2037 = vand.u32 %v2036, 8388607
    %v2038 = vor.u32 %v2037, 8388608
    %v2039 = vsub.s32 0, %v2038
    %v2040 = vadd.s32 %v2035, 1
    %vm2041 = vcmp.gt.s32.totalorder %v2040, 0
    %v2042 = vsel %vm2041, %v2040, 0
    %v2043 = vshrl.u32 %v2042, 5
    %v2044 = vand.u32 %v2042, 31
    %v2045 = vsub.s32 32, %v2044
    %v2046 = vshrl.u32 683565275, %v2045
    %v2047 = vshll.u32 683565275, %v2044
    %v2048 = vshrl.u32 2475754826, %v2045
    %v2049 = vor.u32 %v2047, %v2048
    %v2050 = vshll.u32 2475754826, %v2044
    %v2051 = vshrl.u32 2131351028, %v2045
    %v2052 = vor.u32 %v2050, %v2051
    %v2053 = vshll.u32 2131351028, %v2044
    %v2054 = vshrl.u32 2102212464, %v2045
    %v2055 = vor.u32 %v2053, %v2054
    %v2056 = vshll.u32 2102212464, %v2044
    %v2057 = vshrl.u32 920167782, %v2045
    %v2058 = vor.u32 %v2056, %v2057
    %v2059 = vshll.u32 920167782, %v2044
    %v2060 = vshrl.u32 1326507024, %v2045
    %v2061 = vor.u32 %v2059, %v2060
    %vm2062 = vcmp.lt.s32.totalorder %v2043, 1
    %vm2063 = vcmp.lt.s32.totalorder %v2043, 2
    %vm2064 = vcmp.lt.s32.totalorder %v2043, 3
    %vm2065 = vcmp.lt.s32.totalorder %v2043, 4
    %v2066 = vsel %vm2062, %v2046, %v2049
    %v2067 = vsel %vm2065, %v2055, 2102212464
    %v2068 = vsel %vm2064, %v2052, %v2067
    %v2069 = vsel %vm2063, %v2066, %v2068
    %v2070 = vsel %vm2062, %v2049, %v2052
    %v2071 = vsel %vm2065, %v2058, 920167782
    %v2072 = vsel %vm2064, %v2055, %v2071
    %v2073 = vsel %vm2063, %v2070, %v2072
    %v2074 = vsel %vm2062, %v2052, %v2055
    %v2075 = vsel %vm2065, %v2061, 1326507024
    %v2076 = vsel %vm2064, %v2058, %v2075
    %v2077 = vsel %vm2063, %v2074, %v2076
    %v2078 = vshll.u32 %v2038, 8
    %v2079 = vmul.u32.u64.compose %v2078, %v2077
    %v2080 = vextract.low.u32 %v2079
    %v2081 = vextract.high.u32 %v2079
    %v2082 = vmul.u32.u64.compose %v2078, %v2073
    %v2083 = vextract.low.u32 %v2082
    %v2084 = vextract.high.u32 %v2082
    %v2085 = vmul.u32 %v2078, %v2069
    %v2086 = vadd.s32 %v2081, %v2083
    %vm2087 = vc.u32 %v2081, %v2083
    %v2088 = vadd.s32 %v2084, 1
    %v2089 = vsel %vm2087, %v2088, %v2084
    %v2090 = vadd.s32 %v2085, %v2089
    %v2091 = vadd.s32 %v2090, 536870912
    %v2092 = vshrl.u32 %v2091, 30
    %v2093 = vshll.u32 %v2092, 30
    %v2094 = vsub.s32 %v2090, %v2093
    %vm2095 = vcmp.lt.s32.totalorder %v2094, 0
    %v2096 = vsub.s32 0, %v2094
    %v2097 = vsel %vm2095, %v2096, %v2094
    %v2098 = vclz %v2097
    %v2099 = vsub.s32 %v2098, 2
    %vm2100 = vcmp.gt.s32.totalorder 0, %v2099
    %v2101 = vsel %vm2100, 0, %v2099
    %v2102 = vsub.s32 32, %v2101
    %v2103 = vshll.u32 %v2094, %v2101
    %v2104 = vshrl.u32 %v2086, %v2102
    %v2105 = vor.u32 %v2103, %v2104
    %v2106 = vsub.s32 4294967266, %v2101
    %v2107 = vadd.s32 %v2106, 127
    %v2108 = vshll.u32 %v2107, 23
    %v2109 = vor.u32 4788187, %v2108
    %v2110 = vand.u32 2147483647, %v2109
    %v2112 = vcvt.s32.f32 %v2105
    %v2113 = vmul.f32 %v2112, %v2110
    %v2114 = vxor.u32 %v2113, 2147483648
    %v2115 = vsel %vm2032, %v2114, %v2113
    %v2116 = vsub.s32 4, %v2092
    %v2117 = vsel %vm2032, %v2116, %v2092
    %v2118 = vsel %vm2031, %v264, %v2115
    %v2119 = vsel %vm2031, 0, %v2117
    %v2120 = vcosq.f32.pop %v2118
    %v2121 = vsinq.f32.pop %v2118
    %vm2122 = vweird.f32 %v264
    %v2123 = vand.u32 %v2119, 3
    %vm2124 = vcmp.lt.s32.totalorder %v2123, 2
    %vm2125 = vcmp.eq.s32.totalorder %v2123, 0
    %v2126 = vxor.u32 %v2121, 2147483648
    %v2127 = vsel %vm2125, %v2120, %v2126
    %vm2128 = vcmp.eq.s32.totalorder %v2123, 2
    %v2129 = vxor.u32 %v2120, 2147483648
    %v2130 = vsel %vm2128, %v2129, %v2121
    %v2131 = vsel %vm2124, %v2127, %v2130
    %v2132 = vsel %vm2122, nan, %v2131
    %v2133 = vand.u32 2147483647, %v265
    %vm2134 = vcmp.le.f32.partialorder %v2133, 0.7853982
    %vm2135 = vcmp.lt.s32.totalorder %v265, 0
    %v2136 = vand.u32 %v265, 2139095040
    %v2137 = vshrl.u32 %v2136, 23
    %v2138 = vsub.s32 %v2137, 127
    %v2139 = vand.u32 2147483647, %v265
    %v2140 = vand.u32 %v2139, 8388607
    %v2141 = vor.u32 %v2140, 8388608
    %v2142 = vsub.s32 0, %v2141
    %v2143 = vadd.s32 %v2138, 1
    %vm2144 = vcmp.gt.s32.totalorder %v2143, 0
    %v2145 = vsel %vm2144, %v2143, 0
    %v2146 = vshrl.u32 %v2145, 5
    %v2147 = vand.u32 %v2145, 31
    %v2148 = vsub.s32 32, %v2147
    %v2149 = vshrl.u32 683565275, %v2148
    %v2150 = vshll.u32 683565275, %v2147
    %v2151 = vshrl.u32 2475754826, %v2148
    %v2152 = vor.u32 %v2150, %v2151
    %v2153 = vshll.u32 2475754826, %v2147
    %v2154 = vshrl.u32 2131351028, %v2148
    %v2155 = vor.u32 %v2153, %v2154
    %v2156 = vshll.u32 2131351028, %v2147
    %v2157 = vshrl.u32 2102212464, %v2148
    %v2158 = vor.u32 %v2156, %v2157
    %v2159 = vshll.u32 2102212464, %v2147
    %v2160 = vshrl.u32 920167782, %v2148
    %v2161 = vor.u32 %v2159, %v2160
    %v2162 = vshll.u32 920167782, %v2147
    %v2163 = vshrl.u32 1326507024, %v2148
    %v2164 = vor.u32 %v2162, %v2163
    %vm2165 = vcmp.lt.s32.totalorder %v2146, 1
    %vm2166 = vcmp.lt.s32.totalorder %v2146, 2
    %vm2167 = vcmp.lt.s32.totalorder %v2146, 3
    %vm2168 = vcmp.lt.s32.totalorder %v2146, 4
    %v2169 = vsel %vm2165, %v2149, %v2152
    %v2170 = vsel %vm2168, %v2158, 2102212464
    %v2171 = vsel %vm2167, %v2155, %v2170
    %v2172 = vsel %vm2166, %v2169, %v2171
    %v2173 = vsel %vm2165, %v2152, %v2155
    %v2174 = vsel %vm2168, %v2161, 920167782
    %v2175 = vsel %vm2167, %v2158, %v2174
    %v2176 = vsel %vm2166, %v2173, %v2175
    %v2177 = vsel %vm2165, %v2155, %v2158
    %v2178 = vsel %vm2168, %v2164, 1326507024
    %v2179 = vsel %vm2167, %v2161, %v2178
    %v2180 = vsel %vm2166, %v2177, %v2179
    %v2181 = vshll.u32 %v2141, 8
    %v2182 = vmul.u32.u64.compose %v2181, %v2180
    %v2183 = vextract.low.u32 %v2182
    %v2184 = vextract.high.u32 %v2182
    %v2185 = vmul.u32.u64.compose %v2181, %v2176
    %v2186 = vextract.low.u32 %v2185
    %v2187 = vextract.high.u32 %v2185
    %v2188 = vmul.u32 %v2181, %v2172
    %v2189 = vadd.s32 %v2184, %v2186
    %vm2190 = vc.u32 %v2184, %v2186
    %v2191 = vadd.s32 %v2187, 1
    %v2192 = vsel %vm2190, %v2191, %v2187
    %v2193 = vadd.s32 %v2188, %v2192
    %v2194 = vadd.s32 %v2193, 536870912
    %v2195 = vshrl.u32 %v2194, 30
    %v2196 = vshll.u32 %v2195, 30
    %v2197 = vsub.s32 %v2193, %v2196
    %vm2198 = vcmp.lt.s32.totalorder %v2197, 0
    %v2199 = vsub.s32 0, %v2197
    %v2200 = vsel %vm2198, %v2199, %v2197
    %v2201 = vclz %v2200
    %v2202 = vsub.s32 %v2201, 2
    %vm2203 = vcmp.gt.s32.totalorder 0, %v2202
    %v2204 = vsel %vm2203, 0, %v2202
    %v2205 = vsub.s32 32, %v2204
    %v2206 = vshll.u32 %v2197, %v2204
    %v2207 = vshrl.u32 %v2189, %v2205
    %v2208 = vor.u32 %v2206, %v2207
    %v2209 = vsub.s32 4294967266, %v2204
    %v2210 = vadd.s32 %v2209, 127
    %v2211 = vshll.u32 %v2210, 23
    %v2212 = vor.u32 4788187, %v2211
    %v2213 = vand.u32 2147483647, %v2212
    %v2215 = vcvt.s32.f32 %v2208
    %v2216 = vmul.f32 %v2215, %v2213
    %v2217 = vxor.u32 %v2216, 2147483648
    %v2218 = vsel %vm2135, %v2217, %v2216
    %v2219 = vsub.s32 4, %v2195
    %v2220 = vsel %vm2135, %v2219, %v2195
    %v2221 = vsel %vm2134, %v265, %v2218
    %v2222 = vsel %vm2134, 0, %v2220
    %v2223 = vcosq.f32.pop %v2221
    %v2224 = vsinq.f32.pop %v2221
    %vm2225 = vweird.f32 %v265
    %v2226 = vand.u32 %v2222, 3
    %vm2227 = vcmp.lt.s32.totalorder %v2226, 2
    %vm2228 = vcmp.eq.s32.totalorder %v2226, 0
    %v2229 = vxor.u32 %v2224, 2147483648
    %v2230 = vsel %vm2228, %v2223, %v2229
    %vm2231 = vcmp.eq.s32.totalorder %v2226, 2
    %v2232 = vxor.u32 %v2223, 2147483648
    %v2233 = vsel %vm2231, %v2232, %v2224
    %v2234 = vsel %vm2227, %v2230, %v2233
    %v2235 = vsel %vm2225, nan, %v2234
    %v2236 = vand.u32 2147483647, %v266
    %vm2237 = vcmp.le.f32.partialorder %v2236, 0.7853982
    %vm2238 = vcmp.lt.s32.totalorder %v266, 0
    %v2239 = vand.u32 %v266, 2139095040
    %v2240 = vshrl.u32 %v2239, 23
    %v2241 = vsub.s32 %v2240, 127
    %v2242 = vand.u32 2147483647, %v266
    %v2243 = vand.u32 %v2242, 8388607
    %v2244 = vor.u32 %v2243, 8388608
    %v2245 = vsub.s32 0, %v2244
    %v2246 = vadd.s32 %v2241, 1
    %vm2247 = vcmp.gt.s32.totalorder %v2246, 0
    %v2248 = vsel %vm2247, %v2246, 0
    %v2249 = vshrl.u32 %v2248, 5
    %v2250 = vand.u32 %v2248, 31
    %v2251 = vsub.s32 32, %v2250
    %v2252 = vshrl.u32 683565275, %v2251
    %v2253 = vshll.u32 683565275, %v2250
    %v2254 = vshrl.u32 2475754826, %v2251
    %v2255 = vor.u32 %v2253, %v2254
    %v2256 = vshll.u32 2475754826, %v2250
    %v2257 = vshrl.u32 2131351028, %v2251
    %v2258 = vor.u32 %v2256, %v2257
    %v2259 = vshll.u32 2131351028, %v2250
    %v2260 = vshrl.u32 2102212464, %v2251
    %v2261 = vor.u32 %v2259, %v2260
    %v2262 = vshll.u32 2102212464, %v2250
    %v2263 = vshrl.u32 920167782, %v2251
    %v2264 = vor.u32 %v2262, %v2263
    %v2265 = vshll.u32 920167782, %v2250
    %v2266 = vshrl.u32 1326507024, %v2251
    %v2267 = vor.u32 %v2265, %v2266
    %vm2268 = vcmp.lt.s32.totalorder %v2249, 1
    %vm2269 = vcmp.lt.s32.totalorder %v2249, 2
    %vm2270 = vcmp.lt.s32.totalorder %v2249, 3
    %vm2271 = vcmp.lt.s32.totalorder %v2249, 4
    %v2272 = vsel %vm2268, %v2252, %v2255
    %v2273 = vsel %vm2271, %v2261, 2102212464
    %v2274 = vsel %vm2270, %v2258, %v2273
    %v2275 = vsel %vm2269, %v2272, %v2274
    %v2276 = vsel %vm2268, %v2255, %v2258
    %v2277 = vsel %vm2271, %v2264, 920167782
    %v2278 = vsel %vm2270, %v2261, %v2277
    %v2279 = vsel %vm2269, %v2276, %v2278
    %v2280 = vsel %vm2268, %v2258, %v2261
    %v2281 = vsel %vm2271, %v2267, 1326507024
    %v2282 = vsel %vm2270, %v2264, %v2281
    %v2283 = vsel %vm2269, %v2280, %v2282
    %v2284 = vshll.u32 %v2244, 8
    %v2285 = vmul.u32.u64.compose %v2284, %v2283
    %v2286 = vextract.low.u32 %v2285
    %v2287 = vextract.high.u32 %v2285
    %v2288 = vmul.u32.u64.compose %v2284, %v2279
    %v2289 = vextract.low.u32 %v2288
    %v2290 = vextract.high.u32 %v2288
    %v2291 = vmul.u32 %v2284, %v2275
    %v2292 = vadd.s32 %v2287, %v2289
    %vm2293 = vc.u32 %v2287, %v2289
    %v2294 = vadd.s32 %v2290, 1
    %v2295 = vsel %vm2293, %v2294, %v2290
    %v2296 = vadd.s32 %v2291, %v2295
    %v2297 = vadd.s32 %v2296, 536870912
    %v2298 = vshrl.u32 %v2297, 30
    %v2299 = vshll.u32 %v2298, 30
    %v2300 = vsub.s32 %v2296, %v2299
    %vm2301 = vcmp.lt.s32.totalorder %v2300, 0
    %v2302 = vsub.s32 0, %v2300
    %v2303 = vsel %vm2301, %v2302, %v2300
    %v2304 = vclz %v2303
    %v2305 = vsub.s32 %v2304, 2
    %vm2306 = vcmp.gt.s32.totalorder 0, %v2305
    %v2307 = vsel %vm2306, 0, %v2305
    %v2308 = vsub.s32 32, %v2307
    %v2309 = vshll.u32 %v2300, %v2307
    %v2310 = vshrl.u32 %v2292, %v2308
    %v2311 = vor.u32 %v2309, %v2310
    %v2312 = vsub.s32 4294967266, %v2307
    %v2313 = vadd.s32 %v2312, 127
    %v2314 = vshll.u32 %v2313, 23
    %v2315 = vor.u32 4788187, %v2314
    %v2316 = vand.u32 2147483647, %v2315
    %v2318 = vcvt.s32.f32 %v2311
    %v2319 = vmul.f32 %v2318, %v2316
    %v2320 = vxor.u32 %v2319, 2147483648
    %v2321 = vsel %vm2238, %v2320, %v2319
    %v2322 = vsub.s32 4, %v2298
    %v2323 = vsel %vm2238, %v2322, %v2298
    %v2324 = vsel %vm2237, %v266, %v2321
    %v2325 = vsel %vm2237, 0, %v2323
    %v2326 = vcosq.f32.pop %v2324
    %v2327 = vsinq.f32.pop %v2324
    %vm2328 = vweird.f32 %v266
    %v2329 = vand.u32 %v2325, 3
    %vm2330 = vcmp.lt.s32.totalorder %v2329, 2
    %vm2331 = vcmp.eq.s32.totalorder %v2329, 0
    %v2332 = vxor.u32 %v2327, 2147483648
    %v2333 = vsel %vm2331, %v2326, %v2332
    %vm2334 = vcmp.eq.s32.totalorder %v2329, 2
    %v2335 = vxor.u32 %v2326, 2147483648
    %v2336 = vsel %vm2334, %v2335, %v2327
    %v2337 = vsel %vm2330, %v2333, %v2336
    %v2338 = vsel %vm2328, nan, %v2337
    %v2339 = vand.u32 2147483647, %v267
    %vm2340 = vcmp.le.f32.partialorder %v2339, 0.7853982
    %vm2341 = vcmp.lt.s32.totalorder %v267, 0
    %v2342 = vand.u32 %v267, 2139095040
    %v2343 = vshrl.u32 %v2342, 23
    %v2344 = vsub.s32 %v2343, 127
    %v2345 = vand.u32 2147483647, %v267
    %v2346 = vand.u32 %v2345, 8388607
    %v2347 = vor.u32 %v2346, 8388608
    %v2348 = vsub.s32 0, %v2347
    %v2349 = vadd.s32 %v2344, 1
    %vm2350 = vcmp.gt.s32.totalorder %v2349, 0
    %v2351 = vsel %vm2350, %v2349, 0
    %v2352 = vshrl.u32 %v2351, 5
    %v2353 = vand.u32 %v2351, 31
    %v2354 = vsub.s32 32, %v2353
    %v2355 = vshrl.u32 683565275, %v2354
    %v2356 = vshll.u32 683565275, %v2353
    %v2357 = vshrl.u32 2475754826, %v2354
    %v2358 = vor.u32 %v2356, %v2357
    %v2359 = vshll.u32 2475754826, %v2353
    %v2360 = vshrl.u32 2131351028, %v2354
    %v2361 = vor.u32 %v2359, %v2360
    %v2362 = vshll.u32 2131351028, %v2353
    %v2363 = vshrl.u32 2102212464, %v2354
    %v2364 = vor.u32 %v2362, %v2363
    %v2365 = vshll.u32 2102212464, %v2353
    %v2366 = vshrl.u32 920167782, %v2354
    %v2367 = vor.u32 %v2365, %v2366
    %v2368 = vshll.u32 920167782, %v2353
    %v2369 = vshrl.u32 1326507024, %v2354
    %v2370 = vor.u32 %v2368, %v2369
    %vm2371 = vcmp.lt.s32.totalorder %v2352, 1
    %vm2372 = vcmp.lt.s32.totalorder %v2352, 2
    %vm2373 = vcmp.lt.s32.totalorder %v2352, 3
    %vm2374 = vcmp.lt.s32.totalorder %v2352, 4
    %v2375 = vsel %vm2371, %v2355, %v2358
    %v2376 = vsel %vm2374, %v2364, 2102212464
    %v2377 = vsel %vm2373, %v2361, %v2376
    %v2378 = vsel %vm2372, %v2375, %v2377
    %v2379 = vsel %vm2371, %v2358, %v2361
    %v2380 = vsel %vm2374, %v2367, 920167782
    %v2381 = vsel %vm2373, %v2364, %v2380
    %v2382 = vsel %vm2372, %v2379, %v2381
    %v2383 = vsel %vm2371, %v2361, %v2364
    %v2384 = vsel %vm2374, %v2370, 1326507024
    %v2385 = vsel %vm2373, %v2367, %v2384
    %v2386 = vsel %vm2372, %v2383, %v2385
    %v2387 = vshll.u32 %v2347, 8
    %v2388 = vmul.u32.u64.compose %v2387, %v2386
    %v2389 = vextract.low.u32 %v2388
    %v2390 = vextract.high.u32 %v2388
    %v2391 = vmul.u32.u64.compose %v2387, %v2382
    %v2392 = vextract.low.u32 %v2391
    %v2393 = vextract.high.u32 %v2391
    %v2394 = vmul.u32 %v2387, %v2378
    %v2395 = vadd.s32 %v2390, %v2392
    %vm2396 = vc.u32 %v2390, %v2392
    %v2397 = vadd.s32 %v2393, 1
    %v2398 = vsel %vm2396, %v2397, %v2393
    %v2399 = vadd.s32 %v2394, %v2398
    %v2400 = vadd.s32 %v2399, 536870912
    %v2401 = vshrl.u32 %v2400, 30
    %v2402 = vshll.u32 %v2401, 30
    %v2403 = vsub.s32 %v2399, %v2402
    %vm2404 = vcmp.lt.s32.totalorder %v2403, 0
    %v2405 = vsub.s32 0, %v2403
    %v2406 = vsel %vm2404, %v2405, %v2403
    %v2407 = vclz %v2406
    %v2408 = vsub.s32 %v2407, 2
    %vm2409 = vcmp.gt.s32.totalorder 0, %v2408
    %v2410 = vsel %vm2409, 0, %v2408
    %v2411 = vsub.s32 32, %v2410
    %v2412 = vshll.u32 %v2403, %v2410
    %v2413 = vshrl.u32 %v2395, %v2411
    %v2414 = vor.u32 %v2412, %v2413
    %v2415 = vsub.s32 4294967266, %v2410
    %v2416 = vadd.s32 %v2415, 127
    %v2417 = vshll.u32 %v2416, 23
    %v2418 = vor.u32 4788187, %v2417
    %v2419 = vand.u32 2147483647, %v2418
    %v2421 = vcvt.s32.f32 %v2414
    %v2422 = vmul.f32 %v2421, %v2419
    %v2423 = vxor.u32 %v2422, 2147483648
    %v2424 = vsel %vm2341, %v2423, %v2422
    %v2425 = vsub.s32 4, %v2401
    %v2426 = vsel %vm2341, %v2425, %v2401
    %v2427 = vsel %vm2340, %v267, %v2424
    %v2428 = vsel %vm2340, 0, %v2426
    %v2429 = vcosq.f32.pop %v2427
    %v2430 = vsinq.f32.pop %v2427
    %vm2431 = vweird.f32 %v267
    %v2432 = vand.u32 %v2428, 3
    %vm2433 = vcmp.lt.s32.totalorder %v2432, 2
    %vm2434 = vcmp.eq.s32.totalorder %v2432, 0
    %v2435 = vxor.u32 %v2430, 2147483648
    %v2436 = vsel %vm2434, %v2429, %v2435
    %vm2437 = vcmp.eq.s32.totalorder %v2432, 2
    %v2438 = vxor.u32 %v2429, 2147483648
    %v2439 = vsel %vm2437, %v2438, %v2430
    %v2440 = vsel %vm2433, %v2436, %v2439
    %v2441 = vsel %vm2431, nan, %v2440
    %v2442 = vand.u32 2147483647, %v268
    %vm2443 = vcmp.le.f32.partialorder %v2442, 0.7853982
    %vm2444 = vcmp.lt.s32.totalorder %v268, 0
    %v2445 = vand.u32 %v268, 2139095040
    %v2446 = vshrl.u32 %v2445, 23
    %v2447 = vsub.s32 %v2446, 127
    %v2448 = vand.u32 2147483647, %v268
    %v2449 = vand.u32 %v2448, 8388607
    %v2450 = vor.u32 %v2449, 8388608
    %v2451 = vsub.s32 0, %v2450
    %v2452 = vadd.s32 %v2447, 1
    %vm2453 = vcmp.gt.s32.totalorder %v2452, 0
    %v2454 = vsel %vm2453, %v2452, 0
    %v2455 = vshrl.u32 %v2454, 5
    %v2456 = vand.u32 %v2454, 31
    %v2457 = vsub.s32 32, %v2456
    %v2458 = vshrl.u32 683565275, %v2457
    %v2459 = vshll.u32 683565275, %v2456
    %v2460 = vshrl.u32 2475754826, %v2457
    %v2461 = vor.u32 %v2459, %v2460
    %v2462 = vshll.u32 2475754826, %v2456
    %v2463 = vshrl.u32 2131351028, %v2457
    %v2464 = vor.u32 %v2462, %v2463
    %v2465 = vshll.u32 2131351028, %v2456
    %v2466 = vshrl.u32 2102212464, %v2457
    %v2467 = vor.u32 %v2465, %v2466
    %v2468 = vshll.u32 2102212464, %v2456
    %v2469 = vshrl.u32 920167782, %v2457
    %v2470 = vor.u32 %v2468, %v2469
    %v2471 = vshll.u32 920167782, %v2456
    %v2472 = vshrl.u32 1326507024, %v2457
    %v2473 = vor.u32 %v2471, %v2472
    %vm2474 = vcmp.lt.s32.totalorder %v2455, 1
    %vm2475 = vcmp.lt.s32.totalorder %v2455, 2
    %vm2476 = vcmp.lt.s32.totalorder %v2455, 3
    %vm2477 = vcmp.lt.s32.totalorder %v2455, 4
    %v2478 = vsel %vm2474, %v2458, %v2461
    %v2479 = vsel %vm2477, %v2467, 2102212464
    %v2480 = vsel %vm2476, %v2464, %v2479
    %v2481 = vsel %vm2475, %v2478, %v2480
    %v2482 = vsel %vm2474, %v2461, %v2464
    %v2483 = vsel %vm2477, %v2470, 920167782
    %v2484 = vsel %vm2476, %v2467, %v2483
    %v2485 = vsel %vm2475, %v2482, %v2484
    %v2486 = vsel %vm2474, %v2464, %v2467
    %v2487 = vsel %vm2477, %v2473, 1326507024
    %v2488 = vsel %vm2476, %v2470, %v2487
    %v2489 = vsel %vm2475, %v2486, %v2488
    %v2490 = vshll.u32 %v2450, 8
    %v2491 = vmul.u32.u64.compose %v2490, %v2489
    %v2492 = vextract.low.u32 %v2491
    %v2493 = vextract.high.u32 %v2491
    %v2494 = vmul.u32.u64.compose %v2490, %v2485
    %v2495 = vextract.low.u32 %v2494
    %v2496 = vextract.high.u32 %v2494
    %v2497 = vmul.u32 %v2490, %v2481
    %v2498 = vadd.s32 %v2493, %v2495
    %vm2499 = vc.u32 %v2493, %v2495
    %v2500 = vadd.s32 %v2496, 1
    %v2501 = vsel %vm2499, %v2500, %v2496
    %v2502 = vadd.s32 %v2497, %v2501
    %v2503 = vadd.s32 %v2502, 536870912
    %v2504 = vshrl.u32 %v2503, 30
    %v2505 = vshll.u32 %v2504, 30
    %v2506 = vsub.s32 %v2502, %v2505
    %vm2507 = vcmp.lt.s32.totalorder %v2506, 0
    %v2508 = vsub.s32 0, %v2506
    %v2509 = vsel %vm2507, %v2508, %v2506
    %v2510 = vclz %v2509
    %v2511 = vsub.s32 %v2510, 2
    %vm2512 = vcmp.gt.s32.totalorder 0, %v2511
    %v2513 = vsel %vm2512, 0, %v2511
    %v2514 = vsub.s32 32, %v2513
    %v2515 = vshll.u32 %v2506, %v2513
    %v2516 = vshrl.u32 %v2498, %v2514
    %v2517 = vor.u32 %v2515, %v2516
    %v2518 = vsub.s32 4294967266, %v2513
    %v2519 = vadd.s32 %v2518, 127
    %v2520 = vshll.u32 %v2519, 23
    %v2521 = vor.u32 4788187, %v2520
    %v2522 = vand.u32 2147483647, %v2521
    %v2524 = vcvt.s32.f32 %v2517
    %v2525 = vmul.f32 %v2524, %v2522
    %v2526 = vxor.u32 %v2525, 2147483648
    %v2527 = vsel %vm2444, %v2526, %v2525
    %v2528 = vsub.s32 4, %v2504
    %v2529 = vsel %vm2444, %v2528, %v2504
    %v2530 = vsel %vm2443, %v268, %v2527
    %v2531 = vsel %vm2443, 0, %v2529
    %v2532 = vcosq.f32.pop %v2530
    %v2533 = vsinq.f32.pop %v2530
    %vm2534 = vweird.f32 %v268
    %v2535 = vand.u32 %v2531, 3
    %vm2536 = vcmp.lt.s32.totalorder %v2535, 2
    %vm2537 = vcmp.eq.s32.totalorder %v2535, 0
    %v2538 = vxor.u32 %v2533, 2147483648
    %v2539 = vsel %vm2537, %v2532, %v2538
    %vm2540 = vcmp.eq.s32.totalorder %v2535, 2
    %v2541 = vxor.u32 %v2532, 2147483648
    %v2542 = vsel %vm2540, %v2541, %v2533
    %v2543 = vsel %vm2536, %v2539, %v2542
    %v2544 = vsel %vm2534, nan, %v2543
    %v2545 = vand.u32 2147483647, %v269
    %vm2546 = vcmp.le.f32.partialorder %v2545, 0.7853982
    %vm2547 = vcmp.lt.s32.totalorder %v269, 0
    %v2548 = vand.u32 %v269, 2139095040
    %v2549 = vshrl.u32 %v2548, 23
    %v2550 = vsub.s32 %v2549, 127
    %v2551 = vand.u32 2147483647, %v269
    %v2552 = vand.u32 %v2551, 8388607
    %v2553 = vor.u32 %v2552, 8388608
    %v2554 = vsub.s32 0, %v2553
    %v2555 = vadd.s32 %v2550, 1
    %vm2556 = vcmp.gt.s32.totalorder %v2555, 0
    %v2557 = vsel %vm2556, %v2555, 0
    %v2558 = vshrl.u32 %v2557, 5
    %v2559 = vand.u32 %v2557, 31
    %v2560 = vsub.s32 32, %v2559
    %v2561 = vshrl.u32 683565275, %v2560
    %v2562 = vshll.u32 683565275, %v2559
    %v2563 = vshrl.u32 2475754826, %v2560
    %v2564 = vor.u32 %v2562, %v2563
    %v2565 = vshll.u32 2475754826, %v2559
    %v2566 = vshrl.u32 2131351028, %v2560
    %v2567 = vor.u32 %v2565, %v2566
    %v2568 = vshll.u32 2131351028, %v2559
    %v2569 = vshrl.u32 2102212464, %v2560
    %v2570 = vor.u32 %v2568, %v2569
    %v2571 = vshll.u32 2102212464, %v2559
    %v2572 = vshrl.u32 920167782, %v2560
    %v2573 = vor.u32 %v2571, %v2572
    %v2574 = vshll.u32 920167782, %v2559
    %v2575 = vshrl.u32 1326507024, %v2560
    %v2576 = vor.u32 %v2574, %v2575
    %vm2577 = vcmp.lt.s32.totalorder %v2558, 1
    %vm2578 = vcmp.lt.s32.totalorder %v2558, 2
    %vm2579 = vcmp.lt.s32.totalorder %v2558, 3
    %vm2580 = vcmp.lt.s32.totalorder %v2558, 4
    %v2581 = vsel %vm2577, %v2561, %v2564
    %v2582 = vsel %vm2580, %v2570, 2102212464
    %v2583 = vsel %vm2579, %v2567, %v2582
    %v2584 = vsel %vm2578, %v2581, %v2583
    %v2585 = vsel %vm2577, %v2564, %v2567
    %v2586 = vsel %vm2580, %v2573, 920167782
    %v2587 = vsel %vm2579, %v2570, %v2586
    %v2588 = vsel %vm2578, %v2585, %v2587
    %v2589 = vsel %vm2577, %v2567, %v2570
    %v2590 = vsel %vm2580, %v2576, 1326507024
    %v2591 = vsel %vm2579, %v2573, %v2590
    %v2592 = vsel %vm2578, %v2589, %v2591
    %v2593 = vshll.u32 %v2553, 8
    %v2594 = vmul.u32.u64.compose %v2593, %v2592
    %v2595 = vextract.low.u32 %v2594
    %v2596 = vextract.high.u32 %v2594
    %v2597 = vmul.u32.u64.compose %v2593, %v2588
    %v2598 = vextract.low.u32 %v2597
    %v2599 = vextract.high.u32 %v2597
    %v2600 = vmul.u32 %v2593, %v2584
    %v2601 = vadd.s32 %v2596, %v2598
    %vm2602 = vc.u32 %v2596, %v2598
    %v2603 = vadd.s32 %v2599, 1
    %v2604 = vsel %vm2602, %v2603, %v2599
    %v2605 = vadd.s32 %v2600, %v2604
    %v2606 = vadd.s32 %v2605, 536870912
    %v2607 = vshrl.u32 %v2606, 30
    %v2608 = vshll.u32 %v2607, 30
    %v2609 = vsub.s32 %v2605, %v2608
    %vm2610 = vcmp.lt.s32.totalorder %v2609, 0
    %v2611 = vsub.s32 0, %v2609
    %v2612 = vsel %vm2610, %v2611, %v2609
    %v2613 = vclz %v2612
    %v2614 = vsub.s32 %v2613, 2
    %vm2615 = vcmp.gt.s32.totalorder 0, %v2614
    %v2616 = vsel %vm2615, 0, %v2614
    %v2617 = vsub.s32 32, %v2616
    %v2618 = vshll.u32 %v2609, %v2616
    %v2619 = vshrl.u32 %v2601, %v2617
    %v2620 = vor.u32 %v2618, %v2619
    %v2621 = vsub.s32 4294967266, %v2616
    %v2622 = vadd.s32 %v2621, 127
    %v2623 = vshll.u32 %v2622, 23
    %v2624 = vor.u32 4788187, %v2623
    %v2625 = vand.u32 2147483647, %v2624
    %v2627 = vcvt.s32.f32 %v2620
    %v2628 = vmul.f32 %v2627, %v2625
    %v2629 = vxor.u32 %v2628, 2147483648
    %v2630 = vsel %vm2547, %v2629, %v2628
    %v2631 = vsub.s32 4, %v2607
    %v2632 = vsel %vm2547, %v2631, %v2607
    %v2633 = vsel %vm2546, %v269, %v2630
    %v2634 = vsel %vm2546, 0, %v2632
    %v2635 = vcosq.f32.pop %v2633
    %v2636 = vsinq.f32.pop %v2633
    %vm2637 = vweird.f32 %v269
    %v2638 = vand.u32 %v2634, 3
    %vm2639 = vcmp.lt.s32.totalorder %v2638, 2
    %vm2640 = vcmp.eq.s32.totalorder %v2638, 0
    %v2641 = vxor.u32 %v2636, 2147483648
    %v2642 = vsel %vm2640, %v2635, %v2641
    %vm2643 = vcmp.eq.s32.totalorder %v2638, 2
    %v2644 = vxor.u32 %v2635, 2147483648
    %v2645 = vsel %vm2643, %v2644, %v2636
    %v2646 = vsel %vm2639, %v2642, %v2645
    %v2647 = vsel %vm2637, nan, %v2646
    %v2648 = vand.u32 2147483647, %v270
    %vm2649 = vcmp.le.f32.partialorder %v2648, 0.7853982
    %vm2650 = vcmp.lt.s32.totalorder %v270, 0
    %v2651 = vand.u32 %v270, 2139095040
    %v2652 = vshrl.u32 %v2651, 23
    %v2653 = vsub.s32 %v2652, 127
    %v2654 = vand.u32 2147483647, %v270
    %v2655 = vand.u32 %v2654, 8388607
    %v2656 = vor.u32 %v2655, 8388608
    %v2657 = vsub.s32 0, %v2656
    %v2658 = vadd.s32 %v2653, 1
    %vm2659 = vcmp.gt.s32.totalorder %v2658, 0
    %v2660 = vsel %vm2659, %v2658, 0
    %v2661 = vshrl.u32 %v2660, 5
    %v2662 = vand.u32 %v2660, 31
    %v2663 = vsub.s32 32, %v2662
    %v2664 = vshrl.u32 683565275, %v2663
    %v2665 = vshll.u32 683565275, %v2662
    %v2666 = vshrl.u32 2475754826, %v2663
    %v2667 = vor.u32 %v2665, %v2666
    %v2668 = vshll.u32 2475754826, %v2662
    %v2669 = vshrl.u32 2131351028, %v2663
    %v2670 = vor.u32 %v2668, %v2669
    %v2671 = vshll.u32 2131351028, %v2662
    %v2672 = vshrl.u32 2102212464, %v2663
    %v2673 = vor.u32 %v2671, %v2672
    %v2674 = vshll.u32 2102212464, %v2662
    %v2675 = vshrl.u32 920167782, %v2663
    %v2676 = vor.u32 %v2674, %v2675
    %v2677 = vshll.u32 920167782, %v2662
    %v2678 = vshrl.u32 1326507024, %v2663
    %v2679 = vor.u32 %v2677, %v2678
    %vm2680 = vcmp.lt.s32.totalorder %v2661, 1
    %vm2681 = vcmp.lt.s32.totalorder %v2661, 2
    %vm2682 = vcmp.lt.s32.totalorder %v2661, 3
    %vm2683 = vcmp.lt.s32.totalorder %v2661, 4
    %v2684 = vsel %vm2680, %v2664, %v2667
    %v2685 = vsel %vm2683, %v2673, 2102212464
    %v2686 = vsel %vm2682, %v2670, %v2685
    %v2687 = vsel %vm2681, %v2684, %v2686
    %v2688 = vsel %vm2680, %v2667, %v2670
    %v2689 = vsel %vm2683, %v2676, 920167782
    %v2690 = vsel %vm2682, %v2673, %v2689
    %v2691 = vsel %vm2681, %v2688, %v2690
    %v2692 = vsel %vm2680, %v2670, %v2673
    %v2693 = vsel %vm2683, %v2679, 1326507024
    %v2694 = vsel %vm2682, %v2676, %v2693
    %v2695 = vsel %vm2681, %v2692, %v2694
    %v2696 = vshll.u32 %v2656, 8
    %v2697 = vmul.u32.u64.compose %v2696, %v2695
    %v2698 = vextract.low.u32 %v2697
    %v2699 = vextract.high.u32 %v2697
    %v2700 = vmul.u32.u64.compose %v2696, %v2691
    %v2701 = vextract.low.u32 %v2700
    %v2702 = vextract.high.u32 %v2700
    %v2703 = vmul.u32 %v2696, %v2687
    %v2704 = vadd.s32 %v2699, %v2701
    %vm2705 = vc.u32 %v2699, %v2701
    %v2706 = vadd.s32 %v2702, 1
    %v2707 = vsel %vm2705, %v2706, %v2702
    %v2708 = vadd.s32 %v2703, %v2707
    %v2709 = vadd.s32 %v2708, 536870912
    %v2710 = vshrl.u32 %v2709, 30
    %v2711 = vshll.u32 %v2710, 30
    %v2712 = vsub.s32 %v2708, %v2711
    %vm2713 = vcmp.lt.s32.totalorder %v2712, 0
    %v2714 = vsub.s32 0, %v2712
    %v2715 = vsel %vm2713, %v2714, %v2712
    %v2716 = vclz %v2715
    %v2717 = vsub.s32 %v2716, 2
    %vm2718 = vcmp.gt.s32.totalorder 0, %v2717
    %v2719 = vsel %vm2718, 0, %v2717
    %v2720 = vsub.s32 32, %v2719
    %v2721 = vshll.u32 %v2712, %v2719
    %v2722 = vshrl.u32 %v2704, %v2720
    %v2723 = vor.u32 %v2721, %v2722
    %v2724 = vsub.s32 4294967266, %v2719
    %v2725 = vadd.s32 %v2724, 127
    %v2726 = vshll.u32 %v2725, 23
    %v2727 = vor.u32 4788187, %v2726
    %v2728 = vand.u32 2147483647, %v2727
    %v2730 = vcvt.s32.f32 %v2723
    %v2731 = vmul.f32 %v2730, %v2728
    %v2732 = vxor.u32 %v2731, 2147483648
    %v2733 = vsel %vm2650, %v2732, %v2731
    %v2734 = vsub.s32 4, %v2710
    %v2735 = vsel %vm2650, %v2734, %v2710
    %v2736 = vsel %vm2649, %v270, %v2733
    %v2737 = vsel %vm2649, 0, %v2735
    %v2738 = vcosq.f32.pop %v2736
    %v2739 = vsinq.f32.pop %v2736
    %vm2740 = vweird.f32 %v270
    %v2741 = vand.u32 %v2737, 3
    %vm2742 = vcmp.lt.s32.totalorder %v2741, 2
    %vm2743 = vcmp.eq.s32.totalorder %v2741, 0
    %v2744 = vxor.u32 %v2739, 2147483648
    %v2745 = vsel %vm2743, %v2738, %v2744
    %vm2746 = vcmp.eq.s32.totalorder %v2741, 2
    %v2747 = vxor.u32 %v2738, 2147483648
    %v2748 = vsel %vm2746, %v2747, %v2739
    %v2749 = vsel %vm2742, %v2745, %v2748
    %v2750 = vsel %vm2740, nan, %v2749
    %v2751 = vand.u32 2147483647, %v271
    %vm2752 = vcmp.le.f32.partialorder %v2751, 0.7853982
    %vm2753 = vcmp.lt.s32.totalorder %v271, 0
    %v2754 = vand.u32 %v271, 2139095040
    %v2755 = vshrl.u32 %v2754, 23
    %v2756 = vsub.s32 %v2755, 127
    %v2757 = vand.u32 2147483647, %v271
    %v2758 = vand.u32 %v2757, 8388607
    %v2759 = vor.u32 %v2758, 8388608
    %v2760 = vsub.s32 0, %v2759
    %v2761 = vadd.s32 %v2756, 1
    %vm2762 = vcmp.gt.s32.totalorder %v2761, 0
    %v2763 = vsel %vm2762, %v2761, 0
    %v2764 = vshrl.u32 %v2763, 5
    %v2765 = vand.u32 %v2763, 31
    %v2766 = vsub.s32 32, %v2765
    %v2767 = vshrl.u32 683565275, %v2766
    %v2768 = vshll.u32 683565275, %v2765
    %v2769 = vshrl.u32 2475754826, %v2766
    %v2770 = vor.u32 %v2768, %v2769
    %v2771 = vshll.u32 2475754826, %v2765
    %v2772 = vshrl.u32 2131351028, %v2766
    %v2773 = vor.u32 %v2771, %v2772
    %v2774 = vshll.u32 2131351028, %v2765
    %v2775 = vshrl.u32 2102212464, %v2766
    %v2776 = vor.u32 %v2774, %v2775
    %v2777 = vshll.u32 2102212464, %v2765
    %v2778 = vshrl.u32 920167782, %v2766
    %v2779 = vor.u32 %v2777, %v2778
    %v2780 = vshll.u32 920167782, %v2765
    %v2781 = vshrl.u32 1326507024, %v2766
    %v2782 = vor.u32 %v2780, %v2781
    %vm2783 = vcmp.lt.s32.totalorder %v2764, 1
    %vm2784 = vcmp.lt.s32.totalorder %v2764, 2
    %vm2785 = vcmp.lt.s32.totalorder %v2764, 3
    %vm2786 = vcmp.lt.s32.totalorder %v2764, 4
    %v2787 = vsel %vm2783, %v2767, %v2770
    %v2788 = vsel %vm2786, %v2776, 2102212464
    %v2789 = vsel %vm2785, %v2773, %v2788
    %v2790 = vsel %vm2784, %v2787, %v2789
    %v2791 = vsel %vm2783, %v2770, %v2773
    %v2792 = vsel %vm2786, %v2779, 920167782
    %v2793 = vsel %vm2785, %v2776, %v2792
    %v2794 = vsel %vm2784, %v2791, %v2793
    %v2795 = vsel %vm2783, %v2773, %v2776
    %v2796 = vsel %vm2786, %v2782, 1326507024
    %v2797 = vsel %vm2785, %v2779, %v2796
    %v2798 = vsel %vm2784, %v2795, %v2797
    %v2799 = vshll.u32 %v2759, 8
    %v2800 = vmul.u32.u64.compose %v2799, %v2798
    %v2801 = vextract.low.u32 %v2800
    %v2802 = vextract.high.u32 %v2800
    %v2803 = vmul.u32.u64.compose %v2799, %v2794
    %v2804 = vextract.low.u32 %v2803
    %v2805 = vextract.high.u32 %v2803
    %v2806 = vmul.u32 %v2799, %v2790
    %v2807 = vadd.s32 %v2802, %v2804
    %vm2808 = vc.u32 %v2802, %v2804
    %v2809 = vadd.s32 %v2805, 1
    %v2810 = vsel %vm2808, %v2809, %v2805
    %v2811 = vadd.s32 %v2806, %v2810
    %v2812 = vadd.s32 %v2811, 536870912
    %v2813 = vshrl.u32 %v2812, 30
    %v2814 = vshll.u32 %v2813, 30
    %v2815 = vsub.s32 %v2811, %v2814
    %vm2816 = vcmp.lt.s32.totalorder %v2815, 0
    %v2817 = vsub.s32 0, %v2815
    %v2818 = vsel %vm2816, %v2817, %v2815
    %v2819 = vclz %v2818
    %v2820 = vsub.s32 %v2819, 2
    %vm2821 = vcmp.gt.s32.totalorder 0, %v2820
    %v2822 = vsel %vm2821, 0, %v2820
    %v2823 = vsub.s32 32, %v2822
    %v2824 = vshll.u32 %v2815, %v2822
    %v2825 = vshrl.u32 %v2807, %v2823
    %v2826 = vor.u32 %v2824, %v2825
    %v2827 = vsub.s32 4294967266, %v2822
    %v2828 = vadd.s32 %v2827, 127
    %v2829 = vshll.u32 %v2828, 23
    %v2830 = vor.u32 4788187, %v2829
    %v2831 = vand.u32 2147483647, %v2830
    %v2833 = vcvt.s32.f32 %v2826
    %v2834 = vmul.f32 %v2833, %v2831
    %v2835 = vxor.u32 %v2834, 2147483648
    %v2836 = vsel %vm2753, %v2835, %v2834
    %v2837 = vsub.s32 4, %v2813
    %v2838 = vsel %vm2753, %v2837, %v2813
    %v2839 = vsel %vm2752, %v271, %v2836
    %v2840 = vsel %vm2752, 0, %v2838
    %v2841 = vcosq.f32.pop %v2839
    %v2842 = vsinq.f32.pop %v2839
    %vm2843 = vweird.f32 %v271
    %v2844 = vand.u32 %v2840, 3
    %vm2845 = vcmp.lt.s32.totalorder %v2844, 2
    %vm2846 = vcmp.eq.s32.totalorder %v2844, 0
    %v2847 = vxor.u32 %v2842, 2147483648
    %v2848 = vsel %vm2846, %v2841, %v2847
    %vm2849 = vcmp.eq.s32.totalorder %v2844, 2
    %v2850 = vxor.u32 %v2841, 2147483648
    %v2851 = vsel %vm2849, %v2850, %v2842
    %v2852 = vsel %vm2845, %v2848, %v2851
    %v2853 = vsel %vm2843, nan, %v2852
    %v2854 = vand.u32 2147483647, %v272
    %vm2855 = vcmp.le.f32.partialorder %v2854, 0.7853982
    %vm2856 = vcmp.lt.s32.totalorder %v272, 0
    %v2857 = vand.u32 %v272, 2139095040
    %v2858 = vshrl.u32 %v2857, 23
    %v2859 = vsub.s32 %v2858, 127
    %v2860 = vand.u32 2147483647, %v272
    %v2861 = vand.u32 %v2860, 8388607
    %v2862 = vor.u32 %v2861, 8388608
    %v2863 = vsub.s32 0, %v2862
    %v2864 = vadd.s32 %v2859, 1
    %vm2865 = vcmp.gt.s32.totalorder %v2864, 0
    %v2866 = vsel %vm2865, %v2864, 0
    %v2867 = vshrl.u32 %v2866, 5
    %v2868 = vand.u32 %v2866, 31
    %v2869 = vsub.s32 32, %v2868
    %v2870 = vshrl.u32 683565275, %v2869
    %v2871 = vshll.u32 683565275, %v2868
    %v2872 = vshrl.u32 2475754826, %v2869
    %v2873 = vor.u32 %v2871, %v2872
    %v2874 = vshll.u32 2475754826, %v2868
    %v2875 = vshrl.u32 2131351028, %v2869
    %v2876 = vor.u32 %v2874, %v2875
    %v2877 = vshll.u32 2131351028, %v2868
    %v2878 = vshrl.u32 2102212464, %v2869
    %v2879 = vor.u32 %v2877, %v2878
    %v2880 = vshll.u32 2102212464, %v2868
    %v2881 = vshrl.u32 920167782, %v2869
    %v2882 = vor.u32 %v2880, %v2881
    %v2883 = vshll.u32 920167782, %v2868
    %v2884 = vshrl.u32 1326507024, %v2869
    %v2885 = vor.u32 %v2883, %v2884
    %vm2886 = vcmp.lt.s32.totalorder %v2867, 1
    %vm2887 = vcmp.lt.s32.totalorder %v2867, 2
    %vm2888 = vcmp.lt.s32.totalorder %v2867, 3
    %vm2889 = vcmp.lt.s32.totalorder %v2867, 4
    %v2890 = vsel %vm2886, %v2870, %v2873
    %v2891 = vsel %vm2889, %v2879, 2102212464
    %v2892 = vsel %vm2888, %v2876, %v2891
    %v2893 = vsel %vm2887, %v2890, %v2892
    %v2894 = vsel %vm2886, %v2873, %v2876
    %v2895 = vsel %vm2889, %v2882, 920167782
    %v2896 = vsel %vm2888, %v2879, %v2895
    %v2897 = vsel %vm2887, %v2894, %v2896
    %v2898 = vsel %vm2886, %v2876, %v2879
    %v2899 = vsel %vm2889, %v2885, 1326507024
    %v2900 = vsel %vm2888, %v2882, %v2899
    %v2901 = vsel %vm2887, %v2898, %v2900
    %v2902 = vshll.u32 %v2862, 8
    %v2903 = vmul.u32.u64.compose %v2902, %v2901
    %v2904 = vextract.low.u32 %v2903
    %v2905 = vextract.high.u32 %v2903
    %v2906 = vmul.u32.u64.compose %v2902, %v2897
    %v2907 = vextract.low.u32 %v2906
    %v2908 = vextract.high.u32 %v2906
    %v2909 = vmul.u32 %v2902, %v2893
    %v2910 = vadd.s32 %v2905, %v2907
    %vm2911 = vc.u32 %v2905, %v2907
    %v2912 = vadd.s32 %v2908, 1
    %v2913 = vsel %vm2911, %v2912, %v2908
    %v2914 = vadd.s32 %v2909, %v2913
    %v2915 = vadd.s32 %v2914, 536870912
    %v2916 = vshrl.u32 %v2915, 30
    %v2917 = vshll.u32 %v2916, 30
    %v2918 = vsub.s32 %v2914, %v2917
    %vm2919 = vcmp.lt.s32.totalorder %v2918, 0
    %v2920 = vsub.s32 0, %v2918
    %v2921 = vsel %vm2919, %v2920, %v2918
    %v2922 = vclz %v2921
    %v2923 = vsub.s32 %v2922, 2
    %vm2924 = vcmp.gt.s32.totalorder 0, %v2923
    %v2925 = vsel %vm2924, 0, %v2923
    %v2926 = vsub.s32 32, %v2925
    %v2927 = vshll.u32 %v2918, %v2925
    %v2928 = vshrl.u32 %v2910, %v2926
    %v2929 = vor.u32 %v2927, %v2928
    %v2930 = vsub.s32 4294967266, %v2925
    %v2931 = vadd.s32 %v2930, 127
    %v2932 = vshll.u32 %v2931, 23
    %v2933 = vor.u32 4788187, %v2932
    %v2934 = vand.u32 2147483647, %v2933
    %v2936 = vcvt.s32.f32 %v2929
    %v2937 = vmul.f32 %v2936, %v2934
    %v2938 = vxor.u32 %v2937, 2147483648
    %v2939 = vsel %vm2856, %v2938, %v2937
    %v2940 = vsub.s32 4, %v2916
    %v2941 = vsel %vm2856, %v2940, %v2916
    %v2942 = vsel %vm2855, %v272, %v2939
    %v2943 = vsel %vm2855, 0, %v2941
    %v2944 = vcosq.f32.pop %v2942
    %v2945 = vsinq.f32.pop %v2942
    %vm2946 = vweird.f32 %v272
    %v2947 = vand.u32 %v2943, 3
    %vm2948 = vcmp.lt.s32.totalorder %v2947, 2
    %vm2949 = vcmp.eq.s32.totalorder %v2947, 0
    %v2950 = vxor.u32 %v2945, 2147483648
    %v2951 = vsel %vm2949, %v2944, %v2950
    %vm2952 = vcmp.eq.s32.totalorder %v2947, 2
    %v2953 = vxor.u32 %v2944, 2147483648
    %v2954 = vsel %vm2952, %v2953, %v2945
    %v2955 = vsel %vm2948, %v2951, %v2954
    %v2956 = vsel %vm2946, nan, %v2955
    %v2957 = vand.u32 2147483647, %v273
    %vm2958 = vcmp.le.f32.partialorder %v2957, 0.7853982
    %vm2959 = vcmp.lt.s32.totalorder %v273, 0
    %v2960 = vand.u32 %v273, 2139095040
    %v2961 = vshrl.u32 %v2960, 23
    %v2962 = vsub.s32 %v2961, 127
    %v2963 = vand.u32 2147483647, %v273
    %v2964 = vand.u32 %v2963, 8388607
    %v2965 = vor.u32 %v2964, 8388608
    %v2966 = vsub.s32 0, %v2965
    %v2967 = vadd.s32 %v2962, 1
    %vm2968 = vcmp.gt.s32.totalorder %v2967, 0
    %v2969 = vsel %vm2968, %v2967, 0
    %v2970 = vshrl.u32 %v2969, 5
    %v2971 = vand.u32 %v2969, 31
    %v2972 = vsub.s32 32, %v2971
    %v2973 = vshrl.u32 683565275, %v2972
    %v2974 = vshll.u32 683565275, %v2971
    %v2975 = vshrl.u32 2475754826, %v2972
    %v2976 = vor.u32 %v2974, %v2975
    %v2977 = vshll.u32 2475754826, %v2971
    %v2978 = vshrl.u32 2131351028, %v2972
    %v2979 = vor.u32 %v2977, %v2978
    %v2980 = vshll.u32 2131351028, %v2971
    %v2981 = vshrl.u32 2102212464, %v2972
    %v2982 = vor.u32 %v2980, %v2981
    %v2983 = vshll.u32 2102212464, %v2971
    %v2984 = vshrl.u32 920167782, %v2972
    %v2985 = vor.u32 %v2983, %v2984
    %v2986 = vshll.u32 920167782, %v2971
    %v2987 = vshrl.u32 1326507024, %v2972
    %v2988 = vor.u32 %v2986, %v2987
    %vm2989 = vcmp.lt.s32.totalorder %v2970, 1
    %vm2990 = vcmp.lt.s32.totalorder %v2970, 2
    %vm2991 = vcmp.lt.s32.totalorder %v2970, 3
    %vm2992 = vcmp.lt.s32.totalorder %v2970, 4
    %v2993 = vsel %vm2989, %v2973, %v2976
    %v2994 = vsel %vm2992, %v2982, 2102212464
    %v2995 = vsel %vm2991, %v2979, %v2994
    %v2996 = vsel %vm2990, %v2993, %v2995
    %v2997 = vsel %vm2989, %v2976, %v2979
    %v2998 = vsel %vm2992, %v2985, 920167782
    %v2999 = vsel %vm2991, %v2982, %v2998
    %v3000 = vsel %vm2990, %v2997, %v2999
    %v3001 = vsel %vm2989, %v2979, %v2982
    %v3002 = vsel %vm2992, %v2988, 1326507024
    %v3003 = vsel %vm2991, %v2985, %v3002
    %v3004 = vsel %vm2990, %v3001, %v3003
    %v3005 = vshll.u32 %v2965, 8
    %v3006 = vmul.u32.u64.compose %v3005, %v3004
    %v3007 = vextract.low.u32 %v3006
    %v3008 = vextract.high.u32 %v3006
    %v3009 = vmul.u32.u64.compose %v3005, %v3000
    %v3010 = vextract.low.u32 %v3009
    %v3011 = vextract.high.u32 %v3009
    %v3012 = vmul.u32 %v3005, %v2996
    %v3013 = vadd.s32 %v3008, %v3010
    %vm3014 = vc.u32 %v3008, %v3010
    %v3015 = vadd.s32 %v3011, 1
    %v3016 = vsel %vm3014, %v3015, %v3011
    %v3017 = vadd.s32 %v3012, %v3016
    %v3018 = vadd.s32 %v3017, 536870912
    %v3019 = vshrl.u32 %v3018, 30
    %v3020 = vshll.u32 %v3019, 30
    %v3021 = vsub.s32 %v3017, %v3020
    %vm3022 = vcmp.lt.s32.totalorder %v3021, 0
    %v3023 = vsub.s32 0, %v3021
    %v3024 = vsel %vm3022, %v3023, %v3021
    %v3025 = vclz %v3024
    %v3026 = vsub.s32 %v3025, 2
    %vm3027 = vcmp.gt.s32.totalorder 0, %v3026
    %v3028 = vsel %vm3027, 0, %v3026
    %v3029 = vsub.s32 32, %v3028
    %v3030 = vshll.u32 %v3021, %v3028
    %v3031 = vshrl.u32 %v3013, %v3029
    %v3032 = vor.u32 %v3030, %v3031
    %v3033 = vsub.s32 4294967266, %v3028
    %v3034 = vadd.s32 %v3033, 127
    %v3035 = vshll.u32 %v3034, 23
    %v3036 = vor.u32 4788187, %v3035
    %v3037 = vand.u32 2147483647, %v3036
    %v3039 = vcvt.s32.f32 %v3032
    %v3040 = vmul.f32 %v3039, %v3037
    %v3041 = vxor.u32 %v3040, 2147483648
    %v3042 = vsel %vm2959, %v3041, %v3040
    %v3043 = vsub.s32 4, %v3019
    %v3044 = vsel %vm2959, %v3043, %v3019
    %v3045 = vsel %vm2958, %v273, %v3042
    %v3046 = vsel %vm2958, 0, %v3044
    %v3047 = vcosq.f32.pop %v3045
    %v3048 = vsinq.f32.pop %v3045
    %vm3049 = vweird.f32 %v273
    %v3050 = vand.u32 %v3046, 3
    %vm3051 = vcmp.lt.s32.totalorder %v3050, 2
    %vm3052 = vcmp.eq.s32.totalorder %v3050, 0
    %v3053 = vxor.u32 %v3048, 2147483648
    %v3054 = vsel %vm3052, %v3047, %v3053
    %vm3055 = vcmp.eq.s32.totalorder %v3050, 2
    %v3056 = vxor.u32 %v3047, 2147483648
    %v3057 = vsel %vm3055, %v3056, %v3048
    %v3058 = vsel %vm3051, %v3054, %v3057
    %v3059 = vsel %vm3049, nan, %v3058
    %v3060 = vand.u32 2147483647, %v274
    %vm3061 = vcmp.le.f32.partialorder %v3060, 0.7853982
    %vm3062 = vcmp.lt.s32.totalorder %v274, 0
    %v3063 = vand.u32 %v274, 2139095040
    %v3064 = vshrl.u32 %v3063, 23
    %v3065 = vsub.s32 %v3064, 127
    %v3066 = vand.u32 2147483647, %v274
    %v3067 = vand.u32 %v3066, 8388607
    %v3068 = vor.u32 %v3067, 8388608
    %v3069 = vsub.s32 0, %v3068
    %v3070 = vadd.s32 %v3065, 1
    %vm3071 = vcmp.gt.s32.totalorder %v3070, 0
    %v3072 = vsel %vm3071, %v3070, 0
    %v3073 = vshrl.u32 %v3072, 5
    %v3074 = vand.u32 %v3072, 31
    %v3075 = vsub.s32 32, %v3074
    %v3076 = vshrl.u32 683565275, %v3075
    %v3077 = vshll.u32 683565275, %v3074
    %v3078 = vshrl.u32 2475754826, %v3075
    %v3079 = vor.u32 %v3077, %v3078
    %v3080 = vshll.u32 2475754826, %v3074
    %v3081 = vshrl.u32 2131351028, %v3075
    %v3082 = vor.u32 %v3080, %v3081
    %v3083 = vshll.u32 2131351028, %v3074
    %v3084 = vshrl.u32 2102212464, %v3075
    %v3085 = vor.u32 %v3083, %v3084
    %v3086 = vshll.u32 2102212464, %v3074
    %v3087 = vshrl.u32 920167782, %v3075
    %v3088 = vor.u32 %v3086, %v3087
    %v3089 = vshll.u32 920167782, %v3074
    %v3090 = vshrl.u32 1326507024, %v3075
    %v3091 = vor.u32 %v3089, %v3090
    %vm3092 = vcmp.lt.s32.totalorder %v3073, 1
    %vm3093 = vcmp.lt.s32.totalorder %v3073, 2
    %vm3094 = vcmp.lt.s32.totalorder %v3073, 3
    %vm3095 = vcmp.lt.s32.totalorder %v3073, 4
    %v3096 = vsel %vm3092, %v3076, %v3079
    %v3097 = vsel %vm3095, %v3085, 2102212464
    %v3098 = vsel %vm3094, %v3082, %v3097
    %v3099 = vsel %vm3093, %v3096, %v3098
    %v3100 = vsel %vm3092, %v3079, %v3082
    %v3101 = vsel %vm3095, %v3088, 920167782
    %v3102 = vsel %vm3094, %v3085, %v3101
    %v3103 = vsel %vm3093, %v3100, %v3102
    %v3104 = vsel %vm3092, %v3082, %v3085
    %v3105 = vsel %vm3095, %v3091, 1326507024
    %v3106 = vsel %vm3094, %v3088, %v3105
    %v3107 = vsel %vm3093, %v3104, %v3106
    %v3108 = vshll.u32 %v3068, 8
    %v3109 = vmul.u32.u64.compose %v3108, %v3107
    %v3110 = vextract.low.u32 %v3109
    %v3111 = vextract.high.u32 %v3109
    %v3112 = vmul.u32.u64.compose %v3108, %v3103
    %v3113 = vextract.low.u32 %v3112
    %v3114 = vextract.high.u32 %v3112
    %v3115 = vmul.u32 %v3108, %v3099
    %v3116 = vadd.s32 %v3111, %v3113
    %vm3117 = vc.u32 %v3111, %v3113
    %v3118 = vadd.s32 %v3114, 1
    %v3119 = vsel %vm3117, %v3118, %v3114
    %v3120 = vadd.s32 %v3115, %v3119
    %v3121 = vadd.s32 %v3120, 536870912
    %v3122 = vshrl.u32 %v3121, 30
    %v3123 = vshll.u32 %v3122, 30
    %v3124 = vsub.s32 %v3120, %v3123
    %vm3125 = vcmp.lt.s32.totalorder %v3124, 0
    %v3126 = vsub.s32 0, %v3124
    %v3127 = vsel %vm3125, %v3126, %v3124
    %v3128 = vclz %v3127
    %v3129 = vsub.s32 %v3128, 2
    %vm3130 = vcmp.gt.s32.totalorder 0, %v3129
    %v3131 = vsel %vm3130, 0, %v3129
    %v3132 = vsub.s32 32, %v3131
    %v3133 = vshll.u32 %v3124, %v3131
    %v3134 = vshrl.u32 %v3116, %v3132
    %v3135 = vor.u32 %v3133, %v3134
    %v3136 = vsub.s32 4294967266, %v3131
    %v3137 = vadd.s32 %v3136, 127
    %v3138 = vshll.u32 %v3137, 23
    %v3139 = vor.u32 4788187, %v3138
    %v3140 = vand.u32 2147483647, %v3139
    %v3142 = vcvt.s32.f32 %v3135
    %v3143 = vmul.f32 %v3142, %v3140
    %v3144 = vxor.u32 %v3143, 2147483648
    %v3145 = vsel %vm3062, %v3144, %v3143
    %v3146 = vsub.s32 4, %v3122
    %v3147 = vsel %vm3062, %v3146, %v3122
    %v3148 = vsel %vm3061, %v274, %v3145
    %v3149 = vsel %vm3061, 0, %v3147
    %v3150 = vcosq.f32.pop %v3148
    %v3151 = vsinq.f32.pop %v3148
    %vm3152 = vweird.f32 %v274
    %v3153 = vand.u32 %v3149, 3
    %vm3154 = vcmp.lt.s32.totalorder %v3153, 2
    %vm3155 = vcmp.eq.s32.totalorder %v3153, 0
    %v3156 = vxor.u32 %v3151, 2147483648
    %v3157 = vsel %vm3155, %v3150, %v3156
    %vm3158 = vcmp.eq.s32.totalorder %v3153, 2
    %v3159 = vxor.u32 %v3150, 2147483648
    %v3160 = vsel %vm3158, %v3159, %v3151
    %v3161 = vsel %vm3154, %v3157, %v3160
    %v3162 = vsel %vm3152, nan, %v3161
    %v3163 = vand.u32 2147483647, %v275
    %vm3164 = vcmp.le.f32.partialorder %v3163, 0.7853982
    %vm3165 = vcmp.lt.s32.totalorder %v275, 0
    %v3166 = vand.u32 %v275, 2139095040
    %v3167 = vshrl.u32 %v3166, 23
    %v3168 = vsub.s32 %v3167, 127
    %v3169 = vand.u32 2147483647, %v275
    %v3170 = vand.u32 %v3169, 8388607
    %v3171 = vor.u32 %v3170, 8388608
    %v3172 = vsub.s32 0, %v3171
    %v3173 = vadd.s32 %v3168, 1
    %vm3174 = vcmp.gt.s32.totalorder %v3173, 0
    %v3175 = vsel %vm3174, %v3173, 0
    %v3176 = vshrl.u32 %v3175, 5
    %v3177 = vand.u32 %v3175, 31
    %v3178 = vsub.s32 32, %v3177
    %v3179 = vshrl.u32 683565275, %v3178
    %v3180 = vshll.u32 683565275, %v3177
    %v3181 = vshrl.u32 2475754826, %v3178
    %v3182 = vor.u32 %v3180, %v3181
    %v3183 = vshll.u32 2475754826, %v3177
    %v3184 = vshrl.u32 2131351028, %v3178
    %v3185 = vor.u32 %v3183, %v3184
    %v3186 = vshll.u32 2131351028, %v3177
    %v3187 = vshrl.u32 2102212464, %v3178
    %v3188 = vor.u32 %v3186, %v3187
    %v3189 = vshll.u32 2102212464, %v3177
    %v3190 = vshrl.u32 920167782, %v3178
    %v3191 = vor.u32 %v3189, %v3190
    %v3192 = vshll.u32 920167782, %v3177
    %v3193 = vshrl.u32 1326507024, %v3178
    %v3194 = vor.u32 %v3192, %v3193
    %vm3195 = vcmp.lt.s32.totalorder %v3176, 1
    %vm3196 = vcmp.lt.s32.totalorder %v3176, 2
    %vm3197 = vcmp.lt.s32.totalorder %v3176, 3
    %vm3198 = vcmp.lt.s32.totalorder %v3176, 4
    %v3199 = vsel %vm3195, %v3179, %v3182
    %v3200 = vsel %vm3198, %v3188, 2102212464
    %v3201 = vsel %vm3197, %v3185, %v3200
    %v3202 = vsel %vm3196, %v3199, %v3201
    %v3203 = vsel %vm3195, %v3182, %v3185
    %v3204 = vsel %vm3198, %v3191, 920167782
    %v3205 = vsel %vm3197, %v3188, %v3204
    %v3206 = vsel %vm3196, %v3203, %v3205
    %v3207 = vsel %vm3195, %v3185, %v3188
    %v3208 = vsel %vm3198, %v3194, 1326507024
    %v3209 = vsel %vm3197, %v3191, %v3208
    %v3210 = vsel %vm3196, %v3207, %v3209
    %v3211 = vshll.u32 %v3171, 8
    %v3212 = vmul.u32.u64.compose %v3211, %v3210
    %v3213 = vextract.low.u32 %v3212
    %v3214 = vextract.high.u32 %v3212
    %v3215 = vmul.u32.u64.compose %v3211, %v3206
    %v3216 = vextract.low.u32 %v3215
    %v3217 = vextract.high.u32 %v3215
    %v3218 = vmul.u32 %v3211, %v3202
    %v3219 = vadd.s32 %v3214, %v3216
    %vm3220 = vc.u32 %v3214, %v3216
    %v3221 = vadd.s32 %v3217, 1
    %v3222 = vsel %vm3220, %v3221, %v3217
    %v3223 = vadd.s32 %v3218, %v3222
    %v3224 = vadd.s32 %v3223, 536870912
    %v3225 = vshrl.u32 %v3224, 30
    %v3226 = vshll.u32 %v3225, 30
    %v3227 = vsub.s32 %v3223, %v3226
    %vm3228 = vcmp.lt.s32.totalorder %v3227, 0
    %v3229 = vsub.s32 0, %v3227
    %v3230 = vsel %vm3228, %v3229, %v3227
    %v3231 = vclz %v3230
    %v3232 = vsub.s32 %v3231, 2
    %vm3233 = vcmp.gt.s32.totalorder 0, %v3232
    %v3234 = vsel %vm3233, 0, %v3232
    %v3235 = vsub.s32 32, %v3234
    %v3236 = vshll.u32 %v3227, %v3234
    %v3237 = vshrl.u32 %v3219, %v3235
    %v3238 = vor.u32 %v3236, %v3237
    %v3239 = vsub.s32 4294967266, %v3234
    %v3240 = vadd.s32 %v3239, 127
    %v3241 = vshll.u32 %v3240, 23
    %v3242 = vor.u32 4788187, %v3241
    %v3243 = vand.u32 2147483647, %v3242
    %v3245 = vcvt.s32.f32 %v3238
    %v3246 = vmul.f32 %v3245, %v3243
    %v3247 = vxor.u32 %v3246, 2147483648
    %v3248 = vsel %vm3165, %v3247, %v3246
    %v3249 = vsub.s32 4, %v3225
    %v3250 = vsel %vm3165, %v3249, %v3225
    %v3251 = vsel %vm3164, %v275, %v3248
    %v3252 = vsel %vm3164, 0, %v3250
    %v3253 = vcosq.f32.pop %v3251
    %v3254 = vsinq.f32.pop %v3251
    %vm3255 = vweird.f32 %v275
    %v3256 = vand.u32 %v3252, 3
    %vm3257 = vcmp.lt.s32.totalorder %v3256, 2
    %vm3258 = vcmp.eq.s32.totalorder %v3256, 0
    %v3259 = vxor.u32 %v3254, 2147483648
    %v3260 = vsel %vm3258, %v3253, %v3259
    %vm3261 = vcmp.eq.s32.totalorder %v3256, 2
    %v3262 = vxor.u32 %v3253, 2147483648
    %v3263 = vsel %vm3261, %v3262, %v3254
    %v3264 = vsel %vm3257, %v3260, %v3263
    %v3265 = vsel %vm3255, nan, %v3264
    %v3266 = vand.u32 2147483647, %v276
    %vm3267 = vcmp.le.f32.partialorder %v3266, 0.7853982
    %vm3268 = vcmp.lt.s32.totalorder %v276, 0
    %v3269 = vand.u32 %v276, 2139095040
    %v3270 = vshrl.u32 %v3269, 23
    %v3271 = vsub.s32 %v3270, 127
    %v3272 = vand.u32 2147483647, %v276
    %v3273 = vand.u32 %v3272, 8388607
    %v3274 = vor.u32 %v3273, 8388608
    %v3275 = vsub.s32 0, %v3274
    %v3276 = vadd.s32 %v3271, 1
    %vm3277 = vcmp.gt.s32.totalorder %v3276, 0
    %v3278 = vsel %vm3277, %v3276, 0
    %v3279 = vshrl.u32 %v3278, 5
    %v3280 = vand.u32 %v3278, 31
    %v3281 = vsub.s32 32, %v3280
    %v3282 = vshrl.u32 683565275, %v3281
    %v3283 = vshll.u32 683565275, %v3280
    %v3284 = vshrl.u32 2475754826, %v3281
    %v3285 = vor.u32 %v3283, %v3284
    %v3286 = vshll.u32 2475754826, %v3280
    %v3287 = vshrl.u32 2131351028, %v3281
    %v3288 = vor.u32 %v3286, %v3287
    %v3289 = vshll.u32 2131351028, %v3280
    %v3290 = vshrl.u32 2102212464, %v3281
    %v3291 = vor.u32 %v3289, %v3290
    %v3292 = vshll.u32 2102212464, %v3280
    %v3293 = vshrl.u32 920167782, %v3281
    %v3294 = vor.u32 %v3292, %v3293
    %v3295 = vshll.u32 920167782, %v3280
    %v3296 = vshrl.u32 1326507024, %v3281
    %v3297 = vor.u32 %v3295, %v3296
    %vm3298 = vcmp.lt.s32.totalorder %v3279, 1
    %vm3299 = vcmp.lt.s32.totalorder %v3279, 2
    %vm3300 = vcmp.lt.s32.totalorder %v3279, 3
    %vm3301 = vcmp.lt.s32.totalorder %v3279, 4
    %v3302 = vsel %vm3298, %v3282, %v3285
    %v3303 = vsel %vm3301, %v3291, 2102212464
    %v3304 = vsel %vm3300, %v3288, %v3303
    %v3305 = vsel %vm3299, %v3302, %v3304
    %v3306 = vsel %vm3298, %v3285, %v3288
    %v3307 = vsel %vm3301, %v3294, 920167782
    %v3308 = vsel %vm3300, %v3291, %v3307
    %v3309 = vsel %vm3299, %v3306, %v3308
    %v3310 = vsel %vm3298, %v3288, %v3291
    %v3311 = vsel %vm3301, %v3297, 1326507024
    %v3312 = vsel %vm3300, %v3294, %v3311
    %v3313 = vsel %vm3299, %v3310, %v3312
    %v3314 = vshll.u32 %v3274, 8
    %v3315 = vmul.u32.u64.compose %v3314, %v3313
    %v3316 = vextract.low.u32 %v3315
    %v3317 = vextract.high.u32 %v3315
    %v3318 = vmul.u32.u64.compose %v3314, %v3309
    %v3319 = vextract.low.u32 %v3318
    %v3320 = vextract.high.u32 %v3318
    %v3321 = vmul.u32 %v3314, %v3305
    %v3322 = vadd.s32 %v3317, %v3319
    %vm3323 = vc.u32 %v3317, %v3319
    %v3324 = vadd.s32 %v3320, 1
    %v3325 = vsel %vm3323, %v3324, %v3320
    %v3326 = vadd.s32 %v3321, %v3325
    %v3327 = vadd.s32 %v3326, 536870912
    %v3328 = vshrl.u32 %v3327, 30
    %v3329 = vshll.u32 %v3328, 30
    %v3330 = vsub.s32 %v3326, %v3329
    %vm3331 = vcmp.lt.s32.totalorder %v3330, 0
    %v3332 = vsub.s32 0, %v3330
    %v3333 = vsel %vm3331, %v3332, %v3330
    %v3334 = vclz %v3333
    %v3335 = vsub.s32 %v3334, 2
    %vm3336 = vcmp.gt.s32.totalorder 0, %v3335
    %v3337 = vsel %vm3336, 0, %v3335
    %v3338 = vsub.s32 32, %v3337
    %v3339 = vshll.u32 %v3330, %v3337
    %v3340 = vshrl.u32 %v3322, %v3338
    %v3341 = vor.u32 %v3339, %v3340
    %v3342 = vsub.s32 4294967266, %v3337
    %v3343 = vadd.s32 %v3342, 127
    %v3344 = vshll.u32 %v3343, 23
    %v3345 = vor.u32 4788187, %v3344
    %v3346 = vand.u32 2147483647, %v3345
    %v3348 = vcvt.s32.f32 %v3341
    %v3349 = vmul.f32 %v3348, %v3346
    %v3350 = vxor.u32 %v3349, 2147483648
    %v3351 = vsel %vm3268, %v3350, %v3349
    %v3352 = vsub.s32 4, %v3328
    %v3353 = vsel %vm3268, %v3352, %v3328
    %v3354 = vsel %vm3267, %v276, %v3351
    %v3355 = vsel %vm3267, 0, %v3353
    %v3356 = vcosq.f32.pop %v3354
    %v3357 = vsinq.f32.pop %v3354
    %vm3358 = vweird.f32 %v276
    %v3359 = vand.u32 %v3355, 3
    %vm3360 = vcmp.lt.s32.totalorder %v3359, 2
    %vm3361 = vcmp.eq.s32.totalorder %v3359, 0
    %v3362 = vxor.u32 %v3357, 2147483648
    %v3363 = vsel %vm3361, %v3356, %v3362
    %vm3364 = vcmp.eq.s32.totalorder %v3359, 2
    %v3365 = vxor.u32 %v3356, 2147483648
    %v3366 = vsel %vm3364, %v3365, %v3357
    %v3367 = vsel %vm3360, %v3363, %v3366
    %v3368 = vsel %vm3358, nan, %v3367
    %v3369 = vand.u32 2147483647, %v277
    %vm3370 = vcmp.le.f32.partialorder %v3369, 0.7853982
    %vm3371 = vcmp.lt.s32.totalorder %v277, 0
    %v3372 = vand.u32 %v277, 2139095040
    %v3373 = vshrl.u32 %v3372, 23
    %v3374 = vsub.s32 %v3373, 127
    %v3375 = vand.u32 2147483647, %v277
    %v3376 = vand.u32 %v3375, 8388607
    %v3377 = vor.u32 %v3376, 8388608
    %v3378 = vsub.s32 0, %v3377
    %v3379 = vadd.s32 %v3374, 1
    %vm3380 = vcmp.gt.s32.totalorder %v3379, 0
    %v3381 = vsel %vm3380, %v3379, 0
    %v3382 = vshrl.u32 %v3381, 5
    %v3383 = vand.u32 %v3381, 31
    %v3384 = vsub.s32 32, %v3383
    %v3385 = vshrl.u32 683565275, %v3384
    %v3386 = vshll.u32 683565275, %v3383
    %v3387 = vshrl.u32 2475754826, %v3384
    %v3388 = vor.u32 %v3386, %v3387
    %v3389 = vshll.u32 2475754826, %v3383
    %v3390 = vshrl.u32 2131351028, %v3384
    %v3391 = vor.u32 %v3389, %v3390
    %v3392 = vshll.u32 2131351028, %v3383
    %v3393 = vshrl.u32 2102212464, %v3384
    %v3394 = vor.u32 %v3392, %v3393
    %v3395 = vshll.u32 2102212464, %v3383
    %v3396 = vshrl.u32 920167782, %v3384
    %v3397 = vor.u32 %v3395, %v3396
    %v3398 = vshll.u32 920167782, %v3383
    %v3399 = vshrl.u32 1326507024, %v3384
    %v3400 = vor.u32 %v3398, %v3399
    %vm3401 = vcmp.lt.s32.totalorder %v3382, 1
    %vm3402 = vcmp.lt.s32.totalorder %v3382, 2
    %vm3403 = vcmp.lt.s32.totalorder %v3382, 3
    %vm3404 = vcmp.lt.s32.totalorder %v3382, 4
    %v3405 = vsel %vm3401, %v3385, %v3388
    %v3406 = vsel %vm3404, %v3394, 2102212464
    %v3407 = vsel %vm3403, %v3391, %v3406
    %v3408 = vsel %vm3402, %v3405, %v3407
    %v3409 = vsel %vm3401, %v3388, %v3391
    %v3410 = vsel %vm3404, %v3397, 920167782
    %v3411 = vsel %vm3403, %v3394, %v3410
    %v3412 = vsel %vm3402, %v3409, %v3411
    %v3413 = vsel %vm3401, %v3391, %v3394
    %v3414 = vsel %vm3404, %v3400, 1326507024
    %v3415 = vsel %vm3403, %v3397, %v3414
    %v3416 = vsel %vm3402, %v3413, %v3415
    %v3417 = vshll.u32 %v3377, 8
    %v3418 = vmul.u32.u64.compose %v3417, %v3416
    %v3419 = vextract.low.u32 %v3418
    %v3420 = vextract.high.u32 %v3418
    %v3421 = vmul.u32.u64.compose %v3417, %v3412
    %v3422 = vextract.low.u32 %v3421
    %v3423 = vextract.high.u32 %v3421
    %v3424 = vmul.u32 %v3417, %v3408
    %v3425 = vadd.s32 %v3420, %v3422
    %vm3426 = vc.u32 %v3420, %v3422
    %v3427 = vadd.s32 %v3423, 1
    %v3428 = vsel %vm3426, %v3427, %v3423
    %v3429 = vadd.s32 %v3424, %v3428
    %v3430 = vadd.s32 %v3429, 536870912
    %v3431 = vshrl.u32 %v3430, 30
    %v3432 = vshll.u32 %v3431, 30
    %v3433 = vsub.s32 %v3429, %v3432
    %vm3434 = vcmp.lt.s32.totalorder %v3433, 0
    %v3435 = vsub.s32 0, %v3433
    %v3436 = vsel %vm3434, %v3435, %v3433
    %v3437 = vclz %v3436
    %v3438 = vsub.s32 %v3437, 2
    %vm3439 = vcmp.gt.s32.totalorder 0, %v3438
    %v3440 = vsel %vm3439, 0, %v3438
    %v3441 = vsub.s32 32, %v3440
    %v3442 = vshll.u32 %v3433, %v3440
    %v3443 = vshrl.u32 %v3425, %v3441
    %v3444 = vor.u32 %v3442, %v3443
    %v3445 = vsub.s32 4294967266, %v3440
    %v3446 = vadd.s32 %v3445, 127
    %v3447 = vshll.u32 %v3446, 23
    %v3448 = vor.u32 4788187, %v3447
    %v3449 = vand.u32 2147483647, %v3448
    %v3451 = vcvt.s32.f32 %v3444
    %v3452 = vmul.f32 %v3451, %v3449
    %v3453 = vxor.u32 %v3452, 2147483648
    %v3454 = vsel %vm3371, %v3453, %v3452
    %v3455 = vsub.s32 4, %v3431
    %v3456 = vsel %vm3371, %v3455, %v3431
    %v3457 = vsel %vm3370, %v277, %v3454
    %v3458 = vsel %vm3370, 0, %v3456
    %v3459 = vcosq.f32.pop %v3457
    %v3460 = vsinq.f32.pop %v3457
    %vm3461 = vweird.f32 %v277
    %v3462 = vand.u32 %v3458, 3
    %vm3463 = vcmp.lt.s32.totalorder %v3462, 2
    %vm3464 = vcmp.eq.s32.totalorder %v3462, 0
    %v3465 = vxor.u32 %v3460, 2147483648
    %v3466 = vsel %vm3464, %v3459, %v3465
    %vm3467 = vcmp.eq.s32.totalorder %v3462, 2
    %v3468 = vxor.u32 %v3459, 2147483648
    %v3469 = vsel %vm3467, %v3468, %v3460
    %v3470 = vsel %vm3463, %v3466, %v3469
    %v3471 = vsel %vm3461, nan, %v3470
    %v3472 = vand.u32 2147483647, %v278
    %vm3473 = vcmp.le.f32.partialorder %v3472, 0.7853982
    %vm3474 = vcmp.lt.s32.totalorder %v278, 0
    %v3475 = vand.u32 %v278, 2139095040
    %v3476 = vshrl.u32 %v3475, 23
    %v3477 = vsub.s32 %v3476, 127
    %v3478 = vand.u32 2147483647, %v278
    %v3479 = vand.u32 %v3478, 8388607
    %v3480 = vor.u32 %v3479, 8388608
    %v3481 = vsub.s32 0, %v3480
    %v3482 = vadd.s32 %v3477, 1
    %vm3483 = vcmp.gt.s32.totalorder %v3482, 0
    %v3484 = vsel %vm3483, %v3482, 0
    %v3485 = vshrl.u32 %v3484, 5
    %v3486 = vand.u32 %v3484, 31
    %v3487 = vsub.s32 32, %v3486
    %v3488 = vshrl.u32 683565275, %v3487
    %v3489 = vshll.u32 683565275, %v3486
    %v3490 = vshrl.u32 2475754826, %v3487
    %v3491 = vor.u32 %v3489, %v3490
    %v3492 = vshll.u32 2475754826, %v3486
    %v3493 = vshrl.u32 2131351028, %v3487
    %v3494 = vor.u32 %v3492, %v3493
    %v3495 = vshll.u32 2131351028, %v3486
    %v3496 = vshrl.u32 2102212464, %v3487
    %v3497 = vor.u32 %v3495, %v3496
    %v3498 = vshll.u32 2102212464, %v3486
    %v3499 = vshrl.u32 920167782, %v3487
    %v3500 = vor.u32 %v3498, %v3499
    %v3501 = vshll.u32 920167782, %v3486
    %v3502 = vshrl.u32 1326507024, %v3487
    %v3503 = vor.u32 %v3501, %v3502
    %vm3504 = vcmp.lt.s32.totalorder %v3485, 1
    %vm3505 = vcmp.lt.s32.totalorder %v3485, 2
    %vm3506 = vcmp.lt.s32.totalorder %v3485, 3
    %vm3507 = vcmp.lt.s32.totalorder %v3485, 4
    %v3508 = vsel %vm3504, %v3488, %v3491
    %v3509 = vsel %vm3507, %v3497, 2102212464
    %v3510 = vsel %vm3506, %v3494, %v3509
    %v3511 = vsel %vm3505, %v3508, %v3510
    %v3512 = vsel %vm3504, %v3491, %v3494
    %v3513 = vsel %vm3507, %v3500, 920167782
    %v3514 = vsel %vm3506, %v3497, %v3513
    %v3515 = vsel %vm3505, %v3512, %v3514
    %v3516 = vsel %vm3504, %v3494, %v3497
    %v3517 = vsel %vm3507, %v3503, 1326507024
    %v3518 = vsel %vm3506, %v3500, %v3517
    %v3519 = vsel %vm3505, %v3516, %v3518
    %v3520 = vshll.u32 %v3480, 8
    %v3521 = vmul.u32.u64.compose %v3520, %v3519
    %v3522 = vextract.low.u32 %v3521
    %v3523 = vextract.high.u32 %v3521
    %v3524 = vmul.u32.u64.compose %v3520, %v3515
    %v3525 = vextract.low.u32 %v3524
    %v3526 = vextract.high.u32 %v3524
    %v3527 = vmul.u32 %v3520, %v3511
    %v3528 = vadd.s32 %v3523, %v3525
    %vm3529 = vc.u32 %v3523, %v3525
    %v3530 = vadd.s32 %v3526, 1
    %v3531 = vsel %vm3529, %v3530, %v3526
    %v3532 = vadd.s32 %v3527, %v3531
    %v3533 = vadd.s32 %v3532, 536870912
    %v3534 = vshrl.u32 %v3533, 30
    %v3535 = vshll.u32 %v3534, 30
    %v3536 = vsub.s32 %v3532, %v3535
    %vm3537 = vcmp.lt.s32.totalorder %v3536, 0
    %v3538 = vsub.s32 0, %v3536
    %v3539 = vsel %vm3537, %v3538, %v3536
    %v3540 = vclz %v3539
    %v3541 = vsub.s32 %v3540, 2
    %vm3542 = vcmp.gt.s32.totalorder 0, %v3541
    %v3543 = vsel %vm3542, 0, %v3541
    %v3544 = vsub.s32 32, %v3543
    %v3545 = vshll.u32 %v3536, %v3543
    %v3546 = vshrl.u32 %v3528, %v3544
    %v3547 = vor.u32 %v3545, %v3546
    %v3548 = vsub.s32 4294967266, %v3543
    %v3549 = vadd.s32 %v3548, 127
    %v3550 = vshll.u32 %v3549, 23
    %v3551 = vor.u32 4788187, %v3550
    %v3552 = vand.u32 2147483647, %v3551
    %v3554 = vcvt.s32.f32 %v3547
    %v3555 = vmul.f32 %v3554, %v3552
    %v3556 = vxor.u32 %v3555, 2147483648
    %v3557 = vsel %vm3474, %v3556, %v3555
    %v3558 = vsub.s32 4, %v3534
    %v3559 = vsel %vm3474, %v3558, %v3534
    %v3560 = vsel %vm3473, %v278, %v3557
    %v3561 = vsel %vm3473, 0, %v3559
    %v3562 = vcosq.f32.pop %v3560
    %v3563 = vsinq.f32.pop %v3560
    %vm3564 = vweird.f32 %v278
    %v3565 = vand.u32 %v3561, 3
    %vm3566 = vcmp.lt.s32.totalorder %v3565, 2
    %vm3567 = vcmp.eq.s32.totalorder %v3565, 0
    %v3568 = vxor.u32 %v3563, 2147483648
    %v3569 = vsel %vm3567, %v3562, %v3568
    %vm3570 = vcmp.eq.s32.totalorder %v3565, 2
    %v3571 = vxor.u32 %v3562, 2147483648
    %v3572 = vsel %vm3570, %v3571, %v3563
    %v3573 = vsel %vm3566, %v3569, %v3572
    %v3574 = vsel %vm3564, nan, %v3573
    %v3575 = vmul.f32 %v381, %v381
    %v3576 = vmul.f32 %v484, %v484
    %v3577 = vmul.f32 %v587, %v587
    %v3578 = vmul.f32 %v690, %v690
    %v3579 = vmul.f32 %v793, %v793
    %v3580 = vmul.f32 %v896, %v896
    %v3581 = vmul.f32 %v999, %v999
    %v3582 = vmul.f32 %v1102, %v1102
    %v3583 = vmul.f32 %v1205, %v1205
    %v3584 = vmul.f32 %v1308, %v1308
    %v3585 = vmul.f32 %v1411, %v1411
    %v3586 = vmul.f32 %v1514, %v1514
    %v3587 = vmul.f32 %v1617, %v1617
    %v3588 = vmul.f32 %v1720, %v1720
    %v3589 = vmul.f32 %v1823, %v1823
    %v3590 = vmul.f32 %v1926, %v1926
    %v3591 = vmul.f32 %v2029, %v2029
    %v3592 = vmul.f32 %v2132, %v2132
    %v3593 = vmul.f32 %v2235, %v2235
    %v3594 = vmul.f32 %v2338, %v2338
    %v3595 = vmul.f32 %v2441, %v2441
    %v3596 = vmul.f32 %v2544, %v2544
    %v3597 = vmul.f32 %v2647, %v2647
    %v3598 = vmul.f32 %v2750, %v2750
    %v3599 = vmul.f32 %v2853, %v2853
    %v3600 = vmul.f32 %v2956, %v2956
    %v3601 = vmul.f32 %v3059, %v3059
    %v3602 = vmul.f32 %v3162, %v3162
    %v3603 = vmul.f32 %v3265, %v3265
    %v3604 = vmul.f32 %v3368, %v3368
    %v3605 = vmul.f32 %v3471, %v3471
    %v3606 = vmul.f32 %v3574, %v3574
    %v3607 = vsel %vm215, %v3575, 0.0
    %v3608 = vsel %vm216, %v3576, 0.0
    %v3609 = vsel %vm217, %v3577, 0.0
    %v3610 = vsel %vm218, %v3578, 0.0
    %v3611 = vsel %vm219, %v3579, 0.0
    %v3612 = vsel %vm220, %v3580, 0.0
    %v3613 = vsel %vm221, %v3581, 0.0
    %v3614 = vsel %vm222, %v3582, 0.0
    %v3615 = vsel %vm223, %v3583, 0.0
    %v3616 = vsel %vm224, %v3584, 0.0
    %v3617 = vsel %vm225, %v3585, 0.0
    %v3618 = vsel %vm226, %v3586, 0.0
    %v3619 = vsel %vm227, %v3587, 0.0
    %v3620 = vsel %vm228, %v3588, 0.0
    %v3621 = vsel %vm229, %v3589, 0.0
    %v3622 = vsel %vm230, %v3590, 0.0
    %v3623 = vsel %vm231, %v3591, 0.0
    %v3624 = vsel %vm232, %v3592, 0.0
    %v3625 = vsel %vm233, %v3593, 0.0
    %v3626 = vsel %vm234, %v3594, 0.0
    %v3627 = vsel %vm235, %v3595, 0.0
    %v3628 = vsel %vm236, %v3596, 0.0
    %v3629 = vsel %vm237, %v3597, 0.0
    %v3630 = vsel %vm238, %v3598, 0.0
    %v3631 = vsel %vm239, %v3599, 0.0
    %v3632 = vsel %vm240, %v3600, 0.0
    %v3633 = vsel %vm241, %v3601, 0.0
    %v3634 = vsel %vm242, %v3602, 0.0
    %v3635 = vsel %vm243, %v3603, 0.0
    %v3636 = vsel %vm244, %v3604, 0.0
    %v3637 = vsel %vm245, %v3605, 0.0
    %v3638 = vsel %vm246, %v3606, 0.0
    %3640 = vset.pattern.permute.xlu0 0
    %3641 = vperm.xlu0 %3640, %v152
    %v3642 = vpop.permute.xlu0 %3641
    %3645 = vset.pattern.permute.xlu0 0
    %3646 = vperm.xlu0 %3645, %v154
    %v3647 = vpop.permute.xlu0 %3646
    %3650 = vset.pattern.permute.xlu0 0
    %3651 = vperm.xlu0 %3650, %v156
    %v3652 = vpop.permute.xlu0 %3651
    %3655 = vset.pattern.permute.xlu0 0
    %3656 = vperm.xlu0 %3655, %v158
    %v3657 = vpop.permute.xlu0 %3656
    %3660 = vset.pattern.permute.xlu0 0
    %3661 = vperm.xlu0 %3660, %v160
    %v3662 = vpop.permute.xlu0 %3661
    %3665 = vset.pattern.permute.xlu0 0
    %3666 = vperm.xlu0 %3665, %v162
    %v3667 = vpop.permute.xlu0 %3666
    %3670 = vset.pattern.permute.xlu0 0
    %3671 = vperm.xlu0 %3670, %v164
    %v3672 = vpop.permute.xlu0 %3671
    %3675 = vset.pattern.permute.xlu0 0
    %3676 = vperm.xlu0 %3675, %v166
    %v3677 = vpop.permute.xlu0 %3676
    %3680 = vset.pattern.permute.xlu0 0
    %3681 = vperm.xlu0 %3680, %v168
    %v3682 = vpop.permute.xlu0 %3681
    %3685 = vset.pattern.permute.xlu0 0
    %3686 = vperm.xlu0 %3685, %v170
    %v3687 = vpop.permute.xlu0 %3686
    %3690 = vset.pattern.permute.xlu0 0
    %3691 = vperm.xlu0 %3690, %v172
    %v3692 = vpop.permute.xlu0 %3691
    %3695 = vset.pattern.permute.xlu0 0
    %3696 = vperm.xlu0 %3695, %v174
    %v3697 = vpop.permute.xlu0 %3696
    %3700 = vset.pattern.permute.xlu0 0
    %3701 = vperm.xlu0 %3700, %v176
    %v3702 = vpop.permute.xlu0 %3701
    %3705 = vset.pattern.permute.xlu0 0
    %3706 = vperm.xlu0 %3705, %v178
    %v3707 = vpop.permute.xlu0 %3706
    %3710 = vset.pattern.permute.xlu0 0
    %3711 = vperm.xlu0 %3710, %v180
    %v3712 = vpop.permute.xlu0 %3711
    %3715 = vset.pattern.permute.xlu0 0
    %3716 = vperm.xlu0 %3715, %v182
    %v3717 = vpop.permute.xlu0 %3716
    %3720 = vset.pattern.permute.xlu0 0
    %3721 = vperm.xlu0 %3720, %v184
    %v3722 = vpop.permute.xlu0 %3721
    %3725 = vset.pattern.permute.xlu0 0
    %3726 = vperm.xlu0 %3725, %v186
    %v3727 = vpop.permute.xlu0 %3726
    %3730 = vset.pattern.permute.xlu0 0
    %3731 = vperm.xlu0 %3730, %v188
    %v3732 = vpop.permute.xlu0 %3731
    %3735 = vset.pattern.permute.xlu0 0
    %3736 = vperm.xlu0 %3735, %v190
    %v3737 = vpop.permute.xlu0 %3736
    %3740 = vset.pattern.permute.xlu0 0
    %3741 = vperm.xlu0 %3740, %v192
    %v3742 = vpop.permute.xlu0 %3741
    %3745 = vset.pattern.permute.xlu0 0
    %3746 = vperm.xlu0 %3745, %v194
    %v3747 = vpop.permute.xlu0 %3746
    %3750 = vset.pattern.permute.xlu0 0
    %3751 = vperm.xlu0 %3750, %v196
    %v3752 = vpop.permute.xlu0 %3751
    %3755 = vset.pattern.permute.xlu0 0
    %3756 = vperm.xlu0 %3755, %v198
    %v3757 = vpop.permute.xlu0 %3756
    %3760 = vset.pattern.permute.xlu0 0
    %3761 = vperm.xlu0 %3760, %v200
    %v3762 = vpop.permute.xlu0 %3761
    %3765 = vset.pattern.permute.xlu0 0
    %3766 = vperm.xlu0 %3765, %v202
    %v3767 = vpop.permute.xlu0 %3766
    %3770 = vset.pattern.permute.xlu0 0
    %3771 = vperm.xlu0 %3770, %v204
    %v3772 = vpop.permute.xlu0 %3771
    %3775 = vset.pattern.permute.xlu0 0
    %3776 = vperm.xlu0 %3775, %v206
    %v3777 = vpop.permute.xlu0 %3776
    %3780 = vset.pattern.permute.xlu0 0
    %3781 = vperm.xlu0 %3780, %v208
    %v3782 = vpop.permute.xlu0 %3781
    %3785 = vset.pattern.permute.xlu0 0
    %3786 = vperm.xlu0 %3785, %v210
    %v3787 = vpop.permute.xlu0 %3786
    %3790 = vset.pattern.permute.xlu0 0
    %3791 = vperm.xlu0 %3790, %v212
    %v3792 = vpop.permute.xlu0 %3791
    %3795 = vset.pattern.permute.xlu0 0
    %3796 = vperm.xlu0 %3795, %v214
    %v3797 = vpop.permute.xlu0 %3796
    %v3800 = vlaneseq
    %v3801 = vshrl.u32 %v3800, 7
    %v3802 = vsub.s32 0, %v3801
    %v3803 = vrot.slane %v150, %v3802
    %v3805 = vsub.f32 %v3642, %v3803
    %v3806 = vsub.f32 %v3647, %v3803
    %v3807 = vsub.f32 %v3652, %v3803
    %v3808 = vsub.f32 %v3657, %v3803
    %v3809 = vsub.f32 %v3662, %v3803
    %v3810 = vsub.f32 %v3667, %v3803
    %v3811 = vsub.f32 %v3672, %v3803
    %v3812 = vsub.f32 %v3677, %v3803
    %v3813 = vsub.f32 %v3682, %v3803
    %v3814 = vsub.f32 %v3687, %v3803
    %v3815 = vsub.f32 %v3692, %v3803
    %v3816 = vsub.f32 %v3697, %v3803
    %v3817 = vsub.f32 %v3702, %v3803
    %v3818 = vsub.f32 %v3707, %v3803
    %v3819 = vsub.f32 %v3712, %v3803
    %v3820 = vsub.f32 %v3717, %v3803
    %v3821 = vsub.f32 %v3722, %v3803
    %v3822 = vsub.f32 %v3727, %v3803
    %v3823 = vsub.f32 %v3732, %v3803
    %v3824 = vsub.f32 %v3737, %v3803
    %v3825 = vsub.f32 %v3742, %v3803
    %v3826 = vsub.f32 %v3747, %v3803
    %v3827 = vsub.f32 %v3752, %v3803
    %v3828 = vsub.f32 %v3757, %v3803
    %v3829 = vsub.f32 %v3762, %v3803
    %v3830 = vsub.f32 %v3767, %v3803
    %v3831 = vsub.f32 %v3772, %v3803
    %v3832 = vsub.f32 %v3777, %v3803
    %v3833 = vsub.f32 %v3782, %v3803
    %v3834 = vsub.f32 %v3787, %v3803
    %v3835 = vsub.f32 %v3792, %v3803
    %v3836 = vsub.f32 %v3797, %v3803
    %v3837 = vmul.f32 %v3805, %v3805
    %v3838 = vmul.f32 %v3806, %v3806
    %v3839 = vmul.f32 %v3807, %v3807
    %v3840 = vmul.f32 %v3808, %v3808
    %v3841 = vmul.f32 %v3809, %v3809
    %v3842 = vmul.f32 %v3810, %v3810
    %v3843 = vmul.f32 %v3811, %v3811
    %v3844 = vmul.f32 %v3812, %v3812
    %v3845 = vmul.f32 %v3813, %v3813
    %v3846 = vmul.f32 %v3814, %v3814
    %v3847 = vmul.f32 %v3815, %v3815
    %v3848 = vmul.f32 %v3816, %v3816
    %v3849 = vmul.f32 %v3817, %v3817
    %v3850 = vmul.f32 %v3818, %v3818
    %v3851 = vmul.f32 %v3819, %v3819
    %v3852 = vmul.f32 %v3820, %v3820
    %v3853 = vmul.f32 %v3821, %v3821
    %v3854 = vmul.f32 %v3822, %v3822
    %v3855 = vmul.f32 %v3823, %v3823
    %v3856 = vmul.f32 %v3824, %v3824
    %v3857 = vmul.f32 %v3825, %v3825
    %v3858 = vmul.f32 %v3826, %v3826
    %v3859 = vmul.f32 %v3827, %v3827
    %v3860 = vmul.f32 %v3828, %v3828
    %v3861 = vmul.f32 %v3829, %v3829
    %v3862 = vmul.f32 %v3830, %v3830
    %v3863 = vmul.f32 %v3831, %v3831
    %v3864 = vmul.f32 %v3832, %v3832
    %v3865 = vmul.f32 %v3833, %v3833
    %v3866 = vmul.f32 %v3834, %v3834
    %v3867 = vmul.f32 %v3835, %v3835
    %v3868 = vmul.f32 %v3836, %v3836
    %v3869 = vmul.f32 %v3837, -0.5
    %v3870 = vmul.f32 %v3838, -0.5
    %v3871 = vmul.f32 %v3839, -0.5
    %v3872 = vmul.f32 %v3840, -0.5
    %v3873 = vmul.f32 %v3841, -0.5
    %v3874 = vmul.f32 %v3842, -0.5
    %v3875 = vmul.f32 %v3843, -0.5
    %v3876 = vmul.f32 %v3844, -0.5
    %v3877 = vmul.f32 %v3845, -0.5
    %v3878 = vmul.f32 %v3846, -0.5
    %v3879 = vmul.f32 %v3847, -0.5
    %v3880 = vmul.f32 %v3848, -0.5
    %v3881 = vmul.f32 %v3849, -0.5
    %v3882 = vmul.f32 %v3850, -0.5
    %v3883 = vmul.f32 %v3851, -0.5
    %v3884 = vmul.f32 %v3852, -0.5
    %v3885 = vmul.f32 %v3853, -0.5
    %v3886 = vmul.f32 %v3854, -0.5
    %v3887 = vmul.f32 %v3855, -0.5
    %v3888 = vmul.f32 %v3856, -0.5
    %v3889 = vmul.f32 %v3857, -0.5
    %v3890 = vmul.f32 %v3858, -0.5
    %v3891 = vmul.f32 %v3859, -0.5
    %v3892 = vmul.f32 %v3860, -0.5
    %v3893 = vmul.f32 %v3861, -0.5
    %v3894 = vmul.f32 %v3862, -0.5
    %v3895 = vmul.f32 %v3863, -0.5
    %v3896 = vmul.f32 %v3864, -0.5
    %v3897 = vmul.f32 %v3865, -0.5
    %v3898 = vmul.f32 %v3866, -0.5
    %v3899 = vmul.f32 %v3867, -0.5
    %v3900 = vmul.f32 %v3868, -0.5
    %v3901 = vrcp.pop 0.020408163
    %v3902 = vmul.f32 %v3869, %v3901
    %v3903 = vmul.f32 %v3870, %v3901
    %v3904 = vmul.f32 %v3871, %v3901
    %v3905 = vmul.f32 %v3872, %v3901
    %v3906 = vmul.f32 %v3873, %v3901
    %v3907 = vmul.f32 %v3874, %v3901
    %v3908 = vmul.f32 %v3875, %v3901
    %v3909 = vmul.f32 %v3876, %v3901
    %v3910 = vmul.f32 %v3877, %v3901
    %v3911 = vmul.f32 %v3878, %v3901
    %v3912 = vmul.f32 %v3879, %v3901
    %v3913 = vmul.f32 %v3880, %v3901
    %v3914 = vmul.f32 %v3881, %v3901
    %v3915 = vmul.f32 %v3882, %v3901
    %v3916 = vmul.f32 %v3883, %v3901
    %v3917 = vmul.f32 %v3884, %v3901
    %v3918 = vmul.f32 %v3885, %v3901
    %v3919 = vmul.f32 %v3886, %v3901
    %v3920 = vmul.f32 %v3887, %v3901
    %v3921 = vmul.f32 %v3888, %v3901
    %v3922 = vmul.f32 %v3889, %v3901
    %v3923 = vmul.f32 %v3890, %v3901
    %v3924 = vmul.f32 %v3891, %v3901
    %v3925 = vmul.f32 %v3892, %v3901
    %v3926 = vmul.f32 %v3893, %v3901
    %v3927 = vmul.f32 %v3894, %v3901
    %v3928 = vmul.f32 %v3895, %v3901
    %v3929 = vmul.f32 %v3896, %v3901
    %v3930 = vmul.f32 %v3897, %v3901
    %v3931 = vmul.f32 %v3898, %v3901
    %v3932 = vmul.f32 %v3899, %v3901
    %v3933 = vmul.f32 %v3900, %v3901
    %v3934 = vmul.f32 %v3902, 1.442695
    %v3935 = vpow.pop %v3934
    %v3936 = vmul.f32 %v3903, 1.442695
    %v3937 = vpow.pop %v3936
    %v3938 = vmul.f32 %v3904, 1.442695
    %v3939 = vpow.pop %v3938
    %v3940 = vmul.f32 %v3905, 1.442695
    %v3941 = vpow.pop %v3940
    %v3942 = vmul.f32 %v3906, 1.442695
    %v3943 = vpow.pop %v3942
    %v3944 = vmul.f32 %v3907, 1.442695
    %v3945 = vpow.pop %v3944
    %v3946 = vmul.f32 %v3908, 1.442695
    %v3947 = vpow.pop %v3946
    %v3948 = vmul.f32 %v3909, 1.442695
    %v3949 = vpow.pop %v3948
    %v3950 = vmul.f32 %v3910, 1.442695
    %v3951 = vpow.pop %v3950
    %v3952 = vmul.f32 %v3911, 1.442695
    %v3953 = vpow.pop %v3952
    %v3954 = vmul.f32 %v3912, 1.442695
    %v3955 = vpow.pop %v3954
    %v3956 = vmul.f32 %v3913, 1.442695
    %v3957 = vpow.pop %v3956
    %v3958 = vmul.f32 %v3914, 1.442695
    %v3959 = vpow.pop %v3958
    %v3960 = vmul.f32 %v3915, 1.442695
    %v3961 = vpow.pop %v3960
    %v3962 = vmul.f32 %v3916, 1.442695
    %v3963 = vpow.pop %v3962
    %v3964 = vmul.f32 %v3917, 1.442695
    %v3965 = vpow.pop %v3964
    %v3966 = vmul.f32 %v3918, 1.442695
    %v3967 = vpow.pop %v3966
    %v3968 = vmul.f32 %v3919, 1.442695
    %v3969 = vpow.pop %v3968
    %v3970 = vmul.f32 %v3920, 1.442695
    %v3971 = vpow.pop %v3970
    %v3972 = vmul.f32 %v3921, 1.442695
    %v3973 = vpow.pop %v3972
    %v3974 = vmul.f32 %v3922, 1.442695
    %v3975 = vpow.pop %v3974
    %v3976 = vmul.f32 %v3923, 1.442695
    %v3977 = vpow.pop %v3976
    %v3978 = vmul.f32 %v3924, 1.442695
    %v3979 = vpow.pop %v3978
    %v3980 = vmul.f32 %v3925, 1.442695
    %v3981 = vpow.pop %v3980
    %v3982 = vmul.f32 %v3926, 1.442695
    %v3983 = vpow.pop %v3982
    %v3984 = vmul.f32 %v3927, 1.442695
    %v3985 = vpow.pop %v3984
    %v3986 = vmul.f32 %v3928, 1.442695
    %v3987 = vpow.pop %v3986
    %v3988 = vmul.f32 %v3929, 1.442695
    %v3989 = vpow.pop %v3988
    %v3990 = vmul.f32 %v3930, 1.442695
    %v3991 = vpow.pop %v3990
    %v3992 = vmul.f32 %v3931, 1.442695
    %v3993 = vpow.pop %v3992
    %v3994 = vmul.f32 %v3932, 1.442695
    %v3995 = vpow.pop %v3994
    %v3996 = vmul.f32 %v3933, 1.442695
    %v3997 = vpow.pop %v3996
    %3999 = vset.pattern.permute.xlu0 0
    %4000 = vperm.xlu0 %3999, %v3607
    %v4001 = vpop.permute.xlu0 %4000
    %4004 = vset.pattern.permute.xlu0 0
    %4005 = vperm.xlu0 %4004, %v3608
    %v4006 = vpop.permute.xlu0 %4005
    %4009 = vset.pattern.permute.xlu0 0
    %4010 = vperm.xlu0 %4009, %v3609
    %v4011 = vpop.permute.xlu0 %4010
    %4014 = vset.pattern.permute.xlu0 0
    %4015 = vperm.xlu0 %4014, %v3610
    %v4016 = vpop.permute.xlu0 %4015
    %4019 = vset.pattern.permute.xlu0 0
    %4020 = vperm.xlu0 %4019, %v3611
    %v4021 = vpop.permute.xlu0 %4020
    %4024 = vset.pattern.permute.xlu0 0
    %4025 = vperm.xlu0 %4024, %v3612
    %v4026 = vpop.permute.xlu0 %4025
    %4029 = vset.pattern.permute.xlu0 0
    %4030 = vperm.xlu0 %4029, %v3613
    %v4031 = vpop.permute.xlu0 %4030
    %4034 = vset.pattern.permute.xlu0 0
    %4035 = vperm.xlu0 %4034, %v3614
    %v4036 = vpop.permute.xlu0 %4035
    %4039 = vset.pattern.permute.xlu0 0
    %4040 = vperm.xlu0 %4039, %v3615
    %v4041 = vpop.permute.xlu0 %4040
    %4044 = vset.pattern.permute.xlu0 0
    %4045 = vperm.xlu0 %4044, %v3616
    %v4046 = vpop.permute.xlu0 %4045
    %4049 = vset.pattern.permute.xlu0 0
    %4050 = vperm.xlu0 %4049, %v3617
    %v4051 = vpop.permute.xlu0 %4050
    %4054 = vset.pattern.permute.xlu0 0
    %4055 = vperm.xlu0 %4054, %v3618
    %v4056 = vpop.permute.xlu0 %4055
    %4059 = vset.pattern.permute.xlu0 0
    %4060 = vperm.xlu0 %4059, %v3619
    %v4061 = vpop.permute.xlu0 %4060
    %4064 = vset.pattern.permute.xlu0 0
    %4065 = vperm.xlu0 %4064, %v3620
    %v4066 = vpop.permute.xlu0 %4065
    %4069 = vset.pattern.permute.xlu0 0
    %4070 = vperm.xlu0 %4069, %v3621
    %v4071 = vpop.permute.xlu0 %4070
    %4074 = vset.pattern.permute.xlu0 0
    %4075 = vperm.xlu0 %4074, %v3622
    %v4076 = vpop.permute.xlu0 %4075
    %4079 = vset.pattern.permute.xlu0 0
    %4080 = vperm.xlu0 %4079, %v3623
    %v4081 = vpop.permute.xlu0 %4080
    %4084 = vset.pattern.permute.xlu0 0
    %4085 = vperm.xlu0 %4084, %v3624
    %v4086 = vpop.permute.xlu0 %4085
    %4089 = vset.pattern.permute.xlu0 0
    %4090 = vperm.xlu0 %4089, %v3625
    %v4091 = vpop.permute.xlu0 %4090
    %4094 = vset.pattern.permute.xlu0 0
    %4095 = vperm.xlu0 %4094, %v3626
    %v4096 = vpop.permute.xlu0 %4095
    %4099 = vset.pattern.permute.xlu0 0
    %4100 = vperm.xlu0 %4099, %v3627
    %v4101 = vpop.permute.xlu0 %4100
    %4104 = vset.pattern.permute.xlu0 0
    %4105 = vperm.xlu0 %4104, %v3628
    %v4106 = vpop.permute.xlu0 %4105
    %4109 = vset.pattern.permute.xlu0 0
    %4110 = vperm.xlu0 %4109, %v3629
    %v4111 = vpop.permute.xlu0 %4110
    %4114 = vset.pattern.permute.xlu0 0
    %4115 = vperm.xlu0 %4114, %v3630
    %v4116 = vpop.permute.xlu0 %4115
    %4119 = vset.pattern.permute.xlu0 0
    %4120 = vperm.xlu0 %4119, %v3631
    %v4121 = vpop.permute.xlu0 %4120
    %4124 = vset.pattern.permute.xlu0 0
    %4125 = vperm.xlu0 %4124, %v3632
    %v4126 = vpop.permute.xlu0 %4125
    %4129 = vset.pattern.permute.xlu0 0
    %4130 = vperm.xlu0 %4129, %v3633
    %v4131 = vpop.permute.xlu0 %4130
    %4134 = vset.pattern.permute.xlu0 0
    %4135 = vperm.xlu0 %4134, %v3634
    %v4136 = vpop.permute.xlu0 %4135
    %4139 = vset.pattern.permute.xlu0 0
    %4140 = vperm.xlu0 %4139, %v3635
    %v4141 = vpop.permute.xlu0 %4140
    %4144 = vset.pattern.permute.xlu0 0
    %4145 = vperm.xlu0 %4144, %v3636
    %v4146 = vpop.permute.xlu0 %4145
    %4149 = vset.pattern.permute.xlu0 0
    %4150 = vperm.xlu0 %4149, %v3637
    %v4151 = vpop.permute.xlu0 %4150
    %4154 = vset.pattern.permute.xlu0 0
    %4155 = vperm.xlu0 %4154, %v3638
    %v4156 = vpop.permute.xlu0 %4155
    %v4158 = vmul.f32 %v3935, %v4001
    %v4159 = vmul.f32 %v3937, %v4006
    %v4160 = vmul.f32 %v3939, %v4011
    %v4161 = vmul.f32 %v3941, %v4016
    %v4162 = vmul.f32 %v3943, %v4021
    %v4163 = vmul.f32 %v3945, %v4026
    %v4164 = vmul.f32 %v3947, %v4031
    %v4165 = vmul.f32 %v3949, %v4036
    %v4166 = vmul.f32 %v3951, %v4041
    %v4167 = vmul.f32 %v3953, %v4046
    %v4168 = vmul.f32 %v3955, %v4051
    %v4169 = vmul.f32 %v3957, %v4056
    %v4170 = vmul.f32 %v3959, %v4061
    %v4171 = vmul.f32 %v3961, %v4066
    %v4172 = vmul.f32 %v3963, %v4071
    %v4173 = vmul.f32 %v3965, %v4076
    %v4174 = vmul.f32 %v3967, %v4081
    %v4175 = vmul.f32 %v3969, %v4086
    %v4176 = vmul.f32 %v3971, %v4091
    %v4177 = vmul.f32 %v3973, %v4096
    %v4178 = vmul.f32 %v3975, %v4101
    %v4179 = vmul.f32 %v3977, %v4106
    %v4180 = vmul.f32 %v3979, %v4111
    %v4181 = vmul.f32 %v3981, %v4116
    %v4182 = vmul.f32 %v3983, %v4121
    %v4183 = vmul.f32 %v3985, %v4126
    %v4184 = vmul.f32 %v3987, %v4131
    %v4185 = vmul.f32 %v3989, %v4136
    %v4186 = vmul.f32 %v3991, %v4141
    %v4187 = vmul.f32 %v3993, %v4146
    %v4188 = vmul.f32 %v3995, %v4151
    %v4189 = vmul.f32 %v3997, %v4156
    %v4190 = vmul.f32 %v118, %v3642
    %v4191 = vmul.f32 %v119, %v3647
    %v4192 = vmul.f32 %v120, %v3652
    %v4193 = vmul.f32 %v121, %v3657
    %v4194 = vmul.f32 %v122, %v3662
    %v4195 = vmul.f32 %v123, %v3667
    %v4196 = vmul.f32 %v124, %v3672
    %v4197 = vmul.f32 %v125, %v3677
    %v4198 = vmul.f32 %v126, %v3682
    %v4199 = vmul.f32 %v127, %v3687
    %v4200 = vmul.f32 %v128, %v3692
    %v4201 = vmul.f32 %v129, %v3697
    %v4202 = vmul.f32 %v130, %v3702
    %v4203 = vmul.f32 %v131, %v3707
    %v4204 = vmul.f32 %v132, %v3712
    %v4205 = vmul.f32 %v133, %v3717
    %v4206 = vmul.f32 %v134, %v3722
    %v4207 = vmul.f32 %v135, %v3727
    %v4208 = vmul.f32 %v136, %v3732
    %v4209 = vmul.f32 %v137, %v3737
    %v4210 = vmul.f32 %v138, %v3742
    %v4211 = vmul.f32 %v139, %v3747
    %v4212 = vmul.f32 %v140, %v3752
    %v4213 = vmul.f32 %v141, %v3757
    %v4214 = vmul.f32 %v142, %v3762
    %v4215 = vmul.f32 %v143, %v3767
    %v4216 = vmul.f32 %v144, %v3772
    %v4217 = vmul.f32 %v145, %v3777
    %v4218 = vmul.f32 %v146, %v3782
    %v4219 = vmul.f32 %v147, %v3787
    %v4220 = vmul.f32 %v148, %v3792
    %v4221 = vmul.f32 %v149, %v3797
    %v4222 = vmul.f32 %v4190, %v4190
    %v4223 = vmul.f32 %v4191, %v4191
    %v4224 = vmul.f32 %v4192, %v4192
    %v4225 = vmul.f32 %v4193, %v4193
    %v4226 = vmul.f32 %v4194, %v4194
    %v4227 = vmul.f32 %v4195, %v4195
    %v4228 = vmul.f32 %v4196, %v4196
    %v4229 = vmul.f32 %v4197, %v4197
    %v4230 = vmul.f32 %v4198, %v4198
    %v4231 = vmul.f32 %v4199, %v4199
    %v4232 = vmul.f32 %v4200, %v4200
    %v4233 = vmul.f32 %v4201, %v4201
    %v4234 = vmul.f32 %v4202, %v4202
    %v4235 = vmul.f32 %v4203, %v4203
    %v4236 = vmul.f32 %v4204, %v4204
    %v4237 = vmul.f32 %v4205, %v4205
    %v4238 = vmul.f32 %v4206, %v4206
    %v4239 = vmul.f32 %v4207, %v4207
    %v4240 = vmul.f32 %v4208, %v4208
    %v4241 = vmul.f32 %v4209, %v4209
    %v4242 = vmul.f32 %v4210, %v4210
    %v4243 = vmul.f32 %v4211, %v4211
    %v4244 = vmul.f32 %v4212, %v4212
    %v4245 = vmul.f32 %v4213, %v4213
    %v4246 = vmul.f32 %v4214, %v4214
    %v4247 = vmul.f32 %v4215, %v4215
    %v4248 = vmul.f32 %v4216, %v4216
    %v4249 = vmul.f32 %v4217, %v4217
    %v4250 = vmul.f32 %v4218, %v4218
    %v4251 = vmul.f32 %v4219, %v4219
    %v4252 = vmul.f32 %v4220, %v4220
    %v4253 = vmul.f32 %v4221, %v4221
    %4286 = vrot.lane.b32.xlu0 %v4222, 127
    %v4287 = vpop.permute.xlu0 %4286
    %4288 = vrot.lane.b32.xlu0 %v4223, 127
    %v4289 = vpop.permute.xlu0 %4288
    %4290 = vrot.lane.b32.xlu0 %v4224, 127
    %v4291 = vpop.permute.xlu0 %4290
    %4292 = vrot.lane.b32.xlu0 %v4225, 127
    %v4293 = vpop.permute.xlu0 %4292
    %4294 = vrot.lane.b32.xlu0 %v4226, 127
    %v4295 = vpop.permute.xlu0 %4294
    %4296 = vrot.lane.b32.xlu0 %v4227, 127
    %v4297 = vpop.permute.xlu0 %4296
    %4298 = vrot.lane.b32.xlu0 %v4228, 127
    %v4299 = vpop.permute.xlu0 %4298
    %4300 = vrot.lane.b32.xlu0 %v4229, 127
    %v4301 = vpop.permute.xlu0 %4300
    %4302 = vrot.lane.b32.xlu0 %v4230, 127
    %v4303 = vpop.permute.xlu0 %4302
    %4304 = vrot.lane.b32.xlu0 %v4231, 127
    %v4305 = vpop.permute.xlu0 %4304
    %4306 = vrot.lane.b32.xlu0 %v4232, 127
    %v4307 = vpop.permute.xlu0 %4306
    %4308 = vrot.lane.b32.xlu0 %v4233, 127
    %v4309 = vpop.permute.xlu0 %4308
    %4310 = vrot.lane.b32.xlu0 %v4234, 127
    %v4311 = vpop.permute.xlu0 %4310
    %4312 = vrot.lane.b32.xlu0 %v4235, 127
    %v4313 = vpop.permute.xlu0 %4312
    %4314 = vrot.lane.b32.xlu0 %v4236, 127
    %v4315 = vpop.permute.xlu0 %4314
    %4316 = vrot.lane.b32.xlu0 %v4237, 127
    %v4317 = vpop.permute.xlu0 %4316
    %4318 = vrot.lane.b32.xlu0 %v4238, 127
    %v4319 = vpop.permute.xlu0 %4318
    %4320 = vrot.lane.b32.xlu0 %v4239, 127
    %v4321 = vpop.permute.xlu0 %4320
    %4322 = vrot.lane.b32.xlu0 %v4240, 127
    %v4323 = vpop.permute.xlu0 %4322
    %4324 = vrot.lane.b32.xlu0 %v4241, 127
    %v4325 = vpop.permute.xlu0 %4324
    %4326 = vrot.lane.b32.xlu0 %v4242, 127
    %v4327 = vpop.permute.xlu0 %4326
    %4328 = vrot.lane.b32.xlu0 %v4243, 127
    %v4329 = vpop.permute.xlu0 %4328
    %4330 = vrot.lane.b32.xlu0 %v4244, 127
    %v4331 = vpop.permute.xlu0 %4330
    %4332 = vrot.lane.b32.xlu0 %v4245, 127
    %v4333 = vpop.permute.xlu0 %4332
    %4334 = vrot.lane.b32.xlu0 %v4246, 127
    %v4335 = vpop.permute.xlu0 %4334
    %4336 = vrot.lane.b32.xlu0 %v4247, 127
    %v4337 = vpop.permute.xlu0 %4336
    %4338 = vrot.lane.b32.xlu0 %v4248, 127
    %v4339 = vpop.permute.xlu0 %4338
    %4340 = vrot.lane.b32.xlu0 %v4249, 127
    %v4341 = vpop.permute.xlu0 %4340
    %4342 = vrot.lane.b32.xlu0 %v4250, 127
    %v4343 = vpop.permute.xlu0 %4342
    %4344 = vrot.lane.b32.xlu0 %v4251, 127
    %v4345 = vpop.permute.xlu0 %4344
    %4346 = vrot.lane.b32.xlu0 %v4252, 127
    %v4347 = vpop.permute.xlu0 %4346
    %4348 = vrot.lane.b32.xlu0 %v4253, 127
    %v4349 = vpop.permute.xlu0 %4348
    %v4382 = vadd.f32 %v4222, %v4287
    %v4383 = vadd.f32 %v4223, %v4289
    %v4384 = vadd.f32 %v4224, %v4291
    %v4385 = vadd.f32 %v4225, %v4293
    %v4386 = vadd.f32 %v4226, %v4295
    %v4387 = vadd.f32 %v4227, %v4297
    %v4388 = vadd.f32 %v4228, %v4299
    %v4389 = vadd.f32 %v4229, %v4301
    %v4390 = vadd.f32 %v4230, %v4303
    %v4391 = vadd.f32 %v4231, %v4305
    %v4392 = vadd.f32 %v4232, %v4307
    %v4393 = vadd.f32 %v4233, %v4309
    %v4394 = vadd.f32 %v4234, %v4311
    %v4395 = vadd.f32 %v4235, %v4313
    %v4396 = vadd.f32 %v4236, %v4315
    %v4397 = vadd.f32 %v4237, %v4317
    %v4398 = vadd.f32 %v4238, %v4319
    %v4399 = vadd.f32 %v4239, %v4321
    %v4400 = vadd.f32 %v4240, %v4323
    %v4401 = vadd.f32 %v4241, %v4325
    %v4402 = vadd.f32 %v4242, %v4327
    %v4403 = vadd.f32 %v4243, %v4329
    %v4404 = vadd.f32 %v4244, %v4331
    %v4405 = vadd.f32 %v4245, %v4333
    %v4406 = vadd.f32 %v4246, %v4335
    %v4407 = vadd.f32 %v4247, %v4337
    %v4408 = vadd.f32 %v4248, %v4339
    %v4409 = vadd.f32 %v4249, %v4341
    %v4410 = vadd.f32 %v4250, %v4343
    %v4411 = vadd.f32 %v4251, %v4345
    %v4412 = vadd.f32 %v4252, %v4347
    %v4413 = vadd.f32 %v4253, %v4349
    %4414 = vrot.lane.b32.xlu0 %v4222, 126
    %v4415 = vpop.permute.xlu0 %4414
    %4416 = vrot.lane.b32.xlu0 %v4223, 126
    %v4417 = vpop.permute.xlu0 %4416
    %4418 = vrot.lane.b32.xlu0 %v4224, 126
    %v4419 = vpop.permute.xlu0 %4418
    %4420 = vrot.lane.b32.xlu0 %v4225, 126
    %v4421 = vpop.permute.xlu0 %4420
    %4422 = vrot.lane.b32.xlu0 %v4226, 126
    %v4423 = vpop.permute.xlu0 %4422
    %4424 = vrot.lane.b32.xlu0 %v4227, 126
    %v4425 = vpop.permute.xlu0 %4424
    %4426 = vrot.lane.b32.xlu0 %v4228, 126
    %v4427 = vpop.permute.xlu0 %4426
    %4428 = vrot.lane.b32.xlu0 %v4229, 126
    %v4429 = vpop.permute.xlu0 %4428
    %4430 = vrot.lane.b32.xlu0 %v4230, 126
    %v4431 = vpop.permute.xlu0 %4430
    %4432 = vrot.lane.b32.xlu0 %v4231, 126
    %v4433 = vpop.permute.xlu0 %4432
    %4434 = vrot.lane.b32.xlu0 %v4232, 126
    %v4435 = vpop.permute.xlu0 %4434
    %4436 = vrot.lane.b32.xlu0 %v4233, 126
    %v4437 = vpop.permute.xlu0 %4436
    %4438 = vrot.lane.b32.xlu0 %v4234, 126
    %v4439 = vpop.permute.xlu0 %4438
    %4440 = vrot.lane.b32.xlu0 %v4235, 126
    %v4441 = vpop.permute.xlu0 %4440
    %4442 = vrot.lane.b32.xlu0 %v4236, 126
    %v4443 = vpop.permute.xlu0 %4442
    %4444 = vrot.lane.b32.xlu0 %v4237, 126
    %v4445 = vpop.permute.xlu0 %4444
    %4446 = vrot.lane.b32.xlu0 %v4238, 126
    %v4447 = vpop.permute.xlu0 %4446
    %4448 = vrot.lane.b32.xlu0 %v4239, 126
    %v4449 = vpop.permute.xlu0 %4448
    %4450 = vrot.lane.b32.xlu0 %v4240, 126
    %v4451 = vpop.permute.xlu0 %4450
    %4452 = vrot.lane.b32.xlu0 %v4241, 126
    %v4453 = vpop.permute.xlu0 %4452
    %4454 = vrot.lane.b32.xlu0 %v4242, 126
    %v4455 = vpop.permute.xlu0 %4454
    %4456 = vrot.lane.b32.xlu0 %v4243, 126
    %v4457 = vpop.permute.xlu0 %4456
    %4458 = vrot.lane.b32.xlu0 %v4244, 126
    %v4459 = vpop.permute.xlu0 %4458
    %4460 = vrot.lane.b32.xlu0 %v4245, 126
    %v4461 = vpop.permute.xlu0 %4460
    %4462 = vrot.lane.b32.xlu0 %v4246, 126
    %v4463 = vpop.permute.xlu0 %4462
    %4464 = vrot.lane.b32.xlu0 %v4247, 126
    %v4465 = vpop.permute.xlu0 %4464
    %4466 = vrot.lane.b32.xlu0 %v4248, 126
    %v4467 = vpop.permute.xlu0 %4466
    %4468 = vrot.lane.b32.xlu0 %v4249, 126
    %v4469 = vpop.permute.xlu0 %4468
    %4470 = vrot.lane.b32.xlu0 %v4250, 126
    %v4471 = vpop.permute.xlu0 %4470
    %4472 = vrot.lane.b32.xlu0 %v4251, 126
    %v4473 = vpop.permute.xlu0 %4472
    %4474 = vrot.lane.b32.xlu0 %v4252, 126
    %v4475 = vpop.permute.xlu0 %4474
    %4476 = vrot.lane.b32.xlu0 %v4253, 126
    %v4477 = vpop.permute.xlu0 %4476
    %v4510 = vadd.f32 %v4382, %v4415
    %v4511 = vadd.f32 %v4383, %v4417
    %v4512 = vadd.f32 %v4384, %v4419
    %v4513 = vadd.f32 %v4385, %v4421
    %v4514 = vadd.f32 %v4386, %v4423
    %v4515 = vadd.f32 %v4387, %v4425
    %v4516 = vadd.f32 %v4388, %v4427
    %v4517 = vadd.f32 %v4389, %v4429
    %v4518 = vadd.f32 %v4390, %v4431
    %v4519 = vadd.f32 %v4391, %v4433
    %v4520 = vadd.f32 %v4392, %v4435
    %v4521 = vadd.f32 %v4393, %v4437
    %v4522 = vadd.f32 %v4394, %v4439
    %v4523 = vadd.f32 %v4395, %v4441
    %v4524 = vadd.f32 %v4396, %v4443
    %v4525 = vadd.f32 %v4397, %v4445
    %v4526 = vadd.f32 %v4398, %v4447
    %v4527 = vadd.f32 %v4399, %v4449
    %v4528 = vadd.f32 %v4400, %v4451
    %v4529 = vadd.f32 %v4401, %v4453
    %v4530 = vadd.f32 %v4402, %v4455
    %v4531 = vadd.f32 %v4403, %v4457
    %v4532 = vadd.f32 %v4404, %v4459
    %v4533 = vadd.f32 %v4405, %v4461
    %v4534 = vadd.f32 %v4406, %v4463
    %v4535 = vadd.f32 %v4407, %v4465
    %v4536 = vadd.f32 %v4408, %v4467
    %v4537 = vadd.f32 %v4409, %v4469
    %v4538 = vadd.f32 %v4410, %v4471
    %v4539 = vadd.f32 %v4411, %v4473
    %v4540 = vadd.f32 %v4412, %v4475
    %v4541 = vadd.f32 %v4413, %v4477
    %v4542 = vrcp.pop 3.0
    %v4543 = vmul.f32 %v4510, %v4542
    %v4544 = vmul.f32 %v4511, %v4542
    %v4545 = vmul.f32 %v4512, %v4542
    %v4546 = vmul.f32 %v4513, %v4542
    %v4547 = vmul.f32 %v4514, %v4542
    %v4548 = vmul.f32 %v4515, %v4542
    %v4549 = vmul.f32 %v4516, %v4542
    %v4550 = vmul.f32 %v4517, %v4542
    %v4551 = vmul.f32 %v4518, %v4542
    %v4552 = vmul.f32 %v4519, %v4542
    %v4553 = vmul.f32 %v4520, %v4542
    %v4554 = vmul.f32 %v4521, %v4542
    %v4555 = vmul.f32 %v4522, %v4542
    %v4556 = vmul.f32 %v4523, %v4542
    %v4557 = vmul.f32 %v4524, %v4542
    %v4558 = vmul.f32 %v4525, %v4542
    %v4559 = vmul.f32 %v4526, %v4542
    %v4560 = vmul.f32 %v4527, %v4542
    %v4561 = vmul.f32 %v4528, %v4542
    %v4562 = vmul.f32 %v4529, %v4542
    %v4563 = vmul.f32 %v4530, %v4542
    %v4564 = vmul.f32 %v4531, %v4542
    %v4565 = vmul.f32 %v4532, %v4542
    %v4566 = vmul.f32 %v4533, %v4542
    %v4567 = vmul.f32 %v4534, %v4542
    %v4568 = vmul.f32 %v4535, %v4542
    %v4569 = vmul.f32 %v4536, %v4542
    %v4570 = vmul.f32 %v4537, %v4542
    %v4571 = vmul.f32 %v4538, %v4542
    %v4572 = vmul.f32 %v4539, %v4542
    %v4573 = vmul.f32 %v4540, %v4542
    %v4574 = vmul.f32 %v4541, %v4542
    %v4575 = vld [vmem:[#allocation5] sm:$0xf]
    %v4576 = vld [vmem:[#allocation5 + $0x4] sm:$0xf]
    %v4577 = vld [vmem:[#allocation5 + $0x8] sm:$0xf]
    %v4578 = vld [vmem:[#allocation5 + $0xc] sm:$0xf]
    %v4579 = vld [vmem:[#allocation5 + $0x10] sm:$0xf]
    %v4580 = vld [vmem:[#allocation5 + $0x14] sm:$0xf]
    %v4581 = vld [vmem:[#allocation5 + $0x18] sm:$0xf]
    %v4582 = vld [vmem:[#allocation5 + $0x1c] sm:$0xf]
    %v4583 = vld [vmem:[#allocation5 + $0x20] sm:$0xf]
    %v4584 = vld [vmem:[#allocation5 + $0x24] sm:$0xf]
    %v4585 = vld [vmem:[#allocation5 + $0x28] sm:$0xf]
    %v4586 = vld [vmem:[#allocation5 + $0x2c] sm:$0xf]
    %v4587 = vld [vmem:[#allocation5 + $0x30] sm:$0xf]
    %v4588 = vld [vmem:[#allocation5 + $0x34] sm:$0xf]
    %v4589 = vld [vmem:[#allocation5 + $0x38] sm:$0xf]
    %v4590 = vld [vmem:[#allocation5 + $0x3c] sm:$0xf]
    %v4591 = vld [vmem:[#allocation5 + $0x40] sm:$0xf]
    %v4592 = vld [vmem:[#allocation5 + $0x44] sm:$0xf]
    %v4593 = vld [vmem:[#allocation5 + $0x48] sm:$0xf]
    %v4594 = vld [vmem:[#allocation5 + $0x4c] sm:$0xf]
    %v4595 = vld [vmem:[#allocation5 + $0x50] sm:$0xf]
    %v4596 = vld [vmem:[#allocation5 + $0x54] sm:$0xf]
    %v4597 = vld [vmem:[#allocation5 + $0x58] sm:$0xf]
    %v4598 = vld [vmem:[#allocation5 + $0x5c] sm:$0xf]
    %v4599 = vld [vmem:[#allocation5 + $0x60] sm:$0xf]
    %v4600 = vld [vmem:[#allocation5 + $0x64] sm:$0xf]
    %v4601 = vld [vmem:[#allocation5 + $0x68] sm:$0xf]
    %v4602 = vld [vmem:[#allocation5 + $0x6c] sm:$0xf]
    %v4603 = vld [vmem:[#allocation5 + $0x70] sm:$0xf]
    %v4604 = vld [vmem:[#allocation5 + $0x74] sm:$0xf]
    %v4605 = vld [vmem:[#allocation5 + $0x78] sm:$0xf]
    %v4606 = vld [vmem:[#allocation5 + $0x7c] sm:$0xf]
    %v4607 = vld [vmem:[#allocation14] sm:$0xf]
    %v4608 = vld [vmem:[#allocation14 + $0x4] sm:$0xf]
    %v4641 = vunpack.c.l.b16 %v4575
    %v4642 = vunpack.c.l.b16 %v4576
    %v4643 = vunpack.c.l.b16 %v4577
    %v4644 = vunpack.c.l.b16 %v4578
    %v4645 = vunpack.c.l.b16 %v4579
    %v4646 = vunpack.c.l.b16 %v4580
    %v4647 = vunpack.c.l.b16 %v4581
    %v4648 = vunpack.c.l.b16 %v4582
    %v4649 = vunpack.c.l.b16 %v4583
    %v4650 = vunpack.c.l.b16 %v4584
    %v4651 = vunpack.c.l.b16 %v4585
    %v4652 = vunpack.c.l.b16 %v4586
    %v4653 = vunpack.c.l.b16 %v4587
    %v4654 = vunpack.c.l.b16 %v4588
    %v4655 = vunpack.c.l.b16 %v4589
    %v4656 = vunpack.c.l.b16 %v4590
    %v4657 = vunpack.c.l.b16 %v4591
    %v4658 = vunpack.c.l.b16 %v4592
    %v4659 = vunpack.c.l.b16 %v4593
    %v4660 = vunpack.c.l.b16 %v4594
    %v4661 = vunpack.c.l.b16 %v4595
    %v4662 = vunpack.c.l.b16 %v4596
    %v4663 = vunpack.c.l.b16 %v4597
    %v4664 = vunpack.c.l.b16 %v4598
    %v4665 = vunpack.c.l.b16 %v4599
    %v4666 = vunpack.c.l.b16 %v4600
    %v4667 = vunpack.c.l.b16 %v4601
    %v4668 = vunpack.c.l.b16 %v4602
    %v4669 = vunpack.c.l.b16 %v4603
    %v4670 = vunpack.c.l.b16 %v4604
    %v4671 = vunpack.c.l.b16 %v4605
    %v4672 = vunpack.c.l.b16 %v4606
    %v4673 = vpack.c.b16 %v4642, %v4641
    %v4674 = vpack.c.b16 %v4644, %v4643
    %v4675 = vpack.c.b16 %v4646, %v4645
    %v4676 = vpack.c.b16 %v4648, %v4647
    %v4677 = vpack.c.b16 %v4650, %v4649
    %v4678 = vpack.c.b16 %v4652, %v4651
    %v4679 = vpack.c.b16 %v4654, %v4653
    %v4680 = vpack.c.b16 %v4656, %v4655
    %v4681 = vpack.c.b16 %v4658, %v4657
    %v4682 = vpack.c.b16 %v4660, %v4659
    %v4683 = vpack.c.b16 %v4662, %v4661
    %v4684 = vpack.c.b16 %v4664, %v4663
    %v4685 = vpack.c.b16 %v4666, %v4665
    %v4686 = vpack.c.b16 %v4668, %v4667
    %v4687 = vpack.c.b16 %v4670, %v4669
    %v4688 = vpack.c.b16 %v4672, %v4671
    %v4691 = vunpack.c.l.b16 %v4607
    %v4692 = vunpack.c.l.b16 %v4608
    %v4693 = vpack.c.b16 %v4692, %v4691
    %vm4695 = vcmask 130048
    %v4697 = vsel %vm4695, %v4673, 0
    %v4700 = vsel %vm4695, %v4674, 0
    %v4703 = vsel %vm4695, %v4675, 0
    %v4706 = vsel %vm4695, %v4676, 0
    %v4709 = vsel %vm4695, %v4677, 0
    %v4712 = vsel %vm4695, %v4678, 0
    %v4715 = vsel %vm4695, %v4679, 0
    %v4718 = vsel %vm4695, %v4680, 0
    %v4721 = vsel %vm4695, %v4681, 0
    %v4724 = vsel %vm4695, %v4682, 0
    %v4727 = vsel %vm4695, %v4683, 0
    %v4730 = vsel %vm4695, %v4684, 0
    %v4733 = vsel %vm4695, %v4685, 0
    %v4736 = vsel %vm4695, %v4686, 0
    %v4739 = vsel %vm4695, %v4687, 0
    %v4742 = vsel %vm4695, %v4688, 0
    %4744 = vmatprep.subr.bf16.mxu0 0
    %4745 = vmatpush1.bf16.msra.mxu0 %v4693
    %4746 = vmatprep.subr.bf16.mxu0 0
    %4747 = vmatpush1.bf16.msra.mxu0 0
    %4748 = vmatprep.subr.bf16.mxu0 0
    %4749 = vmatpush1.bf16.msra.mxu0 0
    %4750 = vmatprep.subr.bf16.mxu0 0
    %4751 = vmatpush1.bf16.msra.mxu0 0
    %4752 = vmatprep.subr.bf16.mxu0 0
    %4753 = vmatpush1.bf16.msra.mxu0 0
    %4754 = vmatprep.subr.bf16.mxu0 0
    %4755 = vmatpush1.bf16.msra.mxu0 0
    %4756 = vmatprep.subr.bf16.mxu0 0
    %4757 = vmatpush1.bf16.msra.mxu0 0
    %4758 = vmatprep.subr.bf16.mxu0 0
    %4759 = vmatpush1.bf16.msra.mxu0 0
    %4760 = vmatprep.subr.bf16.mxu0 0
    %4761 = vmatpush1.bf16.msra.mxu0 0
    %4762 = vmatprep.subr.bf16.mxu0 0
    %4763 = vmatpush1.bf16.msra.mxu0 0
    %4764 = vmatprep.subr.bf16.mxu0 0
    %4765 = vmatpush1.bf16.msra.mxu0 0
    %4766 = vmatprep.subr.bf16.mxu0 0
    %4767 = vmatpush1.bf16.msra.mxu0 0
    %4768 = vmatprep.subr.bf16.mxu0 0
    %4769 = vmatpush1.bf16.msra.mxu0 0
    %4770 = vmatprep.subr.bf16.mxu0 0
    %4771 = vmatpush1.bf16.msra.mxu0 0
    %4772 = vmatprep.subr.bf16.mxu0 0
    %4773 = vmatpush1.bf16.msra.mxu0 0
    %4774 = vmatprep.subr.bf16.mxu0 0
    %4775 = vmatpush1.bf16.msra.mxu0 0
    %4776 = vmatprep.mubr.bf16.mxu0 0
    %4777 = vmatmul.mubr.bf16.gmra.mrb[0].mxu0 %v4697
    %v4778 = vpop.f32.mrb[0].mxu0
    %v4779 = vadd.f32 0.0, %v4778
    %v4780 = vpop.f32.mrb[0].mxu0
    %v4781 = vpop.f32.mrb[0].mxu0
    %v4782 = vadd.f32 0.0, %v4781
    %v4783 = vpop.f32.mrb[0].mxu0
    %4784 = vmatprep.mubr.bf16.mxu0 0
    %4785 = vmatmul.mubr.bf16.gmra.mrb[0].mxu0 %v4700
    %v4786 = vpop.f32.mrb[0].mxu0
    %v4787 = vadd.f32 0.0, %v4786
    %v4788 = vpop.f32.mrb[0].mxu0
    %v4789 = vpop.f32.mrb[0].mxu0
    %v4790 = vadd.f32 0.0, %v4789
    %v4791 = vpop.f32.mrb[0].mxu0
    %4792 = vmatprep.mubr.bf16.mxu0 0
    %4793 = vmatmul.mubr.bf16.gmra.mrb[0].mxu0 %v4703
    %v4794 = vpop.f32.mrb[0].mxu0
    %v4795 = vadd.f32 0.0, %v4794
    %v4796 = vpop.f32.mrb[0].mxu0
    %v4797 = vpop.f32.mrb[0].mxu0
    %v4798 = vadd.f32 0.0, %v4797
    %v4799 = vpop.f32.mrb[0].mxu0
    %4800 = vmatprep.mubr.bf16.mxu0 0
    %4801 = vmatmul.mubr.bf16.gmra.mrb[0].mxu0 %v4706
    %v4802 = vpop.f32.mrb[0].mxu0
    %v4803 = vadd.f32 0.0, %v4802
    %v4804 = vpop.f32.mrb[0].mxu0
    %v4805 = vpop.f32.mrb[0].mxu0
    %v4806 = vadd.f32 0.0, %v4805
    %v4807 = vpop.f32.mrb[0].mxu0
    %4808 = vmatprep.mubr.bf16.mxu0 0
    %4809 = vmatmul.mubr.bf16.gmra.mrb[0].mxu0 %v4709
    %v4810 = vpop.f32.mrb[0].mxu0
    %v4811 = vadd.f32 0.0, %v4810
    %v4812 = vpop.f32.mrb[0].mxu0
    %v4813 = vpop.f32.mrb[0].mxu0
    %v4814 = vadd.f32 0.0, %v4813
    %v4815 = vpop.f32.mrb[0].mxu0
    %4816 = vmatprep.mubr.bf16.mxu0 0
    %4817 = vmatmul.mubr.bf16.gmra.mrb[0].mxu0 %v4712
    %v4818 = vpop.f32.mrb[0].mxu0
    %v4819 = vadd.f32 0.0, %v4818
    %v4820 = vpop.f32.mrb[0].mxu0
    %v4821 = vpop.f32.mrb[0].mxu0
    %v4822 = vadd.f32 0.0, %v4821
    %v4823 = vpop.f32.mrb[0].mxu0
    %4824 = vmatprep.mubr.bf16.mxu0 0
    %4825 = vmatmul.mubr.bf16.gmra.mrb[0].mxu0 %v4715
    %v4826 = vpop.f32.mrb[0].mxu0
    %v4827 = vadd.f32 0.0, %v4826
    %v4828 = vpop.f32.mrb[0].mxu0
    %v4829 = vpop.f32.mrb[0].mxu0
    %v4830 = vadd.f32 0.0, %v4829
    %v4831 = vpop.f32.mrb[0].mxu0
    %4832 = vmatprep.mubr.bf16.mxu0 0
    %4833 = vmatmul.mubr.bf16.gmra.mrb[0].mxu0 %v4718
    %v4834 = vpop.f32.mrb[0].mxu0
    %v4835 = vadd.f32 0.0, %v4834
    %v4836 = vpop.f32.mrb[0].mxu0
    %v4837 = vpop.f32.mrb[0].mxu0
    %v4838 = vadd.f32 0.0, %v4837
    %v4839 = vpop.f32.mrb[0].mxu0
    %4840 = vmatprep.mubr.bf16.mxu0 0
    %4841 = vmatmul.mubr.bf16.gmra.mrb[0].mxu0 %v4721
    %v4842 = vpop.f32.mrb[0].mxu0
    %v4843 = vadd.f32 0.0, %v4842
    %v4844 = vpop.f32.mrb[0].mxu0
    %v4845 = vpop.f32.mrb[0].mxu0
    %v4846 = vadd.f32 0.0, %v4845
    %v4847 = vpop.f32.mrb[0].mxu0
    %4848 = vmatprep.mubr.bf16.mxu0 0
    %4849 = vmatmul.mubr.bf16.gmra.mrb[0].mxu0 %v4724
    %v4850 = vpop.f32.mrb[0].mxu0
    %v4851 = vadd.f32 0.0, %v4850
    %v4852 = vpop.f32.mrb[0].mxu0
    %v4853 = vpop.f32.mrb[0].mxu0
    %v4854 = vadd.f32 0.0, %v4853
    %v4855 = vpop.f32.mrb[0].mxu0
    %4856 = vmatprep.mubr.bf16.mxu0 0
    %4857 = vmatmul.mubr.bf16.gmra.mrb[0].mxu0 %v4727
    %v4858 = vpop.f32.mrb[0].mxu0
    %v4859 = vadd.f32 0.0, %v4858
    %v4860 = vpop.f32.mrb[0].mxu0
    %v4861 = vpop.f32.mrb[0].mxu0
    %v4862 = vadd.f32 0.0, %v4861
    %v4863 = vpop.f32.mrb[0].mxu0
    %4864 = vmatprep.mubr.bf16.mxu0 0
    %4865 = vmatmul.mubr.bf16.gmra.mrb[0].mxu0 %v4730
    %v4866 = vpop.f32.mrb[0].mxu0
    %v4867 = vadd.f32 0.0, %v4866
    %v4868 = vpop.f32.mrb[0].mxu0
    %v4869 = vpop.f32.mrb[0].mxu0
    %v4870 = vadd.f32 0.0, %v4869
    %v4871 = vpop.f32.mrb[0].mxu0
    %4872 = vmatprep.mubr.bf16.mxu0 0
    %4873 = vmatmul.mubr.bf16.gmra.mrb[0].mxu0 %v4733
    %v4874 = vpop.f32.mrb[0].mxu0
    %v4875 = vadd.f32 0.0, %v4874
    %v4876 = vpop.f32.mrb[0].mxu0
    %v4877 = vpop.f32.mrb[0].mxu0
    %v4878 = vadd.f32 0.0, %v4877
    %v4879 = vpop.f32.mrb[0].mxu0
    %4880 = vmatprep.mubr.bf16.mxu0 0
    %4881 = vmatmul.mubr.bf16.gmra.mrb[0].mxu0 %v4736
    %v4882 = vpop.f32.mrb[0].mxu0
    %v4883 = vadd.f32 0.0, %v4882
    %v4884 = vpop.f32.mrb[0].mxu0
    %v4885 = vpop.f32.mrb[0].mxu0
    %v4886 = vadd.f32 0.0, %v4885
    %v4887 = vpop.f32.mrb[0].mxu0
    %4888 = vmatprep.mubr.bf16.mxu0 0
    %4889 = vmatmul.mubr.bf16.gmra.mrb[0].mxu0 %v4739
    %v4890 = vpop.f32.mrb[0].mxu0
    %v4891 = vadd.f32 0.0, %v4890
    %v4892 = vpop.f32.mrb[0].mxu0
    %v4893 = vpop.f32.mrb[0].mxu0
    %v4894 = vadd.f32 0.0, %v4893
    %v4895 = vpop.f32.mrb[0].mxu0
    %4896 = vmatprep.mubr.bf16.mxu0 0
    %4897 = vmatmul.mubr.bf16.gmra.mrb[0].mxu0 %v4742
    %v4898 = vpop.f32.mrb[0].mxu0
    %v4899 = vadd.f32 0.0, %v4898
    %v4900 = vpop.f32.mrb[0].mxu0
    %v4901 = vpop.f32.mrb[0].mxu0
    %v4902 = vadd.f32 0.0, %v4901
    %v4903 = vpop.f32.mrb[0].mxu0
    %4904 = vdwg.mxu0
    %4906 = vset.pattern.permute.xlu0 0
    %4907 = vperm.xlu0 %4906, %v4158
    %v4908 = vpop.permute.xlu0 %4907
    %4911 = vset.pattern.permute.xlu0 0
    %4912 = vperm.xlu0 %4911, %v4159
    %v4913 = vpop.permute.xlu0 %4912
    %4916 = vset.pattern.permute.xlu0 0
    %4917 = vperm.xlu0 %4916, %v4160
    %v4918 = vpop.permute.xlu0 %4917
    %4921 = vset.pattern.permute.xlu0 0
    %4922 = vperm.xlu0 %4921, %v4161
    %v4923 = vpop.permute.xlu0 %4922
    %4926 = vset.pattern.permute.xlu0 0
    %4927 = vperm.xlu0 %4926, %v4162
    %v4928 = vpop.permute.xlu0 %4927
    %4931 = vset.pattern.permute.xlu0 0
    %4932 = vperm.xlu0 %4931, %v4163
    %v4933 = vpop.permute.xlu0 %4932
    %4936 = vset.pattern.permute.xlu0 0
    %4937 = vperm.xlu0 %4936, %v4164
    %v4938 = vpop.permute.xlu0 %4937
    %4941 = vset.pattern.permute.xlu0 0
    %4942 = vperm.xlu0 %4941, %v4165
    %v4943 = vpop.permute.xlu0 %4942
    %4946 = vset.pattern.permute.xlu0 0
    %4947 = vperm.xlu0 %4946, %v4166
    %v4948 = vpop.permute.xlu0 %4947
    %4951 = vset.pattern.permute.xlu0 0
    %4952 = vperm.xlu0 %4951, %v4167
    %v4953 = vpop.permute.xlu0 %4952
    %4956 = vset.pattern.permute.xlu0 0
    %4957 = vperm.xlu0 %4956, %v4168
    %v4958 = vpop.permute.xlu0 %4957
    %4961 = vset.pattern.permute.xlu0 0
    %4962 = vperm.xlu0 %4961, %v4169
    %v4963 = vpop.permute.xlu0 %4962
    %4966 = vset.pattern.permute.xlu0 0
    %4967 = vperm.xlu0 %4966, %v4170
    %v4968 = vpop.permute.xlu0 %4967
    %4971 = vset.pattern.permute.xlu0 0
    %4972 = vperm.xlu0 %4971, %v4171
    %v4973 = vpop.permute.xlu0 %4972
    %4976 = vset.pattern.permute.xlu0 0
    %4977 = vperm.xlu0 %4976, %v4172
    %v4978 = vpop.permute.xlu0 %4977
    %4981 = vset.pattern.permute.xlu0 0
    %4982 = vperm.xlu0 %4981, %v4173
    %v4983 = vpop.permute.xlu0 %4982
    %4986 = vset.pattern.permute.xlu0 0
    %4987 = vperm.xlu0 %4986, %v4174
    %v4988 = vpop.permute.xlu0 %4987
    %4991 = vset.pattern.permute.xlu0 0
    %4992 = vperm.xlu0 %4991, %v4175
    %v4993 = vpop.permute.xlu0 %4992
    %4996 = vset.pattern.permute.xlu0 0
    %4997 = vperm.xlu0 %4996, %v4176
    %v4998 = vpop.permute.xlu0 %4997
    %5001 = vset.pattern.permute.xlu0 0
    %5002 = vperm.xlu0 %5001, %v4177
    %v5003 = vpop.permute.xlu0 %5002
    %5006 = vset.pattern.permute.xlu0 0
    %5007 = vperm.xlu0 %5006, %v4178
    %v5008 = vpop.permute.xlu0 %5007
    %5011 = vset.pattern.permute.xlu0 0
    %5012 = vperm.xlu0 %5011, %v4179
    %v5013 = vpop.permute.xlu0 %5012
    %5016 = vset.pattern.permute.xlu0 0
    %5017 = vperm.xlu0 %5016, %v4180
    %v5018 = vpop.permute.xlu0 %5017
    %5021 = vset.pattern.permute.xlu0 0
    %5022 = vperm.xlu0 %5021, %v4181
    %v5023 = vpop.permute.xlu0 %5022
    %5026 = vset.pattern.permute.xlu0 0
    %5027 = vperm.xlu0 %5026, %v4182
    %v5028 = vpop.permute.xlu0 %5027
    %5031 = vset.pattern.permute.xlu0 0
    %5032 = vperm.xlu0 %5031, %v4183
    %v5033 = vpop.permute.xlu0 %5032
    %5036 = vset.pattern.permute.xlu0 0
    %5037 = vperm.xlu0 %5036, %v4184
    %v5038 = vpop.permute.xlu0 %5037
    %5041 = vset.pattern.permute.xlu0 0
    %5042 = vperm.xlu0 %5041, %v4185
    %v5043 = vpop.permute.xlu0 %5042
    %5046 = vset.pattern.permute.xlu0 0
    %5047 = vperm.xlu0 %5046, %v4186
    %v5048 = vpop.permute.xlu0 %5047
    %5051 = vset.pattern.permute.xlu0 0
    %5052 = vperm.xlu0 %5051, %v4187
    %v5053 = vpop.permute.xlu0 %5052
    %5056 = vset.pattern.permute.xlu0 0
    %5057 = vperm.xlu0 %5056, %v4188
    %v5058 = vpop.permute.xlu0 %5057
    %5061 = vset.pattern.permute.xlu0 0
    %5062 = vperm.xlu0 %5061, %v4189
    %v5063 = vpop.permute.xlu0 %5062
    %v5065 = vmul.f32 %v4908, %v4779
    %v5066 = vmul.f32 %v4913, %v4782
    %v5067 = vmul.f32 %v4918, %v4787
    %v5068 = vmul.f32 %v4923, %v4790
    %v5069 = vmul.f32 %v4928, %v4795
    %v5070 = vmul.f32 %v4933, %v4798
    %v5071 = vmul.f32 %v4938, %v4803
    %v5072 = vmul.f32 %v4943, %v4806
    %v5073 = vmul.f32 %v4948, %v4811
    %v5074 = vmul.f32 %v4953, %v4814
    %v5075 = vmul.f32 %v4958, %v4819
    %v5076 = vmul.f32 %v4963, %v4822
    %v5077 = vmul.f32 %v4968, %v4827
    %v5078 = vmul.f32 %v4973, %v4830
    %v5079 = vmul.f32 %v4978, %v4835
    %v5080 = vmul.f32 %v4983, %v4838
    %v5081 = vmul.f32 %v4988, %v4843
    %v5082 = vmul.f32 %v4993, %v4846
    %v5083 = vmul.f32 %v4998, %v4851
    %v5084 = vmul.f32 %v5003, %v4854
    %v5085 = vmul.f32 %v5008, %v4859
    %v5086 = vmul.f32 %v5013, %v4862
    %v5087 = vmul.f32 %v5018, %v4867
    %v5088 = vmul.f32 %v5023, %v4870
    %v5089 = vmul.f32 %v5028, %v4875
    %v5090 = vmul.f32 %v5033, %v4878
    %v5091 = vmul.f32 %v5038, %v4883
    %v5092 = vmul.f32 %v5043, %v4886
    %v5093 = vmul.f32 %v5048, %v4891
    %v5094 = vmul.f32 %v5053, %v4894
    %v5095 = vmul.f32 %v5058, %v4899
    %v5096 = vmul.f32 %v5063, %v4902
    %5097 = vset.pattern.permute.xlu0 1
    %5098 = vperm.xlu0 %5097, %v4158
    %v5099 = vpop.permute.xlu0 %5098
    %5101 = vset.pattern.permute.xlu0 1
    %5102 = vperm.xlu0 %5101, %v4159
    %v5103 = vpop.permute.xlu0 %5102
    %5105 = vset.pattern.permute.xlu0 1
    %5106 = vperm.xlu0 %5105, %v4160
    %v5107 = vpop.permute.xlu0 %5106
    %5109 = vset.pattern.permute.xlu0 1
    %5110 = vperm.xlu0 %5109, %v4161
    %v5111 = vpop.permute.xlu0 %5110
    %5113 = vset.pattern.permute.xlu0 1
    %5114 = vperm.xlu0 %5113, %v4162
    %v5115 = vpop.permute.xlu0 %5114
    %5117 = vset.pattern.permute.xlu0 1
    %5118 = vperm.xlu0 %5117, %v4163
    %v5119 = vpop.permute.xlu0 %5118
    %5121 = vset.pattern.permute.xlu0 1
    %5122 = vperm.xlu0 %5121, %v4164
    %v5123 = vpop.permute.xlu0 %5122
    %5125 = vset.pattern.permute.xlu0 1
    %5126 = vperm.xlu0 %5125, %v4165
    %v5127 = vpop.permute.xlu0 %5126
    %5129 = vset.pattern.permute.xlu0 1
    %5130 = vperm.xlu0 %5129, %v4166
    %v5131 = vpop.permute.xlu0 %5130
    %5133 = vset.pattern.permute.xlu0 1
    %5134 = vperm.xlu0 %5133, %v4167
    %v5135 = vpop.permute.xlu0 %5134
    %5137 = vset.pattern.permute.xlu0 1
    %5138 = vperm.xlu0 %5137, %v4168
    %v5139 = vpop.permute.xlu0 %5138
    %5141 = vset.pattern.permute.xlu0 1
    %5142 = vperm.xlu0 %5141, %v4169
    %v5143 = vpop.permute.xlu0 %5142
    %5145 = vset.pattern.permute.xlu0 1
    %5146 = vperm.xlu0 %5145, %v4170
    %v5147 = vpop.permute.xlu0 %5146
    %5149 = vset.pattern.permute.xlu0 1
    %5150 = vperm.xlu0 %5149, %v4171
    %v5151 = vpop.permute.xlu0 %5150
    %5153 = vset.pattern.permute.xlu0 1
    %5154 = vperm.xlu0 %5153, %v4172
    %v5155 = vpop.permute.xlu0 %5154
    %5157 = vset.pattern.permute.xlu0 1
    %5158 = vperm.xlu0 %5157, %v4173
    %v5159 = vpop.permute.xlu0 %5158
    %5161 = vset.pattern.permute.xlu0 1
    %5162 = vperm.xlu0 %5161, %v4174
    %v5163 = vpop.permute.xlu0 %5162
    %5165 = vset.pattern.permute.xlu0 1
    %5166 = vperm.xlu0 %5165, %v4175
    %v5167 = vpop.permute.xlu0 %5166
    %5169 = vset.pattern.permute.xlu0 1
    %5170 = vperm.xlu0 %5169, %v4176
    %v5171 = vpop.permute.xlu0 %5170
    %5173 = vset.pattern.permute.xlu0 1
    %5174 = vperm.xlu0 %5173, %v4177
    %v5175 = vpop.permute.xlu0 %5174
    %5177 = vset.pattern.permute.xlu0 1
    %5178 = vperm.xlu0 %5177, %v4178
    %v5179 = vpop.permute.xlu0 %5178
    %5181 = vset.pattern.permute.xlu0 1
    %5182 = vperm.xlu0 %5181, %v4179
    %v5183 = vpop.permute.xlu0 %5182
    %5185 = vset.pattern.permute.xlu0 1
    %5186 = vperm.xlu0 %5185, %v4180
    %v5187 = vpop.permute.xlu0 %5186
    %5189 = vset.pattern.permute.xlu0 1
    %5190 = vperm.xlu0 %5189, %v4181
    %v5191 = vpop.permute.xlu0 %5190
    %5193 = vset.pattern.permute.xlu0 1
    %5194 = vperm.xlu0 %5193, %v4182
    %v5195 = vpop.permute.xlu0 %5194
    %5197 = vset.pattern.permute.xlu0 1
    %5198 = vperm.xlu0 %5197, %v4183
    %v5199 = vpop.permute.xlu0 %5198
    %5201 = vset.pattern.permute.xlu0 1
    %5202 = vperm.xlu0 %5201, %v4184
    %v5203 = vpop.permute.xlu0 %5202
    %5205 = vset.pattern.permute.xlu0 1
    %5206 = vperm.xlu0 %5205, %v4185
    %v5207 = vpop.permute.xlu0 %5206
    %5209 = vset.pattern.permute.xlu0 1
    %5210 = vperm.xlu0 %5209, %v4186
    %v5211 = vpop.permute.xlu0 %5210
    %5213 = vset.pattern.permute.xlu0 1
    %5214 = vperm.xlu0 %5213, %v4187
    %v5215 = vpop.permute.xlu0 %5214
    %5217 = vset.pattern.permute.xlu0 1
    %5218 = vperm.xlu0 %5217, %v4188
    %v5219 = vpop.permute.xlu0 %5218
    %5221 = vset.pattern.permute.xlu0 1
    %5222 = vperm.xlu0 %5221, %v4189
    %v5223 = vpop.permute.xlu0 %5222
    %v5225 = vmul.f32 %v5099, %v4779
    %v5226 = vmul.f32 %v5103, %v4782
    %v5227 = vmul.f32 %v5107, %v4787
    %v5228 = vmul.f32 %v5111, %v4790
    %v5229 = vmul.f32 %v5115, %v4795
    %v5230 = vmul.f32 %v5119, %v4798
    %v5231 = vmul.f32 %v5123, %v4803
    %v5232 = vmul.f32 %v5127, %v4806
    %v5233 = vmul.f32 %v5131, %v4811
    %v5234 = vmul.f32 %v5135, %v4814
    %v5235 = vmul.f32 %v5139, %v4819
    %v5236 = vmul.f32 %v5143, %v4822
    %v5237 = vmul.f32 %v5147, %v4827
    %v5238 = vmul.f32 %v5151, %v4830
    %v5239 = vmul.f32 %v5155, %v4835
    %v5240 = vmul.f32 %v5159, %v4838
    %v5241 = vmul.f32 %v5163, %v4843
    %v5242 = vmul.f32 %v5167, %v4846
    %v5243 = vmul.f32 %v5171, %v4851
    %v5244 = vmul.f32 %v5175, %v4854
    %v5245 = vmul.f32 %v5179, %v4859
    %v5246 = vmul.f32 %v5183, %v4862
    %v5247 = vmul.f32 %v5187, %v4867
    %v5248 = vmul.f32 %v5191, %v4870
    %v5249 = vmul.f32 %v5195, %v4875
    %v5250 = vmul.f32 %v5199, %v4878
    %v5251 = vmul.f32 %v5203, %v4883
    %v5252 = vmul.f32 %v5207, %v4886
    %v5253 = vmul.f32 %v5211, %v4891
    %v5254 = vmul.f32 %v5215, %v4894
    %v5255 = vmul.f32 %v5219, %v4899
    %v5256 = vmul.f32 %v5223, %v4902
    %5289 = vrot.lane.b32.xlu0 %v5225, 112
    %v5290 = vpop.permute.xlu0 %5289
    %5291 = vrot.lane.b32.xlu0 %v5226, 112
    %v5292 = vpop.permute.xlu0 %5291
    %5293 = vrot.lane.b32.xlu0 %v5227, 112
    %v5294 = vpop.permute.xlu0 %5293
    %5295 = vrot.lane.b32.xlu0 %v5228, 112
    %v5296 = vpop.permute.xlu0 %5295
    %5297 = vrot.lane.b32.xlu0 %v5229, 112
    %v5298 = vpop.permute.xlu0 %5297
    %5299 = vrot.lane.b32.xlu0 %v5230, 112
    %v5300 = vpop.permute.xlu0 %5299
    %5301 = vrot.lane.b32.xlu0 %v5231, 112
    %v5302 = vpop.permute.xlu0 %5301
    %5303 = vrot.lane.b32.xlu0 %v5232, 112
    %v5304 = vpop.permute.xlu0 %5303
    %5305 = vrot.lane.b32.xlu0 %v5233, 112
    %v5306 = vpop.permute.xlu0 %5305
    %5307 = vrot.lane.b32.xlu0 %v5234, 112
    %v5308 = vpop.permute.xlu0 %5307
    %5309 = vrot.lane.b32.xlu0 %v5235, 112
    %v5310 = vpop.permute.xlu0 %5309
    %5311 = vrot.lane.b32.xlu0 %v5236, 112
    %v5312 = vpop.permute.xlu0 %5311
    %5313 = vrot.lane.b32.xlu0 %v5237, 112
    %v5314 = vpop.permute.xlu0 %5313
    %5315 = vrot.lane.b32.xlu0 %v5238, 112
    %v5316 = vpop.permute.xlu0 %5315
    %5317 = vrot.lane.b32.xlu0 %v5239, 112
    %v5318 = vpop.permute.xlu0 %5317
    %5319 = vrot.lane.b32.xlu0 %v5240, 112
    %v5320 = vpop.permute.xlu0 %5319
    %5321 = vrot.lane.b32.xlu0 %v5241, 112
    %v5322 = vpop.permute.xlu0 %5321
    %5323 = vrot.lane.b32.xlu0 %v5242, 112
    %v5324 = vpop.permute.xlu0 %5323
    %5325 = vrot.lane.b32.xlu0 %v5243, 112
    %v5326 = vpop.permute.xlu0 %5325
    %5327 = vrot.lane.b32.xlu0 %v5244, 112
    %v5328 = vpop.permute.xlu0 %5327
    %5329 = vrot.lane.b32.xlu0 %v5245, 112
    %v5330 = vpop.permute.xlu0 %5329
    %5331 = vrot.lane.b32.xlu0 %v5246, 112
    %v5332 = vpop.permute.xlu0 %5331
    %5333 = vrot.lane.b32.xlu0 %v5247, 112
    %v5334 = vpop.permute.xlu0 %5333
    %5335 = vrot.lane.b32.xlu0 %v5248, 112
    %v5336 = vpop.permute.xlu0 %5335
    %5337 = vrot.lane.b32.xlu0 %v5249, 112
    %v5338 = vpop.permute.xlu0 %5337
    %5339 = vrot.lane.b32.xlu0 %v5250, 112
    %v5340 = vpop.permute.xlu0 %5339
    %5341 = vrot.lane.b32.xlu0 %v5251, 112
    %v5342 = vpop.permute.xlu0 %5341
    %5343 = vrot.lane.b32.xlu0 %v5252, 112
    %v5344 = vpop.permute.xlu0 %5343
    %5345 = vrot.lane.b32.xlu0 %v5253, 112
    %v5346 = vpop.permute.xlu0 %5345
    %5347 = vrot.lane.b32.xlu0 %v5254, 112
    %v5348 = vpop.permute.xlu0 %5347
    %5349 = vrot.lane.b32.xlu0 %v5255, 112
    %v5350 = vpop.permute.xlu0 %5349
    %5351 = vrot.lane.b32.xlu0 %v5256, 112
    %v5352 = vpop.permute.xlu0 %5351
    %v5385 = vadd.f32 %v5065, %v5290
    %v5386 = vadd.f32 %v5066, %v5292
    %v5387 = vadd.f32 %v5067, %v5294
    %v5388 = vadd.f32 %v5068, %v5296
    %v5389 = vadd.f32 %v5069, %v5298
    %v5390 = vadd.f32 %v5070, %v5300
    %v5391 = vadd.f32 %v5071, %v5302
    %v5392 = vadd.f32 %v5072, %v5304
    %v5393 = vadd.f32 %v5073, %v5306
    %v5394 = vadd.f32 %v5074, %v5308
    %v5395 = vadd.f32 %v5075, %v5310
    %v5396 = vadd.f32 %v5076, %v5312
    %v5397 = vadd.f32 %v5077, %v5314
    %v5398 = vadd.f32 %v5078, %v5316
    %v5399 = vadd.f32 %v5079, %v5318
    %v5400 = vadd.f32 %v5080, %v5320
    %v5401 = vadd.f32 %v5081, %v5322
    %v5402 = vadd.f32 %v5082, %v5324
    %v5403 = vadd.f32 %v5083, %v5326
    %v5404 = vadd.f32 %v5084, %v5328
    %v5405 = vadd.f32 %v5085, %v5330
    %v5406 = vadd.f32 %v5086, %v5332
    %v5407 = vadd.f32 %v5087, %v5334
    %v5408 = vadd.f32 %v5088, %v5336
    %v5409 = vadd.f32 %v5089, %v5338
    %v5410 = vadd.f32 %v5090, %v5340
    %v5411 = vadd.f32 %v5091, %v5342
    %v5412 = vadd.f32 %v5092, %v5344
    %v5413 = vadd.f32 %v5093, %v5346
    %v5414 = vadd.f32 %v5094, %v5348
    %v5415 = vadd.f32 %v5095, %v5350
    %v5416 = vadd.f32 %v5096, %v5352
    %5417 = vset.pattern.permute.xlu0 2
    %5418 = vperm.xlu0 %5417, %v4158
    %v5419 = vpop.permute.xlu0 %5418
    %5421 = vset.pattern.permute.xlu0 2
    %5422 = vperm.xlu0 %5421, %v4159
    %v5423 = vpop.permute.xlu0 %5422
    %5425 = vset.pattern.permute.xlu0 2
    %5426 = vperm.xlu0 %5425, %v4160
    %v5427 = vpop.permute.xlu0 %5426
    %5429 = vset.pattern.permute.xlu0 2
    %5430 = vperm.xlu0 %5429, %v4161
    %v5431 = vpop.permute.xlu0 %5430
    %5433 = vset.pattern.permute.xlu0 2
    %5434 = vperm.xlu0 %5433, %v4162
    %v5435 = vpop.permute.xlu0 %5434
    %5437 = vset.pattern.permute.xlu0 2
    %5438 = vperm.xlu0 %5437, %v4163
    %v5439 = vpop.permute.xlu0 %5438
    %5441 = vset.pattern.permute.xlu0 2
    %5442 = vperm.xlu0 %5441, %v4164
    %v5443 = vpop.permute.xlu0 %5442
    %5445 = vset.pattern.permute.xlu0 2
    %5446 = vperm.xlu0 %5445, %v4165
    %v5447 = vpop.permute.xlu0 %5446
    %5449 = vset.pattern.permute.xlu0 2
    %5450 = vperm.xlu0 %5449, %v4166
    %v5451 = vpop.permute.xlu0 %5450
    %5453 = vset.pattern.permute.xlu0 2
    %5454 = vperm.xlu0 %5453, %v4167
    %v5455 = vpop.permute.xlu0 %5454
    %5457 = vset.pattern.permute.xlu0 2
    %5458 = vperm.xlu0 %5457, %v4168
    %v5459 = vpop.permute.xlu0 %5458
    %5461 = vset.pattern.permute.xlu0 2
    %5462 = vperm.xlu0 %5461, %v4169
    %v5463 = vpop.permute.xlu0 %5462
    %5465 = vset.pattern.permute.xlu0 2
    %5466 = vperm.xlu0 %5465, %v4170
    %v5467 = vpop.permute.xlu0 %5466
    %5469 = vset.pattern.permute.xlu0 2
    %5470 = vperm.xlu0 %5469, %v4171
    %v5471 = vpop.permute.xlu0 %5470
    %5473 = vset.pattern.permute.xlu0 2
    %5474 = vperm.xlu0 %5473, %v4172
    %v5475 = vpop.permute.xlu0 %5474
    %5477 = vset.pattern.permute.xlu0 2
    %5478 = vperm.xlu0 %5477, %v4173
    %v5479 = vpop.permute.xlu0 %5478
    %5481 = vset.pattern.permute.xlu0 2
    %5482 = vperm.xlu0 %5481, %v4174
    %v5483 = vpop.permute.xlu0 %5482
    %5485 = vset.pattern.permute.xlu0 2
    %5486 = vperm.xlu0 %5485, %v4175
    %v5487 = vpop.permute.xlu0 %5486
    %5489 = vset.pattern.permute.xlu0 2
    %5490 = vperm.xlu0 %5489, %v4176
    %v5491 = vpop.permute.xlu0 %5490
    %5493 = vset.pattern.permute.xlu0 2
    %5494 = vperm.xlu0 %5493, %v4177
    %v5495 = vpop.permute.xlu0 %5494
    %5497 = vset.pattern.permute.xlu0 2
    %5498 = vperm.xlu0 %5497, %v4178
    %v5499 = vpop.permute.xlu0 %5498
    %5501 = vset.pattern.permute.xlu0 2
    %5502 = vperm.xlu0 %5501, %v4179
    %v5503 = vpop.permute.xlu0 %5502
    %5505 = vset.pattern.permute.xlu0 2
    %5506 = vperm.xlu0 %5505, %v4180
    %v5507 = vpop.permute.xlu0 %5506
    %5509 = vset.pattern.permute.xlu0 2
    %5510 = vperm.xlu0 %5509, %v4181
    %v5511 = vpop.permute.xlu0 %5510
    %5513 = vset.pattern.permute.xlu0 2
    %5514 = vperm.xlu0 %5513, %v4182
    %v5515 = vpop.permute.xlu0 %5514
    %5517 = vset.pattern.permute.xlu0 2
    %5518 = vperm.xlu0 %5517, %v4183
    %v5519 = vpop.permute.xlu0 %5518
    %5521 = vset.pattern.permute.xlu0 2
    %5522 = vperm.xlu0 %5521, %v4184
    %v5523 = vpop.permute.xlu0 %5522
    %5525 = vset.pattern.permute.xlu0 2
    %5526 = vperm.xlu0 %5525, %v4185
    %v5527 = vpop.permute.xlu0 %5526
    %5529 = vset.pattern.permute.xlu0 2
    %5530 = vperm.xlu0 %5529, %v4186
    %v5531 = vpop.permute.xlu0 %5530
    %5533 = vset.pattern.permute.xlu0 2
    %5534 = vperm.xlu0 %5533, %v4187
    %v5535 = vpop.permute.xlu0 %5534
    %5537 = vset.pattern.permute.xlu0 2
    %5538 = vperm.xlu0 %5537, %v4188
    %v5539 = vpop.permute.xlu0 %5538
    %5541 = vset.pattern.permute.xlu0 2
    %5542 = vperm.xlu0 %5541, %v4189
    %v5543 = vpop.permute.xlu0 %5542
    %v5545 = vmul.f32 %v5419, %v4779
    %v5546 = vmul.f32 %v5423, %v4782
    %v5547 = vmul.f32 %v5427, %v4787
    %v5548 = vmul.f32 %v5431, %v4790
    %v5549 = vmul.f32 %v5435, %v4795
    %v5550 = vmul.f32 %v5439, %v4798
    %v5551 = vmul.f32 %v5443, %v4803
    %v5552 = vmul.f32 %v5447, %v4806
    %v5553 = vmul.f32 %v5451, %v4811
    %v5554 = vmul.f32 %v5455, %v4814
    %v5555 = vmul.f32 %v5459, %v4819
    %v5556 = vmul.f32 %v5463, %v4822
    %v5557 = vmul.f32 %v5467, %v4827
    %v5558 = vmul.f32 %v5471, %v4830
    %v5559 = vmul.f32 %v5475, %v4835
    %v5560 = vmul.f32 %v5479, %v4838
    %v5561 = vmul.f32 %v5483, %v4843
    %v5562 = vmul.f32 %v5487, %v4846
    %v5563 = vmul.f32 %v5491, %v4851
    %v5564 = vmul.f32 %v5495, %v4854
    %v5565 = vmul.f32 %v5499, %v4859
    %v5566 = vmul.f32 %v5503, %v4862
    %v5567 = vmul.f32 %v5507, %v4867
    %v5568 = vmul.f32 %v5511, %v4870
    %v5569 = vmul.f32 %v5515, %v4875
    %v5570 = vmul.f32 %v5519, %v4878
    %v5571 = vmul.f32 %v5523, %v4883
    %v5572 = vmul.f32 %v5527, %v4886
    %v5573 = vmul.f32 %v5531, %v4891
    %v5574 = vmul.f32 %v5535, %v4894
    %v5575 = vmul.f32 %v5539, %v4899
    %v5576 = vmul.f32 %v5543, %v4902
    %5609 = vrot.lane.b32.xlu0 %v5545, 96
    %v5610 = vpop.permute.xlu0 %5609
    %5611 = vrot.lane.b32.xlu0 %v5546, 96
    %v5612 = vpop.permute.xlu0 %5611
    %5613 = vrot.lane.b32.xlu0 %v5547, 96
    %v5614 = vpop.permute.xlu0 %5613
    %5615 = vrot.lane.b32.xlu0 %v5548, 96
    %v5616 = vpop.permute.xlu0 %5615
    %5617 = vrot.lane.b32.xlu0 %v5549, 96
    %v5618 = vpop.permute.xlu0 %5617
    %5619 = vrot.lane.b32.xlu0 %v5550, 96
    %v5620 = vpop.permute.xlu0 %5619
    %5621 = vrot.lane.b32.xlu0 %v5551, 96
    %v5622 = vpop.permute.xlu0 %5621
    %5623 = vrot.lane.b32.xlu0 %v5552, 96
    %v5624 = vpop.permute.xlu0 %5623
    %5625 = vrot.lane.b32.xlu0 %v5553, 96
    %v5626 = vpop.permute.xlu0 %5625
    %5627 = vrot.lane.b32.xlu0 %v5554, 96
    %v5628 = vpop.permute.xlu0 %5627
    %5629 = vrot.lane.b32.xlu0 %v5555, 96
    %v5630 = vpop.permute.xlu0 %5629
    %5631 = vrot.lane.b32.xlu0 %v5556, 96
    %v5632 = vpop.permute.xlu0 %5631
    %5633 = vrot.lane.b32.xlu0 %v5557, 96
    %v5634 = vpop.permute.xlu0 %5633
    %5635 = vrot.lane.b32.xlu0 %v5558, 96
    %v5636 = vpop.permute.xlu0 %5635
    %5637 = vrot.lane.b32.xlu0 %v5559, 96
    %v5638 = vpop.permute.xlu0 %5637
    %5639 = vrot.lane.b32.xlu0 %v5560, 96
    %v5640 = vpop.permute.xlu0 %5639
    %5641 = vrot.lane.b32.xlu0 %v5561, 96
    %v5642 = vpop.permute.xlu0 %5641
    %5643 = vrot.lane.b32.xlu0 %v5562, 96
    %v5644 = vpop.permute.xlu0 %5643
    %5645 = vrot.lane.b32.xlu0 %v5563, 96
    %v5646 = vpop.permute.xlu0 %5645
    %5647 = vrot.lane.b32.xlu0 %v5564, 96
    %v5648 = vpop.permute.xlu0 %5647
    %5649 = vrot.lane.b32.xlu0 %v5565, 96
    %v5650 = vpop.permute.xlu0 %5649
    %5651 = vrot.lane.b32.xlu0 %v5566, 96
    %v5652 = vpop.permute.xlu0 %5651
    %5653 = vrot.lane.b32.xlu0 %v5567, 96
    %v5654 = vpop.permute.xlu0 %5653
    %5655 = vrot.lane.b32.xlu0 %v5568, 96
    %v5656 = vpop.permute.xlu0 %5655
    %5657 = vrot.lane.b32.xlu0 %v5569, 96
    %v5658 = vpop.permute.xlu0 %5657
    %5659 = vrot.lane.b32.xlu0 %v5570, 96
    %v5660 = vpop.permute.xlu0 %5659
    %5661 = vrot.lane.b32.xlu0 %v5571, 96
    %v5662 = vpop.permute.xlu0 %5661
    %5663 = vrot.lane.b32.xlu0 %v5572, 96
    %v5664 = vpop.permute.xlu0 %5663
    %5665 = vrot.lane.b32.xlu0 %v5573, 96
    %v5666 = vpop.permute.xlu0 %5665
    %5667 = vrot.lane.b32.xlu0 %v5574, 96
    %v5668 = vpop.permute.xlu0 %5667
    %5669 = vrot.lane.b32.xlu0 %v5575, 96
    %v5670 = vpop.permute.xlu0 %5669
    %5671 = vrot.lane.b32.xlu0 %v5576, 96
    %v5672 = vpop.permute.xlu0 %5671
    %v5705 = vadd.f32 %v5385, %v5610
    %v5706 = vadd.f32 %v5386, %v5612
    %v5707 = vadd.f32 %v5387, %v5614
    %v5708 = vadd.f32 %v5388, %v5616
    %v5709 = vadd.f32 %v5389, %v5618
    %v5710 = vadd.f32 %v5390, %v5620
    %v5711 = vadd.f32 %v5391, %v5622
    %v5712 = vadd.f32 %v5392, %v5624
    %v5713 = vadd.f32 %v5393, %v5626
    %v5714 = vadd.f32 %v5394, %v5628
    %v5715 = vadd.f32 %v5395, %v5630
    %v5716 = vadd.f32 %v5396, %v5632
    %v5717 = vadd.f32 %v5397, %v5634
    %v5718 = vadd.f32 %v5398, %v5636
    %v5719 = vadd.f32 %v5399, %v5638
    %v5720 = vadd.f32 %v5400, %v5640
    %v5721 = vadd.f32 %v5401, %v5642
    %v5722 = vadd.f32 %v5402, %v5644
    %v5723 = vadd.f32 %v5403, %v5646
    %v5724 = vadd.f32 %v5404, %v5648
    %v5725 = vadd.f32 %v5405, %v5650
    %v5726 = vadd.f32 %v5406, %v5652
    %v5727 = vadd.f32 %v5407, %v5654
    %v5728 = vadd.f32 %v5408, %v5656
    %v5729 = vadd.f32 %v5409, %v5658
    %v5730 = vadd.f32 %v5410, %v5660
    %v5731 = vadd.f32 %v5411, %v5662
    %v5732 = vadd.f32 %v5412, %v5664
    %v5733 = vadd.f32 %v5413, %v5666
    %v5734 = vadd.f32 %v5414, %v5668
    %v5735 = vadd.f32 %v5415, %v5670
    %v5736 = vadd.f32 %v5416, %v5672
    %5737 = vset.pattern.permute.xlu0 3
    %5738 = vperm.xlu0 %5737, %v4158
    %v5739 = vpop.permute.xlu0 %5738
    %5741 = vset.pattern.permute.xlu0 3
    %5742 = vperm.xlu0 %5741, %v4159
    %v5743 = vpop.permute.xlu0 %5742
    %5745 = vset.pattern.permute.xlu0 3
    %5746 = vperm.xlu0 %5745, %v4160
    %v5747 = vpop.permute.xlu0 %5746
    %5749 = vset.pattern.permute.xlu0 3
    %5750 = vperm.xlu0 %5749, %v4161
    %v5751 = vpop.permute.xlu0 %5750
    %5753 = vset.pattern.permute.xlu0 3
    %5754 = vperm.xlu0 %5753, %v4162
    %v5755 = vpop.permute.xlu0 %5754
    %5757 = vset.pattern.permute.xlu0 3
    %5758 = vperm.xlu0 %5757, %v4163
    %v5759 = vpop.permute.xlu0 %5758
    %5761 = vset.pattern.permute.xlu0 3
    %5762 = vperm.xlu0 %5761, %v4164
    %v5763 = vpop.permute.xlu0 %5762
    %5765 = vset.pattern.permute.xlu0 3
    %5766 = vperm.xlu0 %5765, %v4165
    %v5767 = vpop.permute.xlu0 %5766
    %5769 = vset.pattern.permute.xlu0 3
    %5770 = vperm.xlu0 %5769, %v4166
    %v5771 = vpop.permute.xlu0 %5770
    %5773 = vset.pattern.permute.xlu0 3
    %5774 = vperm.xlu0 %5773, %v4167
    %v5775 = vpop.permute.xlu0 %5774
    %5777 = vset.pattern.permute.xlu0 3
    %5778 = vperm.xlu0 %5777, %v4168
    %v5779 = vpop.permute.xlu0 %5778
    %5781 = vset.pattern.permute.xlu0 3
    %5782 = vperm.xlu0 %5781, %v4169
    %v5783 = vpop.permute.xlu0 %5782
    %5785 = vset.pattern.permute.xlu0 3
    %5786 = vperm.xlu0 %5785, %v4170
    %v5787 = vpop.permute.xlu0 %5786
    %5789 = vset.pattern.permute.xlu0 3
    %5790 = vperm.xlu0 %5789, %v4171
    %v5791 = vpop.permute.xlu0 %5790
    %5793 = vset.pattern.permute.xlu0 3
    %5794 = vperm.xlu0 %5793, %v4172
    %v5795 = vpop.permute.xlu0 %5794
    %5797 = vset.pattern.permute.xlu0 3
    %5798 = vperm.xlu0 %5797, %v4173
    %v5799 = vpop.permute.xlu0 %5798
    %5801 = vset.pattern.permute.xlu0 3
    %5802 = vperm.xlu0 %5801, %v4174
    %v5803 = vpop.permute.xlu0 %5802
    %5805 = vset.pattern.permute.xlu0 3
    %5806 = vperm.xlu0 %5805, %v4175
    %v5807 = vpop.permute.xlu0 %5806
    %5809 = vset.pattern.permute.xlu0 3
    %5810 = vperm.xlu0 %5809, %v4176
    %v5811 = vpop.permute.xlu0 %5810
    %5813 = vset.pattern.permute.xlu0 3
    %5814 = vperm.xlu0 %5813, %v4177
    %v5815 = vpop.permute.xlu0 %5814
    %5817 = vset.pattern.permute.xlu0 3
    %5818 = vperm.xlu0 %5817, %v4178
    %v5819 = vpop.permute.xlu0 %5818
    %5821 = vset.pattern.permute.xlu0 3
    %5822 = vperm.xlu0 %5821, %v4179
    %v5823 = vpop.permute.xlu0 %5822
    %5825 = vset.pattern.permute.xlu0 3
    %5826 = vperm.xlu0 %5825, %v4180
    %v5827 = vpop.permute.xlu0 %5826
    %5829 = vset.pattern.permute.xlu0 3
    %5830 = vperm.xlu0 %5829, %v4181
    %v5831 = vpop.permute.xlu0 %5830
    %5833 = vset.pattern.permute.xlu0 3
    %5834 = vperm.xlu0 %5833, %v4182
    %v5835 = vpop.permute.xlu0 %5834
    %5837 = vset.pattern.permute.xlu0 3
    %5838 = vperm.xlu0 %5837, %v4183
    %v5839 = vpop.permute.xlu0 %5838
    %5841 = vset.pattern.permute.xlu0 3
    %5842 = vperm.xlu0 %5841, %v4184
    %v5843 = vpop.permute.xlu0 %5842
    %5845 = vset.pattern.permute.xlu0 3
    %5846 = vperm.xlu0 %5845, %v4185
    %v5847 = vpop.permute.xlu0 %5846
    %5849 = vset.pattern.permute.xlu0 3
    %5850 = vperm.xlu0 %5849, %v4186
    %v5851 = vpop.permute.xlu0 %5850
    %5853 = vset.pattern.permute.xlu0 3
    %5854 = vperm.xlu0 %5853, %v4187
    %v5855 = vpop.permute.xlu0 %5854
    %5857 = vset.pattern.permute.xlu0 3
    %5858 = vperm.xlu0 %5857, %v4188
    %v5859 = vpop.permute.xlu0 %5858
    %5861 = vset.pattern.permute.xlu0 3
    %5862 = vperm.xlu0 %5861, %v4189
    %v5863 = vpop.permute.xlu0 %5862
    %v5865 = vmul.f32 %v5739, %v4779
    %v5866 = vmul.f32 %v5743, %v4782
    %v5867 = vmul.f32 %v5747, %v4787
    %v5868 = vmul.f32 %v5751, %v4790
    %v5869 = vmul.f32 %v5755, %v4795
    %v5870 = vmul.f32 %v5759, %v4798
    %v5871 = vmul.f32 %v5763, %v4803
    %v5872 = vmul.f32 %v5767, %v4806
    %v5873 = vmul.f32 %v5771, %v4811
    %v5874 = vmul.f32 %v5775, %v4814
    %v5875 = vmul.f32 %v5779, %v4819
    %v5876 = vmul.f32 %v5783, %v4822
    %v5877 = vmul.f32 %v5787, %v4827
    %v5878 = vmul.f32 %v5791, %v4830
    %v5879 = vmul.f32 %v5795, %v4835
    %v5880 = vmul.f32 %v5799, %v4838
    %v5881 = vmul.f32 %v5803, %v4843
    %v5882 = vmul.f32 %v5807, %v4846
    %v5883 = vmul.f32 %v5811, %v4851
    %v5884 = vmul.f32 %v5815, %v4854
    %v5885 = vmul.f32 %v5819, %v4859
    %v5886 = vmul.f32 %v5823, %v4862
    %v5887 = vmul.f32 %v5827, %v4867
    %v5888 = vmul.f32 %v5831, %v4870
    %v5889 = vmul.f32 %v5835, %v4875
    %v5890 = vmul.f32 %v5839, %v4878
    %v5891 = vmul.f32 %v5843, %v4883
    %v5892 = vmul.f32 %v5847, %v4886
    %v5893 = vmul.f32 %v5851, %v4891
    %v5894 = vmul.f32 %v5855, %v4894
    %v5895 = vmul.f32 %v5859, %v4899
    %v5896 = vmul.f32 %v5863, %v4902
    %5929 = vrot.lane.b32.xlu0 %v5865, 80
    %v5930 = vpop.permute.xlu0 %5929
    %5931 = vrot.lane.b32.xlu0 %v5866, 80
    %v5932 = vpop.permute.xlu0 %5931
    %5933 = vrot.lane.b32.xlu0 %v5867, 80
    %v5934 = vpop.permute.xlu0 %5933
    %5935 = vrot.lane.b32.xlu0 %v5868, 80
    %v5936 = vpop.permute.xlu0 %5935
    %5937 = vrot.lane.b32.xlu0 %v5869, 80
    %v5938 = vpop.permute.xlu0 %5937
    %5939 = vrot.lane.b32.xlu0 %v5870, 80
    %v5940 = vpop.permute.xlu0 %5939
    %5941 = vrot.lane.b32.xlu0 %v5871, 80
    %v5942 = vpop.permute.xlu0 %5941
    %5943 = vrot.lane.b32.xlu0 %v5872, 80
    %v5944 = vpop.permute.xlu0 %5943
    %5945 = vrot.lane.b32.xlu0 %v5873, 80
    %v5946 = vpop.permute.xlu0 %5945
    %5947 = vrot.lane.b32.xlu0 %v5874, 80
    %v5948 = vpop.permute.xlu0 %5947
    %5949 = vrot.lane.b32.xlu0 %v5875, 80
    %v5950 = vpop.permute.xlu0 %5949
    %5951 = vrot.lane.b32.xlu0 %v5876, 80
    %v5952 = vpop.permute.xlu0 %5951
    %5953 = vrot.lane.b32.xlu0 %v5877, 80
    %v5954 = vpop.permute.xlu0 %5953
    %5955 = vrot.lane.b32.xlu0 %v5878, 80
    %v5956 = vpop.permute.xlu0 %5955
    %5957 = vrot.lane.b32.xlu0 %v5879, 80
    %v5958 = vpop.permute.xlu0 %5957
    %5959 = vrot.lane.b32.xlu0 %v5880, 80
    %v5960 = vpop.permute.xlu0 %5959
    %5961 = vrot.lane.b32.xlu0 %v5881, 80
    %v5962 = vpop.permute.xlu0 %5961
    %5963 = vrot.lane.b32.xlu0 %v5882, 80
    %v5964 = vpop.permute.xlu0 %5963
    %5965 = vrot.lane.b32.xlu0 %v5883, 80
    %v5966 = vpop.permute.xlu0 %5965
    %5967 = vrot.lane.b32.xlu0 %v5884, 80
    %v5968 = vpop.permute.xlu0 %5967
    %5969 = vrot.lane.b32.xlu0 %v5885, 80
    %v5970 = vpop.permute.xlu0 %5969
    %5971 = vrot.lane.b32.xlu0 %v5886, 80
    %v5972 = vpop.permute.xlu0 %5971
    %5973 = vrot.lane.b32.xlu0 %v5887, 80
    %v5974 = vpop.permute.xlu0 %5973
    %5975 = vrot.lane.b32.xlu0 %v5888, 80
    %v5976 = vpop.permute.xlu0 %5975
    %5977 = vrot.lane.b32.xlu0 %v5889, 80
    %v5978 = vpop.permute.xlu0 %5977
    %5979 = vrot.lane.b32.xlu0 %v5890, 80
    %v5980 = vpop.permute.xlu0 %5979
    %5981 = vrot.lane.b32.xlu0 %v5891, 80
    %v5982 = vpop.permute.xlu0 %5981
    %5983 = vrot.lane.b32.xlu0 %v5892, 80
    %v5984 = vpop.permute.xlu0 %5983
    %5985 = vrot.lane.b32.xlu0 %v5893, 80
    %v5986 = vpop.permute.xlu0 %5985
    %5987 = vrot.lane.b32.xlu0 %v5894, 80
    %v5988 = vpop.permute.xlu0 %5987
    %5989 = vrot.lane.b32.xlu0 %v5895, 80
    %v5990 = vpop.permute.xlu0 %5989
    %5991 = vrot.lane.b32.xlu0 %v5896, 80
    %v5992 = vpop.permute.xlu0 %5991
    %v6025 = vadd.f32 %v5705, %v5930
    %v6026 = vadd.f32 %v5706, %v5932
    %v6027 = vadd.f32 %v5707, %v5934
    %v6028 = vadd.f32 %v5708, %v5936
    %v6029 = vadd.f32 %v5709, %v5938
    %v6030 = vadd.f32 %v5710, %v5940
    %v6031 = vadd.f32 %v5711, %v5942
    %v6032 = vadd.f32 %v5712, %v5944
    %v6033 = vadd.f32 %v5713, %v5946
    %v6034 = vadd.f32 %v5714, %v5948
    %v6035 = vadd.f32 %v5715, %v5950
    %v6036 = vadd.f32 %v5716, %v5952
    %v6037 = vadd.f32 %v5717, %v5954
    %v6038 = vadd.f32 %v5718, %v5956
    %v6039 = vadd.f32 %v5719, %v5958
    %v6040 = vadd.f32 %v5720, %v5960
    %v6041 = vadd.f32 %v5721, %v5962
    %v6042 = vadd.f32 %v5722, %v5964
    %v6043 = vadd.f32 %v5723, %v5966
    %v6044 = vadd.f32 %v5724, %v5968
    %v6045 = vadd.f32 %v5725, %v5970
    %v6046 = vadd.f32 %v5726, %v5972
    %v6047 = vadd.f32 %v5727, %v5974
    %v6048 = vadd.f32 %v5728, %v5976
    %v6049 = vadd.f32 %v5729, %v5978
    %v6050 = vadd.f32 %v5730, %v5980
    %v6051 = vadd.f32 %v5731, %v5982
    %v6052 = vadd.f32 %v5732, %v5984
    %v6053 = vadd.f32 %v5733, %v5986
    %v6054 = vadd.f32 %v5734, %v5988
    %v6055 = vadd.f32 %v5735, %v5990
    %v6056 = vadd.f32 %v5736, %v5992
    %6057 = vset.pattern.permute.xlu0 4
    %6058 = vperm.xlu0 %6057, %v4158
    %v6059 = vpop.permute.xlu0 %6058
    %6061 = vset.pattern.permute.xlu0 4
    %6062 = vperm.xlu0 %6061, %v4159
    %v6063 = vpop.permute.xlu0 %6062
    %6065 = vset.pattern.permute.xlu0 4
    %6066 = vperm.xlu0 %6065, %v4160
    %v6067 = vpop.permute.xlu0 %6066
    %6069 = vset.pattern.permute.xlu0 4
    %6070 = vperm.xlu0 %6069, %v4161
    %v6071 = vpop.permute.xlu0 %6070
    %6073 = vset.pattern.permute.xlu0 4
    %6074 = vperm.xlu0 %6073, %v4162
    %v6075 = vpop.permute.xlu0 %6074
    %6077 = vset.pattern.permute.xlu0 4
    %6078 = vperm.xlu0 %6077, %v4163
    %v6079 = vpop.permute.xlu0 %6078
    %6081 = vset.pattern.permute.xlu0 4
    %6082 = vperm.xlu0 %6081, %v4164
    %v6083 = vpop.permute.xlu0 %6082
    %6085 = vset.pattern.permute.xlu0 4
    %6086 = vperm.xlu0 %6085, %v4165
    %v6087 = vpop.permute.xlu0 %6086
    %6089 = vset.pattern.permute.xlu0 4
    %6090 = vperm.xlu0 %6089, %v4166
    %v6091 = vpop.permute.xlu0 %6090
    %6093 = vset.pattern.permute.xlu0 4
    %6094 = vperm.xlu0 %6093, %v4167
    %v6095 = vpop.permute.xlu0 %6094
    %6097 = vset.pattern.permute.xlu0 4
    %6098 = vperm.xlu0 %6097, %v4168
    %v6099 = vpop.permute.xlu0 %6098
    %6101 = vset.pattern.permute.xlu0 4
    %6102 = vperm.xlu0 %6101, %v4169
    %v6103 = vpop.permute.xlu0 %6102
    %6105 = vset.pattern.permute.xlu0 4
    %6106 = vperm.xlu0 %6105, %v4170
    %v6107 = vpop.permute.xlu0 %6106
    %6109 = vset.pattern.permute.xlu0 4
    %6110 = vperm.xlu0 %6109, %v4171
    %v6111 = vpop.permute.xlu0 %6110
    %6113 = vset.pattern.permute.xlu0 4
    %6114 = vperm.xlu0 %6113, %v4172
    %v6115 = vpop.permute.xlu0 %6114
    %6117 = vset.pattern.permute.xlu0 4
    %6118 = vperm.xlu0 %6117, %v4173
    %v6119 = vpop.permute.xlu0 %6118
    %6121 = vset.pattern.permute.xlu0 4
    %6122 = vperm.xlu0 %6121, %v4174
    %v6123 = vpop.permute.xlu0 %6122
    %6125 = vset.pattern.permute.xlu0 4
    %6126 = vperm.xlu0 %6125, %v4175
    %v6127 = vpop.permute.xlu0 %6126
    %6129 = vset.pattern.permute.xlu0 4
    %6130 = vperm.xlu0 %6129, %v4176
    %v6131 = vpop.permute.xlu0 %6130
    %6133 = vset.pattern.permute.xlu0 4
    %6134 = vperm.xlu0 %6133, %v4177
    %v6135 = vpop.permute.xlu0 %6134
    %6137 = vset.pattern.permute.xlu0 4
    %6138 = vperm.xlu0 %6137, %v4178
    %v6139 = vpop.permute.xlu0 %6138
    %6141 = vset.pattern.permute.xlu0 4
    %6142 = vperm.xlu0 %6141, %v4179
    %v6143 = vpop.permute.xlu0 %6142
    %6145 = vset.pattern.permute.xlu0 4
    %6146 = vperm.xlu0 %6145, %v4180
    %v6147 = vpop.permute.xlu0 %6146
    %6149 = vset.pattern.permute.xlu0 4
    %6150 = vperm.xlu0 %6149, %v4181
    %v6151 = vpop.permute.xlu0 %6150
    %6153 = vset.pattern.permute.xlu0 4
    %6154 = vperm.xlu0 %6153, %v4182
    %v6155 = vpop.permute.xlu0 %6154
    %6157 = vset.pattern.permute.xlu0 4
    %6158 = vperm.xlu0 %6157, %v4183
    %v6159 = vpop.permute.xlu0 %6158
    %6161 = vset.pattern.permute.xlu0 4
    %6162 = vperm.xlu0 %6161, %v4184
    %v6163 = vpop.permute.xlu0 %6162
    %6165 = vset.pattern.permute.xlu0 4
    %6166 = vperm.xlu0 %6165, %v4185
    %v6167 = vpop.permute.xlu0 %6166
    %6169 = vset.pattern.permute.xlu0 4
    %6170 = vperm.xlu0 %6169, %v4186
    %v6171 = vpop.permute.xlu0 %6170
    %6173 = vset.pattern.permute.xlu0 4
    %6174 = vperm.xlu0 %6173, %v4187
    %v6175 = vpop.permute.xlu0 %6174
    %6177 = vset.pattern.permute.xlu0 4
    %6178 = vperm.xlu0 %6177, %v4188
    %v6179 = vpop.permute.xlu0 %6178
    %6181 = vset.pattern.permute.xlu0 4
    %6182 = vperm.xlu0 %6181, %v4189
    %v6183 = vpop.permute.xlu0 %6182
    %v6185 = vmul.f32 %v6059, %v4779
    %v6186 = vmul.f32 %v6063, %v4782
    %v6187 = vmul.f32 %v6067, %v4787
    %v6188 = vmul.f32 %v6071, %v4790
    %v6189 = vmul.f32 %v6075, %v4795
    %v6190 = vmul.f32 %v6079, %v4798
    %v6191 = vmul.f32 %v6083, %v4803
    %v6192 = vmul.f32 %v6087, %v4806
    %v6193 = vmul.f32 %v6091, %v4811
    %v6194 = vmul.f32 %v6095, %v4814
    %v6195 = vmul.f32 %v6099, %v4819
    %v6196 = vmul.f32 %v6103, %v4822
    %v6197 = vmul.f32 %v6107, %v4827
    %v6198 = vmul.f32 %v6111, %v4830
    %v6199 = vmul.f32 %v6115, %v4835
    %v6200 = vmul.f32 %v6119, %v4838
    %v6201 = vmul.f32 %v6123, %v4843
    %v6202 = vmul.f32 %v6127, %v4846
    %v6203 = vmul.f32 %v6131, %v4851
    %v6204 = vmul.f32 %v6135, %v4854
    %v6205 = vmul.f32 %v6139, %v4859
    %v6206 = vmul.f32 %v6143, %v4862
    %v6207 = vmul.f32 %v6147, %v4867
    %v6208 = vmul.f32 %v6151, %v4870
    %v6209 = vmul.f32 %v6155, %v4875
    %v6210 = vmul.f32 %v6159, %v4878
    %v6211 = vmul.f32 %v6163, %v4883
    %v6212 = vmul.f32 %v6167, %v4886
    %v6213 = vmul.f32 %v6171, %v4891
    %v6214 = vmul.f32 %v6175, %v4894
    %v6215 = vmul.f32 %v6179, %v4899
    %v6216 = vmul.f32 %v6183, %v4902
    %6249 = vrot.lane.b32.xlu0 %v6185, 64
    %v6250 = vpop.permute.xlu0 %6249
    %6251 = vrot.lane.b32.xlu0 %v6186, 64
    %v6252 = vpop.permute.xlu0 %6251
    %6253 = vrot.lane.b32.xlu0 %v6187, 64
    %v6254 = vpop.permute.xlu0 %6253
    %6255 = vrot.lane.b32.xlu0 %v6188, 64
    %v6256 = vpop.permute.xlu0 %6255
    %6257 = vrot.lane.b32.xlu0 %v6189, 64
    %v6258 = vpop.permute.xlu0 %6257
    %6259 = vrot.lane.b32.xlu0 %v6190, 64
    %v6260 = vpop.permute.xlu0 %6259
    %6261 = vrot.lane.b32.xlu0 %v6191, 64
    %v6262 = vpop.permute.xlu0 %6261
    %6263 = vrot.lane.b32.xlu0 %v6192, 64
    %v6264 = vpop.permute.xlu0 %6263
    %6265 = vrot.lane.b32.xlu0 %v6193, 64
    %v6266 = vpop.permute.xlu0 %6265
    %6267 = vrot.lane.b32.xlu0 %v6194, 64
    %v6268 = vpop.permute.xlu0 %6267
    %6269 = vrot.lane.b32.xlu0 %v6195, 64
    %v6270 = vpop.permute.xlu0 %6269
    %6271 = vrot.lane.b32.xlu0 %v6196, 64
    %v6272 = vpop.permute.xlu0 %6271
    %6273 = vrot.lane.b32.xlu0 %v6197, 64
    %v6274 = vpop.permute.xlu0 %6273
    %6275 = vrot.lane.b32.xlu0 %v6198, 64
    %v6276 = vpop.permute.xlu0 %6275
    %6277 = vrot.lane.b32.xlu0 %v6199, 64
    %v6278 = vpop.permute.xlu0 %6277
    %6279 = vrot.lane.b32.xlu0 %v6200, 64
    %v6280 = vpop.permute.xlu0 %6279
    %6281 = vrot.lane.b32.xlu0 %v6201, 64
    %v6282 = vpop.permute.xlu0 %6281
    %6283 = vrot.lane.b32.xlu0 %v6202, 64
    %v6284 = vpop.permute.xlu0 %6283
    %6285 = vrot.lane.b32.xlu0 %v6203, 64
    %v6286 = vpop.permute.xlu0 %6285
    %6287 = vrot.lane.b32.xlu0 %v6204, 64
    %v6288 = vpop.permute.xlu0 %6287
    %6289 = vrot.lane.b32.xlu0 %v6205, 64
    %v6290 = vpop.permute.xlu0 %6289
    %6291 = vrot.lane.b32.xlu0 %v6206, 64
    %v6292 = vpop.permute.xlu0 %6291
    %6293 = vrot.lane.b32.xlu0 %v6207, 64
    %v6294 = vpop.permute.xlu0 %6293
    %6295 = vrot.lane.b32.xlu0 %v6208, 64
    %v6296 = vpop.permute.xlu0 %6295
    %6297 = vrot.lane.b32.xlu0 %v6209, 64
    %v6298 = vpop.permute.xlu0 %6297
    %6299 = vrot.lane.b32.xlu0 %v6210, 64
    %v6300 = vpop.permute.xlu0 %6299
    %6301 = vrot.lane.b32.xlu0 %v6211, 64
    %v6302 = vpop.permute.xlu0 %6301
    %6303 = vrot.lane.b32.xlu0 %v6212, 64
    %v6304 = vpop.permute.xlu0 %6303
    %6305 = vrot.lane.b32.xlu0 %v6213, 64
    %v6306 = vpop.permute.xlu0 %6305
    %6307 = vrot.lane.b32.xlu0 %v6214, 64
    %v6308 = vpop.permute.xlu0 %6307
    %6309 = vrot.lane.b32.xlu0 %v6215, 64
    %v6310 = vpop.permute.xlu0 %6309
    %6311 = vrot.lane.b32.xlu0 %v6216, 64
    %v6312 = vpop.permute.xlu0 %6311
    %v6345 = vadd.f32 %v6025, %v6250
    %v6346 = vadd.f32 %v6026, %v6252
    %v6347 = vadd.f32 %v6027, %v6254
    %v6348 = vadd.f32 %v6028, %v6256
    %v6349 = vadd.f32 %v6029, %v6258
    %v6350 = vadd.f32 %v6030, %v6260
    %v6351 = vadd.f32 %v6031, %v6262
    %v6352 = vadd.f32 %v6032, %v6264
    %v6353 = vadd.f32 %v6033, %v6266
    %v6354 = vadd.f32 %v6034, %v6268
    %v6355 = vadd.f32 %v6035, %v6270
    %v6356 = vadd.f32 %v6036, %v6272
    %v6357 = vadd.f32 %v6037, %v6274
    %v6358 = vadd.f32 %v6038, %v6276
    %v6359 = vadd.f32 %v6039, %v6278
    %v6360 = vadd.f32 %v6040, %v6280
    %v6361 = vadd.f32 %v6041, %v6282
    %v6362 = vadd.f32 %v6042, %v6284
    %v6363 = vadd.f32 %v6043, %v6286
    %v6364 = vadd.f32 %v6044, %v6288
    %v6365 = vadd.f32 %v6045, %v6290
    %v6366 = vadd.f32 %v6046, %v6292
    %v6367 = vadd.f32 %v6047, %v6294
    %v6368 = vadd.f32 %v6048, %v6296
    %v6369 = vadd.f32 %v6049, %v6298
    %v6370 = vadd.f32 %v6050, %v6300
    %v6371 = vadd.f32 %v6051, %v6302
    %v6372 = vadd.f32 %v6052, %v6304
    %v6373 = vadd.f32 %v6053, %v6306
    %v6374 = vadd.f32 %v6054, %v6308
    %v6375 = vadd.f32 %v6055, %v6310
    %v6376 = vadd.f32 %v6056, %v6312
    %6377 = vset.pattern.permute.xlu0 5
    %6378 = vperm.xlu0 %6377, %v4158
    %v6379 = vpop.permute.xlu0 %6378
    %6381 = vset.pattern.permute.xlu0 5
    %6382 = vperm.xlu0 %6381, %v4159
    %v6383 = vpop.permute.xlu0 %6382
    %6385 = vset.pattern.permute.xlu0 5
    %6386 = vperm.xlu0 %6385, %v4160
    %v6387 = vpop.permute.xlu0 %6386
    %6389 = vset.pattern.permute.xlu0 5
    %6390 = vperm.xlu0 %6389, %v4161
    %v6391 = vpop.permute.xlu0 %6390
    %6393 = vset.pattern.permute.xlu0 5
    %6394 = vperm.xlu0 %6393, %v4162
    %v6395 = vpop.permute.xlu0 %6394
    %6397 = vset.pattern.permute.xlu0 5
    %6398 = vperm.xlu0 %6397, %v4163
    %v6399 = vpop.permute.xlu0 %6398
    %6401 = vset.pattern.permute.xlu0 5
    %6402 = vperm.xlu0 %6401, %v4164
    %v6403 = vpop.permute.xlu0 %6402
    %6405 = vset.pattern.permute.xlu0 5
    %6406 = vperm.xlu0 %6405, %v4165
    %v6407 = vpop.permute.xlu0 %6406
    %6409 = vset.pattern.permute.xlu0 5
    %6410 = vperm.xlu0 %6409, %v4166
    %v6411 = vpop.permute.xlu0 %6410
    %6413 = vset.pattern.permute.xlu0 5
    %6414 = vperm.xlu0 %6413, %v4167
    %v6415 = vpop.permute.xlu0 %6414
    %6417 = vset.pattern.permute.xlu0 5
    %6418 = vperm.xlu0 %6417, %v4168
    %v6419 = vpop.permute.xlu0 %6418
    %6421 = vset.pattern.permute.xlu0 5
    %6422 = vperm.xlu0 %6421, %v4169
    %v6423 = vpop.permute.xlu0 %6422
    %6425 = vset.pattern.permute.xlu0 5
    %6426 = vperm.xlu0 %6425, %v4170
    %v6427 = vpop.permute.xlu0 %6426
    %6429 = vset.pattern.permute.xlu0 5
    %6430 = vperm.xlu0 %6429, %v4171
    %v6431 = vpop.permute.xlu0 %6430
    %6433 = vset.pattern.permute.xlu0 5
    %6434 = vperm.xlu0 %6433, %v4172
    %v6435 = vpop.permute.xlu0 %6434
    %6437 = vset.pattern.permute.xlu0 5
    %6438 = vperm.xlu0 %6437, %v4173
    %v6439 = vpop.permute.xlu0 %6438
    %6441 = vset.pattern.permute.xlu0 5
    %6442 = vperm.xlu0 %6441, %v4174
    %v6443 = vpop.permute.xlu0 %6442
    %6445 = vset.pattern.permute.xlu0 5
    %6446 = vperm.xlu0 %6445, %v4175
    %v6447 = vpop.permute.xlu0 %6446
    %6449 = vset.pattern.permute.xlu0 5
    %6450 = vperm.xlu0 %6449, %v4176
    %v6451 = vpop.permute.xlu0 %6450
    %6453 = vset.pattern.permute.xlu0 5
    %6454 = vperm.xlu0 %6453, %v4177
    %v6455 = vpop.permute.xlu0 %6454
    %6457 = vset.pattern.permute.xlu0 5
    %6458 = vperm.xlu0 %6457, %v4178
    %v6459 = vpop.permute.xlu0 %6458
    %6461 = vset.pattern.permute.xlu0 5
    %6462 = vperm.xlu0 %6461, %v4179
    %v6463 = vpop.permute.xlu0 %6462
    %6465 = vset.pattern.permute.xlu0 5
    %6466 = vperm.xlu0 %6465, %v4180
    %v6467 = vpop.permute.xlu0 %6466
    %6469 = vset.pattern.permute.xlu0 5
    %6470 = vperm.xlu0 %6469, %v4181
    %v6471 = vpop.permute.xlu0 %6470
    %6473 = vset.pattern.permute.xlu0 5
    %6474 = vperm.xlu0 %6473, %v4182
    %v6475 = vpop.permute.xlu0 %6474
    %6477 = vset.pattern.permute.xlu0 5
    %6478 = vperm.xlu0 %6477, %v4183
    %v6479 = vpop.permute.xlu0 %6478
    %6481 = vset.pattern.permute.xlu0 5
    %6482 = vperm.xlu0 %6481, %v4184
    %v6483 = vpop.permute.xlu0 %6482
    %6485 = vset.pattern.permute.xlu0 5
    %6486 = vperm.xlu0 %6485, %v4185
    %v6487 = vpop.permute.xlu0 %6486
    %6489 = vset.pattern.permute.xlu0 5
    %6490 = vperm.xlu0 %6489, %v4186
    %v6491 = vpop.permute.xlu0 %6490
    %6493 = vset.pattern.permute.xlu0 5
    %6494 = vperm.xlu0 %6493, %v4187
    %v6495 = vpop.permute.xlu0 %6494
    %6497 = vset.pattern.permute.xlu0 5
    %6498 = vperm.xlu0 %6497, %v4188
    %v6499 = vpop.permute.xlu0 %6498
    %6501 = vset.pattern.permute.xlu0 5
    %6502 = vperm.xlu0 %6501, %v4189
    %v6503 = vpop.permute.xlu0 %6502
    %v6505 = vmul.f32 %v6379, %v4779
    %v6506 = vmul.f32 %v6383, %v4782
    %v6507 = vmul.f32 %v6387, %v4787
    %v6508 = vmul.f32 %v6391, %v4790
    %v6509 = vmul.f32 %v6395, %v4795
    %v6510 = vmul.f32 %v6399, %v4798
    %v6511 = vmul.f32 %v6403, %v4803
    %v6512 = vmul.f32 %v6407, %v4806
    %v6513 = vmul.f32 %v6411, %v4811
    %v6514 = vmul.f32 %v6415, %v4814
    %v6515 = vmul.f32 %v6419, %v4819
    %v6516 = vmul.f32 %v6423, %v4822
    %v6517 = vmul.f32 %v6427, %v4827
    %v6518 = vmul.f32 %v6431, %v4830
    %v6519 = vmul.f32 %v6435, %v4835
    %v6520 = vmul.f32 %v6439, %v4838
    %v6521 = vmul.f32 %v6443, %v4843
    %v6522 = vmul.f32 %v6447, %v4846
    %v6523 = vmul.f32 %v6451, %v4851
    %v6524 = vmul.f32 %v6455, %v4854
    %v6525 = vmul.f32 %v6459, %v4859
    %v6526 = vmul.f32 %v6463, %v4862
    %v6527 = vmul.f32 %v6467, %v4867
    %v6528 = vmul.f32 %v6471, %v4870
    %v6529 = vmul.f32 %v6475, %v4875
    %v6530 = vmul.f32 %v6479, %v4878
    %v6531 = vmul.f32 %v6483, %v4883
    %v6532 = vmul.f32 %v6487, %v4886
    %v6533 = vmul.f32 %v6491, %v4891
    %v6534 = vmul.f32 %v6495, %v4894
    %v6535 = vmul.f32 %v6499, %v4899
    %v6536 = vmul.f32 %v6503, %v4902
    %6569 = vrot.lane.b32.xlu0 %v6505, 48
    %v6570 = vpop.permute.xlu0 %6569
    %6571 = vrot.lane.b32.xlu0 %v6506, 48
    %v6572 = vpop.permute.xlu0 %6571
    %6573 = vrot.lane.b32.xlu0 %v6507, 48
    %v6574 = vpop.permute.xlu0 %6573
    %6575 = vrot.lane.b32.xlu0 %v6508, 48
    %v6576 = vpop.permute.xlu0 %6575
    %6577 = vrot.lane.b32.xlu0 %v6509, 48
    %v6578 = vpop.permute.xlu0 %6577
    %6579 = vrot.lane.b32.xlu0 %v6510, 48
    %v6580 = vpop.permute.xlu0 %6579
    %6581 = vrot.lane.b32.xlu0 %v6511, 48
    %v6582 = vpop.permute.xlu0 %6581
    %6583 = vrot.lane.b32.xlu0 %v6512, 48
    %v6584 = vpop.permute.xlu0 %6583
    %6585 = vrot.lane.b32.xlu0 %v6513, 48
    %v6586 = vpop.permute.xlu0 %6585
    %6587 = vrot.lane.b32.xlu0 %v6514, 48
    %v6588 = vpop.permute.xlu0 %6587
    %6589 = vrot.lane.b32.xlu0 %v6515, 48
    %v6590 = vpop.permute.xlu0 %6589
    %6591 = vrot.lane.b32.xlu0 %v6516, 48
    %v6592 = vpop.permute.xlu0 %6591
    %6593 = vrot.lane.b32.xlu0 %v6517, 48
    %v6594 = vpop.permute.xlu0 %6593
    %6595 = vrot.lane.b32.xlu0 %v6518, 48
    %v6596 = vpop.permute.xlu0 %6595
    %6597 = vrot.lane.b32.xlu0 %v6519, 48
    %v6598 = vpop.permute.xlu0 %6597
    %6599 = vrot.lane.b32.xlu0 %v6520, 48
    %v6600 = vpop.permute.xlu0 %6599
    %6601 = vrot.lane.b32.xlu0 %v6521, 48
    %v6602 = vpop.permute.xlu0 %6601
    %6603 = vrot.lane.b32.xlu0 %v6522, 48
    %v6604 = vpop.permute.xlu0 %6603
    %6605 = vrot.lane.b32.xlu0 %v6523, 48
    %v6606 = vpop.permute.xlu0 %6605
    %6607 = vrot.lane.b32.xlu0 %v6524, 48
    %v6608 = vpop.permute.xlu0 %6607
    %6609 = vrot.lane.b32.xlu0 %v6525, 48
    %v6610 = vpop.permute.xlu0 %6609
    %6611 = vrot.lane.b32.xlu0 %v6526, 48
    %v6612 = vpop.permute.xlu0 %6611
    %6613 = vrot.lane.b32.xlu0 %v6527, 48
    %v6614 = vpop.permute.xlu0 %6613
    %6615 = vrot.lane.b32.xlu0 %v6528, 48
    %v6616 = vpop.permute.xlu0 %6615
    %6617 = vrot.lane.b32.xlu0 %v6529, 48
    %v6618 = vpop.permute.xlu0 %6617
    %6619 = vrot.lane.b32.xlu0 %v6530, 48
    %v6620 = vpop.permute.xlu0 %6619
    %6621 = vrot.lane.b32.xlu0 %v6531, 48
    %v6622 = vpop.permute.xlu0 %6621
    %6623 = vrot.lane.b32.xlu0 %v6532, 48
    %v6624 = vpop.permute.xlu0 %6623
    %6625 = vrot.lane.b32.xlu0 %v6533, 48
    %v6626 = vpop.permute.xlu0 %6625
    %6627 = vrot.lane.b32.xlu0 %v6534, 48
    %v6628 = vpop.permute.xlu0 %6627
    %6629 = vrot.lane.b32.xlu0 %v6535, 48
    %v6630 = vpop.permute.xlu0 %6629
    %6631 = vrot.lane.b32.xlu0 %v6536, 48
    %v6632 = vpop.permute.xlu0 %6631
    %v6665 = vadd.f32 %v6345, %v6570
    %v6666 = vadd.f32 %v6346, %v6572
    %v6667 = vadd.f32 %v6347, %v6574
    %v6668 = vadd.f32 %v6348, %v6576
    %v6669 = vadd.f32 %v6349, %v6578
    %v6670 = vadd.f32 %v6350, %v6580
    %v6671 = vadd.f32 %v6351, %v6582
    %v6672 = vadd.f32 %v6352, %v6584
    %v6673 = vadd.f32 %v6353, %v6586
    %v6674 = vadd.f32 %v6354, %v6588
    %v6675 = vadd.f32 %v6355, %v6590
    %v6676 = vadd.f32 %v6356, %v6592
    %v6677 = vadd.f32 %v6357, %v6594
    %v6678 = vadd.f32 %v6358, %v6596
    %v6679 = vadd.f32 %v6359, %v6598
    %v6680 = vadd.f32 %v6360, %v6600
    %v6681 = vadd.f32 %v6361, %v6602
    %v6682 = vadd.f32 %v6362, %v6604
    %v6683 = vadd.f32 %v6363, %v6606
    %v6684 = vadd.f32 %v6364, %v6608
    %v6685 = vadd.f32 %v6365, %v6610
    %v6686 = vadd.f32 %v6366, %v6612
    %v6687 = vadd.f32 %v6367, %v6614
    %v6688 = vadd.f32 %v6368, %v6616
    %v6689 = vadd.f32 %v6369, %v6618
    %v6690 = vadd.f32 %v6370, %v6620
    %v6691 = vadd.f32 %v6371, %v6622
    %v6692 = vadd.f32 %v6372, %v6624
    %v6693 = vadd.f32 %v6373, %v6626
    %v6694 = vadd.f32 %v6374, %v6628
    %v6695 = vadd.f32 %v6375, %v6630
    %v6696 = vadd.f32 %v6376, %v6632
    %6697 = vset.pattern.permute.xlu0 6
    %6698 = vperm.xlu0 %6697, %v4158
    %v6699 = vpop.permute.xlu0 %6698
    %6701 = vset.pattern.permute.xlu0 6
    %6702 = vperm.xlu0 %6701, %v4159
    %v6703 = vpop.permute.xlu0 %6702
    %6705 = vset.pattern.permute.xlu0 6
    %6706 = vperm.xlu0 %6705, %v4160
    %v6707 = vpop.permute.xlu0 %6706
    %6709 = vset.pattern.permute.xlu0 6
    %6710 = vperm.xlu0 %6709, %v4161
    %v6711 = vpop.permute.xlu0 %6710
    %6713 = vset.pattern.permute.xlu0 6
    %6714 = vperm.xlu0 %6713, %v4162
    %v6715 = vpop.permute.xlu0 %6714
    %6717 = vset.pattern.permute.xlu0 6
    %6718 = vperm.xlu0 %6717, %v4163
    %v6719 = vpop.permute.xlu0 %6718
    %6721 = vset.pattern.permute.xlu0 6
    %6722 = vperm.xlu0 %6721, %v4164
    %v6723 = vpop.permute.xlu0 %6722
    %6725 = vset.pattern.permute.xlu0 6
    %6726 = vperm.xlu0 %6725, %v4165
    %v6727 = vpop.permute.xlu0 %6726
    %6729 = vset.pattern.permute.xlu0 6
    %6730 = vperm.xlu0 %6729, %v4166
    %v6731 = vpop.permute.xlu0 %6730
    %6733 = vset.pattern.permute.xlu0 6
    %6734 = vperm.xlu0 %6733, %v4167
    %v6735 = vpop.permute.xlu0 %6734
    %6737 = vset.pattern.permute.xlu0 6
    %6738 = vperm.xlu0 %6737, %v4168
    %v6739 = vpop.permute.xlu0 %6738
    %6741 = vset.pattern.permute.xlu0 6
    %6742 = vperm.xlu0 %6741, %v4169
    %v6743 = vpop.permute.xlu0 %6742
    %6745 = vset.pattern.permute.xlu0 6
    %6746 = vperm.xlu0 %6745, %v4170
    %v6747 = vpop.permute.xlu0 %6746
    %6749 = vset.pattern.permute.xlu0 6
    %6750 = vperm.xlu0 %6749, %v4171
    %v6751 = vpop.permute.xlu0 %6750
    %6753 = vset.pattern.permute.xlu0 6
    %6754 = vperm.xlu0 %6753, %v4172
    %v6755 = vpop.permute.xlu0 %6754
    %6757 = vset.pattern.permute.xlu0 6
    %6758 = vperm.xlu0 %6757, %v4173
    %v6759 = vpop.permute.xlu0 %6758
    %6761 = vset.pattern.permute.xlu0 6
    %6762 = vperm.xlu0 %6761, %v4174
    %v6763 = vpop.permute.xlu0 %6762
    %6765 = vset.pattern.permute.xlu0 6
    %6766 = vperm.xlu0 %6765, %v4175
    %v6767 = vpop.permute.xlu0 %6766
    %6769 = vset.pattern.permute.xlu0 6
    %6770 = vperm.xlu0 %6769, %v4176
    %v6771 = vpop.permute.xlu0 %6770
    %6773 = vset.pattern.permute.xlu0 6
    %6774 = vperm.xlu0 %6773, %v4177
    %v6775 = vpop.permute.xlu0 %6774
    %6777 = vset.pattern.permute.xlu0 6
    %6778 = vperm.xlu0 %6777, %v4178
    %v6779 = vpop.permute.xlu0 %6778
    %6781 = vset.pattern.permute.xlu0 6
    %6782 = vperm.xlu0 %6781, %v4179
    %v6783 = vpop.permute.xlu0 %6782
    %6785 = vset.pattern.permute.xlu0 6
    %6786 = vperm.xlu0 %6785, %v4180
    %v6787 = vpop.permute.xlu0 %6786
    %6789 = vset.pattern.permute.xlu0 6
    %6790 = vperm.xlu0 %6789, %v4181
    %v6791 = vpop.permute.xlu0 %6790
    %6793 = vset.pattern.permute.xlu0 6
    %6794 = vperm.xlu0 %6793, %v4182
    %v6795 = vpop.permute.xlu0 %6794
    %6797 = vset.pattern.permute.xlu0 6
    %6798 = vperm.xlu0 %6797, %v4183
    %v6799 = vpop.permute.xlu0 %6798
    %6801 = vset.pattern.permute.xlu0 6
    %6802 = vperm.xlu0 %6801, %v4184
    %v6803 = vpop.permute.xlu0 %6802
    %6805 = vset.pattern.permute.xlu0 6
    %6806 = vperm.xlu0 %6805, %v4185
    %v6807 = vpop.permute.xlu0 %6806
    %6809 = vset.pattern.permute.xlu0 6
    %6810 = vperm.xlu0 %6809, %v4186
    %v6811 = vpop.permute.xlu0 %6810
    %6813 = vset.pattern.permute.xlu0 6
    %6814 = vperm.xlu0 %6813, %v4187
    %v6815 = vpop.permute.xlu0 %6814
    %6817 = vset.pattern.permute.xlu0 6
    %6818 = vperm.xlu0 %6817, %v4188
    %v6819 = vpop.permute.xlu0 %6818
    %6821 = vset.pattern.permute.xlu0 6
    %6822 = vperm.xlu0 %6821, %v4189
    %v6823 = vpop.permute.xlu0 %6822
    %v6825 = vmul.f32 %v6699, %v4779
    %v6826 = vmul.f32 %v6703, %v4782
    %v6827 = vmul.f32 %v6707, %v4787
    %v6828 = vmul.f32 %v6711, %v4790
    %v6829 = vmul.f32 %v6715, %v4795
    %v6830 = vmul.f32 %v6719, %v4798
    %v6831 = vmul.f32 %v6723, %v4803
    %v6832 = vmul.f32 %v6727, %v4806
    %v6833 = vmul.f32 %v6731, %v4811
    %v6834 = vmul.f32 %v6735, %v4814
    %v6835 = vmul.f32 %v6739, %v4819
    %v6836 = vmul.f32 %v6743, %v4822
    %v6837 = vmul.f32 %v6747, %v4827
    %v6838 = vmul.f32 %v6751, %v4830
    %v6839 = vmul.f32 %v6755, %v4835
    %v6840 = vmul.f32 %v6759, %v4838
    %v6841 = vmul.f32 %v6763, %v4843
    %v6842 = vmul.f32 %v6767, %v4846
    %v6843 = vmul.f32 %v6771, %v4851
    %v6844 = vmul.f32 %v6775, %v4854
    %v6845 = vmul.f32 %v6779, %v4859
    %v6846 = vmul.f32 %v6783, %v4862
    %v6847 = vmul.f32 %v6787, %v4867
    %v6848 = vmul.f32 %v6791, %v4870
    %v6849 = vmul.f32 %v6795, %v4875
    %v6850 = vmul.f32 %v6799, %v4878
    %v6851 = vmul.f32 %v6803, %v4883
    %v6852 = vmul.f32 %v6807, %v4886
    %v6853 = vmul.f32 %v6811, %v4891
    %v6854 = vmul.f32 %v6815, %v4894
    %v6855 = vmul.f32 %v6819, %v4899
    %v6856 = vmul.f32 %v6823, %v4902
    %6889 = vrot.lane.b32.xlu0 %v6825, 32
    %v6890 = vpop.permute.xlu0 %6889
    %6891 = vrot.lane.b32.xlu0 %v6826, 32
    %v6892 = vpop.permute.xlu0 %6891
    %6893 = vrot.lane.b32.xlu0 %v6827, 32
    %v6894 = vpop.permute.xlu0 %6893
    %6895 = vrot.lane.b32.xlu0 %v6828, 32
    %v6896 = vpop.permute.xlu0 %6895
    %6897 = vrot.lane.b32.xlu0 %v6829, 32
    %v6898 = vpop.permute.xlu0 %6897
    %6899 = vrot.lane.b32.xlu0 %v6830, 32
    %v6900 = vpop.permute.xlu0 %6899
    %6901 = vrot.lane.b32.xlu0 %v6831, 32
    %v6902 = vpop.permute.xlu0 %6901
    %6903 = vrot.lane.b32.xlu0 %v6832, 32
    %v6904 = vpop.permute.xlu0 %6903
    %6905 = vrot.lane.b32.xlu0 %v6833, 32
    %v6906 = vpop.permute.xlu0 %6905
    %6907 = vrot.lane.b32.xlu0 %v6834, 32
    %v6908 = vpop.permute.xlu0 %6907
    %6909 = vrot.lane.b32.xlu0 %v6835, 32
    %v6910 = vpop.permute.xlu0 %6909
    %6911 = vrot.lane.b32.xlu0 %v6836, 32
    %v6912 = vpop.permute.xlu0 %6911
    %6913 = vrot.lane.b32.xlu0 %v6837, 32
    %v6914 = vpop.permute.xlu0 %6913
    %6915 = vrot.lane.b32.xlu0 %v6838, 32
    %v6916 = vpop.permute.xlu0 %6915
    %6917 = vrot.lane.b32.xlu0 %v6839, 32
    %v6918 = vpop.permute.xlu0 %6917
    %6919 = vrot.lane.b32.xlu0 %v6840, 32
    %v6920 = vpop.permute.xlu0 %6919
    %6921 = vrot.lane.b32.xlu0 %v6841, 32
    %v6922 = vpop.permute.xlu0 %6921
    %6923 = vrot.lane.b32.xlu0 %v6842, 32
    %v6924 = vpop.permute.xlu0 %6923
    %6925 = vrot.lane.b32.xlu0 %v6843, 32
    %v6926 = vpop.permute.xlu0 %6925
    %6927 = vrot.lane.b32.xlu0 %v6844, 32
    %v6928 = vpop.permute.xlu0 %6927
    %6929 = vrot.lane.b32.xlu0 %v6845, 32
    %v6930 = vpop.permute.xlu0 %6929
    %6931 = vrot.lane.b32.xlu0 %v6846, 32
    %v6932 = vpop.permute.xlu0 %6931
    %6933 = vrot.lane.b32.xlu0 %v6847, 32
    %v6934 = vpop.permute.xlu0 %6933
    %6935 = vrot.lane.b32.xlu0 %v6848, 32
    %v6936 = vpop.permute.xlu0 %6935
    %6937 = vrot.lane.b32.xlu0 %v6849, 32
    %v6938 = vpop.permute.xlu0 %6937
    %6939 = vrot.lane.b32.xlu0 %v6850, 32
    %v6940 = vpop.permute.xlu0 %6939
    %6941 = vrot.lane.b32.xlu0 %v6851, 32
    %v6942 = vpop.permute.xlu0 %6941
    %6943 = vrot.lane.b32.xlu0 %v6852, 32
    %v6944 = vpop.permute.xlu0 %6943
    %6945 = vrot.lane.b32.xlu0 %v6853, 32
    %v6946 = vpop.permute.xlu0 %6945
    %6947 = vrot.lane.b32.xlu0 %v6854, 32
    %v6948 = vpop.permute.xlu0 %6947
    %6949 = vrot.lane.b32.xlu0 %v6855, 32
    %v6950 = vpop.permute.xlu0 %6949
    %6951 = vrot.lane.b32.xlu0 %v6856, 32
    %v6952 = vpop.permute.xlu0 %6951
    %v6985 = vadd.f32 %v6665, %v6890
    %v6986 = vadd.f32 %v6666, %v6892
    %v6987 = vadd.f32 %v6667, %v6894
    %v6988 = vadd.f32 %v6668, %v6896
    %v6989 = vadd.f32 %v6669, %v6898
    %v6990 = vadd.f32 %v6670, %v6900
    %v6991 = vadd.f32 %v6671, %v6902
    %v6992 = vadd.f32 %v6672, %v6904
    %v6993 = vadd.f32 %v6673, %v6906
    %v6994 = vadd.f32 %v6674, %v6908
    %v6995 = vadd.f32 %v6675, %v6910
    %v6996 = vadd.f32 %v6676, %v6912
    %v6997 = vadd.f32 %v6677, %v6914
    %v6998 = vadd.f32 %v6678, %v6916
    %v6999 = vadd.f32 %v6679, %v6918
    %v7000 = vadd.f32 %v6680, %v6920
    %v7001 = vadd.f32 %v6681, %v6922
    %v7002 = vadd.f32 %v6682, %v6924
    %v7003 = vadd.f32 %v6683, %v6926
    %v7004 = vadd.f32 %v6684, %v6928
    %v7005 = vadd.f32 %v6685, %v6930
    %v7006 = vadd.f32 %v6686, %v6932
    %v7007 = vadd.f32 %v6687, %v6934
    %v7008 = vadd.f32 %v6688, %v6936
    %v7009 = vadd.f32 %v6689, %v6938
    %v7010 = vadd.f32 %v6690, %v6940
    %v7011 = vadd.f32 %v6691, %v6942
    %v7012 = vadd.f32 %v6692, %v6944
    %v7013 = vadd.f32 %v6693, %v6946
    %v7014 = vadd.f32 %v6694, %v6948
    %v7015 = vadd.f32 %v6695, %v6950
    %v7016 = vadd.f32 %v6696, %v6952
    %7017 = vset.pattern.permute.xlu0 7
    %7018 = vperm.xlu0 %7017, %v4158
    %v7019 = vpop.permute.xlu0 %7018
    %7021 = vset.pattern.permute.xlu0 7
    %7022 = vperm.xlu0 %7021, %v4159
    %v7023 = vpop.permute.xlu0 %7022
    %7025 = vset.pattern.permute.xlu0 7
    %7026 = vperm.xlu0 %7025, %v4160
    %v7027 = vpop.permute.xlu0 %7026
    %7029 = vset.pattern.permute.xlu0 7
    %7030 = vperm.xlu0 %7029, %v4161
    %v7031 = vpop.permute.xlu0 %7030
    %7033 = vset.pattern.permute.xlu0 7
    %7034 = vperm.xlu0 %7033, %v4162
    %v7035 = vpop.permute.xlu0 %7034
    %7037 = vset.pattern.permute.xlu0 7
    %7038 = vperm.xlu0 %7037, %v4163
    %v7039 = vpop.permute.xlu0 %7038
    %7041 = vset.pattern.permute.xlu0 7
    %7042 = vperm.xlu0 %7041, %v4164
    %v7043 = vpop.permute.xlu0 %7042
    %7045 = vset.pattern.permute.xlu0 7
    %7046 = vperm.xlu0 %7045, %v4165
    %v7047 = vpop.permute.xlu0 %7046
    %7049 = vset.pattern.permute.xlu0 7
    %7050 = vperm.xlu0 %7049, %v4166
    %v7051 = vpop.permute.xlu0 %7050
    %7053 = vset.pattern.permute.xlu0 7
    %7054 = vperm.xlu0 %7053, %v4167
    %v7055 = vpop.permute.xlu0 %7054
    %7057 = vset.pattern.permute.xlu0 7
    %7058 = vperm.xlu0 %7057, %v4168
    %v7059 = vpop.permute.xlu0 %7058
    %7061 = vset.pattern.permute.xlu0 7
    %7062 = vperm.xlu0 %7061, %v4169
    %v7063 = vpop.permute.xlu0 %7062
    %7065 = vset.pattern.permute.xlu0 7
    %7066 = vperm.xlu0 %7065, %v4170
    %v7067 = vpop.permute.xlu0 %7066
    %7069 = vset.pattern.permute.xlu0 7
    %7070 = vperm.xlu0 %7069, %v4171
    %v7071 = vpop.permute.xlu0 %7070
    %7073 = vset.pattern.permute.xlu0 7
    %7074 = vperm.xlu0 %7073, %v4172
    %v7075 = vpop.permute.xlu0 %7074
    %7077 = vset.pattern.permute.xlu0 7
    %7078 = vperm.xlu0 %7077, %v4173
    %v7079 = vpop.permute.xlu0 %7078
    %7081 = vset.pattern.permute.xlu0 7
    %7082 = vperm.xlu0 %7081, %v4174
    %v7083 = vpop.permute.xlu0 %7082
    %7085 = vset.pattern.permute.xlu0 7
    %7086 = vperm.xlu0 %7085, %v4175
    %v7087 = vpop.permute.xlu0 %7086
    %7089 = vset.pattern.permute.xlu0 7
    %7090 = vperm.xlu0 %7089, %v4176
    %v7091 = vpop.permute.xlu0 %7090
    %7093 = vset.pattern.permute.xlu0 7
    %7094 = vperm.xlu0 %7093, %v4177
    %v7095 = vpop.permute.xlu0 %7094
    %7097 = vset.pattern.permute.xlu0 7
    %7098 = vperm.xlu0 %7097, %v4178
    %v7099 = vpop.permute.xlu0 %7098
    %7101 = vset.pattern.permute.xlu0 7
    %7102 = vperm.xlu0 %7101, %v4179
    %v7103 = vpop.permute.xlu0 %7102
    %7105 = vset.pattern.permute.xlu0 7
    %7106 = vperm.xlu0 %7105, %v4180
    %v7107 = vpop.permute.xlu0 %7106
    %7109 = vset.pattern.permute.xlu0 7
    %7110 = vperm.xlu0 %7109, %v4181
    %v7111 = vpop.permute.xlu0 %7110
    %7113 = vset.pattern.permute.xlu0 7
    %7114 = vperm.xlu0 %7113, %v4182
    %v7115 = vpop.permute.xlu0 %7114
    %7117 = vset.pattern.permute.xlu0 7
    %7118 = vperm.xlu0 %7117, %v4183
    %v7119 = vpop.permute.xlu0 %7118
    %7121 = vset.pattern.permute.xlu0 7
    %7122 = vperm.xlu0 %7121, %v4184
    %v7123 = vpop.permute.xlu0 %7122
    %7125 = vset.pattern.permute.xlu0 7
    %7126 = vperm.xlu0 %7125, %v4185
    %v7127 = vpop.permute.xlu0 %7126
    %7129 = vset.pattern.permute.xlu0 7
    %7130 = vperm.xlu0 %7129, %v4186
    %v7131 = vpop.permute.xlu0 %7130
    %7133 = vset.pattern.permute.xlu0 7
    %7134 = vperm.xlu0 %7133, %v4187
    %v7135 = vpop.permute.xlu0 %7134
    %7137 = vset.pattern.permute.xlu0 7
    %7138 = vperm.xlu0 %7137, %v4188
    %v7139 = vpop.permute.xlu0 %7138
    %7141 = vset.pattern.permute.xlu0 7
    %7142 = vperm.xlu0 %7141, %v4189
    %v7143 = vpop.permute.xlu0 %7142
    %v7145 = vmul.f32 %v7019, %v4779
    %v7146 = vmul.f32 %v7023, %v4782
    %v7147 = vmul.f32 %v7027, %v4787
    %v7148 = vmul.f32 %v7031, %v4790
    %v7149 = vmul.f32 %v7035, %v4795
    %v7150 = vmul.f32 %v7039, %v4798
    %v7151 = vmul.f32 %v7043, %v4803
    %v7152 = vmul.f32 %v7047, %v4806
    %v7153 = vmul.f32 %v7051, %v4811
    %v7154 = vmul.f32 %v7055, %v4814
    %v7155 = vmul.f32 %v7059, %v4819
    %v7156 = vmul.f32 %v7063, %v4822
    %v7157 = vmul.f32 %v7067, %v4827
    %v7158 = vmul.f32 %v7071, %v4830
    %v7159 = vmul.f32 %v7075, %v4835
    %v7160 = vmul.f32 %v7079, %v4838
    %v7161 = vmul.f32 %v7083, %v4843
    %v7162 = vmul.f32 %v7087, %v4846
    %v7163 = vmul.f32 %v7091, %v4851
    %v7164 = vmul.f32 %v7095, %v4854
    %v7165 = vmul.f32 %v7099, %v4859
    %v7166 = vmul.f32 %v7103, %v4862
    %v7167 = vmul.f32 %v7107, %v4867
    %v7168 = vmul.f32 %v7111, %v4870
    %v7169 = vmul.f32 %v7115, %v4875
    %v7170 = vmul.f32 %v7119, %v4878
    %v7171 = vmul.f32 %v7123, %v4883
    %v7172 = vmul.f32 %v7127, %v4886
    %v7173 = vmul.f32 %v7131, %v4891
    %v7174 = vmul.f32 %v7135, %v4894
    %v7175 = vmul.f32 %v7139, %v4899
    %v7176 = vmul.f32 %v7143, %v4902
    %7209 = vrot.lane.b32.xlu0 %v7145, 16
    %v7210 = vpop.permute.xlu0 %7209
    %7211 = vrot.lane.b32.xlu0 %v7146, 16
    %v7212 = vpop.permute.xlu0 %7211
    %7213 = vrot.lane.b32.xlu0 %v7147, 16
    %v7214 = vpop.permute.xlu0 %7213
    %7215 = vrot.lane.b32.xlu0 %v7148, 16
    %v7216 = vpop.permute.xlu0 %7215
    %7217 = vrot.lane.b32.xlu0 %v7149, 16
    %v7218 = vpop.permute.xlu0 %7217
    %7219 = vrot.lane.b32.xlu0 %v7150, 16
    %v7220 = vpop.permute.xlu0 %7219
    %7221 = vrot.lane.b32.xlu0 %v7151, 16
    %v7222 = vpop.permute.xlu0 %7221
    %7223 = vrot.lane.b32.xlu0 %v7152, 16
    %v7224 = vpop.permute.xlu0 %7223
    %7225 = vrot.lane.b32.xlu0 %v7153, 16
    %v7226 = vpop.permute.xlu0 %7225
    %7227 = vrot.lane.b32.xlu0 %v7154, 16
    %v7228 = vpop.permute.xlu0 %7227
    %7229 = vrot.lane.b32.xlu0 %v7155, 16
    %v7230 = vpop.permute.xlu0 %7229
    %7231 = vrot.lane.b32.xlu0 %v7156, 16
    %v7232 = vpop.permute.xlu0 %7231
    %7233 = vrot.lane.b32.xlu0 %v7157, 16
    %v7234 = vpop.permute.xlu0 %7233
    %7235 = vrot.lane.b32.xlu0 %v7158, 16
    %v7236 = vpop.permute.xlu0 %7235
    %7237 = vrot.lane.b32.xlu0 %v7159, 16
    %v7238 = vpop.permute.xlu0 %7237
    %7239 = vrot.lane.b32.xlu0 %v7160, 16
    %v7240 = vpop.permute.xlu0 %7239
    %7241 = vrot.lane.b32.xlu0 %v7161, 16
    %v7242 = vpop.permute.xlu0 %7241
    %7243 = vrot.lane.b32.xlu0 %v7162, 16
    %v7244 = vpop.permute.xlu0 %7243
    %7245 = vrot.lane.b32.xlu0 %v7163, 16
    %v7246 = vpop.permute.xlu0 %7245
    %7247 = vrot.lane.b32.xlu0 %v7164, 16
    %v7248 = vpop.permute.xlu0 %7247
    %7249 = vrot.lane.b32.xlu0 %v7165, 16
    %v7250 = vpop.permute.xlu0 %7249
    %7251 = vrot.lane.b32.xlu0 %v7166, 16
    %v7252 = vpop.permute.xlu0 %7251
    %7253 = vrot.lane.b32.xlu0 %v7167, 16
    %v7254 = vpop.permute.xlu0 %7253
    %7255 = vrot.lane.b32.xlu0 %v7168, 16
    %v7256 = vpop.permute.xlu0 %7255
    %7257 = vrot.lane.b32.xlu0 %v7169, 16
    %v7258 = vpop.permute.xlu0 %7257
    %7259 = vrot.lane.b32.xlu0 %v7170, 16
    %v7260 = vpop.permute.xlu0 %7259
    %7261 = vrot.lane.b32.xlu0 %v7171, 16
    %v7262 = vpop.permute.xlu0 %7261
    %7263 = vrot.lane.b32.xlu0 %v7172, 16
    %v7264 = vpop.permute.xlu0 %7263
    %7265 = vrot.lane.b32.xlu0 %v7173, 16
    %v7266 = vpop.permute.xlu0 %7265
    %7267 = vrot.lane.b32.xlu0 %v7174, 16
    %v7268 = vpop.permute.xlu0 %7267
    %7269 = vrot.lane.b32.xlu0 %v7175, 16
    %v7270 = vpop.permute.xlu0 %7269
    %7271 = vrot.lane.b32.xlu0 %v7176, 16
    %v7272 = vpop.permute.xlu0 %7271
    %v7305 = vadd.f32 %v6985, %v7210
    %v7306 = vadd.f32 %v6986, %v7212
    %v7307 = vadd.f32 %v6987, %v7214
    %v7308 = vadd.f32 %v6988, %v7216
    %v7309 = vadd.f32 %v6989, %v7218
    %v7310 = vadd.f32 %v6990, %v7220
    %v7311 = vadd.f32 %v6991, %v7222
    %v7312 = vadd.f32 %v6992, %v7224
    %v7313 = vadd.f32 %v6993, %v7226
    %v7314 = vadd.f32 %v6994, %v7228
    %v7315 = vadd.f32 %v6995, %v7230
    %v7316 = vadd.f32 %v6996, %v7232
    %v7317 = vadd.f32 %v6997, %v7234
    %v7318 = vadd.f32 %v6998, %v7236
    %v7319 = vadd.f32 %v6999, %v7238
    %v7320 = vadd.f32 %v7000, %v7240
    %v7321 = vadd.f32 %v7001, %v7242
    %v7322 = vadd.f32 %v7002, %v7244
    %v7323 = vadd.f32 %v7003, %v7246
    %v7324 = vadd.f32 %v7004, %v7248
    %v7325 = vadd.f32 %v7005, %v7250
    %v7326 = vadd.f32 %v7006, %v7252
    %v7327 = vadd.f32 %v7007, %v7254
    %v7328 = vadd.f32 %v7008, %v7256
    %v7329 = vadd.f32 %v7009, %v7258
    %v7330 = vadd.f32 %v7010, %v7260
    %v7331 = vadd.f32 %v7011, %v7262
    %v7332 = vadd.f32 %v7012, %v7264
    %v7333 = vadd.f32 %v7013, %v7266
    %v7334 = vadd.f32 %v7014, %v7268
    %v7335 = vadd.f32 %v7015, %v7270
    %v7336 = vadd.f32 %v7016, %v7272
    %v7337 = vsub.f32 %v4222, %v4543
    %v7338 = vsub.f32 %v4223, %v4544
    %v7339 = vsub.f32 %v4224, %v4545
    %v7340 = vsub.f32 %v4225, %v4546
    %v7341 = vsub.f32 %v4226, %v4547
    %v7342 = vsub.f32 %v4227, %v4548
    %v7343 = vsub.f32 %v4228, %v4549
    %v7344 = vsub.f32 %v4229, %v4550
    %v7345 = vsub.f32 %v4230, %v4551
    %v7346 = vsub.f32 %v4231, %v4552
    %v7347 = vsub.f32 %v4232, %v4553
    %v7348 = vsub.f32 %v4233, %v4554
    %v7349 = vsub.f32 %v4234, %v4555
    %v7350 = vsub.f32 %v4235, %v4556
    %v7351 = vsub.f32 %v4236, %v4557
    %v7352 = vsub.f32 %v4237, %v4558
    %v7353 = vsub.f32 %v4238, %v4559
    %v7354 = vsub.f32 %v4239, %v4560
    %v7355 = vsub.f32 %v4240, %v4561
    %v7356 = vsub.f32 %v4241, %v4562
    %v7357 = vsub.f32 %v4242, %v4563
    %v7358 = vsub.f32 %v4243, %v4564
    %v7359 = vsub.f32 %v4244, %v4565
    %v7360 = vsub.f32 %v4245, %v4566
    %v7361 = vsub.f32 %v4246, %v4567
    %v7362 = vsub.f32 %v4247, %v4568
    %v7363 = vsub.f32 %v4248, %v4569
    %v7364 = vsub.f32 %v4249, %v4570
    %v7365 = vsub.f32 %v4250, %v4571
    %v7366 = vsub.f32 %v4251, %v4572
    %v7367 = vsub.f32 %v4252, %v4573
    %v7368 = vsub.f32 %v4253, %v4574
    %7401 = vrot.lane.b32.xlu0 %v4190, 127
    %v7402 = vpop.permute.xlu0 %7401
    %7403 = vrot.lane.b32.xlu0 %v4191, 127
    %v7404 = vpop.permute.xlu0 %7403
    %7405 = vrot.lane.b32.xlu0 %v4192, 127
    %v7406 = vpop.permute.xlu0 %7405
    %7407 = vrot.lane.b32.xlu0 %v4193, 127
    %v7408 = vpop.permute.xlu0 %7407
    %7409 = vrot.lane.b32.xlu0 %v4194, 127
    %v7410 = vpop.permute.xlu0 %7409
    %7411 = vrot.lane.b32.xlu0 %v4195, 127
    %v7412 = vpop.permute.xlu0 %7411
    %7413 = vrot.lane.b32.xlu0 %v4196, 127
    %v7414 = vpop.permute.xlu0 %7413
    %7415 = vrot.lane.b32.xlu0 %v4197, 127
    %v7416 = vpop.permute.xlu0 %7415
    %7417 = vrot.lane.b32.xlu0 %v4198, 127
    %v7418 = vpop.permute.xlu0 %7417
    %7419 = vrot.lane.b32.xlu0 %v4199, 127
    %v7420 = vpop.permute.xlu0 %7419
    %7421 = vrot.lane.b32.xlu0 %v4200, 127
    %v7422 = vpop.permute.xlu0 %7421
    %7423 = vrot.lane.b32.xlu0 %v4201, 127
    %v7424 = vpop.permute.xlu0 %7423
    %7425 = vrot.lane.b32.xlu0 %v4202, 127
    %v7426 = vpop.permute.xlu0 %7425
    %7427 = vrot.lane.b32.xlu0 %v4203, 127
    %v7428 = vpop.permute.xlu0 %7427
    %7429 = vrot.lane.b32.xlu0 %v4204, 127
    %v7430 = vpop.permute.xlu0 %7429
    %7431 = vrot.lane.b32.xlu0 %v4205, 127
    %v7432 = vpop.permute.xlu0 %7431
    %7433 = vrot.lane.b32.xlu0 %v4206, 127
    %v7434 = vpop.permute.xlu0 %7433
    %7435 = vrot.lane.b32.xlu0 %v4207, 127
    %v7436 = vpop.permute.xlu0 %7435
    %7437 = vrot.lane.b32.xlu0 %v4208, 127
    %v7438 = vpop.permute.xlu0 %7437
    %7439 = vrot.lane.b32.xlu0 %v4209, 127
    %v7440 = vpop.permute.xlu0 %7439
    %7441 = vrot.lane.b32.xlu0 %v4210, 127
    %v7442 = vpop.permute.xlu0 %7441
    %7443 = vrot.lane.b32.xlu0 %v4211, 127
    %v7444 = vpop.permute.xlu0 %7443
    %7445 = vrot.lane.b32.xlu0 %v4212, 127
    %v7446 = vpop.permute.xlu0 %7445
    %7447 = vrot.lane.b32.xlu0 %v4213, 127
    %v7448 = vpop.permute.xlu0 %7447
    %7449 = vrot.lane.b32.xlu0 %v4214, 127
    %v7450 = vpop.permute.xlu0 %7449
    %7451 = vrot.lane.b32.xlu0 %v4215, 127
    %v7452 = vpop.permute.xlu0 %7451
    %7453 = vrot.lane.b32.xlu0 %v4216, 127
    %v7454 = vpop.permute.xlu0 %7453
    %7455 = vrot.lane.b32.xlu0 %v4217, 127
    %v7456 = vpop.permute.xlu0 %7455
    %7457 = vrot.lane.b32.xlu0 %v4218, 127
    %v7458 = vpop.permute.xlu0 %7457
    %7459 = vrot.lane.b32.xlu0 %v4219, 127
    %v7460 = vpop.permute.xlu0 %7459
    %7461 = vrot.lane.b32.xlu0 %v4220, 127
    %v7462 = vpop.permute.xlu0 %7461
    %7463 = vrot.lane.b32.xlu0 %v4221, 127
    %v7464 = vpop.permute.xlu0 %7463
    %v7497 = vmul.f32 %v4190, %v7402
    %v7498 = vmul.f32 %v4191, %v7404
    %v7499 = vmul.f32 %v4192, %v7406
    %v7500 = vmul.f32 %v4193, %v7408
    %v7501 = vmul.f32 %v4194, %v7410
    %v7502 = vmul.f32 %v4195, %v7412
    %v7503 = vmul.f32 %v4196, %v7414
    %v7504 = vmul.f32 %v4197, %v7416
    %v7505 = vmul.f32 %v4198, %v7418
    %v7506 = vmul.f32 %v4199, %v7420
    %v7507 = vmul.f32 %v4200, %v7422
    %v7508 = vmul.f32 %v4201, %v7424
    %v7509 = vmul.f32 %v4202, %v7426
    %v7510 = vmul.f32 %v4203, %v7428
    %v7511 = vmul.f32 %v4204, %v7430
    %v7512 = vmul.f32 %v4205, %v7432
    %v7513 = vmul.f32 %v4206, %v7434
    %v7514 = vmul.f32 %v4207, %v7436
    %v7515 = vmul.f32 %v4208, %v7438
    %v7516 = vmul.f32 %v4209, %v7440
    %v7517 = vmul.f32 %v4210, %v7442
    %v7518 = vmul.f32 %v4211, %v7444
    %v7519 = vmul.f32 %v4212, %v7446
    %v7520 = vmul.f32 %v4213, %v7448
    %v7521 = vmul.f32 %v4214, %v7450
    %v7522 = vmul.f32 %v4215, %v7452
    %v7523 = vmul.f32 %v4216, %v7454
    %v7524 = vmul.f32 %v4217, %v7456
    %v7525 = vmul.f32 %v4218, %v7458
    %v7526 = vmul.f32 %v4219, %v7460
    %v7527 = vmul.f32 %v4220, %v7462
    %v7528 = vmul.f32 %v4221, %v7464
    %7529 = vrot.lane.b32.xlu0 %v4190, 126
    %v7530 = vpop.permute.xlu0 %7529
    %7531 = vrot.lane.b32.xlu0 %v4191, 126
    %v7532 = vpop.permute.xlu0 %7531
    %7533 = vrot.lane.b32.xlu0 %v4192, 126
    %v7534 = vpop.permute.xlu0 %7533
    %7535 = vrot.lane.b32.xlu0 %v4193, 126
    %v7536 = vpop.permute.xlu0 %7535
    %7537 = vrot.lane.b32.xlu0 %v4194, 126
    %v7538 = vpop.permute.xlu0 %7537
    %7539 = vrot.lane.b32.xlu0 %v4195, 126
    %v7540 = vpop.permute.xlu0 %7539
    %7541 = vrot.lane.b32.xlu0 %v4196, 126
    %v7542 = vpop.permute.xlu0 %7541
    %7543 = vrot.lane.b32.xlu0 %v4197, 126
    %v7544 = vpop.permute.xlu0 %7543
    %7545 = vrot.lane.b32.xlu0 %v4198, 126
    %v7546 = vpop.permute.xlu0 %7545
    %7547 = vrot.lane.b32.xlu0 %v4199, 126
    %v7548 = vpop.permute.xlu0 %7547
    %7549 = vrot.lane.b32.xlu0 %v4200, 126
    %v7550 = vpop.permute.xlu0 %7549
    %7551 = vrot.lane.b32.xlu0 %v4201, 126
    %v7552 = vpop.permute.xlu0 %7551
    %7553 = vrot.lane.b32.xlu0 %v4202, 126
    %v7554 = vpop.permute.xlu0 %7553
    %7555 = vrot.lane.b32.xlu0 %v4203, 126
    %v7556 = vpop.permute.xlu0 %7555
    %7557 = vrot.lane.b32.xlu0 %v4204, 126
    %v7558 = vpop.permute.xlu0 %7557
    %7559 = vrot.lane.b32.xlu0 %v4205, 126
    %v7560 = vpop.permute.xlu0 %7559
    %7561 = vrot.lane.b32.xlu0 %v4206, 126
    %v7562 = vpop.permute.xlu0 %7561
    %7563 = vrot.lane.b32.xlu0 %v4207, 126
    %v7564 = vpop.permute.xlu0 %7563
    %7565 = vrot.lane.b32.xlu0 %v4208, 126
    %v7566 = vpop.permute.xlu0 %7565
    %7567 = vrot.lane.b32.xlu0 %v4209, 126
    %v7568 = vpop.permute.xlu0 %7567
    %7569 = vrot.lane.b32.xlu0 %v4210, 126
    %v7570 = vpop.permute.xlu0 %7569
    %7571 = vrot.lane.b32.xlu0 %v4211, 126
    %v7572 = vpop.permute.xlu0 %7571
    %7573 = vrot.lane.b32.xlu0 %v4212, 126
    %v7574 = vpop.permute.xlu0 %7573
    %7575 = vrot.lane.b32.xlu0 %v4213, 126
    %v7576 = vpop.permute.xlu0 %7575
    %7577 = vrot.lane.b32.xlu0 %v4214, 126
    %v7578 = vpop.permute.xlu0 %7577
    %7579 = vrot.lane.b32.xlu0 %v4215, 126
    %v7580 = vpop.permute.xlu0 %7579
    %7581 = vrot.lane.b32.xlu0 %v4216, 126
    %v7582 = vpop.permute.xlu0 %7581
    %7583 = vrot.lane.b32.xlu0 %v4217, 126
    %v7584 = vpop.permute.xlu0 %7583
    %7585 = vrot.lane.b32.xlu0 %v4218, 126
    %v7586 = vpop.permute.xlu0 %7585
    %7587 = vrot.lane.b32.xlu0 %v4219, 126
    %v7588 = vpop.permute.xlu0 %7587
    %7589 = vrot.lane.b32.xlu0 %v4220, 126
    %v7590 = vpop.permute.xlu0 %7589
    %7591 = vrot.lane.b32.xlu0 %v4221, 126
    %v7592 = vpop.permute.xlu0 %7591
    %v7625 = vmul.f32 %v4190, %v7530
    %v7626 = vmul.f32 %v4191, %v7532
    %v7627 = vmul.f32 %v4192, %v7534
    %v7628 = vmul.f32 %v4193, %v7536
    %v7629 = vmul.f32 %v4194, %v7538
    %v7630 = vmul.f32 %v4195, %v7540
    %v7631 = vmul.f32 %v4196, %v7542
    %v7632 = vmul.f32 %v4197, %v7544
    %v7633 = vmul.f32 %v4198, %v7546
    %v7634 = vmul.f32 %v4199, %v7548
    %v7635 = vmul.f32 %v4200, %v7550
    %v7636 = vmul.f32 %v4201, %v7552
    %v7637 = vmul.f32 %v4202, %v7554
    %v7638 = vmul.f32 %v4203, %v7556
    %v7639 = vmul.f32 %v4204, %v7558
    %v7640 = vmul.f32 %v4205, %v7560
    %v7641 = vmul.f32 %v4206, %v7562
    %v7642 = vmul.f32 %v4207, %v7564
    %v7643 = vmul.f32 %v4208, %v7566
    %v7644 = vmul.f32 %v4209, %v7568
    %v7645 = vmul.f32 %v4210, %v7570
    %v7646 = vmul.f32 %v4211, %v7572
    %v7647 = vmul.f32 %v4212, %v7574
    %v7648 = vmul.f32 %v4213, %v7576
    %v7649 = vmul.f32 %v4214, %v7578
    %v7650 = vmul.f32 %v4215, %v7580
    %v7651 = vmul.f32 %v4216, %v7582
    %v7652 = vmul.f32 %v4217, %v7584
    %v7653 = vmul.f32 %v4218, %v7586
    %v7654 = vmul.f32 %v4219, %v7588
    %v7655 = vmul.f32 %v4220, %v7590
    %v7656 = vmul.f32 %v4221, %v7592
    %7689 = vrot.lane.b32.xlu0 %v4543, 1
    %v7690 = vpop.permute.xlu0 %7689
    %7691 = vrot.lane.b32.xlu0 %v4544, 1
    %v7692 = vpop.permute.xlu0 %7691
    %7693 = vrot.lane.b32.xlu0 %v4545, 1
    %v7694 = vpop.permute.xlu0 %7693
    %7695 = vrot.lane.b32.xlu0 %v4546, 1
    %v7696 = vpop.permute.xlu0 %7695
    %7697 = vrot.lane.b32.xlu0 %v4547, 1
    %v7698 = vpop.permute.xlu0 %7697
    %7699 = vrot.lane.b32.xlu0 %v4548, 1
    %v7700 = vpop.permute.xlu0 %7699
    %7701 = vrot.lane.b32.xlu0 %v4549, 1
    %v7702 = vpop.permute.xlu0 %7701
    %7703 = vrot.lane.b32.xlu0 %v4550, 1
    %v7704 = vpop.permute.xlu0 %7703
    %7705 = vrot.lane.b32.xlu0 %v4551, 1
    %v7706 = vpop.permute.xlu0 %7705
    %7707 = vrot.lane.b32.xlu0 %v4552, 1
    %v7708 = vpop.permute.xlu0 %7707
    %7709 = vrot.lane.b32.xlu0 %v4553, 1
    %v7710 = vpop.permute.xlu0 %7709
    %7711 = vrot.lane.b32.xlu0 %v4554, 1
    %v7712 = vpop.permute.xlu0 %7711
    %7713 = vrot.lane.b32.xlu0 %v4555, 1
    %v7714 = vpop.permute.xlu0 %7713
    %7715 = vrot.lane.b32.xlu0 %v4556, 1
    %v7716 = vpop.permute.xlu0 %7715
    %7717 = vrot.lane.b32.xlu0 %v4557, 1
    %v7718 = vpop.permute.xlu0 %7717
    %7719 = vrot.lane.b32.xlu0 %v4558, 1
    %v7720 = vpop.permute.xlu0 %7719
    %7721 = vrot.lane.b32.xlu0 %v4559, 1
    %v7722 = vpop.permute.xlu0 %7721
    %7723 = vrot.lane.b32.xlu0 %v4560, 1
    %v7724 = vpop.permute.xlu0 %7723
    %7725 = vrot.lane.b32.xlu0 %v4561, 1
    %v7726 = vpop.permute.xlu0 %7725
    %7727 = vrot.lane.b32.xlu0 %v4562, 1
    %v7728 = vpop.permute.xlu0 %7727
    %7729 = vrot.lane.b32.xlu0 %v4563, 1
    %v7730 = vpop.permute.xlu0 %7729
    %7731 = vrot.lane.b32.xlu0 %v4564, 1
    %v7732 = vpop.permute.xlu0 %7731
    %7733 = vrot.lane.b32.xlu0 %v4565, 1
    %v7734 = vpop.permute.xlu0 %7733
    %7735 = vrot.lane.b32.xlu0 %v4566, 1
    %v7736 = vpop.permute.xlu0 %7735
    %7737 = vrot.lane.b32.xlu0 %v4567, 1
    %v7738 = vpop.permute.xlu0 %7737
    %7739 = vrot.lane.b32.xlu0 %v4568, 1
    %v7740 = vpop.permute.xlu0 %7739
    %7741 = vrot.lane.b32.xlu0 %v4569, 1
    %v7742 = vpop.permute.xlu0 %7741
    %7743 = vrot.lane.b32.xlu0 %v4570, 1
    %v7744 = vpop.permute.xlu0 %7743
    %7745 = vrot.lane.b32.xlu0 %v4571, 1
    %v7746 = vpop.permute.xlu0 %7745
    %7747 = vrot.lane.b32.xlu0 %v4572, 1
    %v7748 = vpop.permute.xlu0 %7747
    %7749 = vrot.lane.b32.xlu0 %v4573, 1
    %v7750 = vpop.permute.xlu0 %7749
    %7751 = vrot.lane.b32.xlu0 %v4574, 1
    %v7752 = vpop.permute.xlu0 %7751
    %v7785 = vsub.f32 %v4222, %v7690
    %v7786 = vsub.f32 %v4223, %v7692
    %v7787 = vsub.f32 %v4224, %v7694
    %v7788 = vsub.f32 %v4225, %v7696
    %v7789 = vsub.f32 %v4226, %v7698
    %v7790 = vsub.f32 %v4227, %v7700
    %v7791 = vsub.f32 %v4228, %v7702
    %v7792 = vsub.f32 %v4229, %v7704
    %v7793 = vsub.f32 %v4230, %v7706
    %v7794 = vsub.f32 %v4231, %v7708
    %v7795 = vsub.f32 %v4232, %v7710
    %v7796 = vsub.f32 %v4233, %v7712
    %v7797 = vsub.f32 %v4234, %v7714
    %v7798 = vsub.f32 %v4235, %v7716
    %v7799 = vsub.f32 %v4236, %v7718
    %v7800 = vsub.f32 %v4237, %v7720
    %v7801 = vsub.f32 %v4238, %v7722
    %v7802 = vsub.f32 %v4239, %v7724
    %v7803 = vsub.f32 %v4240, %v7726
    %v7804 = vsub.f32 %v4241, %v7728
    %v7805 = vsub.f32 %v4242, %v7730
    %v7806 = vsub.f32 %v4243, %v7732
    %v7807 = vsub.f32 %v4244, %v7734
    %v7808 = vsub.f32 %v4245, %v7736
    %v7809 = vsub.f32 %v4246, %v7738
    %v7810 = vsub.f32 %v4247, %v7740
    %v7811 = vsub.f32 %v4248, %v7742
    %v7812 = vsub.f32 %v4249, %v7744
    %v7813 = vsub.f32 %v4250, %v7746
    %v7814 = vsub.f32 %v4251, %v7748
    %v7815 = vsub.f32 %v4252, %v7750
    %v7816 = vsub.f32 %v4253, %v7752
    %7817 = vset.pattern.permute.xlu0 1
    %7818 = vperm.xlu0 %7817, %v4190
    %v7819 = vpop.permute.xlu0 %7818
    %7821 = vset.pattern.permute.xlu0 1
    %7822 = vperm.xlu0 %7821, %v4191
    %v7823 = vpop.permute.xlu0 %7822
    %7825 = vset.pattern.permute.xlu0 1
    %7826 = vperm.xlu0 %7825, %v4192
    %v7827 = vpop.permute.xlu0 %7826
    %7829 = vset.pattern.permute.xlu0 1
    %7830 = vperm.xlu0 %7829, %v4193
    %v7831 = vpop.permute.xlu0 %7830
    %7833 = vset.pattern.permute.xlu0 1
    %7834 = vperm.xlu0 %7833, %v4194
    %v7835 = vpop.permute.xlu0 %7834
    %7837 = vset.pattern.permute.xlu0 1
    %7838 = vperm.xlu0 %7837, %v4195
    %v7839 = vpop.permute.xlu0 %7838
    %7841 = vset.pattern.permute.xlu0 1
    %7842 = vperm.xlu0 %7841, %v4196
    %v7843 = vpop.permute.xlu0 %7842
    %7845 = vset.pattern.permute.xlu0 1
    %7846 = vperm.xlu0 %7845, %v4197
    %v7847 = vpop.permute.xlu0 %7846
    %7849 = vset.pattern.permute.xlu0 1
    %7850 = vperm.xlu0 %7849, %v4198
    %v7851 = vpop.permute.xlu0 %7850
    %7853 = vset.pattern.permute.xlu0 1
    %7854 = vperm.xlu0 %7853, %v4199
    %v7855 = vpop.permute.xlu0 %7854
    %7857 = vset.pattern.permute.xlu0 1
    %7858 = vperm.xlu0 %7857, %v4200
    %v7859 = vpop.permute.xlu0 %7858
    %7861 = vset.pattern.permute.xlu0 1
    %7862 = vperm.xlu0 %7861, %v4201
    %v7863 = vpop.permute.xlu0 %7862
    %7865 = vset.pattern.permute.xlu0 1
    %7866 = vperm.xlu0 %7865, %v4202
    %v7867 = vpop.permute.xlu0 %7866
    %7869 = vset.pattern.permute.xlu0 1
    %7870 = vperm.xlu0 %7869, %v4203
    %v7871 = vpop.permute.xlu0 %7870
    %7873 = vset.pattern.permute.xlu0 1
    %7874 = vperm.xlu0 %7873, %v4204
    %v7875 = vpop.permute.xlu0 %7874
    %7877 = vset.pattern.permute.xlu0 1
    %7878 = vperm.xlu0 %7877, %v4205
    %v7879 = vpop.permute.xlu0 %7878
    %7881 = vset.pattern.permute.xlu0 1
    %7882 = vperm.xlu0 %7881, %v4206
    %v7883 = vpop.permute.xlu0 %7882
    %7885 = vset.pattern.permute.xlu0 1
    %7886 = vperm.xlu0 %7885, %v4207
    %v7887 = vpop.permute.xlu0 %7886
    %7889 = vset.pattern.permute.xlu0 1
    %7890 = vperm.xlu0 %7889, %v4208
    %v7891 = vpop.permute.xlu0 %7890
    %7893 = vset.pattern.permute.xlu0 1
    %7894 = vperm.xlu0 %7893, %v4209
    %v7895 = vpop.permute.xlu0 %7894
    %7897 = vset.pattern.permute.xlu0 1
    %7898 = vperm.xlu0 %7897, %v4210
    %v7899 = vpop.permute.xlu0 %7898
    %7901 = vset.pattern.permute.xlu0 1
    %7902 = vperm.xlu0 %7901, %v4211
    %v7903 = vpop.permute.xlu0 %7902
    %7905 = vset.pattern.permute.xlu0 1
    %7906 = vperm.xlu0 %7905, %v4212
    %v7907 = vpop.permute.xlu0 %7906
    %7909 = vset.pattern.permute.xlu0 1
    %7910 = vperm.xlu0 %7909, %v4213
    %v7911 = vpop.permute.xlu0 %7910
    %7913 = vset.pattern.permute.xlu0 1
    %7914 = vperm.xlu0 %7913, %v4214
    %v7915 = vpop.permute.xlu0 %7914
    %7917 = vset.pattern.permute.xlu0 1
    %7918 = vperm.xlu0 %7917, %v4215
    %v7919 = vpop.permute.xlu0 %7918
    %7921 = vset.pattern.permute.xlu0 1
    %7922 = vperm.xlu0 %7921, %v4216
    %v7923 = vpop.permute.xlu0 %7922
    %7925 = vset.pattern.permute.xlu0 1
    %7926 = vperm.xlu0 %7925, %v4217
    %v7927 = vpop.permute.xlu0 %7926
    %7929 = vset.pattern.permute.xlu0 1
    %7930 = vperm.xlu0 %7929, %v4218
    %v7931 = vpop.permute.xlu0 %7930
    %7933 = vset.pattern.permute.xlu0 1
    %7934 = vperm.xlu0 %7933, %v4219
    %v7935 = vpop.permute.xlu0 %7934
    %7937 = vset.pattern.permute.xlu0 1
    %7938 = vperm.xlu0 %7937, %v4220
    %v7939 = vpop.permute.xlu0 %7938
    %7941 = vset.pattern.permute.xlu0 1
    %7942 = vperm.xlu0 %7941, %v4221
    %v7943 = vpop.permute.xlu0 %7942
    %v7945 = vmul.f32 %v7819, %v7305
    %v7946 = vmul.f32 %v7823, %v7306
    %v7947 = vmul.f32 %v7827, %v7307
    %v7948 = vmul.f32 %v7831, %v7308
    %v7949 = vmul.f32 %v7835, %v7309
    %v7950 = vmul.f32 %v7839, %v7310
    %v7951 = vmul.f32 %v7843, %v7311
    %v7952 = vmul.f32 %v7847, %v7312
    %v7953 = vmul.f32 %v7851, %v7313
    %v7954 = vmul.f32 %v7855, %v7314
    %v7955 = vmul.f32 %v7859, %v7315
    %v7956 = vmul.f32 %v7863, %v7316
    %v7957 = vmul.f32 %v7867, %v7317
    %v7958 = vmul.f32 %v7871, %v7318
    %v7959 = vmul.f32 %v7875, %v7319
    %v7960 = vmul.f32 %v7879, %v7320
    %v7961 = vmul.f32 %v7883, %v7321
    %v7962 = vmul.f32 %v7887, %v7322
    %v7963 = vmul.f32 %v7891, %v7323
    %v7964 = vmul.f32 %v7895, %v7324
    %v7965 = vmul.f32 %v7899, %v7325
    %v7966 = vmul.f32 %v7903, %v7326
    %v7967 = vmul.f32 %v7907, %v7327
    %v7968 = vmul.f32 %v7911, %v7328
    %v7969 = vmul.f32 %v7915, %v7329
    %v7970 = vmul.f32 %v7919, %v7330
    %v7971 = vmul.f32 %v7923, %v7331
    %v7972 = vmul.f32 %v7927, %v7332
    %v7973 = vmul.f32 %v7931, %v7333
    %v7974 = vmul.f32 %v7935, %v7334
    %v7975 = vmul.f32 %v7939, %v7335
    %v7976 = vmul.f32 %v7943, %v7336
    %7977 = vset.pattern.permute.xlu0 2
    %7978 = vperm.xlu0 %7977, %v4190
    %v7979 = vpop.permute.xlu0 %7978
    %7981 = vset.pattern.permute.xlu0 2
    %7982 = vperm.xlu0 %7981, %v4191
    %v7983 = vpop.permute.xlu0 %7982
    %7985 = vset.pattern.permute.xlu0 2
    %7986 = vperm.xlu0 %7985, %v4192
    %v7987 = vpop.permute.xlu0 %7986
    %7989 = vset.pattern.permute.xlu0 2
    %7990 = vperm.xlu0 %7989, %v4193
    %v7991 = vpop.permute.xlu0 %7990
    %7993 = vset.pattern.permute.xlu0 2
    %7994 = vperm.xlu0 %7993, %v4194
    %v7995 = vpop.permute.xlu0 %7994
    %7997 = vset.pattern.permute.xlu0 2
    %7998 = vperm.xlu0 %7997, %v4195
    %v7999 = vpop.permute.xlu0 %7998
    %8001 = vset.pattern.permute.xlu0 2
    %8002 = vperm.xlu0 %8001, %v4196
    %v8003 = vpop.permute.xlu0 %8002
    %8005 = vset.pattern.permute.xlu0 2
    %8006 = vperm.xlu0 %8005, %v4197
    %v8007 = vpop.permute.xlu0 %8006
    %8009 = vset.pattern.permute.xlu0 2
    %8010 = vperm.xlu0 %8009, %v4198
    %v8011 = vpop.permute.xlu0 %8010
    %8013 = vset.pattern.permute.xlu0 2
    %8014 = vperm.xlu0 %8013, %v4199
    %v8015 = vpop.permute.xlu0 %8014
    %8017 = vset.pattern.permute.xlu0 2
    %8018 = vperm.xlu0 %8017, %v4200
    %v8019 = vpop.permute.xlu0 %8018
    %8021 = vset.pattern.permute.xlu0 2
    %8022 = vperm.xlu0 %8021, %v4201
    %v8023 = vpop.permute.xlu0 %8022
    %8025 = vset.pattern.permute.xlu0 2
    %8026 = vperm.xlu0 %8025, %v4202
    %v8027 = vpop.permute.xlu0 %8026
    %8029 = vset.pattern.permute.xlu0 2
    %8030 = vperm.xlu0 %8029, %v4203
    %v8031 = vpop.permute.xlu0 %8030
    %8033 = vset.pattern.permute.xlu0 2
    %8034 = vperm.xlu0 %8033, %v4204
    %v8035 = vpop.permute.xlu0 %8034
    %8037 = vset.pattern.permute.xlu0 2
    %8038 = vperm.xlu0 %8037, %v4205
    %v8039 = vpop.permute.xlu0 %8038
    %8041 = vset.pattern.permute.xlu0 2
    %8042 = vperm.xlu0 %8041, %v4206
    %v8043 = vpop.permute.xlu0 %8042
    %8045 = vset.pattern.permute.xlu0 2
    %8046 = vperm.xlu0 %8045, %v4207
    %v8047 = vpop.permute.xlu0 %8046
    %8049 = vset.pattern.permute.xlu0 2
    %8050 = vperm.xlu0 %8049, %v4208
    %v8051 = vpop.permute.xlu0 %8050
    %8053 = vset.pattern.permute.xlu0 2
    %8054 = vperm.xlu0 %8053, %v4209
    %v8055 = vpop.permute.xlu0 %8054
    %8057 = vset.pattern.permute.xlu0 2
    %8058 = vperm.xlu0 %8057, %v4210
    %v8059 = vpop.permute.xlu0 %8058
    %8061 = vset.pattern.permute.xlu0 2
    %8062 = vperm.xlu0 %8061, %v4211
    %v8063 = vpop.permute.xlu0 %8062
    %8065 = vset.pattern.permute.xlu0 2
    %8066 = vperm.xlu0 %8065, %v4212
    %v8067 = vpop.permute.xlu0 %8066
    %8069 = vset.pattern.permute.xlu0 2
    %8070 = vperm.xlu0 %8069, %v4213
    %v8071 = vpop.permute.xlu0 %8070
    %8073 = vset.pattern.permute.xlu0 2
    %8074 = vperm.xlu0 %8073, %v4214
    %v8075 = vpop.permute.xlu0 %8074
    %8077 = vset.pattern.permute.xlu0 2
    %8078 = vperm.xlu0 %8077, %v4215
    %v8079 = vpop.permute.xlu0 %8078
    %8081 = vset.pattern.permute.xlu0 2
    %8082 = vperm.xlu0 %8081, %v4216
    %v8083 = vpop.permute.xlu0 %8082
    %8085 = vset.pattern.permute.xlu0 2
    %8086 = vperm.xlu0 %8085, %v4217
    %v8087 = vpop.permute.xlu0 %8086
    %8089 = vset.pattern.permute.xlu0 2
    %8090 = vperm.xlu0 %8089, %v4218
    %v8091 = vpop.permute.xlu0 %8090
    %8093 = vset.pattern.permute.xlu0 2
    %8094 = vperm.xlu0 %8093, %v4219
    %v8095 = vpop.permute.xlu0 %8094
    %8097 = vset.pattern.permute.xlu0 2
    %8098 = vperm.xlu0 %8097, %v4220
    %v8099 = vpop.permute.xlu0 %8098
    %8101 = vset.pattern.permute.xlu0 2
    %8102 = vperm.xlu0 %8101, %v4221
    %v8103 = vpop.permute.xlu0 %8102
    %v8105 = vmul.f32 %v7979, %v7305
    %v8106 = vmul.f32 %v7983, %v7306
    %v8107 = vmul.f32 %v7987, %v7307
    %v8108 = vmul.f32 %v7991, %v7308
    %v8109 = vmul.f32 %v7995, %v7309
    %v8110 = vmul.f32 %v7999, %v7310
    %v8111 = vmul.f32 %v8003, %v7311
    %v8112 = vmul.f32 %v8007, %v7312
    %v8113 = vmul.f32 %v8011, %v7313
    %v8114 = vmul.f32 %v8015, %v7314
    %v8115 = vmul.f32 %v8019, %v7315
    %v8116 = vmul.f32 %v8023, %v7316
    %v8117 = vmul.f32 %v8027, %v7317
    %v8118 = vmul.f32 %v8031, %v7318
    %v8119 = vmul.f32 %v8035, %v7319
    %v8120 = vmul.f32 %v8039, %v7320
    %v8121 = vmul.f32 %v8043, %v7321
    %v8122 = vmul.f32 %v8047, %v7322
    %v8123 = vmul.f32 %v8051, %v7323
    %v8124 = vmul.f32 %v8055, %v7324
    %v8125 = vmul.f32 %v8059, %v7325
    %v8126 = vmul.f32 %v8063, %v7326
    %v8127 = vmul.f32 %v8067, %v7327
    %v8128 = vmul.f32 %v8071, %v7328
    %v8129 = vmul.f32 %v8075, %v7329
    %v8130 = vmul.f32 %v8079, %v7330
    %v8131 = vmul.f32 %v8083, %v7331
    %v8132 = vmul.f32 %v8087, %v7332
    %v8133 = vmul.f32 %v8091, %v7333
    %v8134 = vmul.f32 %v8095, %v7334
    %v8135 = vmul.f32 %v8099, %v7335
    %v8136 = vmul.f32 %v8103, %v7336
    %8137 = vset.pattern.permute.xlu0 3
    %8138 = vperm.xlu0 %8137, %v4190
    %v8139 = vpop.permute.xlu0 %8138
    %8141 = vset.pattern.permute.xlu0 3
    %8142 = vperm.xlu0 %8141, %v4191
    %v8143 = vpop.permute.xlu0 %8142
    %8145 = vset.pattern.permute.xlu0 3
    %8146 = vperm.xlu0 %8145, %v4192
    %v8147 = vpop.permute.xlu0 %8146
    %8149 = vset.pattern.permute.xlu0 3
    %8150 = vperm.xlu0 %8149, %v4193
    %v8151 = vpop.permute.xlu0 %8150
    %8153 = vset.pattern.permute.xlu0 3
    %8154 = vperm.xlu0 %8153, %v4194
    %v8155 = vpop.permute.xlu0 %8154
    %8157 = vset.pattern.permute.xlu0 3
    %8158 = vperm.xlu0 %8157, %v4195
    %v8159 = vpop.permute.xlu0 %8158
    %8161 = vset.pattern.permute.xlu0 3
    %8162 = vperm.xlu0 %8161, %v4196
    %v8163 = vpop.permute.xlu0 %8162
    %8165 = vset.pattern.permute.xlu0 3
    %8166 = vperm.xlu0 %8165, %v4197
    %v8167 = vpop.permute.xlu0 %8166
    %8169 = vset.pattern.permute.xlu0 3
    %8170 = vperm.xlu0 %8169, %v4198
    %v8171 = vpop.permute.xlu0 %8170
    %8173 = vset.pattern.permute.xlu0 3
    %8174 = vperm.xlu0 %8173, %v4199
    %v8175 = vpop.permute.xlu0 %8174
    %8177 = vset.pattern.permute.xlu0 3
    %8178 = vperm.xlu0 %8177, %v4200
    %v8179 = vpop.permute.xlu0 %8178
    %8181 = vset.pattern.permute.xlu0 3
    %8182 = vperm.xlu0 %8181, %v4201
    %v8183 = vpop.permute.xlu0 %8182
    %8185 = vset.pattern.permute.xlu0 3
    %8186 = vperm.xlu0 %8185, %v4202
    %v8187 = vpop.permute.xlu0 %8186
    %8189 = vset.pattern.permute.xlu0 3
    %8190 = vperm.xlu0 %8189, %v4203
    %v8191 = vpop.permute.xlu0 %8190
    %8193 = vset.pattern.permute.xlu0 3
    %8194 = vperm.xlu0 %8193, %v4204
    %v8195 = vpop.permute.xlu0 %8194
    %8197 = vset.pattern.permute.xlu0 3
    %8198 = vperm.xlu0 %8197, %v4205
    %v8199 = vpop.permute.xlu0 %8198
    %8201 = vset.pattern.permute.xlu0 3
    %8202 = vperm.xlu0 %8201, %v4206
    %v8203 = vpop.permute.xlu0 %8202
    %8205 = vset.pattern.permute.xlu0 3
    %8206 = vperm.xlu0 %8205, %v4207
    %v8207 = vpop.permute.xlu0 %8206
    %8209 = vset.pattern.permute.xlu0 3
    %8210 = vperm.xlu0 %8209, %v4208
    %v8211 = vpop.permute.xlu0 %8210
    %8213 = vset.pattern.permute.xlu0 3
    %8214 = vperm.xlu0 %8213, %v4209
    %v8215 = vpop.permute.xlu0 %8214
    %8217 = vset.pattern.permute.xlu0 3
    %8218 = vperm.xlu0 %8217, %v4210
    %v8219 = vpop.permute.xlu0 %8218
    %8221 = vset.pattern.permute.xlu0 3
    %8222 = vperm.xlu0 %8221, %v4211
    %v8223 = vpop.permute.xlu0 %8222
    %8225 = vset.pattern.permute.xlu0 3
    %8226 = vperm.xlu0 %8225, %v4212
    %v8227 = vpop.permute.xlu0 %8226
    %8229 = vset.pattern.permute.xlu0 3
    %8230 = vperm.xlu0 %8229, %v4213
    %v8231 = vpop.permute.xlu0 %8230
    %8233 = vset.pattern.permute.xlu0 3
    %8234 = vperm.xlu0 %8233, %v4214
    %v8235 = vpop.permute.xlu0 %8234
    %8237 = vset.pattern.permute.xlu0 3
    %8238 = vperm.xlu0 %8237, %v4215
    %v8239 = vpop.permute.xlu0 %8238
    %8241 = vset.pattern.permute.xlu0 3
    %8242 = vperm.xlu0 %8241, %v4216
    %v8243 = vpop.permute.xlu0 %8242
    %8245 = vset.pattern.permute.xlu0 3
    %8246 = vperm.xlu0 %8245, %v4217
    %v8247 = vpop.permute.xlu0 %8246
    %8249 = vset.pattern.permute.xlu0 3
    %8250 = vperm.xlu0 %8249, %v4218
    %v8251 = vpop.permute.xlu0 %8250
    %8253 = vset.pattern.permute.xlu0 3
    %8254 = vperm.xlu0 %8253, %v4219
    %v8255 = vpop.permute.xlu0 %8254
    %8257 = vset.pattern.permute.xlu0 3
    %8258 = vperm.xlu0 %8257, %v4220
    %v8259 = vpop.permute.xlu0 %8258
    %8261 = vset.pattern.permute.xlu0 3
    %8262 = vperm.xlu0 %8261, %v4221
    %v8263 = vpop.permute.xlu0 %8262
    %v8265 = vmul.f32 %v8139, %v7305
    %v8266 = vmul.f32 %v8143, %v7306
    %v8267 = vmul.f32 %v8147, %v7307
    %v8268 = vmul.f32 %v8151, %v7308
    %v8269 = vmul.f32 %v8155, %v7309
    %v8270 = vmul.f32 %v8159, %v7310
    %v8271 = vmul.f32 %v8163, %v7311
    %v8272 = vmul.f32 %v8167, %v7312
    %v8273 = vmul.f32 %v8171, %v7313
    %v8274 = vmul.f32 %v8175, %v7314
    %v8275 = vmul.f32 %v8179, %v7315
    %v8276 = vmul.f32 %v8183, %v7316
    %v8277 = vmul.f32 %v8187, %v7317
    %v8278 = vmul.f32 %v8191, %v7318
    %v8279 = vmul.f32 %v8195, %v7319
    %v8280 = vmul.f32 %v8199, %v7320
    %v8281 = vmul.f32 %v8203, %v7321
    %v8282 = vmul.f32 %v8207, %v7322
    %v8283 = vmul.f32 %v8211, %v7323
    %v8284 = vmul.f32 %v8215, %v7324
    %v8285 = vmul.f32 %v8219, %v7325
    %v8286 = vmul.f32 %v8223, %v7326
    %v8287 = vmul.f32 %v8227, %v7327
    %v8288 = vmul.f32 %v8231, %v7328
    %v8289 = vmul.f32 %v8235, %v7329
    %v8290 = vmul.f32 %v8239, %v7330
    %v8291 = vmul.f32 %v8243, %v7331
    %v8292 = vmul.f32 %v8247, %v7332
    %v8293 = vmul.f32 %v8251, %v7333
    %v8294 = vmul.f32 %v8255, %v7334
    %v8295 = vmul.f32 %v8259, %v7335
    %v8296 = vmul.f32 %v8263, %v7336
    %8298 = vset.pattern.permute.xlu0 1
    %8299 = vperm.xlu0 %8298, %v7337
    %v8300 = vpop.permute.xlu0 %8299
    %8303 = vset.pattern.permute.xlu0 1
    %8304 = vperm.xlu0 %8303, %v7338
    %v8305 = vpop.permute.xlu0 %8304
    %8308 = vset.pattern.permute.xlu0 1
    %8309 = vperm.xlu0 %8308, %v7339
    %v8310 = vpop.permute.xlu0 %8309
    %8313 = vset.pattern.permute.xlu0 1
    %8314 = vperm.xlu0 %8313, %v7340
    %v8315 = vpop.permute.xlu0 %8314
    %8318 = vset.pattern.permute.xlu0 1
    %8319 = vperm.xlu0 %8318, %v7341
    %v8320 = vpop.permute.xlu0 %8319
    %8323 = vset.pattern.permute.xlu0 1
    %8324 = vperm.xlu0 %8323, %v7342
    %v8325 = vpop.permute.xlu0 %8324
    %8328 = vset.pattern.permute.xlu0 1
    %8329 = vperm.xlu0 %8328, %v7343
    %v8330 = vpop.permute.xlu0 %8329
    %8333 = vset.pattern.permute.xlu0 1
    %8334 = vperm.xlu0 %8333, %v7344
    %v8335 = vpop.permute.xlu0 %8334
    %8338 = vset.pattern.permute.xlu0 1
    %8339 = vperm.xlu0 %8338, %v7345
    %v8340 = vpop.permute.xlu0 %8339
    %8343 = vset.pattern.permute.xlu0 1
    %8344 = vperm.xlu0 %8343, %v7346
    %v8345 = vpop.permute.xlu0 %8344
    %8348 = vset.pattern.permute.xlu0 1
    %8349 = vperm.xlu0 %8348, %v7347
    %v8350 = vpop.permute.xlu0 %8349
    %8353 = vset.pattern.permute.xlu0 1
    %8354 = vperm.xlu0 %8353, %v7348
    %v8355 = vpop.permute.xlu0 %8354
    %8358 = vset.pattern.permute.xlu0 1
    %8359 = vperm.xlu0 %8358, %v7349
    %v8360 = vpop.permute.xlu0 %8359
    %8363 = vset.pattern.permute.xlu0 1
    %8364 = vperm.xlu0 %8363, %v7350
    %v8365 = vpop.permute.xlu0 %8364
    %8368 = vset.pattern.permute.xlu0 1
    %8369 = vperm.xlu0 %8368, %v7351
    %v8370 = vpop.permute.xlu0 %8369
    %8373 = vset.pattern.permute.xlu0 1
    %8374 = vperm.xlu0 %8373, %v7352
    %v8375 = vpop.permute.xlu0 %8374
    %8378 = vset.pattern.permute.xlu0 1
    %8379 = vperm.xlu0 %8378, %v7353
    %v8380 = vpop.permute.xlu0 %8379
    %8383 = vset.pattern.permute.xlu0 1
    %8384 = vperm.xlu0 %8383, %v7354
    %v8385 = vpop.permute.xlu0 %8384
    %8388 = vset.pattern.permute.xlu0 1
    %8389 = vperm.xlu0 %8388, %v7355
    %v8390 = vpop.permute.xlu0 %8389
    %8393 = vset.pattern.permute.xlu0 1
    %8394 = vperm.xlu0 %8393, %v7356
    %v8395 = vpop.permute.xlu0 %8394
    %8398 = vset.pattern.permute.xlu0 1
    %8399 = vperm.xlu0 %8398, %v7357
    %v8400 = vpop.permute.xlu0 %8399
    %8403 = vset.pattern.permute.xlu0 1
    %8404 = vperm.xlu0 %8403, %v7358
    %v8405 = vpop.permute.xlu0 %8404
    %8408 = vset.pattern.permute.xlu0 1
    %8409 = vperm.xlu0 %8408, %v7359
    %v8410 = vpop.permute.xlu0 %8409
    %8413 = vset.pattern.permute.xlu0 1
    %8414 = vperm.xlu0 %8413, %v7360
    %v8415 = vpop.permute.xlu0 %8414
    %8418 = vset.pattern.permute.xlu0 1
    %8419 = vperm.xlu0 %8418, %v7361
    %v8420 = vpop.permute.xlu0 %8419
    %8423 = vset.pattern.permute.xlu0 1
    %8424 = vperm.xlu0 %8423, %v7362
    %v8425 = vpop.permute.xlu0 %8424
    %8428 = vset.pattern.permute.xlu0 1
    %8429 = vperm.xlu0 %8428, %v7363
    %v8430 = vpop.permute.xlu0 %8429
    %8433 = vset.pattern.permute.xlu0 1
    %8434 = vperm.xlu0 %8433, %v7364
    %v8435 = vpop.permute.xlu0 %8434
    %8438 = vset.pattern.permute.xlu0 1
    %8439 = vperm.xlu0 %8438, %v7365
    %v8440 = vpop.permute.xlu0 %8439
    %8443 = vset.pattern.permute.xlu0 1
    %8444 = vperm.xlu0 %8443, %v7366
    %v8445 = vpop.permute.xlu0 %8444
    %8448 = vset.pattern.permute.xlu0 1
    %8449 = vperm.xlu0 %8448, %v7367
    %v8450 = vpop.permute.xlu0 %8449
    %8453 = vset.pattern.permute.xlu0 1
    %8454 = vperm.xlu0 %8453, %v7368
    %v8455 = vpop.permute.xlu0 %8454
    %v8457 = vmul.f32 %v8300, %v7305
    %v8458 = vmul.f32 %v8305, %v7306
    %v8459 = vmul.f32 %v8310, %v7307
    %v8460 = vmul.f32 %v8315, %v7308
    %v8461 = vmul.f32 %v8320, %v7309
    %v8462 = vmul.f32 %v8325, %v7310
    %v8463 = vmul.f32 %v8330, %v7311
    %v8464 = vmul.f32 %v8335, %v7312
    %v8465 = vmul.f32 %v8340, %v7313
    %v8466 = vmul.f32 %v8345, %v7314
    %v8467 = vmul.f32 %v8350, %v7315
    %v8468 = vmul.f32 %v8355, %v7316
    %v8469 = vmul.f32 %v8360, %v7317
    %v8470 = vmul.f32 %v8365, %v7318
    %v8471 = vmul.f32 %v8370, %v7319
    %v8472 = vmul.f32 %v8375, %v7320
    %v8473 = vmul.f32 %v8380, %v7321
    %v8474 = vmul.f32 %v8385, %v7322
    %v8475 = vmul.f32 %v8390, %v7323
    %v8476 = vmul.f32 %v8395, %v7324
    %v8477 = vmul.f32 %v8400, %v7325
    %v8478 = vmul.f32 %v8405, %v7326
    %v8479 = vmul.f32 %v8410, %v7327
    %v8480 = vmul.f32 %v8415, %v7328
    %v8481 = vmul.f32 %v8420, %v7329
    %v8482 = vmul.f32 %v8425, %v7330
    %v8483 = vmul.f32 %v8430, %v7331
    %v8484 = vmul.f32 %v8435, %v7332
    %v8485 = vmul.f32 %v8440, %v7333
    %v8486 = vmul.f32 %v8445, %v7334
    %v8487 = vmul.f32 %v8450, %v7335
    %v8488 = vmul.f32 %v8455, %v7336
    %8490 = vset.pattern.permute.xlu0 1
    %8491 = vperm.xlu0 %8490, %v7497
    %v8492 = vpop.permute.xlu0 %8491
    %8495 = vset.pattern.permute.xlu0 1
    %8496 = vperm.xlu0 %8495, %v7498
    %v8497 = vpop.permute.xlu0 %8496
    %8500 = vset.pattern.permute.xlu0 1
    %8501 = vperm.xlu0 %8500, %v7499
    %v8502 = vpop.permute.xlu0 %8501
    %8505 = vset.pattern.permute.xlu0 1
    %8506 = vperm.xlu0 %8505, %v7500
    %v8507 = vpop.permute.xlu0 %8506
    %8510 = vset.pattern.permute.xlu0 1
    %8511 = vperm.xlu0 %8510, %v7501
    %v8512 = vpop.permute.xlu0 %8511
    %8515 = vset.pattern.permute.xlu0 1
    %8516 = vperm.xlu0 %8515, %v7502
    %v8517 = vpop.permute.xlu0 %8516
    %8520 = vset.pattern.permute.xlu0 1
    %8521 = vperm.xlu0 %8520, %v7503
    %v8522 = vpop.permute.xlu0 %8521
    %8525 = vset.pattern.permute.xlu0 1
    %8526 = vperm.xlu0 %8525, %v7504
    %v8527 = vpop.permute.xlu0 %8526
    %8530 = vset.pattern.permute.xlu0 1
    %8531 = vperm.xlu0 %8530, %v7505
    %v8532 = vpop.permute.xlu0 %8531
    %8535 = vset.pattern.permute.xlu0 1
    %8536 = vperm.xlu0 %8535, %v7506
    %v8537 = vpop.permute.xlu0 %8536
    %8540 = vset.pattern.permute.xlu0 1
    %8541 = vperm.xlu0 %8540, %v7507
    %v8542 = vpop.permute.xlu0 %8541
    %8545 = vset.pattern.permute.xlu0 1
    %8546 = vperm.xlu0 %8545, %v7508
    %v8547 = vpop.permute.xlu0 %8546
    %8550 = vset.pattern.permute.xlu0 1
    %8551 = vperm.xlu0 %8550, %v7509
    %v8552 = vpop.permute.xlu0 %8551
    %8555 = vset.pattern.permute.xlu0 1
    %8556 = vperm.xlu0 %8555, %v7510
    %v8557 = vpop.permute.xlu0 %8556
    %8560 = vset.pattern.permute.xlu0 1
    %8561 = vperm.xlu0 %8560, %v7511
    %v8562 = vpop.permute.xlu0 %8561
    %8565 = vset.pattern.permute.xlu0 1
    %8566 = vperm.xlu0 %8565, %v7512
    %v8567 = vpop.permute.xlu0 %8566
    %8570 = vset.pattern.permute.xlu0 1
    %8571 = vperm.xlu0 %8570, %v7513
    %v8572 = vpop.permute.xlu0 %8571
    %8575 = vset.pattern.permute.xlu0 1
    %8576 = vperm.xlu0 %8575, %v7514
    %v8577 = vpop.permute.xlu0 %8576
    %8580 = vset.pattern.permute.xlu0 1
    %8581 = vperm.xlu0 %8580, %v7515
    %v8582 = vpop.permute.xlu0 %8581
    %8585 = vset.pattern.permute.xlu0 1
    %8586 = vperm.xlu0 %8585, %v7516
    %v8587 = vpop.permute.xlu0 %8586
    %8590 = vset.pattern.permute.xlu0 1
    %8591 = vperm.xlu0 %8590, %v7517
    %v8592 = vpop.permute.xlu0 %8591
    %8595 = vset.pattern.permute.xlu0 1
    %8596 = vperm.xlu0 %8595, %v7518
    %v8597 = vpop.permute.xlu0 %8596
    %8600 = vset.pattern.permute.xlu0 1
    %8601 = vperm.xlu0 %8600, %v7519
    %v8602 = vpop.permute.xlu0 %8601
    %8605 = vset.pattern.permute.xlu0 1
    %8606 = vperm.xlu0 %8605, %v7520
    %v8607 = vpop.permute.xlu0 %8606
    %8610 = vset.pattern.permute.xlu0 1
    %8611 = vperm.xlu0 %8610, %v7521
    %v8612 = vpop.permute.xlu0 %8611
    %8615 = vset.pattern.permute.xlu0 1
    %8616 = vperm.xlu0 %8615, %v7522
    %v8617 = vpop.permute.xlu0 %8616
    %8620 = vset.pattern.permute.xlu0 1
    %8621 = vperm.xlu0 %8620, %v7523
    %v8622 = vpop.permute.xlu0 %8621
    %8625 = vset.pattern.permute.xlu0 1
    %8626 = vperm.xlu0 %8625, %v7524
    %v8627 = vpop.permute.xlu0 %8626
    %8630 = vset.pattern.permute.xlu0 1
    %8631 = vperm.xlu0 %8630, %v7525
    %v8632 = vpop.permute.xlu0 %8631
    %8635 = vset.pattern.permute.xlu0 1
    %8636 = vperm.xlu0 %8635, %v7526
    %v8637 = vpop.permute.xlu0 %8636
    %8640 = vset.pattern.permute.xlu0 1
    %8641 = vperm.xlu0 %8640, %v7527
    %v8642 = vpop.permute.xlu0 %8641
    %8645 = vset.pattern.permute.xlu0 1
    %8646 = vperm.xlu0 %8645, %v7528
    %v8647 = vpop.permute.xlu0 %8646
    %v8649 = vmul.f32 %v8492, %v7305
    %v8650 = vmul.f32 %v8497, %v7306
    %v8651 = vmul.f32 %v8502, %v7307
    %v8652 = vmul.f32 %v8507, %v7308
    %v8653 = vmul.f32 %v8512, %v7309
    %v8654 = vmul.f32 %v8517, %v7310
    %v8655 = vmul.f32 %v8522, %v7311
    %v8656 = vmul.f32 %v8527, %v7312
    %v8657 = vmul.f32 %v8532, %v7313
    %v8658 = vmul.f32 %v8537, %v7314
    %v8659 = vmul.f32 %v8542, %v7315
    %v8660 = vmul.f32 %v8547, %v7316
    %v8661 = vmul.f32 %v8552, %v7317
    %v8662 = vmul.f32 %v8557, %v7318
    %v8663 = vmul.f32 %v8562, %v7319
    %v8664 = vmul.f32 %v8567, %v7320
    %v8665 = vmul.f32 %v8572, %v7321
    %v8666 = vmul.f32 %v8577, %v7322
    %v8667 = vmul.f32 %v8582, %v7323
    %v8668 = vmul.f32 %v8587, %v7324
    %v8669 = vmul.f32 %v8592, %v7325
    %v8670 = vmul.f32 %v8597, %v7326
    %v8671 = vmul.f32 %v8602, %v7327
    %v8672 = vmul.f32 %v8607, %v7328
    %v8673 = vmul.f32 %v8612, %v7329
    %v8674 = vmul.f32 %v8617, %v7330
    %v8675 = vmul.f32 %v8622, %v7331
    %v8676 = vmul.f32 %v8627, %v7332
    %v8677 = vmul.f32 %v8632, %v7333
    %v8678 = vmul.f32 %v8637, %v7334
    %v8679 = vmul.f32 %v8642, %v7335
    %v8680 = vmul.f32 %v8647, %v7336
    %8682 = vset.pattern.permute.xlu0 1
    %8683 = vperm.xlu0 %8682, %v7625
    %v8684 = vpop.permute.xlu0 %8683
    %8687 = vset.pattern.permute.xlu0 1
    %8688 = vperm.xlu0 %8687, %v7626
    %v8689 = vpop.permute.xlu0 %8688
    %8692 = vset.pattern.permute.xlu0 1
    %8693 = vperm.xlu0 %8692, %v7627
    %v8694 = vpop.permute.xlu0 %8693
    %8697 = vset.pattern.permute.xlu0 1
    %8698 = vperm.xlu0 %8697, %v7628
    %v8699 = vpop.permute.xlu0 %8698
    %8702 = vset.pattern.permute.xlu0 1
    %8703 = vperm.xlu0 %8702, %v7629
    %v8704 = vpop.permute.xlu0 %8703
    %8707 = vset.pattern.permute.xlu0 1
    %8708 = vperm.xlu0 %8707, %v7630
    %v8709 = vpop.permute.xlu0 %8708
    %8712 = vset.pattern.permute.xlu0 1
    %8713 = vperm.xlu0 %8712, %v7631
    %v8714 = vpop.permute.xlu0 %8713
    %8717 = vset.pattern.permute.xlu0 1
    %8718 = vperm.xlu0 %8717, %v7632
    %v8719 = vpop.permute.xlu0 %8718
    %8722 = vset.pattern.permute.xlu0 1
    %8723 = vperm.xlu0 %8722, %v7633
    %v8724 = vpop.permute.xlu0 %8723
    %8727 = vset.pattern.permute.xlu0 1
    %8728 = vperm.xlu0 %8727, %v7634
    %v8729 = vpop.permute.xlu0 %8728
    %8732 = vset.pattern.permute.xlu0 1
    %8733 = vperm.xlu0 %8732, %v7635
    %v8734 = vpop.permute.xlu0 %8733
    %8737 = vset.pattern.permute.xlu0 1
    %8738 = vperm.xlu0 %8737, %v7636
    %v8739 = vpop.permute.xlu0 %8738
    %8742 = vset.pattern.permute.xlu0 1
    %8743 = vperm.xlu0 %8742, %v7637
    %v8744 = vpop.permute.xlu0 %8743
    %8747 = vset.pattern.permute.xlu0 1
    %8748 = vperm.xlu0 %8747, %v7638
    %v8749 = vpop.permute.xlu0 %8748
    %8752 = vset.pattern.permute.xlu0 1
    %8753 = vperm.xlu0 %8752, %v7639
    %v8754 = vpop.permute.xlu0 %8753
    %8757 = vset.pattern.permute.xlu0 1
    %8758 = vperm.xlu0 %8757, %v7640
    %v8759 = vpop.permute.xlu0 %8758
    %8762 = vset.pattern.permute.xlu0 1
    %8763 = vperm.xlu0 %8762, %v7641
    %v8764 = vpop.permute.xlu0 %8763
    %8767 = vset.pattern.permute.xlu0 1
    %8768 = vperm.xlu0 %8767, %v7642
    %v8769 = vpop.permute.xlu0 %8768
    %8772 = vset.pattern.permute.xlu0 1
    %8773 = vperm.xlu0 %8772, %v7643
    %v8774 = vpop.permute.xlu0 %8773
    %8777 = vset.pattern.permute.xlu0 1
    %8778 = vperm.xlu0 %8777, %v7644
    %v8779 = vpop.permute.xlu0 %8778
    %8782 = vset.pattern.permute.xlu0 1
    %8783 = vperm.xlu0 %8782, %v7645
    %v8784 = vpop.permute.xlu0 %8783
    %8787 = vset.pattern.permute.xlu0 1
    %8788 = vperm.xlu0 %8787, %v7646
    %v8789 = vpop.permute.xlu0 %8788
    %8792 = vset.pattern.permute.xlu0 1
    %8793 = vperm.xlu0 %8792, %v7647
    %v8794 = vpop.permute.xlu0 %8793
    %8797 = vset.pattern.permute.xlu0 1
    %8798 = vperm.xlu0 %8797, %v7648
    %v8799 = vpop.permute.xlu0 %8798
    %8802 = vset.pattern.permute.xlu0 1
    %8803 = vperm.xlu0 %8802, %v7649
    %v8804 = vpop.permute.xlu0 %8803
    %8807 = vset.pattern.permute.xlu0 1
    %8808 = vperm.xlu0 %8807, %v7650
    %v8809 = vpop.permute.xlu0 %8808
    %8812 = vset.pattern.permute.xlu0 1
    %8813 = vperm.xlu0 %8812, %v7651
    %v8814 = vpop.permute.xlu0 %8813
    %8817 = vset.pattern.permute.xlu0 1
    %8818 = vperm.xlu0 %8817, %v7652
    %v8819 = vpop.permute.xlu0 %8818
    %8822 = vset.pattern.permute.xlu0 1
    %8823 = vperm.xlu0 %8822, %v7653
    %v8824 = vpop.permute.xlu0 %8823
    %8827 = vset.pattern.permute.xlu0 1
    %8828 = vperm.xlu0 %8827, %v7654
    %v8829 = vpop.permute.xlu0 %8828
    %8832 = vset.pattern.permute.xlu0 1
    %8833 = vperm.xlu0 %8832, %v7655
    %v8834 = vpop.permute.xlu0 %8833
    %8837 = vset.pattern.permute.xlu0 1
    %8838 = vperm.xlu0 %8837, %v7656
    %v8839 = vpop.permute.xlu0 %8838
    %v8841 = vmul.f32 %v8684, %v7305
    %v8842 = vmul.f32 %v8689, %v7306
    %v8843 = vmul.f32 %v8694, %v7307
    %v8844 = vmul.f32 %v8699, %v7308
    %v8845 = vmul.f32 %v8704, %v7309
    %v8846 = vmul.f32 %v8709, %v7310
    %v8847 = vmul.f32 %v8714, %v7311
    %v8848 = vmul.f32 %v8719, %v7312
    %v8849 = vmul.f32 %v8724, %v7313
    %v8850 = vmul.f32 %v8729, %v7314
    %v8851 = vmul.f32 %v8734, %v7315
    %v8852 = vmul.f32 %v8739, %v7316
    %v8853 = vmul.f32 %v8744, %v7317
    %v8854 = vmul.f32 %v8749, %v7318
    %v8855 = vmul.f32 %v8754, %v7319
    %v8856 = vmul.f32 %v8759, %v7320
    %v8857 = vmul.f32 %v8764, %v7321
    %v8858 = vmul.f32 %v8769, %v7322
    %v8859 = vmul.f32 %v8774, %v7323
    %v8860 = vmul.f32 %v8779, %v7324
    %v8861 = vmul.f32 %v8784, %v7325
    %v8862 = vmul.f32 %v8789, %v7326
    %v8863 = vmul.f32 %v8794, %v7327
    %v8864 = vmul.f32 %v8799, %v7328
    %v8865 = vmul.f32 %v8804, %v7329
    %v8866 = vmul.f32 %v8809, %v7330
    %v8867 = vmul.f32 %v8814, %v7331
    %v8868 = vmul.f32 %v8819, %v7332
    %v8869 = vmul.f32 %v8824, %v7333
    %v8870 = vmul.f32 %v8829, %v7334
    %v8871 = vmul.f32 %v8834, %v7335
    %v8872 = vmul.f32 %v8839, %v7336
    %8874 = vset.pattern.permute.xlu0 2
    %8875 = vperm.xlu0 %8874, %v7785
    %v8876 = vpop.permute.xlu0 %8875
    %8879 = vset.pattern.permute.xlu0 2
    %8880 = vperm.xlu0 %8879, %v7786
    %v8881 = vpop.permute.xlu0 %8880
    %8884 = vset.pattern.permute.xlu0 2
    %8885 = vperm.xlu0 %8884, %v7787
    %v8886 = vpop.permute.xlu0 %8885
    %8889 = vset.pattern.permute.xlu0 2
    %8890 = vperm.xlu0 %8889, %v7788
    %v8891 = vpop.permute.xlu0 %8890
    %8894 = vset.pattern.permute.xlu0 2
    %8895 = vperm.xlu0 %8894, %v7789
    %v8896 = vpop.permute.xlu0 %8895
    %8899 = vset.pattern.permute.xlu0 2
    %8900 = vperm.xlu0 %8899, %v7790
    %v8901 = vpop.permute.xlu0 %8900
    %8904 = vset.pattern.permute.xlu0 2
    %8905 = vperm.xlu0 %8904, %v7791
    %v8906 = vpop.permute.xlu0 %8905
    %8909 = vset.pattern.permute.xlu0 2
    %8910 = vperm.xlu0 %8909, %v7792
    %v8911 = vpop.permute.xlu0 %8910
    %8914 = vset.pattern.permute.xlu0 2
    %8915 = vperm.xlu0 %8914, %v7793
    %v8916 = vpop.permute.xlu0 %8915
    %8919 = vset.pattern.permute.xlu0 2
    %8920 = vperm.xlu0 %8919, %v7794
    %v8921 = vpop.permute.xlu0 %8920
    %8924 = vset.pattern.permute.xlu0 2
    %8925 = vperm.xlu0 %8924, %v7795
    %v8926 = vpop.permute.xlu0 %8925
    %8929 = vset.pattern.permute.xlu0 2
    %8930 = vperm.xlu0 %8929, %v7796
    %v8931 = vpop.permute.xlu0 %8930
    %8934 = vset.pattern.permute.xlu0 2
    %8935 = vperm.xlu0 %8934, %v7797
    %v8936 = vpop.permute.xlu0 %8935
    %8939 = vset.pattern.permute.xlu0 2
    %8940 = vperm.xlu0 %8939, %v7798
    %v8941 = vpop.permute.xlu0 %8940
    %8944 = vset.pattern.permute.xlu0 2
    %8945 = vperm.xlu0 %8944, %v7799
    %v8946 = vpop.permute.xlu0 %8945
    %8949 = vset.pattern.permute.xlu0 2
    %8950 = vperm.xlu0 %8949, %v7800
    %v8951 = vpop.permute.xlu0 %8950
    %8954 = vset.pattern.permute.xlu0 2
    %8955 = vperm.xlu0 %8954, %v7801
    %v8956 = vpop.permute.xlu0 %8955
    %8959 = vset.pattern.permute.xlu0 2
    %8960 = vperm.xlu0 %8959, %v7802
    %v8961 = vpop.permute.xlu0 %8960
    %8964 = vset.pattern.permute.xlu0 2
    %8965 = vperm.xlu0 %8964, %v7803
    %v8966 = vpop.permute.xlu0 %8965
    %8969 = vset.pattern.permute.xlu0 2
    %8970 = vperm.xlu0 %8969, %v7804
    %v8971 = vpop.permute.xlu0 %8970
    %8974 = vset.pattern.permute.xlu0 2
    %8975 = vperm.xlu0 %8974, %v7805
    %v8976 = vpop.permute.xlu0 %8975
    %8979 = vset.pattern.permute.xlu0 2
    %8980 = vperm.xlu0 %8979, %v7806
    %v8981 = vpop.permute.xlu0 %8980
    %8984 = vset.pattern.permute.xlu0 2
    %8985 = vperm.xlu0 %8984, %v7807
    %v8986 = vpop.permute.xlu0 %8985
    %8989 = vset.pattern.permute.xlu0 2
    %8990 = vperm.xlu0 %8989, %v7808
    %v8991 = vpop.permute.xlu0 %8990
    %8994 = vset.pattern.permute.xlu0 2
    %8995 = vperm.xlu0 %8994, %v7809
    %v8996 = vpop.permute.xlu0 %8995
    %8999 = vset.pattern.permute.xlu0 2
    %9000 = vperm.xlu0 %8999, %v7810
    %v9001 = vpop.permute.xlu0 %9000
    %9004 = vset.pattern.permute.xlu0 2
    %9005 = vperm.xlu0 %9004, %v7811
    %v9006 = vpop.permute.xlu0 %9005
    %9009 = vset.pattern.permute.xlu0 2
    %9010 = vperm.xlu0 %9009, %v7812
    %v9011 = vpop.permute.xlu0 %9010
    %9014 = vset.pattern.permute.xlu0 2
    %9015 = vperm.xlu0 %9014, %v7813
    %v9016 = vpop.permute.xlu0 %9015
    %9019 = vset.pattern.permute.xlu0 2
    %9020 = vperm.xlu0 %9019, %v7814
    %v9021 = vpop.permute.xlu0 %9020
    %9024 = vset.pattern.permute.xlu0 2
    %9025 = vperm.xlu0 %9024, %v7815
    %v9026 = vpop.permute.xlu0 %9025
    %9029 = vset.pattern.permute.xlu0 2
    %9030 = vperm.xlu0 %9029, %v7816
    %v9031 = vpop.permute.xlu0 %9030
    %v9033 = vmul.f32 %v8876, %v7305
    %v9034 = vmul.f32 %v8881, %v7306
    %v9035 = vmul.f32 %v8886, %v7307
    %v9036 = vmul.f32 %v8891, %v7308
    %v9037 = vmul.f32 %v8896, %v7309
    %v9038 = vmul.f32 %v8901, %v7310
    %v9039 = vmul.f32 %v8906, %v7311
    %v9040 = vmul.f32 %v8911, %v7312
    %v9041 = vmul.f32 %v8916, %v7313
    %v9042 = vmul.f32 %v8921, %v7314
    %v9043 = vmul.f32 %v8926, %v7315
    %v9044 = vmul.f32 %v8931, %v7316
    %v9045 = vmul.f32 %v8936, %v7317
    %v9046 = vmul.f32 %v8941, %v7318
    %v9047 = vmul.f32 %v8946, %v7319
    %v9048 = vmul.f32 %v8951, %v7320
    %v9049 = vmul.f32 %v8956, %v7321
    %v9050 = vmul.f32 %v8961, %v7322
    %v9051 = vmul.f32 %v8966, %v7323
    %v9052 = vmul.f32 %v8971, %v7324
    %v9053 = vmul.f32 %v8976, %v7325
    %v9054 = vmul.f32 %v8981, %v7326
    %v9055 = vmul.f32 %v8986, %v7327
    %v9056 = vmul.f32 %v8991, %v7328
    %v9057 = vmul.f32 %v8996, %v7329
    %v9058 = vmul.f32 %v9001, %v7330
    %v9059 = vmul.f32 %v9006, %v7331
    %v9060 = vmul.f32 %v9011, %v7332
    %v9061 = vmul.f32 %v9016, %v7333
    %v9062 = vmul.f32 %v9021, %v7334
    %v9063 = vmul.f32 %v9026, %v7335
    %v9064 = vmul.f32 %v9031, %v7336
    %9065 = vset.pattern.permute.xlu0 2
    %9066 = vperm.xlu0 %9065, %v7497
    %v9067 = vpop.permute.xlu0 %9066
    %9069 = vset.pattern.permute.xlu0 2
    %9070 = vperm.xlu0 %9069, %v7498
    %v9071 = vpop.permute.xlu0 %9070
    %9073 = vset.pattern.permute.xlu0 2
    %9074 = vperm.xlu0 %9073, %v7499
    %v9075 = vpop.permute.xlu0 %9074
    %9077 = vset.pattern.permute.xlu0 2
    %9078 = vperm.xlu0 %9077, %v7500
    %v9079 = vpop.permute.xlu0 %9078
    %9081 = vset.pattern.permute.xlu0 2
    %9082 = vperm.xlu0 %9081, %v7501
    %v9083 = vpop.permute.xlu0 %9082
    %9085 = vset.pattern.permute.xlu0 2
    %9086 = vperm.xlu0 %9085, %v7502
    %v9087 = vpop.permute.xlu0 %9086
    %9089 = vset.pattern.permute.xlu0 2
    %9090 = vperm.xlu0 %9089, %v7503
    %v9091 = vpop.permute.xlu0 %9090
    %9093 = vset.pattern.permute.xlu0 2
    %9094 = vperm.xlu0 %9093, %v7504
    %v9095 = vpop.permute.xlu0 %9094
    %9097 = vset.pattern.permute.xlu0 2
    %9098 = vperm.xlu0 %9097, %v7505
    %v9099 = vpop.permute.xlu0 %9098
    %9101 = vset.pattern.permute.xlu0 2
    %9102 = vperm.xlu0 %9101, %v7506
    %v9103 = vpop.permute.xlu0 %9102
    %9105 = vset.pattern.permute.xlu0 2
    %9106 = vperm.xlu0 %9105, %v7507
    %v9107 = vpop.permute.xlu0 %9106
    %9109 = vset.pattern.permute.xlu0 2
    %9110 = vperm.xlu0 %9109, %v7508
    %v9111 = vpop.permute.xlu0 %9110
    %9113 = vset.pattern.permute.xlu0 2
    %9114 = vperm.xlu0 %9113, %v7509
    %v9115 = vpop.permute.xlu0 %9114
    %9117 = vset.pattern.permute.xlu0 2
    %9118 = vperm.xlu0 %9117, %v7510
    %v9119 = vpop.permute.xlu0 %9118
    %9121 = vset.pattern.permute.xlu0 2
    %9122 = vperm.xlu0 %9121, %v7511
    %v9123 = vpop.permute.xlu0 %9122
    %9125 = vset.pattern.permute.xlu0 2
    %9126 = vperm.xlu0 %9125, %v7512
    %v9127 = vpop.permute.xlu0 %9126
    %9129 = vset.pattern.permute.xlu0 2
    %9130 = vperm.xlu0 %9129, %v7513
    %v9131 = vpop.permute.xlu0 %9130
    %9133 = vset.pattern.permute.xlu0 2
    %9134 = vperm.xlu0 %9133, %v7514
    %v9135 = vpop.permute.xlu0 %9134
    %9137 = vset.pattern.permute.xlu0 2
    %9138 = vperm.xlu0 %9137, %v7515
    %v9139 = vpop.permute.xlu0 %9138
    %9141 = vset.pattern.permute.xlu0 2
    %9142 = vperm.xlu0 %9141, %v7516
    %v9143 = vpop.permute.xlu0 %9142
    %9145 = vset.pattern.permute.xlu0 2
    %9146 = vperm.xlu0 %9145, %v7517
    %v9147 = vpop.permute.xlu0 %9146
    %9149 = vset.pattern.permute.xlu0 2
    %9150 = vperm.xlu0 %9149, %v7518
    %v9151 = vpop.permute.xlu0 %9150
    %9153 = vset.pattern.permute.xlu0 2
    %9154 = vperm.xlu0 %9153, %v7519
    %v9155 = vpop.permute.xlu0 %9154
    %9157 = vset.pattern.permute.xlu0 2
    %9158 = vperm.xlu0 %9157, %v7520
    %v9159 = vpop.permute.xlu0 %9158
    %9161 = vset.pattern.permute.xlu0 2
    %9162 = vperm.xlu0 %9161, %v7521
    %v9163 = vpop.permute.xlu0 %9162
    %9165 = vset.pattern.permute.xlu0 2
    %9166 = vperm.xlu0 %9165, %v7522
    %v9167 = vpop.permute.xlu0 %9166
    %9169 = vset.pattern.permute.xlu0 2
    %9170 = vperm.xlu0 %9169, %v7523
    %v9171 = vpop.permute.xlu0 %9170
    %9173 = vset.pattern.permute.xlu0 2
    %9174 = vperm.xlu0 %9173, %v7524
    %v9175 = vpop.permute.xlu0 %9174
    %9177 = vset.pattern.permute.xlu0 2
    %9178 = vperm.xlu0 %9177, %v7525
    %v9179 = vpop.permute.xlu0 %9178
    %9181 = vset.pattern.permute.xlu0 2
    %9182 = vperm.xlu0 %9181, %v7526
    %v9183 = vpop.permute.xlu0 %9182
    %9185 = vset.pattern.permute.xlu0 2
    %9186 = vperm.xlu0 %9185, %v7527
    %v9187 = vpop.permute.xlu0 %9186
    %9189 = vset.pattern.permute.xlu0 2
    %9190 = vperm.xlu0 %9189, %v7528
    %v9191 = vpop.permute.xlu0 %9190
    %v9193 = vmul.f32 %v9067, %v7305
    %v9194 = vmul.f32 %v9071, %v7306
    %v9195 = vmul.f32 %v9075, %v7307
    %v9196 = vmul.f32 %v9079, %v7308
    %v9197 = vmul.f32 %v9083, %v7309
    %v9198 = vmul.f32 %v9087, %v7310
    %v9199 = vmul.f32 %v9091, %v7311
    %v9200 = vmul.f32 %v9095, %v7312
    %v9201 = vmul.f32 %v9099, %v7313
    %v9202 = vmul.f32 %v9103, %v7314
    %v9203 = vmul.f32 %v9107, %v7315
    %v9204 = vmul.f32 %v9111, %v7316
    %v9205 = vmul.f32 %v9115, %v7317
    %v9206 = vmul.f32 %v9119, %v7318
    %v9207 = vmul.f32 %v9123, %v7319
    %v9208 = vmul.f32 %v9127, %v7320
    %v9209 = vmul.f32 %v9131, %v7321
    %v9210 = vmul.f32 %v9135, %v7322
    %v9211 = vmul.f32 %v9139, %v7323
    %v9212 = vmul.f32 %v9143, %v7324
    %v9213 = vmul.f32 %v9147, %v7325
    %v9214 = vmul.f32 %v9151, %v7326
    %v9215 = vmul.f32 %v9155, %v7327
    %v9216 = vmul.f32 %v9159, %v7328
    %v9217 = vmul.f32 %v9163, %v7329
    %v9218 = vmul.f32 %v9167, %v7330
    %v9219 = vmul.f32 %v9171, %v7331
    %v9220 = vmul.f32 %v9175, %v7332
    %v9221 = vmul.f32 %v9179, %v7333
    %v9222 = vmul.f32 %v9183, %v7334
    %v9223 = vmul.f32 %v9187, %v7335
    %v9224 = vmul.f32 %v9191, %v7336
    %9257 = vrot.lane.b32.xlu0 %v7945, 16
    %v9258 = vpop.permute.xlu0 %9257
    %9259 = vrot.lane.b32.xlu0 %v7946, 16
    %v9260 = vpop.permute.xlu0 %9259
    %9261 = vrot.lane.b32.xlu0 %v7947, 16
    %v9262 = vpop.permute.xlu0 %9261
    %9263 = vrot.lane.b32.xlu0 %v7948, 16
    %v9264 = vpop.permute.xlu0 %9263
    %9265 = vrot.lane.b32.xlu0 %v7949, 16
    %v9266 = vpop.permute.xlu0 %9265
    %9267 = vrot.lane.b32.xlu0 %v7950, 16
    %v9268 = vpop.permute.xlu0 %9267
    %9269 = vrot.lane.b32.xlu0 %v7951, 16
    %v9270 = vpop.permute.xlu0 %9269
    %9271 = vrot.lane.b32.xlu0 %v7952, 16
    %v9272 = vpop.permute.xlu0 %9271
    %9273 = vrot.lane.b32.xlu0 %v7953, 16
    %v9274 = vpop.permute.xlu0 %9273
    %9275 = vrot.lane.b32.xlu0 %v7954, 16
    %v9276 = vpop.permute.xlu0 %9275
    %9277 = vrot.lane.b32.xlu0 %v7955, 16
    %v9278 = vpop.permute.xlu0 %9277
    %9279 = vrot.lane.b32.xlu0 %v7956, 16
    %v9280 = vpop.permute.xlu0 %9279
    %9281 = vrot.lane.b32.xlu0 %v7957, 16
    %v9282 = vpop.permute.xlu0 %9281
    %9283 = vrot.lane.b32.xlu0 %v7958, 16
    %v9284 = vpop.permute.xlu0 %9283
    %9285 = vrot.lane.b32.xlu0 %v7959, 16
    %v9286 = vpop.permute.xlu0 %9285
    %9287 = vrot.lane.b32.xlu0 %v7960, 16
    %v9288 = vpop.permute.xlu0 %9287
    %9289 = vrot.lane.b32.xlu0 %v7961, 16
    %v9290 = vpop.permute.xlu0 %9289
    %9291 = vrot.lane.b32.xlu0 %v7962, 16
    %v9292 = vpop.permute.xlu0 %9291
    %9293 = vrot.lane.b32.xlu0 %v7963, 16
    %v9294 = vpop.permute.xlu0 %9293
    %9295 = vrot.lane.b32.xlu0 %v7964, 16
    %v9296 = vpop.permute.xlu0 %9295
    %9297 = vrot.lane.b32.xlu0 %v7965, 16
    %v9298 = vpop.permute.xlu0 %9297
    %9299 = vrot.lane.b32.xlu0 %v7966, 16
    %v9300 = vpop.permute.xlu0 %9299
    %9301 = vrot.lane.b32.xlu0 %v7967, 16
    %v9302 = vpop.permute.xlu0 %9301
    %9303 = vrot.lane.b32.xlu0 %v7968, 16
    %v9304 = vpop.permute.xlu0 %9303
    %9305 = vrot.lane.b32.xlu0 %v7969, 16
    %v9306 = vpop.permute.xlu0 %9305
    %9307 = vrot.lane.b32.xlu0 %v7970, 16
    %v9308 = vpop.permute.xlu0 %9307
    %9309 = vrot.lane.b32.xlu0 %v7971, 16
    %v9310 = vpop.permute.xlu0 %9309
    %9311 = vrot.lane.b32.xlu0 %v7972, 16
    %v9312 = vpop.permute.xlu0 %9311
    %9313 = vrot.lane.b32.xlu0 %v7973, 16
    %v9314 = vpop.permute.xlu0 %9313
    %9315 = vrot.lane.b32.xlu0 %v7974, 16
    %v9316 = vpop.permute.xlu0 %9315
    %9317 = vrot.lane.b32.xlu0 %v7975, 16
    %v9318 = vpop.permute.xlu0 %9317
    %9319 = vrot.lane.b32.xlu0 %v7976, 16
    %v9320 = vpop.permute.xlu0 %9319
    %9385 = vrot.lane.b32.xlu0 %v8105, 32
    %v9386 = vpop.permute.xlu0 %9385
    %9387 = vrot.lane.b32.xlu0 %v8106, 32
    %v9388 = vpop.permute.xlu0 %9387
    %9389 = vrot.lane.b32.xlu0 %v8107, 32
    %v9390 = vpop.permute.xlu0 %9389
    %9391 = vrot.lane.b32.xlu0 %v8108, 32
    %v9392 = vpop.permute.xlu0 %9391
    %9393 = vrot.lane.b32.xlu0 %v8109, 32
    %v9394 = vpop.permute.xlu0 %9393
    %9395 = vrot.lane.b32.xlu0 %v8110, 32
    %v9396 = vpop.permute.xlu0 %9395
    %9397 = vrot.lane.b32.xlu0 %v8111, 32
    %v9398 = vpop.permute.xlu0 %9397
    %9399 = vrot.lane.b32.xlu0 %v8112, 32
    %v9400 = vpop.permute.xlu0 %9399
    %9401 = vrot.lane.b32.xlu0 %v8113, 32
    %v9402 = vpop.permute.xlu0 %9401
    %9403 = vrot.lane.b32.xlu0 %v8114, 32
    %v9404 = vpop.permute.xlu0 %9403
    %9405 = vrot.lane.b32.xlu0 %v8115, 32
    %v9406 = vpop.permute.xlu0 %9405
    %9407 = vrot.lane.b32.xlu0 %v8116, 32
    %v9408 = vpop.permute.xlu0 %9407
    %9409 = vrot.lane.b32.xlu0 %v8117, 32
    %v9410 = vpop.permute.xlu0 %9409
    %9411 = vrot.lane.b32.xlu0 %v8118, 32
    %v9412 = vpop.permute.xlu0 %9411
    %9413 = vrot.lane.b32.xlu0 %v8119, 32
    %v9414 = vpop.permute.xlu0 %9413
    %9415 = vrot.lane.b32.xlu0 %v8120, 32
    %v9416 = vpop.permute.xlu0 %9415
    %9417 = vrot.lane.b32.xlu0 %v8121, 32
    %v9418 = vpop.permute.xlu0 %9417
    %9419 = vrot.lane.b32.xlu0 %v8122, 32
    %v9420 = vpop.permute.xlu0 %9419
    %9421 = vrot.lane.b32.xlu0 %v8123, 32
    %v9422 = vpop.permute.xlu0 %9421
    %9423 = vrot.lane.b32.xlu0 %v8124, 32
    %v9424 = vpop.permute.xlu0 %9423
    %9425 = vrot.lane.b32.xlu0 %v8125, 32
    %v9426 = vpop.permute.xlu0 %9425
    %9427 = vrot.lane.b32.xlu0 %v8126, 32
    %v9428 = vpop.permute.xlu0 %9427
    %9429 = vrot.lane.b32.xlu0 %v8127, 32
    %v9430 = vpop.permute.xlu0 %9429
    %9431 = vrot.lane.b32.xlu0 %v8128, 32
    %v9432 = vpop.permute.xlu0 %9431
    %9433 = vrot.lane.b32.xlu0 %v8129, 32
    %v9434 = vpop.permute.xlu0 %9433
    %9435 = vrot.lane.b32.xlu0 %v8130, 32
    %v9436 = vpop.permute.xlu0 %9435
    %9437 = vrot.lane.b32.xlu0 %v8131, 32
    %v9438 = vpop.permute.xlu0 %9437
    %9439 = vrot.lane.b32.xlu0 %v8132, 32
    %v9440 = vpop.permute.xlu0 %9439
    %9441 = vrot.lane.b32.xlu0 %v8133, 32
    %v9442 = vpop.permute.xlu0 %9441
    %9443 = vrot.lane.b32.xlu0 %v8134, 32
    %v9444 = vpop.permute.xlu0 %9443
    %9445 = vrot.lane.b32.xlu0 %v8135, 32
    %v9446 = vpop.permute.xlu0 %9445
    %9447 = vrot.lane.b32.xlu0 %v8136, 32
    %v9448 = vpop.permute.xlu0 %9447
    %9513 = vrot.lane.b32.xlu0 %v8265, 48
    %v9514 = vpop.permute.xlu0 %9513
    %9515 = vrot.lane.b32.xlu0 %v8266, 48
    %v9516 = vpop.permute.xlu0 %9515
    %9517 = vrot.lane.b32.xlu0 %v8267, 48
    %v9518 = vpop.permute.xlu0 %9517
    %9519 = vrot.lane.b32.xlu0 %v8268, 48
    %v9520 = vpop.permute.xlu0 %9519
    %9521 = vrot.lane.b32.xlu0 %v8269, 48
    %v9522 = vpop.permute.xlu0 %9521
    %9523 = vrot.lane.b32.xlu0 %v8270, 48
    %v9524 = vpop.permute.xlu0 %9523
    %9525 = vrot.lane.b32.xlu0 %v8271, 48
    %v9526 = vpop.permute.xlu0 %9525
    %9527 = vrot.lane.b32.xlu0 %v8272, 48
    %v9528 = vpop.permute.xlu0 %9527
    %9529 = vrot.lane.b32.xlu0 %v8273, 48
    %v9530 = vpop.permute.xlu0 %9529
    %9531 = vrot.lane.b32.xlu0 %v8274, 48
    %v9532 = vpop.permute.xlu0 %9531
    %9533 = vrot.lane.b32.xlu0 %v8275, 48
    %v9534 = vpop.permute.xlu0 %9533
    %9535 = vrot.lane.b32.xlu0 %v8276, 48
    %v9536 = vpop.permute.xlu0 %9535
    %9537 = vrot.lane.b32.xlu0 %v8277, 48
    %v9538 = vpop.permute.xlu0 %9537
    %9539 = vrot.lane.b32.xlu0 %v8278, 48
    %v9540 = vpop.permute.xlu0 %9539
    %9541 = vrot.lane.b32.xlu0 %v8279, 48
    %v9542 = vpop.permute.xlu0 %9541
    %9543 = vrot.lane.b32.xlu0 %v8280, 48
    %v9544 = vpop.permute.xlu0 %9543
    %9545 = vrot.lane.b32.xlu0 %v8281, 48
    %v9546 = vpop.permute.xlu0 %9545
    %9547 = vrot.lane.b32.xlu0 %v8282, 48
    %v9548 = vpop.permute.xlu0 %9547
    %9549 = vrot.lane.b32.xlu0 %v8283, 48
    %v9550 = vpop.permute.xlu0 %9549
    %9551 = vrot.lane.b32.xlu0 %v8284, 48
    %v9552 = vpop.permute.xlu0 %9551
    %9553 = vrot.lane.b32.xlu0 %v8285, 48
    %v9554 = vpop.permute.xlu0 %9553
    %9555 = vrot.lane.b32.xlu0 %v8286, 48
    %v9556 = vpop.permute.xlu0 %9555
    %9557 = vrot.lane.b32.xlu0 %v8287, 48
    %v9558 = vpop.permute.xlu0 %9557
    %9559 = vrot.lane.b32.xlu0 %v8288, 48
    %v9560 = vpop.permute.xlu0 %9559
    %9561 = vrot.lane.b32.xlu0 %v8289, 48
    %v9562 = vpop.permute.xlu0 %9561
    %9563 = vrot.lane.b32.xlu0 %v8290, 48
    %v9564 = vpop.permute.xlu0 %9563
    %9565 = vrot.lane.b32.xlu0 %v8291, 48
    %v9566 = vpop.permute.xlu0 %9565
    %9567 = vrot.lane.b32.xlu0 %v8292, 48
    %v9568 = vpop.permute.xlu0 %9567
    %9569 = vrot.lane.b32.xlu0 %v8293, 48
    %v9570 = vpop.permute.xlu0 %9569
    %9571 = vrot.lane.b32.xlu0 %v8294, 48
    %v9572 = vpop.permute.xlu0 %9571
    %9573 = vrot.lane.b32.xlu0 %v8295, 48
    %v9574 = vpop.permute.xlu0 %9573
    %9575 = vrot.lane.b32.xlu0 %v8296, 48
    %v9576 = vpop.permute.xlu0 %9575
    %9641 = vrot.lane.b32.xlu0 %v8457, 64
    %v9642 = vpop.permute.xlu0 %9641
    %9643 = vrot.lane.b32.xlu0 %v8458, 64
    %v9644 = vpop.permute.xlu0 %9643
    %9645 = vrot.lane.b32.xlu0 %v8459, 64
    %v9646 = vpop.permute.xlu0 %9645
    %9647 = vrot.lane.b32.xlu0 %v8460, 64
    %v9648 = vpop.permute.xlu0 %9647
    %9649 = vrot.lane.b32.xlu0 %v8461, 64
    %v9650 = vpop.permute.xlu0 %9649
    %9651 = vrot.lane.b32.xlu0 %v8462, 64
    %v9652 = vpop.permute.xlu0 %9651
    %9653 = vrot.lane.b32.xlu0 %v8463, 64
    %v9654 = vpop.permute.xlu0 %9653
    %9655 = vrot.lane.b32.xlu0 %v8464, 64
    %v9656 = vpop.permute.xlu0 %9655
    %9657 = vrot.lane.b32.xlu0 %v8465, 64
    %v9658 = vpop.permute.xlu0 %9657
    %9659 = vrot.lane.b32.xlu0 %v8466, 64
    %v9660 = vpop.permute.xlu0 %9659
    %9661 = vrot.lane.b32.xlu0 %v8467, 64
    %v9662 = vpop.permute.xlu0 %9661
    %9663 = vrot.lane.b32.xlu0 %v8468, 64
    %v9664 = vpop.permute.xlu0 %9663
    %9665 = vrot.lane.b32.xlu0 %v8469, 64
    %v9666 = vpop.permute.xlu0 %9665
    %9667 = vrot.lane.b32.xlu0 %v8470, 64
    %v9668 = vpop.permute.xlu0 %9667
    %9669 = vrot.lane.b32.xlu0 %v8471, 64
    %v9670 = vpop.permute.xlu0 %9669
    %9671 = vrot.lane.b32.xlu0 %v8472, 64
    %v9672 = vpop.permute.xlu0 %9671
    %9673 = vrot.lane.b32.xlu0 %v8473, 64
    %v9674 = vpop.permute.xlu0 %9673
    %9675 = vrot.lane.b32.xlu0 %v8474, 64
    %v9676 = vpop.permute.xlu0 %9675
    %9677 = vrot.lane.b32.xlu0 %v8475, 64
    %v9678 = vpop.permute.xlu0 %9677
    %9679 = vrot.lane.b32.xlu0 %v8476, 64
    %v9680 = vpop.permute.xlu0 %9679
    %9681 = vrot.lane.b32.xlu0 %v8477, 64
    %v9682 = vpop.permute.xlu0 %9681
    %9683 = vrot.lane.b32.xlu0 %v8478, 64
    %v9684 = vpop.permute.xlu0 %9683
    %9685 = vrot.lane.b32.xlu0 %v8479, 64
    %v9686 = vpop.permute.xlu0 %9685
    %9687 = vrot.lane.b32.xlu0 %v8480, 64
    %v9688 = vpop.permute.xlu0 %9687
    %9689 = vrot.lane.b32.xlu0 %v8481, 64
    %v9690 = vpop.permute.xlu0 %9689
    %9691 = vrot.lane.b32.xlu0 %v8482, 64
    %v9692 = vpop.permute.xlu0 %9691
    %9693 = vrot.lane.b32.xlu0 %v8483, 64
    %v9694 = vpop.permute.xlu0 %9693
    %9695 = vrot.lane.b32.xlu0 %v8484, 64
    %v9696 = vpop.permute.xlu0 %9695
    %9697 = vrot.lane.b32.xlu0 %v8485, 64
    %v9698 = vpop.permute.xlu0 %9697
    %9699 = vrot.lane.b32.xlu0 %v8486, 64
    %v9700 = vpop.permute.xlu0 %9699
    %9701 = vrot.lane.b32.xlu0 %v8487, 64
    %v9702 = vpop.permute.xlu0 %9701
    %9703 = vrot.lane.b32.xlu0 %v8488, 64
    %v9704 = vpop.permute.xlu0 %9703
    %9769 = vrot.lane.b32.xlu0 %v8649, 80
    %v9770 = vpop.permute.xlu0 %9769
    %9771 = vrot.lane.b32.xlu0 %v8650, 80
    %v9772 = vpop.permute.xlu0 %9771
    %9773 = vrot.lane.b32.xlu0 %v8651, 80
    %v9774 = vpop.permute.xlu0 %9773
    %9775 = vrot.lane.b32.xlu0 %v8652, 80
    %v9776 = vpop.permute.xlu0 %9775
    %9777 = vrot.lane.b32.xlu0 %v8653, 80
    %v9778 = vpop.permute.xlu0 %9777
    %9779 = vrot.lane.b32.xlu0 %v8654, 80
    %v9780 = vpop.permute.xlu0 %9779
    %9781 = vrot.lane.b32.xlu0 %v8655, 80
    %v9782 = vpop.permute.xlu0 %9781
    %9783 = vrot.lane.b32.xlu0 %v8656, 80
    %v9784 = vpop.permute.xlu0 %9783
    %9785 = vrot.lane.b32.xlu0 %v8657, 80
    %v9786 = vpop.permute.xlu0 %9785
    %9787 = vrot.lane.b32.xlu0 %v8658, 80
    %v9788 = vpop.permute.xlu0 %9787
    %9789 = vrot.lane.b32.xlu0 %v8659, 80
    %v9790 = vpop.permute.xlu0 %9789
    %9791 = vrot.lane.b32.xlu0 %v8660, 80
    %v9792 = vpop.permute.xlu0 %9791
    %9793 = vrot.lane.b32.xlu0 %v8661, 80
    %v9794 = vpop.permute.xlu0 %9793
    %9795 = vrot.lane.b32.xlu0 %v8662, 80
    %v9796 = vpop.permute.xlu0 %9795
    %9797 = vrot.lane.b32.xlu0 %v8663, 80
    %v9798 = vpop.permute.xlu0 %9797
    %9799 = vrot.lane.b32.xlu0 %v8664, 80
    %v9800 = vpop.permute.xlu0 %9799
    %9801 = vrot.lane.b32.xlu0 %v8665, 80
    %v9802 = vpop.permute.xlu0 %9801
    %9803 = vrot.lane.b32.xlu0 %v8666, 80
    %v9804 = vpop.permute.xlu0 %9803
    %9805 = vrot.lane.b32.xlu0 %v8667, 80
    %v9806 = vpop.permute.xlu0 %9805
    %9807 = vrot.lane.b32.xlu0 %v8668, 80
    %v9808 = vpop.permute.xlu0 %9807
    %9809 = vrot.lane.b32.xlu0 %v8669, 80
    %v9810 = vpop.permute.xlu0 %9809
    %9811 = vrot.lane.b32.xlu0 %v8670, 80
    %v9812 = vpop.permute.xlu0 %9811
    %9813 = vrot.lane.b32.xlu0 %v8671, 80
    %v9814 = vpop.permute.xlu0 %9813
    %9815 = vrot.lane.b32.xlu0 %v8672, 80
    %v9816 = vpop.permute.xlu0 %9815
    %9817 = vrot.lane.b32.xlu0 %v8673, 80
    %v9818 = vpop.permute.xlu0 %9817
    %9819 = vrot.lane.b32.xlu0 %v8674, 80
    %v9820 = vpop.permute.xlu0 %9819
    %9821 = vrot.lane.b32.xlu0 %v8675, 80
    %v9822 = vpop.permute.xlu0 %9821
    %9823 = vrot.lane.b32.xlu0 %v8676, 80
    %v9824 = vpop.permute.xlu0 %9823
    %9825 = vrot.lane.b32.xlu0 %v8677, 80
    %v9826 = vpop.permute.xlu0 %9825
    %9827 = vrot.lane.b32.xlu0 %v8678, 80
    %v9828 = vpop.permute.xlu0 %9827
    %9829 = vrot.lane.b32.xlu0 %v8679, 80
    %v9830 = vpop.permute.xlu0 %9829
    %9831 = vrot.lane.b32.xlu0 %v8680, 80
    %v9832 = vpop.permute.xlu0 %9831
    %9897 = vrot.lane.b32.xlu0 %v8841, 96
    %v9898 = vpop.permute.xlu0 %9897
    %9899 = vrot.lane.b32.xlu0 %v8842, 96
    %v9900 = vpop.permute.xlu0 %9899
    %9901 = vrot.lane.b32.xlu0 %v8843, 96
    %v9902 = vpop.permute.xlu0 %9901
    %9903 = vrot.lane.b32.xlu0 %v8844, 96
    %v9904 = vpop.permute.xlu0 %9903
    %9905 = vrot.lane.b32.xlu0 %v8845, 96
    %v9906 = vpop.permute.xlu0 %9905
    %9907 = vrot.lane.b32.xlu0 %v8846, 96
    %v9908 = vpop.permute.xlu0 %9907
    %9909 = vrot.lane.b32.xlu0 %v8847, 96
    %v9910 = vpop.permute.xlu0 %9909
    %9911 = vrot.lane.b32.xlu0 %v8848, 96
    %v9912 = vpop.permute.xlu0 %9911
    %9913 = vrot.lane.b32.xlu0 %v8849, 96
    %v9914 = vpop.permute.xlu0 %9913
    %9915 = vrot.lane.b32.xlu0 %v8850, 96
    %v9916 = vpop.permute.xlu0 %9915
    %9917 = vrot.lane.b32.xlu0 %v8851, 96
    %v9918 = vpop.permute.xlu0 %9917
    %9919 = vrot.lane.b32.xlu0 %v8852, 96
    %v9920 = vpop.permute.xlu0 %9919
    %9921 = vrot.lane.b32.xlu0 %v8853, 96
    %v9922 = vpop.permute.xlu0 %9921
    %9923 = vrot.lane.b32.xlu0 %v8854, 96
    %v9924 = vpop.permute.xlu0 %9923
    %9925 = vrot.lane.b32.xlu0 %v8855, 96
    %v9926 = vpop.permute.xlu0 %9925
    %9927 = vrot.lane.b32.xlu0 %v8856, 96
    %v9928 = vpop.permute.xlu0 %9927
    %9929 = vrot.lane.b32.xlu0 %v8857, 96
    %v9930 = vpop.permute.xlu0 %9929
    %9931 = vrot.lane.b32.xlu0 %v8858, 96
    %v9932 = vpop.permute.xlu0 %9931
    %9933 = vrot.lane.b32.xlu0 %v8859, 96
    %v9934 = vpop.permute.xlu0 %9933
    %9935 = vrot.lane.b32.xlu0 %v8860, 96
    %v9936 = vpop.permute.xlu0 %9935
    %9937 = vrot.lane.b32.xlu0 %v8861, 96
    %v9938 = vpop.permute.xlu0 %9937
    %9939 = vrot.lane.b32.xlu0 %v8862, 96
    %v9940 = vpop.permute.xlu0 %9939
    %9941 = vrot.lane.b32.xlu0 %v8863, 96
    %v9942 = vpop.permute.xlu0 %9941
    %9943 = vrot.lane.b32.xlu0 %v8864, 96
    %v9944 = vpop.permute.xlu0 %9943
    %9945 = vrot.lane.b32.xlu0 %v8865, 96
    %v9946 = vpop.permute.xlu0 %9945
    %9947 = vrot.lane.b32.xlu0 %v8866, 96
    %v9948 = vpop.permute.xlu0 %9947
    %9949 = vrot.lane.b32.xlu0 %v8867, 96
    %v9950 = vpop.permute.xlu0 %9949
    %9951 = vrot.lane.b32.xlu0 %v8868, 96
    %v9952 = vpop.permute.xlu0 %9951
    %9953 = vrot.lane.b32.xlu0 %v8869, 96
    %v9954 = vpop.permute.xlu0 %9953
    %9955 = vrot.lane.b32.xlu0 %v8870, 96
    %v9956 = vpop.permute.xlu0 %9955
    %9957 = vrot.lane.b32.xlu0 %v8871, 96
    %v9958 = vpop.permute.xlu0 %9957
    %9959 = vrot.lane.b32.xlu0 %v8872, 96
    %v9960 = vpop.permute.xlu0 %9959
    %10025 = vrot.lane.b32.xlu0 %v9033, 112
    %v10026 = vpop.permute.xlu0 %10025
    %10027 = vrot.lane.b32.xlu0 %v9034, 112
    %v10028 = vpop.permute.xlu0 %10027
    %10029 = vrot.lane.b32.xlu0 %v9035, 112
    %v10030 = vpop.permute.xlu0 %10029
    %10031 = vrot.lane.b32.xlu0 %v9036, 112
    %v10032 = vpop.permute.xlu0 %10031
    %10033 = vrot.lane.b32.xlu0 %v9037, 112
    %v10034 = vpop.permute.xlu0 %10033
    %10035 = vrot.lane.b32.xlu0 %v9038, 112
    %v10036 = vpop.permute.xlu0 %10035
    %10037 = vrot.lane.b32.xlu0 %v9039, 112
    %v10038 = vpop.permute.xlu0 %10037
    %10039 = vrot.lane.b32.xlu0 %v9040, 112
    %v10040 = vpop.permute.xlu0 %10039
    %10041 = vrot.lane.b32.xlu0 %v9041, 112
    %v10042 = vpop.permute.xlu0 %10041
    %10043 = vrot.lane.b32.xlu0 %v9042, 112
    %v10044 = vpop.permute.xlu0 %10043
    %10045 = vrot.lane.b32.xlu0 %v9043, 112
    %v10046 = vpop.permute.xlu0 %10045
    %10047 = vrot.lane.b32.xlu0 %v9044, 112
    %v10048 = vpop.permute.xlu0 %10047
    %10049 = vrot.lane.b32.xlu0 %v9045, 112
    %v10050 = vpop.permute.xlu0 %10049
    %10051 = vrot.lane.b32.xlu0 %v9046, 112
    %v10052 = vpop.permute.xlu0 %10051
    %10053 = vrot.lane.b32.xlu0 %v9047, 112
    %v10054 = vpop.permute.xlu0 %10053
    %10055 = vrot.lane.b32.xlu0 %v9048, 112
    %v10056 = vpop.permute.xlu0 %10055
    %10057 = vrot.lane.b32.xlu0 %v9049, 112
    %v10058 = vpop.permute.xlu0 %10057
    %10059 = vrot.lane.b32.xlu0 %v9050, 112
    %v10060 = vpop.permute.xlu0 %10059
    %10061 = vrot.lane.b32.xlu0 %v9051, 112
    %v10062 = vpop.permute.xlu0 %10061
    %10063 = vrot.lane.b32.xlu0 %v9052, 112
    %v10064 = vpop.permute.xlu0 %10063
    %10065 = vrot.lane.b32.xlu0 %v9053, 112
    %v10066 = vpop.permute.xlu0 %10065
    %10067 = vrot.lane.b32.xlu0 %v9054, 112
    %v10068 = vpop.permute.xlu0 %10067
    %10069 = vrot.lane.b32.xlu0 %v9055, 112
    %v10070 = vpop.permute.xlu0 %10069
    %10071 = vrot.lane.b32.xlu0 %v9056, 112
    %v10072 = vpop.permute.xlu0 %10071
    %10073 = vrot.lane.b32.xlu0 %v9057, 112
    %v10074 = vpop.permute.xlu0 %10073
    %10075 = vrot.lane.b32.xlu0 %v9058, 112
    %v10076 = vpop.permute.xlu0 %10075
    %10077 = vrot.lane.b32.xlu0 %v9059, 112
    %v10078 = vpop.permute.xlu0 %10077
    %10079 = vrot.lane.b32.xlu0 %v9060, 112
    %v10080 = vpop.permute.xlu0 %10079
    %10081 = vrot.lane.b32.xlu0 %v9061, 112
    %v10082 = vpop.permute.xlu0 %10081
    %10083 = vrot.lane.b32.xlu0 %v9062, 112
    %v10084 = vpop.permute.xlu0 %10083
    %10085 = vrot.lane.b32.xlu0 %v9063, 112
    %v10086 = vpop.permute.xlu0 %10085
    %10087 = vrot.lane.b32.xlu0 %v9064, 112
    %v10088 = vpop.permute.xlu0 %10087
    %v10121 = vsel %vm4695, %v7305, %v9258
    %v10122 = vsel %vm4695, %v7306, %v9260
    %v10123 = vsel %vm4695, %v7307, %v9262
    %v10124 = vsel %vm4695, %v7308, %v9264
    %v10125 = vsel %vm4695, %v7309, %v9266
    %v10126 = vsel %vm4695, %v7310, %v9268
    %v10127 = vsel %vm4695, %v7311, %v9270
    %v10128 = vsel %vm4695, %v7312, %v9272
    %v10129 = vsel %vm4695, %v7313, %v9274
    %v10130 = vsel %vm4695, %v7314, %v9276
    %v10131 = vsel %vm4695, %v7315, %v9278
    %v10132 = vsel %vm4695, %v7316, %v9280
    %v10133 = vsel %vm4695, %v7317, %v9282
    %v10134 = vsel %vm4695, %v7318, %v9284
    %v10135 = vsel %vm4695, %v7319, %v9286
    %v10136 = vsel %vm4695, %v7320, %v9288
    %v10137 = vsel %vm4695, %v7321, %v9290
    %v10138 = vsel %vm4695, %v7322, %v9292
    %v10139 = vsel %vm4695, %v7323, %v9294
    %v10140 = vsel %vm4695, %v7324, %v9296
    %v10141 = vsel %vm4695, %v7325, %v9298
    %v10142 = vsel %vm4695, %v7326, %v9300
    %v10143 = vsel %vm4695, %v7327, %v9302
    %v10144 = vsel %vm4695, %v7328, %v9304
    %v10145 = vsel %vm4695, %v7329, %v9306
    %v10146 = vsel %vm4695, %v7330, %v9308
    %v10147 = vsel %vm4695, %v7331, %v9310
    %v10148 = vsel %vm4695, %v7332, %v9312
    %v10149 = vsel %vm4695, %v7333, %v9314
    %v10150 = vsel %vm4695, %v7334, %v9316
    %v10151 = vsel %vm4695, %v7335, %v9318
    %v10152 = vsel %vm4695, %v7336, %v9320
    %vm10153 = vcmask 261120
    %v10154 = vsel %vm10153, %v10121, %v9386
    %v10155 = vsel %vm10153, %v10122, %v9388
    %v10156 = vsel %vm10153, %v10123, %v9390
    %v10157 = vsel %vm10153, %v10124, %v9392
    %v10158 = vsel %vm10153, %v10125, %v9394
    %v10159 = vsel %vm10153, %v10126, %v9396
    %v10160 = vsel %vm10153, %v10127, %v9398
    %v10161 = vsel %vm10153, %v10128, %v9400
    %v10162 = vsel %vm10153, %v10129, %v9402
    %v10163 = vsel %vm10153, %v10130, %v9404
    %v10164 = vsel %vm10153, %v10131, %v9406
    %v10165 = vsel %vm10153, %v10132, %v9408
    %v10166 = vsel %vm10153, %v10133, %v9410
    %v10167 = vsel %vm10153, %v10134, %v9412
    %v10168 = vsel %vm10153, %v10135, %v9414
    %v10169 = vsel %vm10153, %v10136, %v9416
    %v10170 = vsel %vm10153, %v10137, %v9418
    %v10171 = vsel %vm10153, %v10138, %v9420
    %v10172 = vsel %vm10153, %v10139, %v9422
    %v10173 = vsel %vm10153, %v10140, %v9424
    %v10174 = vsel %vm10153, %v10141, %v9426
    %v10175 = vsel %vm10153, %v10142, %v9428
    %v10176 = vsel %vm10153, %v10143, %v9430
    %v10177 = vsel %vm10153, %v10144, %v9432
    %v10178 = vsel %vm10153, %v10145, %v9434
    %v10179 = vsel %vm10153, %v10146, %v9436
    %v10180 = vsel %vm10153, %v10147, %v9438
    %v10181 = vsel %vm10153, %v10148, %v9440
    %v10182 = vsel %vm10153, %v10149, %v9442
    %v10183 = vsel %vm10153, %v10150, %v9444
    %v10184 = vsel %vm10153, %v10151, %v9446
    %v10185 = vsel %vm10153, %v10152, %v9448
    %vm10186 = vcmask 392192
    %v10187 = vsel %vm10186, %v10154, %v9514
    %v10188 = vsel %vm10186, %v10155, %v9516
    %v10189 = vsel %vm10186, %v10156, %v9518
    %v10190 = vsel %vm10186, %v10157, %v9520
    %v10191 = vsel %vm10186, %v10158, %v9522
    %v10192 = vsel %vm10186, %v10159, %v9524
    %v10193 = vsel %vm10186, %v10160, %v9526
    %v10194 = vsel %vm10186, %v10161, %v9528
    %v10195 = vsel %vm10186, %v10162, %v9530
    %v10196 = vsel %vm10186, %v10163, %v9532
    %v10197 = vsel %vm10186, %v10164, %v9534
    %v10198 = vsel %vm10186, %v10165, %v9536
    %v10199 = vsel %vm10186, %v10166, %v9538
    %v10200 = vsel %vm10186, %v10167, %v9540
    %v10201 = vsel %vm10186, %v10168, %v9542
    %v10202 = vsel %vm10186, %v10169, %v9544
    %v10203 = vsel %vm10186, %v10170, %v9546
    %v10204 = vsel %vm10186, %v10171, %v9548
    %v10205 = vsel %vm10186, %v10172, %v9550
    %v10206 = vsel %vm10186, %v10173, %v9552
    %v10207 = vsel %vm10186, %v10174, %v9554
    %v10208 = vsel %vm10186, %v10175, %v9556
    %v10209 = vsel %vm10186, %v10176, %v9558
    %v10210 = vsel %vm10186, %v10177, %v9560
    %v10211 = vsel %vm10186, %v10178, %v9562
    %v10212 = vsel %vm10186, %v10179, %v9564
    %v10213 = vsel %vm10186, %v10180, %v9566
    %v10214 = vsel %vm10186, %v10181, %v9568
    %v10215 = vsel %vm10186, %v10182, %v9570
    %v10216 = vsel %vm10186, %v10183, %v9572
    %v10217 = vsel %vm10186, %v10184, %v9574
    %v10218 = vsel %vm10186, %v10185, %v9576
    %vm10219 = vcmask 523264
    %v10220 = vsel %vm10219, %v10187, %v9642
    %v10221 = vsel %vm10219, %v10188, %v9644
    %v10222 = vsel %vm10219, %v10189, %v9646
    %v10223 = vsel %vm10219, %v10190, %v9648
    %v10224 = vsel %vm10219, %v10191, %v9650
    %v10225 = vsel %vm10219, %v10192, %v9652
    %v10226 = vsel %vm10219, %v10193, %v9654
    %v10227 = vsel %vm10219, %v10194, %v9656
    %v10228 = vsel %vm10219, %v10195, %v9658
    %v10229 = vsel %vm10219, %v10196, %v9660
    %v10230 = vsel %vm10219, %v10197, %v9662
    %v10231 = vsel %vm10219, %v10198, %v9664
    %v10232 = vsel %vm10219, %v10199, %v9666
    %v10233 = vsel %vm10219, %v10200, %v9668
    %v10234 = vsel %vm10219, %v10201, %v9670
    %v10235 = vsel %vm10219, %v10202, %v9672
    %v10236 = vsel %vm10219, %v10203, %v9674
    %v10237 = vsel %vm10219, %v10204, %v9676
    %v10238 = vsel %vm10219, %v10205, %v9678
    %v10239 = vsel %vm10219, %v10206, %v9680
    %v10240 = vsel %vm10219, %v10207, %v9682
    %v10241 = vsel %vm10219, %v10208, %v9684
    %v10242 = vsel %vm10219, %v10209, %v9686
    %v10243 = vsel %vm10219, %v10210, %v9688
    %v10244 = vsel %vm10219, %v10211, %v9690
    %v10245 = vsel %vm10219, %v10212, %v9692
    %v10246 = vsel %vm10219, %v10213, %v9694
    %v10247 = vsel %vm10219, %v10214, %v9696
    %v10248 = vsel %vm10219, %v10215, %v9698
    %v10249 = vsel %vm10219, %v10216, %v9700
    %v10250 = vsel %vm10219, %v10217, %v9702
    %v10251 = vsel %vm10219, %v10218, %v9704
    %vm10252 = vcmask 654336
    %v10253 = vsel %vm10252, %v10220, %v9770
    %v10254 = vsel %vm10252, %v10221, %v9772
    %v10255 = vsel %vm10252, %v10222, %v9774
    %v10256 = vsel %vm10252, %v10223, %v9776
    %v10257 = vsel %vm10252, %v10224, %v9778
    %v10258 = vsel %vm10252, %v10225, %v9780
    %v10259 = vsel %vm10252, %v10226, %v9782
    %v10260 = vsel %vm10252, %v10227, %v9784
    %v10261 = vsel %vm10252, %v10228, %v9786
    %v10262 = vsel %vm10252, %v10229, %v9788
    %v10263 = vsel %vm10252, %v10230, %v9790
    %v10264 = vsel %vm10252, %v10231, %v9792
    %v10265 = vsel %vm10252, %v10232, %v9794
    %v10266 = vsel %vm10252, %v10233, %v9796
    %v10267 = vsel %vm10252, %v10234, %v9798
    %v10268 = vsel %vm10252, %v10235, %v9800
    %v10269 = vsel %vm10252, %v10236, %v9802
    %v10270 = vsel %vm10252, %v10237, %v9804
    %v10271 = vsel %vm10252, %v10238, %v9806
    %v10272 = vsel %vm10252, %v10239, %v9808
    %v10273 = vsel %vm10252, %v10240, %v9810
    %v10274 = vsel %vm10252, %v10241, %v9812
    %v10275 = vsel %vm10252, %v10242, %v9814
    %v10276 = vsel %vm10252, %v10243, %v9816
    %v10277 = vsel %vm10252, %v10244, %v9818
    %v10278 = vsel %vm10252, %v10245, %v9820
    %v10279 = vsel %vm10252, %v10246, %v9822
    %v10280 = vsel %vm10252, %v10247, %v9824
    %v10281 = vsel %vm10252, %v10248, %v9826
    %v10282 = vsel %vm10252, %v10249, %v9828
    %v10283 = vsel %vm10252, %v10250, %v9830
    %v10284 = vsel %vm10252, %v10251, %v9832
    %vm10285 = vcmask 785408
    %v10286 = vsel %vm10285, %v10253, %v9898
    %v10287 = vsel %vm10285, %v10254, %v9900
    %v10288 = vsel %vm10285, %v10255, %v9902
    %v10289 = vsel %vm10285, %v10256, %v9904
    %v10290 = vsel %vm10285, %v10257, %v9906
    %v10291 = vsel %vm10285, %v10258, %v9908
    %v10292 = vsel %vm10285, %v10259, %v9910
    %v10293 = vsel %vm10285, %v10260, %v9912
    %v10294 = vsel %vm10285, %v10261, %v9914
    %v10295 = vsel %vm10285, %v10262, %v9916
    %v10296 = vsel %vm10285, %v10263, %v9918
    %v10297 = vsel %vm10285, %v10264, %v9920
    %v10298 = vsel %vm10285, %v10265, %v9922
    %v10299 = vsel %vm10285, %v10266, %v9924
    %v10300 = vsel %vm10285, %v10267, %v9926
    %v10301 = vsel %vm10285, %v10268, %v9928
    %v10302 = vsel %vm10285, %v10269, %v9930
    %v10303 = vsel %vm10285, %v10270, %v9932
    %v10304 = vsel %vm10285, %v10271, %v9934
    %v10305 = vsel %vm10285, %v10272, %v9936
    %v10306 = vsel %vm10285, %v10273, %v9938
    %v10307 = vsel %vm10285, %v10274, %v9940
    %v10308 = vsel %vm10285, %v10275, %v9942
    %v10309 = vsel %vm10285, %v10276, %v9944
    %v10310 = vsel %vm10285, %v10277, %v9946
    %v10311 = vsel %vm10285, %v10278, %v9948
    %v10312 = vsel %vm10285, %v10279, %v9950
    %v10313 = vsel %vm10285, %v10280, %v9952
    %v10314 = vsel %vm10285, %v10281, %v9954
    %v10315 = vsel %vm10285, %v10282, %v9956
    %v10316 = vsel %vm10285, %v10283, %v9958
    %v10317 = vsel %vm10285, %v10284, %v9960
    %vm10318 = vcmask 916480
    %v10319 = vsel %vm10318, %v10286, %v10026
    %v10320 = vsel %vm10318, %v10287, %v10028
    %v10321 = vsel %vm10318, %v10288, %v10030
    %v10322 = vsel %vm10318, %v10289, %v10032
    %v10323 = vsel %vm10318, %v10290, %v10034
    %v10324 = vsel %vm10318, %v10291, %v10036
    %v10325 = vsel %vm10318, %v10292, %v10038
    %v10326 = vsel %vm10318, %v10293, %v10040
    %v10327 = vsel %vm10318, %v10294, %v10042
    %v10328 = vsel %vm10318, %v10295, %v10044
    %v10329 = vsel %vm10318, %v10296, %v10046
    %v10330 = vsel %vm10318, %v10297, %v10048
    %v10331 = vsel %vm10318, %v10298, %v10050
    %v10332 = vsel %vm10318, %v10299, %v10052
    %v10333 = vsel %vm10318, %v10300, %v10054
    %v10334 = vsel %vm10318, %v10301, %v10056
    %v10335 = vsel %vm10318, %v10302, %v10058
    %v10336 = vsel %vm10318, %v10303, %v10060
    %v10337 = vsel %vm10318, %v10304, %v10062
    %v10338 = vsel %vm10318, %v10305, %v10064
    %v10339 = vsel %vm10318, %v10306, %v10066
    %v10340 = vsel %vm10318, %v10307, %v10068
    %v10341 = vsel %vm10318, %v10308, %v10070
    %v10342 = vsel %vm10318, %v10309, %v10072
    %v10343 = vsel %vm10318, %v10310, %v10074
    %v10344 = vsel %vm10318, %v10311, %v10076
    %v10345 = vsel %vm10318, %v10312, %v10078
    %v10346 = vsel %vm10318, %v10313, %v10080
    %v10347 = vsel %vm10318, %v10314, %v10082
    %v10348 = vsel %vm10318, %v10315, %v10084
    %v10349 = vsel %vm10318, %v10316, %v10086
    %v10350 = vsel %vm10318, %v10317, %v10088
    %v10351 = vsel %vm4695, %v9193, 0.0
    %v10352 = vsel %vm4695, %v9194, 0.0
    %v10353 = vsel %vm4695, %v9195, 0.0
    %v10354 = vsel %vm4695, %v9196, 0.0
    %v10355 = vsel %vm4695, %v9197, 0.0
    %v10356 = vsel %vm4695, %v9198, 0.0
    %v10357 = vsel %vm4695, %v9199, 0.0
    %v10358 = vsel %vm4695, %v9200, 0.0
    %v10359 = vsel %vm4695, %v9201, 0.0
    %v10360 = vsel %vm4695, %v9202, 0.0
    %v10361 = vsel %vm4695, %v9203, 0.0
    %v10362 = vsel %vm4695, %v9204, 0.0
    %v10363 = vsel %vm4695, %v9205, 0.0
    %v10364 = vsel %vm4695, %v9206, 0.0
    %v10365 = vsel %vm4695, %v9207, 0.0
    %v10366 = vsel %vm4695, %v9208, 0.0
    %v10367 = vsel %vm4695, %v9209, 0.0
    %v10368 = vsel %vm4695, %v9210, 0.0
    %v10369 = vsel %vm4695, %v9211, 0.0
    %v10370 = vsel %vm4695, %v9212, 0.0
    %v10371 = vsel %vm4695, %v9213, 0.0
    %v10372 = vsel %vm4695, %v9214, 0.0
    %v10373 = vsel %vm4695, %v9215, 0.0
    %v10374 = vsel %vm4695, %v9216, 0.0
    %v10375 = vsel %vm4695, %v9217, 0.0
    %v10376 = vsel %vm4695, %v9218, 0.0
    %v10377 = vsel %vm4695, %v9219, 0.0
    %v10378 = vsel %vm4695, %v9220, 0.0
    %v10379 = vsel %vm4695, %v9221, 0.0
    %v10380 = vsel %vm4695, %v9222, 0.0
    %v10381 = vsel %vm4695, %v9223, 0.0
    %v10382 = vsel %vm4695, %v9224, 0.0
    %v10383 = vpack.c.bf16 %v10320, %v10319
    %v10384 = vpack.c.bf16 %v10352, %v10351
    %v10385 = vpack.c.bf16 %v10322, %v10321
    %v10386 = vpack.c.bf16 %v10354, %v10353
    %v10387 = vpack.c.bf16 %v10324, %v10323
    %v10388 = vpack.c.bf16 %v10356, %v10355
    %v10389 = vpack.c.bf16 %v10326, %v10325
    %v10390 = vpack.c.bf16 %v10358, %v10357
    %v10391 = vpack.c.bf16 %v10328, %v10327
    %v10392 = vpack.c.bf16 %v10360, %v10359
    %v10393 = vpack.c.bf16 %v10330, %v10329
    %v10394 = vpack.c.bf16 %v10362, %v10361
    %v10395 = vpack.c.bf16 %v10332, %v10331
    %v10396 = vpack.c.bf16 %v10364, %v10363
    %v10397 = vpack.c.bf16 %v10334, %v10333
    %v10398 = vpack.c.bf16 %v10366, %v10365
    %v10399 = vpack.c.bf16 %v10336, %v10335
    %v10400 = vpack.c.bf16 %v10368, %v10367
    %v10401 = vpack.c.bf16 %v10338, %v10337
    %v10402 = vpack.c.bf16 %v10370, %v10369
    %v10403 = vpack.c.bf16 %v10340, %v10339
    %v10404 = vpack.c.bf16 %v10372, %v10371
    %v10405 = vpack.c.bf16 %v10342, %v10341
    %v10406 = vpack.c.bf16 %v10374, %v10373
    %v10407 = vpack.c.bf16 %v10344, %v10343
    %v10408 = vpack.c.bf16 %v10376, %v10375
    %v10409 = vpack.c.bf16 %v10346, %v10345
    %v10410 = vpack.c.bf16 %v10378, %v10377
    %v10411 = vpack.c.bf16 %v10348, %v10347
    %v10412 = vpack.c.bf16 %v10380, %v10379
    %v10413 = vpack.c.bf16 %v10350, %v10349
    %v10414 = vpack.c.bf16 %v10382, %v10381
    %v10415 = vld [vmem:[#allocation10] sm:$0x3]
    %v10416 = vld [vmem:[#allocation11] sm:$0xff]
    %v10417 = vld [vmem:[#allocation11 + $0x8] sm:$0xff]
    %10418 = vset.pattern.permute.xlu0 0
    %10419 = vperm.xlu0 %10418, %v10416
    %v10420 = vpop.permute.xlu0 %10419
    %10421 = vset.pattern.permute.xlu0 0
    %10422 = vperm.xlu0 %10421, %v10417
    %v10423 = vpop.permute.xlu0 %10422
    %v10424 = vlaneseq
    %v10425 = vshrl.u32 %v10424, 7
    %v10426 = vsub.s32 0, %v10425
    %v10427 = vrot.slane %v10415, %v10426
    %v10428 = vlaneseq
    %v10429 = vshrl.u32 %v10428, 7
    %v10430 = vsub.s32 1, %v10429
    %v10431 = vrot.slane %v10415, %v10430
    %vm10432 = vcmp.eq.s32.totalorder %v10420, %v10427
    %vm10433 = vcmp.eq.s32.totalorder %v10420, %v10431
    %vm10434 = vcmp.eq.s32.totalorder %v10423, %v10427
    %vm10435 = vcmp.eq.s32.totalorder %v10423, %v10431
    %v10436 = vsel %vm10432, 1, 0
    %v10437 = vsel %vm10433, 1, 0
    %v10438 = vsel %vm10434, 1, 0
    %v10439 = vsel %vm10435, 1, 0
    %v10440 = vcvt.s32.f32 %v10436
    %v10441 = vcvt.s32.f32 %v10437
    %v10442 = vcvt.s32.f32 %v10438
    %v10443 = vcvt.s32.f32 %v10439
    %v10444 = vpack.c.bf16 %v10442, %v10440
    %v10445 = vpack.c.bf16 %v10443, %v10441
    %v10446 = vld [vmem:[#allocation16] sm:$0xff]
    %v10447 = vld [vmem:[#allocation16 + $0x8] sm:$0xff]
    %v10448 = vld [vmem:[#allocation16 + $0x10] sm:$0xff]
    %v10449 = vld [vmem:[#allocation16 + $0x18] sm:$0xff]
    %10450 = vmatprep.subr.bf16.mxu0 %v10384
    %10451 = vmatpush1.bf16.msra.mxu0 %v10383
    %10452 = vmatprep.subr.bf16.mxu0 %v10386
    %10453 = vmatpush1.bf16.msra.mxu0 %v10385
    %10454 = vmatprep.subr.bf16.mxu0 %v10388
    %10455 = vmatpush1.bf16.msra.mxu0 %v10387
    %10456 = vmatprep.subr.bf16.mxu0 %v10390
    %10457 = vmatpush1.bf16.msra.mxu0 %v10389
    %10458 = vmatprep.subr.bf16.mxu0 %v10392
    %10459 = vmatpush1.bf16.msra.mxu0 %v10391
    %10460 = vmatprep.subr.bf16.mxu0 %v10394
    %10461 = vmatpush1.bf16.msra.mxu0 %v10393
    %10462 = vmatprep.subr.bf16.mxu0 %v10396
    %10463 = vmatpush1.bf16.msra.mxu0 %v10395
    %10464 = vmatprep.subr.bf16.mxu0 %v10398
    %10465 = vmatpush1.bf16.msra.mxu0 %v10397
    %10466 = vmatprep.subr.bf16.mxu0 %v10400
    %10467 = vmatpush1.bf16.msra.mxu0 %v10399
    %10468 = vmatprep.subr.bf16.mxu0 %v10402
    %10469 = vmatpush1.bf16.msra.mxu0 %v10401
    %10470 = vmatprep.subr.bf16.mxu0 %v10404
    %10471 = vmatpush1.bf16.msra.mxu0 %v10403
    %10472 = vmatprep.subr.bf16.mxu0 %v10406
    %10473 = vmatpush1.bf16.msra.mxu0 %v10405
    %10474 = vmatprep.subr.bf16.mxu0 %v10408
    %10475 = vmatpush1.bf16.msra.mxu0 %v10407
    %10476 = vmatprep.subr.bf16.mxu0 %v10410
    %10477 = vmatpush1.bf16.msra.mxu0 %v10409
    %10478 = vmatprep.subr.bf16.mxu0 %v10412
    %10479 = vmatpush1.bf16.msra.mxu0 %v10411
    %10480 = vmatprep.subr.bf16.mxu0 %v10414
    %10481 = vmatpush1.bf16.msra.mxu0 %v10413
    %10482 = vmatprep.mubr.bf16.mxu0 %v10445
    %10483 = vmatmul.mubr.bf16.gmra.mrb[0].mxu0 %v10444
    %v10484 = vpop.f32.mrb[0].mxu0
    %v10485 = vadd.f32 0.0, %v10484
    %v10486 = vpop.f32.mrb[0].mxu0
    %v10487 = vadd.f32 0.0, %v10486
    %v10488 = vpop.f32.mrb[0].mxu0
    %v10489 = vadd.f32 0.0, %v10488
    %v10490 = vpop.f32.mrb[0].mxu0
    %v10491 = vadd.f32 0.0, %v10490
    %10492 = vdwg.mxu0
    %v10493 = vadd.f32 %v10446, %v10485
    %v10494 = vadd.f32 %v10447, %v10487
    %v10495 = vadd.f32 %v10448, %v10489
    %v10496 = vadd.f32 %v10449, %v10491
    %10497 = vst [vmem:[#allocation16] sm:$0xff] %v10493
    %10498 = vst [vmem:[#allocation16 + $0x8] sm:$0xff] %v10494
    %10499 = vst [vmem:[#allocation16 + $0x10] sm:$0xff] %v10495
    %10500 = vst [vmem:[#allocation16 + $0x18] sm:$0xff] %v10496
    // Predicated region
    $region54: #{tpu_custom_call.1} parent=1 // pred_check
      _
    $region55: #{tpu_custom_call.1} parent=1 // pred_check_branch
      %10502 = sbr.rel (0) target = $region57
    $region56: #{tpu_custom_call.1} parent=1 // pred_region
      %s10503 = sld [smem:[#allocation3]]
      %s10504 = smul.u32 2, %s10503
      %s10506 = ssub.s32 512, 512
      %10507 = vsyncadd [#allocation7], %s10506
      %s10508 = smul.addr %s10504, 2
      %s10509 = smul.addr %s10508, 128
      %s10510 = scalar_lea.hbm %s8, %s10509
      %s10511 = sshll.u32 [#allocation16], 4
      %s10512 = int_to_ptr.vmem [resolvable:$true] %s10511
      %10517 = dma.vmem_to_hbm [thread:$0]  %s10512, 512, %s10510, [#allocation7], 256, 256, 16
    $region57: #{tpu_custom_call.1} parent=1 // pred_fallthru
      _
    // Predicated region
    $region58: #{tpu_custom_call.1} parent=1 // pred_check
      _
    $region59: #{tpu_custom_call.1} parent=1 // pred_check_branch
      %10519 = sbr.rel (0) target = $region61
    $region60: #{tpu_custom_call.1} parent=1 // pred_region
      %10520 = dma.done [#allocation7], 512
    $region61: #{tpu_custom_call.1} parent=1 // pred_fallthru
      _
    %10521 = vsyncpa [#allocation6], 1
    %10522 = vsyncpa [#allocation9], 1
    %10523 = vsyncpa [#allocation12], 1
    %10524 = vsyncpa [#allocation15], 1
    %10525 = vsyncpa [#allocation7], 1

</llo_original>
